<compile_context>
chip_gen: v7x
topology: tpu7x:2x2x1
jax: 0.10.0
libtpu: 0.0.40
codegen_flags: <defaults>
</compile_context>

<pallas_src>
import jax
import jax.numpy as jnp
from jax.experimental import pallas as pl
from jax.experimental.pallas import tpu as pltpu

# Config consistent with the module (args.img_size=16, latent_dim=32, channels=3)
IMG_SIZE = 16
LATENT_DIM = 32
CHANNELS = 3
INIT = IMG_SIZE // 4          # 4   (init_size)
UP1 = INIT * 2                # 8   (resolution at conv1)
UP2 = UP1 * 2                 # 16  (resolution at conv2 / conv3)
C_PAD = 128                   # conv3 output channels padded 3 -> 128 (lane-dense)


# --------------------------------------------------------------------------
# In-kernel helpers
# --------------------------------------------------------------------------
def _bn_rows(x, n_rows, eps, gamma=None, beta=None):
    """Training-mode BatchNorm over rows of a (rows, C) matrix.
    Two-pass statistics (mean, then centered sum of squares), biased variance —
    matches PyTorch BatchNorm2d in training mode and avoids E[x^2]-E[x]^2
    cancellation in f32."""
    inv_n = 1.0 / n_rows
    mean = jnp.sum(x, axis=0, keepdims=True) * inv_n
    xc = x - mean
    var = jnp.sum(xc * xc, axis=0, keepdims=True) * inv_n
    scale = jax.lax.rsqrt(var + eps)
    if gamma is not None:
        scale = scale * gamma
    out = xc * scale
    if beta is not None:
        out = out + beta
    return out


def _up2x(x, b, hw, c):
    """Nearest-neighbour 2x upsample of a row-major (b*hw*hw, c) feature map.
    Returns (b, 2*hw, 2*hw, c).  Implemented as broadcast + order-preserving
    reshapes (no narrow stores, no slice/concat chains)."""
    y = x.reshape(b, hw, hw, c)
    y = jnp.broadcast_to(y[:, :, None, :, None, :], (b, hw, 2, hw, 2, c))
    return y.reshape(b, 2 * hw, 2 * hw, c)


def _conv3x3(pad_ref, w_ref, n_rows, hw, cin, cout):
    """3x3 / stride-1 conv.  pad_ref: (B, hw+2, hw+2, cin) f32 VMEM scratch with
    a zero halo.  w_ref: (3, 3*cin, cout) bf16 with rows ordered (dx, cin).
    The three dx taps of each dy are fused along the lane axis into a single
    K = 3*cin matmul (3 matmuls / conv instead of 9; one bf16 cast per dy)."""
    acc = jnp.zeros((n_rows, cout), jnp.float32)
    for dy in range(3):
        taps = [pad_ref[:, dy:dy + hw, dx:dx + hw, :].reshape(n_rows, cin)
                for dx in range(3)]
        k = jnp.concatenate(taps, axis=-1).astype(jnp.bfloat16)   # (n_rows, 3*cin)
        acc = acc + jnp.dot(k, w_ref[dy], preferred_element_type=jnp.float32)
    return acc


# --------------------------------------------------------------------------
# The fused generator kernel
# --------------------------------------------------------------------------
def generator_kernel(z2_ref, wl1_ref, bl1_ref,
                     g0_ref, b0_ref,
                     w1_ref, g1_ref, b1_ref,
                     w2_ref, g2_ref, b2_ref,
                     w3_ref, b3_ref,
                     o_ref,
                     p1_ref, p2_ref, p3_ref):
    B = p1_ref.shape[0]
    r0 = B * INIT * INIT          # rows of the 4x4 maps
    r1 = B * UP1 * UP1            # rows of the 8x8 maps
    r2 = B * UP2 * UP2            # rows of the 16x16 maps

    # ---- l1 Linear at 4x4 resolution; rows come out in (b, h, w) order ----
    x0 = jnp.dot(z2_ref[...], wl1_ref[...], preferred_element_type=jnp.float32)
    x0 = (x0.reshape(B, INIT * INIT, 128) + bl1_ref[...]).reshape(r0, 128)

    # ---- conv_blocks0: BatchNorm2d(128), training-mode batch stats ----
    x0 = _bn_rows(x0, r0, 1e-5, g0_ref[...], b0_ref[...])

    # ---- nearest-2x upsample (4->8) into the conv1 zero-halo scratch ----
    # TODO(synk): ring-only halo zeroing for large B (full zero kept: it is the
    # simplest unmasked-store path and is negligible at this batch size).
    p1_ref[...] = jnp.zeros(p1_ref.shape, p1_ref.dtype)
    p1_ref[:, 1:UP1 + 1, 1:UP1 + 1, :] = _up2x(x0, B, INIT, 128)

    # ---- conv_blocks1: Conv(128->128, 3x3, pad 1) + BN(eps=0.8) + LeakyReLU --
    # (conv bias omitted: exactly cancelled by the BN mean subtraction)
    a1 = _conv3x3(p1_ref, w1_ref, r1, UP1, 128, 128)
    a1 = _bn_rows(a1, r1, 0.8, g1_ref[...], b1_ref[...])
    a1 = jnp.where(a1 >= 0.0, a1, 0.2 * a1)

    # ---- nearest-2x upsample (8->16) into the conv2 zero-halo scratch ----
    p2_ref[...] = jnp.zeros(p2_ref.shape, p2_ref.dtype)
    p2_ref[:, 1:UP2 + 1, 1:UP2 + 1, :] = _up2x(a1, B, UP1, 128)

    # ---- conv_blocks2[0:3]: Conv(128->64) + BN(eps=0.8) + LeakyReLU(0.2) ----
    a2 = _conv3x3(p2_ref, w2_ref, r2, UP2, 128, 64)
    a2 = _bn_rows(a2, r2, 0.8, g2_ref[...], b2_ref[...])
    a2 = jnp.where(a2 >= 0.0, a2, 0.2 * a2)

    # ---- conv_blocks2[3:]: Conv(64->3, padded to 128) + Tanh + BN(affine=False)
    p3_ref[...] = jnp.zeros(p3_ref.shape, p3_ref.dtype)
    p3_ref[:, 1:UP2 + 1, 1:UP2 + 1, :] = a2.reshape(B, UP2, UP2, 64)
    a3 = _conv3x3(p3_ref, w3_ref, r2, UP2, 64, C_PAD)
    a3 = jnp.tanh(a3 + b3_ref[...])
    # Padded channels 3..127 rely on zero conv weights AND zero bias: they stay
    # exactly 0 through tanh and the affine-free BN (mean 0, centered value 0).
    o_ref[...] = _bn_rows(a3, r2, 1e-5)        # BatchNorm2d(3, affine=False)


# --------------------------------------------------------------------------
# Wrapper: small parameter reorganisation (tiny XLA) + the single pallas_call
# --------------------------------------------------------------------------
def generator_forward(params, z):
    B = z.shape[0]
    f32, bf16 = jnp.float32, jnp.bfloat16
    K, P = LATENT_DIM, INIT * INIT

    # l1 weight: PyTorch out-feature f = c*16 + h*4 + w  ->  rows (p=h*4+w, k), cols c
    wl1 = params["l1_w"].reshape(K, 128, INIT, INIT)
    wl1 = wl1.transpose(2, 3, 0, 1).reshape(P * K, 128)
    # l1 bias as a (p, c) table; broadcast over batch happens in-kernel.
    bl1 = params["l1_b"].reshape(128, INIT, INIT).transpose(1, 2, 0).reshape(P, 128)

    # Block-diagonal latent expansion at 4x4 resolution only:
    #   z2[(b,p), (q,k)] = z[b,k] * [p == q]
    eye = jnp.eye(P, dtype=f32)
    z2 = (z.astype(f32)[:, None, None, :] * eye[None, :, :, None]).reshape(B * P, P * K)

    # Conv weights pre-reshaped for the dy-fused (K = 3*cin) matmuls.
    w1 = params["conv1_w"].reshape(3, 3 * 128, 128)
    w2 = params["conv2_w"].reshape(3, 3 * 128, 64)
    # conv3: pad the 3 output channels to 128 (lane-dense matmul and stores);
    # padded channels must keep zero weight AND zero bias (see kernel note).
    w3 = jnp.pad(params["conv3_w"], ((0, 0), (0, 0), (0, 0), (0, C_PAD - CHANNELS)))
    w3 = w3.reshape(3, 3 * 64, C_PAD)
    b3 = jnp.pad(params["conv3_b"], (0, C_PAD - CHANNELS)).reshape(1, C_PAD)

    # NOTE: conv1_b / conv2_b are intentionally NOT passed -- the training-mode
    # BatchNorm directly after each conv subtracts the per-channel batch mean,
    # which cancels a constant per-channel bias exactly.
    args = (
        z2.astype(bf16),
        wl1.astype(bf16),
        bl1.astype(f32),
        params["bn0_g"].reshape(1, 128).astype(f32),
        params["bn0_b"].reshape(1, 128).astype(f32),
        w1.astype(bf16),
        params["bn1_g"].reshape(1, 128).astype(f32),
        params["bn1_b"].reshape(1, 128).astype(f32),
        w2.astype(bf16),
        params["bn2_g"].reshape(1, 64).astype(f32),
        params["bn2_b"].reshape(1, 64).astype(f32),
        w3.astype(bf16),
        b3.astype(f32),
    )

    vmem = pl.BlockSpec(memory_space=pltpu.MemorySpace.VMEM)
    out2d = pl.pallas_call(
        generator_kernel,
        out_shape=jax.ShapeDtypeStruct((B * UP2 * UP2, C_PAD), jnp.float32),
        in_specs=[vmem] * len(args),
        out_specs=vmem,
        scratch_shapes=[
            pltpu.VMEM((B, UP1 + 2, UP1 + 2, 128), jnp.float32),  # conv1 halo input
            pltpu.VMEM((B, UP2 + 2, UP2 + 2, 128), jnp.float32),  # conv2 halo input
            pltpu.VMEM((B, UP2 + 2, UP2 + 2, 64), jnp.float32),   # conv3 halo input
        ],
        compiler_params=pltpu.CompilerParams(
            vmem_limit_bytes=32 * 1024 * 1024),
    )(*args)

    img = out2d.reshape(B, UP2, UP2, C_PAD)[..., :CHANNELS]
    return jnp.transpose(img, (0, 3, 1, 2))      # back to PyTorch NCHW


# --------------------------------------------------------------------------
# Deterministic parameter init (shapes match the PyTorch module; HWIO conv wts)
# --------------------------------------------------------------------------
def init_params(key):
    keys = jax.random.split(key, 8)
    return {
        "l1_w": jax.random.normal(keys[0], (LATENT_DIM, 128 * INIT ** 2),
                                  jnp.float32) * 0.05,
        "l1_b": jax.random.normal(keys[1], (128 * INIT ** 2,), jnp.float32) * 0.05,
        "bn0_g": jnp.ones((128,), jnp.float32),
        "bn0_b": jnp.zeros((128,), jnp.float32),
        "conv1_w": jax.random.normal(keys[2], (3, 3, 128, 128), jnp.float32) * 0.05,
        # conv1_b / conv2_b kept for module fidelity; mathematically cancelled by
        # the training-mode BatchNorm that follows, so the kernel never reads them.
        "conv1_b": jax.random.normal(keys[3], (128,), jnp.float32) * 0.05,
        "bn1_g": jnp.ones((128,), jnp.float32),
        "bn1_b": jnp.zeros((128,), jnp.float32),
        "conv2_w": jax.random.normal(keys[4], (3, 3, 128, 64), jnp.float32) * 0.05,
        "conv2_b": jax.random.normal(keys[5], (64,), jnp.float32) * 0.05,
        "bn2_g": jnp.ones((64,), jnp.float32),
        "bn2_b": jnp.zeros((64,), jnp.float32),
        "conv3_w": jax.random.normal(keys[6], (3, 3, 64, CHANNELS),
                                     jnp.float32) * 0.05,
        "conv3_b": jax.random.normal(keys[7], (CHANNELS,), jnp.float32) * 0.05,
    }


if __name__ == "__main__":
    key = jax.random.PRNGKey(0)
    pkey, zkey = jax.random.split(key)
    params = init_params(pkey)
    z = jax.random.normal(zkey, (2, LATENT_DIM), jnp.float32)

    img = jax.jit(generator_forward)(params, z)
    img = jax.block_until_ready(img)

    assert img.shape == (2, CHANNELS, IMG_SIZE, IMG_SIZE), img.shape
    assert img.dtype == jnp.float32
    print("KERNEL_OK")
</pallas_src>

<mosaic_0001>
module attributes {stable_mosaic.version = 11 : i64} {
  func.func @generator_kernel(%arg0: memref<32x512xbf16, #tpu.memory_space<vmem>>, %arg1: memref<512x128xbf16, #tpu.memory_space<vmem>>, %arg2: memref<16x128xf32, #tpu.memory_space<vmem>>, %arg3: memref<1x128xf32, #tpu.memory_space<vmem>>, %arg4: memref<1x128xf32, #tpu.memory_space<vmem>>, %arg5: memref<3x384x128xbf16, #tpu.memory_space<vmem>>, %arg6: memref<1x128xf32, #tpu.memory_space<vmem>>, %arg7: memref<1x128xf32, #tpu.memory_space<vmem>>, %arg8: memref<3x384x64xbf16, #tpu.memory_space<vmem>>, %arg9: memref<1x64xf32, #tpu.memory_space<vmem>>, %arg10: memref<1x64xf32, #tpu.memory_space<vmem>>, %arg11: memref<3x192x128xbf16, #tpu.memory_space<vmem>>, %arg12: memref<1x128xf32, #tpu.memory_space<vmem>>, %arg13: memref<512x128xf32, #tpu.memory_space<vmem>>, %arg14: memref<2x10x10x128xf32, #tpu.memory_space<vmem>>, %arg15: memref<2x18x18x128xf32, #tpu.memory_space<vmem>>, %arg16: memref<2x18x18x64xf32, #tpu.memory_space<vmem>>) attributes {dimension_semantics = [], scalar_prefetch = 0 : i64, scratch_operands = 3 : i64, tpu.core_type = #tpu.core_type<tc>} {
    %c0 = arith.constant 0 : index
    %c0_0 = arith.constant 0 : index
    %0 = vector.load %arg0[%c0, %c0_0] : memref<32x512xbf16, #tpu.memory_space<vmem>>, vector<32x512xbf16>
    %c0_1 = arith.constant 0 : index
    %c0_2 = arith.constant 0 : index
    %1 = vector.load %arg1[%c0_1, %c0_2] : memref<512x128xbf16, #tpu.memory_space<vmem>>, vector<512x128xbf16>
    %cst = arith.constant dense<0.000000e+00> : vector<32x128xf32>
    %2 = tpu.matmul %0, %1, %cst {dimension_numbers = #tpu.dot_dimension_numbers<[1], [0], [0], [1], [0, 0, 1, 1], [], []>} : vector<32x512xbf16>, vector<512x128xbf16>, vector<32x128xf32> -> vector<32x128xf32>
    %3 = vector.shape_cast %2 : vector<32x128xf32> to vector<2x16x128xf32>
    %c0_3 = arith.constant 0 : index
    %c0_4 = arith.constant 0 : index
    %4 = vector.load %arg2[%c0_3, %c0_4] : memref<16x128xf32, #tpu.memory_space<vmem>>, vector<16x128xf32>
    %5 = vector.shape_cast %4 : vector<16x128xf32> to vector<1x16x128xf32>
    %6 = vector.broadcast %5 : vector<1x16x128xf32> to vector<2x16x128xf32>
    %7 = arith.addf %3, %6 : vector<2x16x128xf32>
    %8 = vector.shape_cast %7 : vector<2x16x128xf32> to vector<32x128xf32>
    %c0_5 = arith.constant 0 : index
    %c0_6 = arith.constant 0 : index
    %9 = vector.load %arg3[%c0_5, %c0_6] : memref<1x128xf32, #tpu.memory_space<vmem>>, vector<1x128xf32>
    %c0_7 = arith.constant 0 : index
    %c0_8 = arith.constant 0 : index
    %10 = vector.load %arg4[%c0_7, %c0_8] : memref<1x128xf32, #tpu.memory_space<vmem>>, vector<1x128xf32>
    %cst_9 = arith.constant dense<0.000000e+00> : vector<128xf32>
    %11 = vector.multi_reduction <add>, %8, %cst_9 [0] : vector<32x128xf32> to vector<128xf32>
    %12 = vector.shape_cast %11 : vector<128xf32> to vector<1x128xf32>
    %cst_10 = arith.constant 3.125000e-02 : f32
    %13 = vector.broadcast %cst_10 : f32 to vector<1x128xf32>
    %14 = arith.mulf %12, %13 : vector<1x128xf32>
    %15 = vector.broadcast %14 : vector<1x128xf32> to vector<32x128xf32>
    %16 = arith.subf %8, %15 : vector<32x128xf32>
    %17 = arith.mulf %16, %16 : vector<32x128xf32>
    %cst_11 = arith.constant dense<0.000000e+00> : vector<128xf32>
    %18 = vector.multi_reduction <add>, %17, %cst_11 [0] : vector<32x128xf32> to vector<128xf32>
    %19 = vector.shape_cast %18 : vector<128xf32> to vector<1x128xf32>
    %cst_12 = arith.constant 3.125000e-02 : f32
    %20 = vector.broadcast %cst_12 : f32 to vector<1x128xf32>
    %21 = arith.mulf %19, %20 : vector<1x128xf32>
    %cst_13 = arith.constant 9.99999974E-6 : f32
    %22 = vector.broadcast %cst_13 : f32 to vector<1x128xf32>
    %23 = arith.addf %21, %22 : vector<1x128xf32>
    %24 = math.rsqrt %23 : vector<1x128xf32>
    %25 = arith.mulf %24, %9 : vector<1x128xf32>
    %26 = vector.broadcast %25 : vector<1x128xf32> to vector<32x128xf32>
    %27 = arith.mulf %16, %26 : vector<32x128xf32>
    %28 = vector.broadcast %10 : vector<1x128xf32> to vector<32x128xf32>
    %29 = arith.addf %27, %28 : vector<32x128xf32>
    %cst_14 = arith.constant 0.000000e+00 : f32
    %30 = vector.broadcast %cst_14 : f32 to vector<2x10x10x128xf32>
    %c0_15 = arith.constant 0 : index
    %c0_16 = arith.constant 0 : index
    %c0_17 = arith.constant 0 : index
    %c0_18 = arith.constant 0 : index
    %31 = vector.load %arg14[%c0_15, %c0_16, %c0_17, %c0_18] : memref<2x10x10x128xf32, #tpu.memory_space<vmem>>, vector<2x10x10x128xf32>
    tpu.vector_store %arg14[%c0_15, %c0_16, %c0_17, %c0_18], %30 {strides = array<i32>} : memref<2x10x10x128xf32, #tpu.memory_space<vmem>>, vector<2x10x10x128xf32>,
    %32 = vector.shape_cast %29 : vector<32x128xf32> to vector<2x4x4x128xf32>
    %33 = vector.shape_cast %32 : vector<2x4x4x128xf32> to vector<2x4x1x4x1x128xf32>
    %34 = vector.shape_cast %33 : vector<2x4x1x4x1x128xf32> to vector<2x4x1x4x1x128xf32>
    %35 = vector.broadcast %34 : vector<2x4x1x4x1x128xf32> to vector<2x4x2x4x2x128xf32>
    %36 = vector.shape_cast %35 : vector<2x4x2x4x2x128xf32> to vector<2x8x8x128xf32>
    %c0_19 = arith.constant 0 : index
    %c1 = arith.constant 1 : index
    %c1_20 = arith.constant 1 : index
    %c0_21 = arith.constant 0 : index
    %37 = vector.load %arg14[%c0_19, %c1, %c1_20, %c0_21] : memref<2x10x10x128xf32, #tpu.memory_space<vmem>>, vector<2x8x8x128xf32>
    tpu.vector_store %arg14[%c0_19, %c1, %c1_20, %c0_21], %36 {strides = array<i32>} : memref<2x10x10x128xf32, #tpu.memory_space<vmem>>, vector<2x8x8x128xf32>,
    %cst_22 = arith.constant 0.000000e+00 : f32
    %38 = vector.broadcast %cst_22 : f32 to vector<128x128xf32>
    %c0_23 = arith.constant 0 : index
    %c0_24 = arith.constant 0 : index
    %c0_25 = arith.constant 0 : index
    %c0_26 = arith.constant 0 : index
    %39 = vector.load %arg14[%c0_23, %c0_24, %c0_25, %c0_26] : memref<2x10x10x128xf32, #tpu.memory_space<vmem>>, vector<2x8x8x128xf32>
    %40 = vector.shape_cast %39 : vector<2x8x8x128xf32> to vector<128x128xf32>
    %c0_27 = arith.constant 0 : index
    %c0_28 = arith.constant 0 : index
    %c1_29 = arith.constant 1 : index
    %c0_30 = arith.constant 0 : index
    %41 = vector.load %arg14[%c0_27, %c0_28, %c1_29, %c0_30] : memref<2x10x10x128xf32, #tpu.memory_space<vmem>>, vector<2x8x8x128xf32>
    %42 = vector.shape_cast %41 : vector<2x8x8x128xf32> to vector<128x128xf32>
    %c0_31 = arith.constant 0 : index
    %c0_32 = arith.constant 0 : index
    %c2 = arith.constant 2 : index
    %c0_33 = arith.constant 0 : index
    %43 = vector.load %arg14[%c0_31, %c0_32, %c2, %c0_33] : memref<2x10x10x128xf32, #tpu.memory_space<vmem>>, vector<2x8x8x128xf32>
    %44 = vector.shape_cast %43 : vector<2x8x8x128xf32> to vector<128x128xf32>
    %45 = tpu.concatenate %40, %42, %44 in 1 : vector<128x128xf32>, vector<128x128xf32>, vector<128x128xf32> -> vector<128x384xf32>
    %46 = arith.truncf %45 : vector<128x384xf32> to vector<128x384xbf16>
    %c0_34 = arith.constant 0 : index
    %c0_35 = arith.constant 0 : index
    %c0_36 = arith.constant 0 : index
    %47 = vector.load %arg5[%c0_34, %c0_35, %c0_36] : memref<3x384x128xbf16, #tpu.memory_space<vmem>>, vector<1x384x128xbf16>
    %48 = vector.shape_cast %47 : vector<1x384x128xbf16> to vector<384x128xbf16>
    %cst_37 = arith.constant dense<0.000000e+00> : vector<128x128xf32>
    %49 = tpu.matmul %46, %48, %cst_37 {dimension_numbers = #tpu.dot_dimension_numbers<[1], [0], [0], [1], [0, 0, 1, 1], [], []>} : vector<128x384xbf16>, vector<384x128xbf16>, vector<128x128xf32> -> vector<128x128xf32>
    %50 = arith.addf %38, %49 : vector<128x128xf32>
    %c0_38 = arith.constant 0 : index
    %c1_39 = arith.constant 1 : index
    %c0_40 = arith.constant 0 : index
    %c0_41 = arith.constant 0 : index
    %51 = vector.load %arg14[%c0_38, %c1_39, %c0_40, %c0_41] : memref<2x10x10x128xf32, #tpu.memory_space<vmem>>, vector<2x8x8x128xf32>
    %52 = vector.shape_cast %51 : vector<2x8x8x128xf32> to vector<128x128xf32>
    %c0_42 = arith.constant 0 : index
    %c1_43 = arith.constant 1 : index
    %c1_44 = arith.constant 1 : index
    %c0_45 = arith.constant 0 : index
    %53 = vector.load %arg14[%c0_42, %c1_43, %c1_44, %c0_45] : memref<2x10x10x128xf32, #tpu.memory_space<vmem>>, vector<2x8x8x128xf32>
    %54 = vector.shape_cast %53 : vector<2x8x8x128xf32> to vector<128x128xf32>
    %c0_46 = arith.constant 0 : index
    %c1_47 = arith.constant 1 : index
    %c2_48 = arith.constant 2 : index
    %c0_49 = arith.constant 0 : index
    %55 = vector.load %arg14[%c0_46, %c1_47, %c2_48, %c0_49] : memref<2x10x10x128xf32, #tpu.memory_space<vmem>>, vector<2x8x8x128xf32>
    %56 = vector.shape_cast %55 : vector<2x8x8x128xf32> to vector<128x128xf32>
    %57 = tpu.concatenate %52, %54, %56 in 1 : vector<128x128xf32>, vector<128x128xf32>, vector<128x128xf32> -> vector<128x384xf32>
    %58 = arith.truncf %57 : vector<128x384xf32> to vector<128x384xbf16>
    %c1_50 = arith.constant 1 : index
    %c0_51 = arith.constant 0 : index
    %c0_52 = arith.constant 0 : index
    %59 = vector.load %arg5[%c1_50, %c0_51, %c0_52] : memref<3x384x128xbf16, #tpu.memory_space<vmem>>, vector<1x384x128xbf16>
    %60 = vector.shape_cast %59 : vector<1x384x128xbf16> to vector<384x128xbf16>
    %cst_53 = arith.constant dense<0.000000e+00> : vector<128x128xf32>
    %61 = tpu.matmul %58, %60, %cst_53 {dimension_numbers = #tpu.dot_dimension_numbers<[1], [0], [0], [1], [0, 0, 1, 1], [], []>} : vector<128x384xbf16>, vector<384x128xbf16>, vector<128x128xf32> -> vector<128x128xf32>
    %62 = arith.addf %50, %61 : vector<128x128xf32>
    %c0_54 = arith.constant 0 : index
    %c2_55 = arith.constant 2 : index
    %c0_56 = arith.constant 0 : index
    %c0_57 = arith.constant 0 : index
    %63 = vector.load %arg14[%c0_54, %c2_55, %c0_56, %c0_57] : memref<2x10x10x128xf32, #tpu.memory_space<vmem>>, vector<2x8x8x128xf32>
    %64 = vector.shape_cast %63 : vector<2x8x8x128xf32> to vector<128x128xf32>
    %c0_58 = arith.constant 0 : index
    %c2_59 = arith.constant 2 : index
    %c1_60 = arith.constant 1 : index
    %c0_61 = arith.constant 0 : index
    %65 = vector.load %arg14[%c0_58, %c2_59, %c1_60, %c0_61] : memref<2x10x10x128xf32, #tpu.memory_space<vmem>>, vector<2x8x8x128xf32>
    %66 = vector.shape_cast %65 : vector<2x8x8x128xf32> to vector<128x128xf32>
    %c0_62 = arith.constant 0 : index
    %c2_63 = arith.constant 2 : index
    %c2_64 = arith.constant 2 : index
    %c0_65 = arith.constant 0 : index
    %67 = vector.load %arg14[%c0_62, %c2_63, %c2_64, %c0_65] : memref<2x10x10x128xf32, #tpu.memory_space<vmem>>, vector<2x8x8x128xf32>
    %68 = vector.shape_cast %67 : vector<2x8x8x128xf32> to vector<128x128xf32>
    %69 = tpu.concatenate %64, %66, %68 in 1 : vector<128x128xf32>, vector<128x128xf32>, vector<128x128xf32> -> vector<128x384xf32>
    %70 = arith.truncf %69 : vector<128x384xf32> to vector<128x384xbf16>
    %c2_66 = arith.constant 2 : index
    %c0_67 = arith.constant 0 : index
    %c0_68 = arith.constant 0 : index
    %71 = vector.load %arg5[%c2_66, %c0_67, %c0_68] : memref<3x384x128xbf16, #tpu.memory_space<vmem>>, vector<1x384x128xbf16>
    %72 = vector.shape_cast %71 : vector<1x384x128xbf16> to vector<384x128xbf16>
    %cst_69 = arith.constant dense<0.000000e+00> : vector<128x128xf32>
    %73 = tpu.matmul %70, %72, %cst_69 {dimension_numbers = #tpu.dot_dimension_numbers<[1], [0], [0], [1], [0, 0, 1, 1], [], []>} : vector<128x384xbf16>, vector<384x128xbf16>, vector<128x128xf32> -> vector<128x128xf32>
    %74 = arith.addf %62, %73 : vector<128x128xf32>
    %c0_70 = arith.constant 0 : index
    %c0_71 = arith.constant 0 : index
    %75 = vector.load %arg6[%c0_70, %c0_71] : memref<1x128xf32, #tpu.memory_space<vmem>>, vector<1x128xf32>
    %c0_72 = arith.constant 0 : index
    %c0_73 = arith.constant 0 : index
    %76 = vector.load %arg7[%c0_72, %c0_73] : memref<1x128xf32, #tpu.memory_space<vmem>>, vector<1x128xf32>
    %cst_74 = arith.constant dense<0.000000e+00> : vector<128xf32>
    %77 = vector.multi_reduction <add>, %74, %cst_74 [0] : vector<128x128xf32> to vector<128xf32>
    %78 = vector.shape_cast %77 : vector<128xf32> to vector<1x128xf32>
    %cst_75 = arith.constant 7.812500e-03 : f32
    %79 = vector.broadcast %cst_75 : f32 to vector<1x128xf32>
    %80 = arith.mulf %78, %79 : vector<1x128xf32>
    %81 = vector.broadcast %80 : vector<1x128xf32> to vector<128x128xf32>
    %82 = arith.subf %74, %81 : vector<128x128xf32>
    %83 = arith.mulf %82, %82 : vector<128x128xf32>
    %cst_76 = arith.constant dense<0.000000e+00> : vector<128xf32>
    %84 = vector.multi_reduction <add>, %83, %cst_76 [0] : vector<128x128xf32> to vector<128xf32>
    %85 = vector.shape_cast %84 : vector<128xf32> to vector<1x128xf32>
    %cst_77 = arith.constant 7.812500e-03 : f32
    %86 = vector.broadcast %cst_77 : f32 to vector<1x128xf32>
    %87 = arith.mulf %85, %86 : vector<1x128xf32>
    %cst_78 = arith.constant 8.000000e-01 : f32
    %88 = vector.broadcast %cst_78 : f32 to vector<1x128xf32>
    %89 = arith.addf %87, %88 : vector<1x128xf32>
    %90 = math.rsqrt %89 : vector<1x128xf32>
    %91 = arith.mulf %90, %75 : vector<1x128xf32>
    %92 = vector.broadcast %91 : vector<1x128xf32> to vector<128x128xf32>
    %93 = arith.mulf %82, %92 : vector<128x128xf32>
    %94 = vector.broadcast %76 : vector<1x128xf32> to vector<128x128xf32>
    %95 = arith.addf %93, %94 : vector<128x128xf32>
    %cst_79 = arith.constant 0.000000e+00 : f32
    %96 = vector.broadcast %cst_79 : f32 to vector<128x128xf32>
    %97 = arith.cmpf oge, %95, %96 : vector<128x128xf32>
    %cst_80 = arith.constant 2.000000e-01 : f32
    %98 = vector.broadcast %cst_80 : f32 to vector<128x128xf32>
    %99 = arith.mulf %98, %95 : vector<128x128xf32>
    %100 = arith.select %97, %95, %99 : vector<128x128xi1>, vector<128x128xf32>
    %cst_81 = arith.constant 0.000000e+00 : f32
    %101 = vector.broadcast %cst_81 : f32 to vector<2x18x18x128xf32>
    %c0_82 = arith.constant 0 : index
    %c0_83 = arith.constant 0 : index
    %c0_84 = arith.constant 0 : index
    %c0_85 = arith.constant 0 : index
    %102 = vector.load %arg15[%c0_82, %c0_83, %c0_84, %c0_85] : memref<2x18x18x128xf32, #tpu.memory_space<vmem>>, vector<2x18x18x128xf32>
    tpu.vector_store %arg15[%c0_82, %c0_83, %c0_84, %c0_85], %101 {strides = array<i32>} : memref<2x18x18x128xf32, #tpu.memory_space<vmem>>, vector<2x18x18x128xf32>,
    %103 = vector.shape_cast %100 : vector<128x128xf32> to vector<2x8x8x128xf32>
    %104 = vector.shape_cast %103 : vector<2x8x8x128xf32> to vector<2x8x1x8x1x128xf32>
    %105 = vector.shape_cast %104 : vector<2x8x1x8x1x128xf32> to vector<2x8x1x8x1x128xf32>
    %106 = vector.broadcast %105 : vector<2x8x1x8x1x128xf32> to vector<2x8x2x8x2x128xf32>
    %107 = vector.shape_cast %106 : vector<2x8x2x8x2x128xf32> to vector<2x16x16x128xf32>
    %c0_86 = arith.constant 0 : index
    %c1_87 = arith.constant 1 : index
    %c1_88 = arith.constant 1 : index
    %c0_89 = arith.constant 0 : index
    %108 = vector.load %arg15[%c0_86, %c1_87, %c1_88, %c0_89] : memref<2x18x18x128xf32, #tpu.memory_space<vmem>>, vector<2x16x16x128xf32>
    tpu.vector_store %arg15[%c0_86, %c1_87, %c1_88, %c0_89], %107 {strides = array<i32>} : memref<2x18x18x128xf32, #tpu.memory_space<vmem>>, vector<2x16x16x128xf32>,
    %cst_90 = arith.constant 0.000000e+00 : f32
    %109 = vector.broadcast %cst_90 : f32 to vector<512x64xf32>
    %c0_91 = arith.constant 0 : index
    %c0_92 = arith.constant 0 : index
    %c0_93 = arith.constant 0 : index
    %c0_94 = arith.constant 0 : index
    %110 = vector.load %arg15[%c0_91, %c0_92, %c0_93, %c0_94] : memref<2x18x18x128xf32, #tpu.memory_space<vmem>>, vector<2x16x16x128xf32>
    %111 = vector.shape_cast %110 : vector<2x16x16x128xf32> to vector<512x128xf32>
    %c0_95 = arith.constant 0 : index
    %c0_96 = arith.constant 0 : index
    %c1_97 = arith.constant 1 : index
    %c0_98 = arith.constant 0 : index
    %112 = vector.load %arg15[%c0_95, %c0_96, %c1_97, %c0_98] : memref<2x18x18x128xf32, #tpu.memory_space<vmem>>, vector<2x16x16x128xf32>
    %113 = vector.shape_cast %112 : vector<2x16x16x128xf32> to vector<512x128xf32>
    %c0_99 = arith.constant 0 : index
    %c0_100 = arith.constant 0 : index
    %c2_101 = arith.constant 2 : index
    %c0_102 = arith.constant 0 : index
    %114 = vector.load %arg15[%c0_99, %c0_100, %c2_101, %c0_102] : memref<2x18x18x128xf32, #tpu.memory_space<vmem>>, vector<2x16x16x128xf32>
    %115 = vector.shape_cast %114 : vector<2x16x16x128xf32> to vector<512x128xf32>
    %116 = tpu.concatenate %111, %113, %115 in 1 : vector<512x128xf32>, vector<512x128xf32>, vector<512x128xf32> -> vector<512x384xf32>
    %117 = arith.truncf %116 : vector<512x384xf32> to vector<512x384xbf16>
    %c0_103 = arith.constant 0 : index
    %c0_104 = arith.constant 0 : index
    %c0_105 = arith.constant 0 : index
    %118 = vector.load %arg8[%c0_103, %c0_104, %c0_105] : memref<3x384x64xbf16, #tpu.memory_space<vmem>>, vector<1x384x64xbf16>
    %119 = vector.shape_cast %118 : vector<1x384x64xbf16> to vector<384x64xbf16>
    %cst_106 = arith.constant dense<0.000000e+00> : vector<512x64xf32>
    %120 = tpu.matmul %117, %119, %cst_106 {dimension_numbers = #tpu.dot_dimension_numbers<[1], [0], [0], [1], [0, 0, 1, 1], [], []>} : vector<512x384xbf16>, vector<384x64xbf16>, vector<512x64xf32> -> vector<512x64xf32>
    %121 = arith.addf %109, %120 : vector<512x64xf32>
    %c0_107 = arith.constant 0 : index
    %c1_108 = arith.constant 1 : index
    %c0_109 = arith.constant 0 : index
    %c0_110 = arith.constant 0 : index
    %122 = vector.load %arg15[%c0_107, %c1_108, %c0_109, %c0_110] : memref<2x18x18x128xf32, #tpu.memory_space<vmem>>, vector<2x16x16x128xf32>
    %123 = vector.shape_cast %122 : vector<2x16x16x128xf32> to vector<512x128xf32>
    %c0_111 = arith.constant 0 : index
    %c1_112 = arith.constant 1 : index
    %c1_113 = arith.constant 1 : index
    %c0_114 = arith.constant 0 : index
    %124 = vector.load %arg15[%c0_111, %c1_112, %c1_113, %c0_114] : memref<2x18x18x128xf32, #tpu.memory_space<vmem>>, vector<2x16x16x128xf32>
    %125 = vector.shape_cast %124 : vector<2x16x16x128xf32> to vector<512x128xf32>
    %c0_115 = arith.constant 0 : index
    %c1_116 = arith.constant 1 : index
    %c2_117 = arith.constant 2 : index
    %c0_118 = arith.constant 0 : index
    %126 = vector.load %arg15[%c0_115, %c1_116, %c2_117, %c0_118] : memref<2x18x18x128xf32, #tpu.memory_space<vmem>>, vector<2x16x16x128xf32>
    %127 = vector.shape_cast %126 : vector<2x16x16x128xf32> to vector<512x128xf32>
    %128 = tpu.concatenate %123, %125, %127 in 1 : vector<512x128xf32>, vector<512x128xf32>, vector<512x128xf32> -> vector<512x384xf32>
    %129 = arith.truncf %128 : vector<512x384xf32> to vector<512x384xbf16>
    %c1_119 = arith.constant 1 : index
    %c0_120 = arith.constant 0 : index
    %c0_121 = arith.constant 0 : index
    %130 = vector.load %arg8[%c1_119, %c0_120, %c0_121] : memref<3x384x64xbf16, #tpu.memory_space<vmem>>, vector<1x384x64xbf16>
    %131 = vector.shape_cast %130 : vector<1x384x64xbf16> to vector<384x64xbf16>
    %cst_122 = arith.constant dense<0.000000e+00> : vector<512x64xf32>
    %132 = tpu.matmul %129, %131, %cst_122 {dimension_numbers = #tpu.dot_dimension_numbers<[1], [0], [0], [1], [0, 0, 1, 1], [], []>} : vector<512x384xbf16>, vector<384x64xbf16>, vector<512x64xf32> -> vector<512x64xf32>
    %133 = arith.addf %121, %132 : vector<512x64xf32>
    %c0_123 = arith.constant 0 : index
    %c2_124 = arith.constant 2 : index
    %c0_125 = arith.constant 0 : index
    %c0_126 = arith.constant 0 : index
    %134 = vector.load %arg15[%c0_123, %c2_124, %c0_125, %c0_126] : memref<2x18x18x128xf32, #tpu.memory_space<vmem>>, vector<2x16x16x128xf32>
    %135 = vector.shape_cast %134 : vector<2x16x16x128xf32> to vector<512x128xf32>
    %c0_127 = arith.constant 0 : index
    %c2_128 = arith.constant 2 : index
    %c1_129 = arith.constant 1 : index
    %c0_130 = arith.constant 0 : index
    %136 = vector.load %arg15[%c0_127, %c2_128, %c1_129, %c0_130] : memref<2x18x18x128xf32, #tpu.memory_space<vmem>>, vector<2x16x16x128xf32>
    %137 = vector.shape_cast %136 : vector<2x16x16x128xf32> to vector<512x128xf32>
    %c0_131 = arith.constant 0 : index
    %c2_132 = arith.constant 2 : index
    %c2_133 = arith.constant 2 : index
    %c0_134 = arith.constant 0 : index
    %138 = vector.load %arg15[%c0_131, %c2_132, %c2_133, %c0_134] : memref<2x18x18x128xf32, #tpu.memory_space<vmem>>, vector<2x16x16x128xf32>
    %139 = vector.shape_cast %138 : vector<2x16x16x128xf32> to vector<512x128xf32>
    %140 = tpu.concatenate %135, %137, %139 in 1 : vector<512x128xf32>, vector<512x128xf32>, vector<512x128xf32> -> vector<512x384xf32>
    %141 = arith.truncf %140 : vector<512x384xf32> to vector<512x384xbf16>
    %c2_135 = arith.constant 2 : index
    %c0_136 = arith.constant 0 : index
    %c0_137 = arith.constant 0 : index
    %142 = vector.load %arg8[%c2_135, %c0_136, %c0_137] : memref<3x384x64xbf16, #tpu.memory_space<vmem>>, vector<1x384x64xbf16>
    %143 = vector.shape_cast %142 : vector<1x384x64xbf16> to vector<384x64xbf16>
    %cst_138 = arith.constant dense<0.000000e+00> : vector<512x64xf32>
    %144 = tpu.matmul %141, %143, %cst_138 {dimension_numbers = #tpu.dot_dimension_numbers<[1], [0], [0], [1], [0, 0, 1, 1], [], []>} : vector<512x384xbf16>, vector<384x64xbf16>, vector<512x64xf32> -> vector<512x64xf32>
    %145 = arith.addf %133, %144 : vector<512x64xf32>
    %c0_139 = arith.constant 0 : index
    %c0_140 = arith.constant 0 : index
    %146 = vector.load %arg9[%c0_139, %c0_140] : memref<1x64xf32, #tpu.memory_space<vmem>>, vector<1x64xf32>
    %c0_141 = arith.constant 0 : index
    %c0_142 = arith.constant 0 : index
    %147 = vector.load %arg10[%c0_141, %c0_142] : memref<1x64xf32, #tpu.memory_space<vmem>>, vector<1x64xf32>
    %cst_143 = arith.constant dense<0.000000e+00> : vector<64xf32>
    %148 = vector.multi_reduction <add>, %145, %cst_143 [0] : vector<512x64xf32> to vector<64xf32>
    %149 = vector.shape_cast %148 : vector<64xf32> to vector<1x64xf32>
    %cst_144 = arith.constant 0.001953125 : f32
    %150 = vector.broadcast %cst_144 : f32 to vector<1x64xf32>
    %151 = arith.mulf %149, %150 : vector<1x64xf32>
    %152 = vector.broadcast %151 : vector<1x64xf32> to vector<512x64xf32>
    %153 = arith.subf %145, %152 : vector<512x64xf32>
    %154 = arith.mulf %153, %153 : vector<512x64xf32>
    %cst_145 = arith.constant dense<0.000000e+00> : vector<64xf32>
    %155 = vector.multi_reduction <add>, %154, %cst_145 [0] : vector<512x64xf32> to vector<64xf32>
    %156 = vector.shape_cast %155 : vector<64xf32> to vector<1x64xf32>
    %cst_146 = arith.constant 0.001953125 : f32
    %157 = vector.broadcast %cst_146 : f32 to vector<1x64xf32>
    %158 = arith.mulf %156, %157 : vector<1x64xf32>
    %cst_147 = arith.constant 8.000000e-01 : f32
    %159 = vector.broadcast %cst_147 : f32 to vector<1x64xf32>
    %160 = arith.addf %158, %159 : vector<1x64xf32>
    %161 = math.rsqrt %160 : vector<1x64xf32>
    %162 = arith.mulf %161, %146 : vector<1x64xf32>
    %163 = vector.broadcast %162 : vector<1x64xf32> to vector<512x64xf32>
    %164 = arith.mulf %153, %163 : vector<512x64xf32>
    %165 = vector.broadcast %147 : vector<1x64xf32> to vector<512x64xf32>
    %166 = arith.addf %164, %165 : vector<512x64xf32>
    %cst_148 = arith.constant 0.000000e+00 : f32
    %167 = vector.broadcast %cst_148 : f32 to vector<512x64xf32>
    %168 = arith.cmpf oge, %166, %167 : vector<512x64xf32>
    %cst_149 = arith.constant 2.000000e-01 : f32
    %169 = vector.broadcast %cst_149 : f32 to vector<512x64xf32>
    %170 = arith.mulf %169, %166 : vector<512x64xf32>
    %171 = arith.select %168, %166, %170 : vector<512x64xi1>, vector<512x64xf32>
    %cst_150 = arith.constant 0.000000e+00 : f32
    %172 = vector.broadcast %cst_150 : f32 to vector<2x18x18x64xf32>
    %c0_151 = arith.constant 0 : index
    %c0_152 = arith.constant 0 : index
    %c0_153 = arith.constant 0 : index
    %c0_154 = arith.constant 0 : index
    %173 = vector.load %arg16[%c0_151, %c0_152, %c0_153, %c0_154] : memref<2x18x18x64xf32, #tpu.memory_space<vmem>>, vector<2x18x18x64xf32>
    tpu.vector_store %arg16[%c0_151, %c0_152, %c0_153, %c0_154], %172 {strides = array<i32>} : memref<2x18x18x64xf32, #tpu.memory_space<vmem>>, vector<2x18x18x64xf32>,
    %174 = vector.shape_cast %171 : vector<512x64xf32> to vector<2x16x16x64xf32>
    %c0_155 = arith.constant 0 : index
    %c1_156 = arith.constant 1 : index
    %c1_157 = arith.constant 1 : index
    %c0_158 = arith.constant 0 : index
    %175 = vector.load %arg16[%c0_155, %c1_156, %c1_157, %c0_158] : memref<2x18x18x64xf32, #tpu.memory_space<vmem>>, vector<2x16x16x64xf32>
    tpu.vector_store %arg16[%c0_155, %c1_156, %c1_157, %c0_158], %174 {strides = array<i32>} : memref<2x18x18x64xf32, #tpu.memory_space<vmem>>, vector<2x16x16x64xf32>,
    %cst_159 = arith.constant 0.000000e+00 : f32
    %176 = vector.broadcast %cst_159 : f32 to vector<512x128xf32>
    %c0_160 = arith.constant 0 : index
    %c0_161 = arith.constant 0 : index
    %c0_162 = arith.constant 0 : index
    %c0_163 = arith.constant 0 : index
    %177 = vector.load %arg16[%c0_160, %c0_161, %c0_162, %c0_163] : memref<2x18x18x64xf32, #tpu.memory_space<vmem>>, vector<2x16x16x64xf32>
    %178 = vector.shape_cast %177 : vector<2x16x16x64xf32> to vector<512x64xf32>
    %c0_164 = arith.constant 0 : index
    %c0_165 = arith.constant 0 : index
    %c1_166 = arith.constant 1 : index
    %c0_167 = arith.constant 0 : index
    %179 = vector.load %arg16[%c0_164, %c0_165, %c1_166, %c0_167] : memref<2x18x18x64xf32, #tpu.memory_space<vmem>>, vector<2x16x16x64xf32>
    %180 = vector.shape_cast %179 : vector<2x16x16x64xf32> to vector<512x64xf32>
    %c0_168 = arith.constant 0 : index
    %c0_169 = arith.constant 0 : index
    %c2_170 = arith.constant 2 : index
    %c0_171 = arith.constant 0 : index
    %181 = vector.load %arg16[%c0_168, %c0_169, %c2_170, %c0_171] : memref<2x18x18x64xf32, #tpu.memory_space<vmem>>, vector<2x16x16x64xf32>
    %182 = vector.shape_cast %181 : vector<2x16x16x64xf32> to vector<512x64xf32>
    %183 = tpu.concatenate %178, %180, %182 in 1 : vector<512x64xf32>, vector<512x64xf32>, vector<512x64xf32> -> vector<512x192xf32>
    %184 = arith.truncf %183 : vector<512x192xf32> to vector<512x192xbf16>
    %c0_172 = arith.constant 0 : index
    %c0_173 = arith.constant 0 : index
    %c0_174 = arith.constant 0 : index
    %185 = vector.load %arg11[%c0_172, %c0_173, %c0_174] : memref<3x192x128xbf16, #tpu.memory_space<vmem>>, vector<1x192x128xbf16>
    %186 = vector.shape_cast %185 : vector<1x192x128xbf16> to vector<192x128xbf16>
    %cst_175 = arith.constant dense<0.000000e+00> : vector<512x128xf32>
    %187 = tpu.matmul %184, %186, %cst_175 {dimension_numbers = #tpu.dot_dimension_numbers<[1], [0], [0], [1], [0, 0, 1, 1], [], []>} : vector<512x192xbf16>, vector<192x128xbf16>, vector<512x128xf32> -> vector<512x128xf32>
    %188 = arith.addf %176, %187 : vector<512x128xf32>
    %c0_176 = arith.constant 0 : index
    %c1_177 = arith.constant 1 : index
    %c0_178 = arith.constant 0 : index
    %c0_179 = arith.constant 0 : index
    %189 = vector.load %arg16[%c0_176, %c1_177, %c0_178, %c0_179] : memref<2x18x18x64xf32, #tpu.memory_space<vmem>>, vector<2x16x16x64xf32>
    %190 = vector.shape_cast %189 : vector<2x16x16x64xf32> to vector<512x64xf32>
    %c0_180 = arith.constant 0 : index
    %c1_181 = arith.constant 1 : index
    %c1_182 = arith.constant 1 : index
    %c0_183 = arith.constant 0 : index
    %191 = vector.load %arg16[%c0_180, %c1_181, %c1_182, %c0_183] : memref<2x18x18x64xf32, #tpu.memory_space<vmem>>, vector<2x16x16x64xf32>
    %192 = vector.shape_cast %191 : vector<2x16x16x64xf32> to vector<512x64xf32>
    %c0_184 = arith.constant 0 : index
    %c1_185 = arith.constant 1 : index
    %c2_186 = arith.constant 2 : index
    %c0_187 = arith.constant 0 : index
    %193 = vector.load %arg16[%c0_184, %c1_185, %c2_186, %c0_187] : memref<2x18x18x64xf32, #tpu.memory_space<vmem>>, vector<2x16x16x64xf32>
    %194 = vector.shape_cast %193 : vector<2x16x16x64xf32> to vector<512x64xf32>
    %195 = tpu.concatenate %190, %192, %194 in 1 : vector<512x64xf32>, vector<512x64xf32>, vector<512x64xf32> -> vector<512x192xf32>
    %196 = arith.truncf %195 : vector<512x192xf32> to vector<512x192xbf16>
    %c1_188 = arith.constant 1 : index
    %c0_189 = arith.constant 0 : index
    %c0_190 = arith.constant 0 : index
    %197 = vector.load %arg11[%c1_188, %c0_189, %c0_190] : memref<3x192x128xbf16, #tpu.memory_space<vmem>>, vector<1x192x128xbf16>
    %198 = vector.shape_cast %197 : vector<1x192x128xbf16> to vector<192x128xbf16>
    %cst_191 = arith.constant dense<0.000000e+00> : vector<512x128xf32>
    %199 = tpu.matmul %196, %198, %cst_191 {dimension_numbers = #tpu.dot_dimension_numbers<[1], [0], [0], [1], [0, 0, 1, 1], [], []>} : vector<512x192xbf16>, vector<192x128xbf16>, vector<512x128xf32> -> vector<512x128xf32>
    %200 = arith.addf %188, %199 : vector<512x128xf32>
    %c0_192 = arith.constant 0 : index
    %c2_193 = arith.constant 2 : index
    %c0_194 = arith.constant 0 : index
    %c0_195 = arith.constant 0 : index
    %201 = vector.load %arg16[%c0_192, %c2_193, %c0_194, %c0_195] : memref<2x18x18x64xf32, #tpu.memory_space<vmem>>, vector<2x16x16x64xf32>
    %202 = vector.shape_cast %201 : vector<2x16x16x64xf32> to vector<512x64xf32>
    %c0_196 = arith.constant 0 : index
    %c2_197 = arith.constant 2 : index
    %c1_198 = arith.constant 1 : index
    %c0_199 = arith.constant 0 : index
    %203 = vector.load %arg16[%c0_196, %c2_197, %c1_198, %c0_199] : memref<2x18x18x64xf32, #tpu.memory_space<vmem>>, vector<2x16x16x64xf32>
    %204 = vector.shape_cast %203 : vector<2x16x16x64xf32> to vector<512x64xf32>
    %c0_200 = arith.constant 0 : index
    %c2_201 = arith.constant 2 : index
    %c2_202 = arith.constant 2 : index
    %c0_203 = arith.constant 0 : index
    %205 = vector.load %arg16[%c0_200, %c2_201, %c2_202, %c0_203] : memref<2x18x18x64xf32, #tpu.memory_space<vmem>>, vector<2x16x16x64xf32>
    %206 = vector.shape_cast %205 : vector<2x16x16x64xf32> to vector<512x64xf32>
    %207 = tpu.concatenate %202, %204, %206 in 1 : vector<512x64xf32>, vector<512x64xf32>, vector<512x64xf32> -> vector<512x192xf32>
    %208 = arith.truncf %207 : vector<512x192xf32> to vector<512x192xbf16>
    %c2_204 = arith.constant 2 : index
    %c0_205 = arith.constant 0 : index
    %c0_206 = arith.constant 0 : index
    %209 = vector.load %arg11[%c2_204, %c0_205, %c0_206] : memref<3x192x128xbf16, #tpu.memory_space<vmem>>, vector<1x192x128xbf16>
    %210 = vector.shape_cast %209 : vector<1x192x128xbf16> to vector<192x128xbf16>
    %cst_207 = arith.constant dense<0.000000e+00> : vector<512x128xf32>
    %211 = tpu.matmul %208, %210, %cst_207 {dimension_numbers = #tpu.dot_dimension_numbers<[1], [0], [0], [1], [0, 0, 1, 1], [], []>} : vector<512x192xbf16>, vector<192x128xbf16>, vector<512x128xf32> -> vector<512x128xf32>
    %212 = arith.addf %200, %211 : vector<512x128xf32>
    %c0_208 = arith.constant 0 : index
    %c0_209 = arith.constant 0 : index
    %213 = vector.load %arg12[%c0_208, %c0_209] : memref<1x128xf32, #tpu.memory_space<vmem>>, vector<1x128xf32>
    %214 = vector.broadcast %213 : vector<1x128xf32> to vector<512x128xf32>
    %215 = arith.addf %212, %214 : vector<512x128xf32>
    %216 = math.tanh %215 : vector<512x128xf32>
    %cst_210 = arith.constant dense<0.000000e+00> : vector<128xf32>
    %217 = vector.multi_reduction <add>, %216, %cst_210 [0] : vector<512x128xf32> to vector<128xf32>
    %218 = vector.shape_cast %217 : vector<128xf32> to vector<1x128xf32>
    %cst_211 = arith.constant 0.001953125 : f32
    %219 = vector.broadcast %cst_211 : f32 to vector<1x128xf32>
    %220 = arith.mulf %218, %219 : vector<1x128xf32>
    %221 = vector.broadcast %220 : vector<1x128xf32> to vector<512x128xf32>
    %222 = arith.subf %216, %221 : vector<512x128xf32>
    %223 = arith.mulf %222, %222 : vector<512x128xf32>
    %cst_212 = arith.constant dense<0.000000e+00> : vector<128xf32>
    %224 = vector.multi_reduction <add>, %223, %cst_212 [0] : vector<512x128xf32> to vector<128xf32>
    %225 = vector.shape_cast %224 : vector<128xf32> to vector<1x128xf32>
    %cst_213 = arith.constant 0.001953125 : f32
    %226 = vector.broadcast %cst_213 : f32 to vector<1x128xf32>
    %227 = arith.mulf %225, %226 : vector<1x128xf32>
    %cst_214 = arith.constant 9.99999974E-6 : f32
    %228 = vector.broadcast %cst_214 : f32 to vector<1x128xf32>
    %229 = arith.addf %227, %228 : vector<1x128xf32>
    %230 = math.rsqrt %229 : vector<1x128xf32>
    %231 = vector.broadcast %230 : vector<1x128xf32> to vector<512x128xf32>
    %232 = arith.mulf %222, %231 : vector<512x128xf32>
    %c0_215 = arith.constant 0 : index
    %c0_216 = arith.constant 0 : index
    %233 = vector.load %arg13[%c0_215, %c0_216] : memref<512x128xf32, #tpu.memory_space<vmem>>, vector<512x128xf32>
    tpu.vector_store %arg13[%c0_215, %c0_216], %232 {strides = array<i32>} : memref<512x128xf32, #tpu.memory_space<vmem>>, vector<512x128xf32>,
    return
  }
}

</mosaic_0001>

<llo_original>
// kernel: generator_forward.1
$region0: #{generator_forward.1}
  #allocation0 [shape = 'u32[]', space=smem, size = 0x4, offset = 0x4, fixed_abs, tag = 'smem constant byte address 0x4 - core index']
  #allocation1 [shape = 'u32[144,128]{1,0:T(1,128)}', space=vmem, size = 0x12000, scoped, tag = 'internal scratch']
  #allocation2 [shape = 'f32[2,10,10,128]{3,2,1,0:T(8,128)}', space=vmem, size = 0x28000, scoped, tag = 'scratch operand']
  #allocation3 [shape = 'f32[2,18,18,128]{3,2,1,0:T(8,128)}', space=vmem, size = 0x6c000, scoped, tag = 'scratch operand']
  #allocation4 [shape = 'f32[2,18,18,64]{3,2,1,0:T(8,128)}', space=vmem, size = 0x6c000, scoped, tag = 'scratch operand']
  %s0 = inlined_call_operand.vmem [shape: bf16[32,512], index: 0, kind: input, shape index: {}]
  %s1 = inlined_call_operand.vmem [shape: bf16[512,128], index: 1, kind: input, shape index: {}]
  %s2 = inlined_call_operand.vmem [shape: f32[16,128], index: 2, kind: input, shape index: {}]
  %s3 = inlined_call_operand.vmem [shape: f32[1,128], index: 3, kind: input, shape index: {}]
  %s4 = inlined_call_operand.vmem [shape: f32[1,128], index: 4, kind: input, shape index: {}]
  %s5 = inlined_call_operand.vmem [shape: bf16[3,384,128], index: 5, kind: input, shape index: {}]
  %s6 = inlined_call_operand.vmem [shape: f32[1,128], index: 6, kind: input, shape index: {}]
  %s7 = inlined_call_operand.vmem [shape: f32[1,128], index: 7, kind: input, shape index: {}]
  %s8 = inlined_call_operand.vmem [shape: bf16[3,384,64], index: 8, kind: input, shape index: {}]
  %s9 = inlined_call_operand.vmem [shape: f32[1,64], index: 9, kind: input, shape index: {}]
  %s10 = inlined_call_operand.vmem [shape: f32[1,64], index: 10, kind: input, shape index: {}]
  %s11 = inlined_call_operand.vmem [shape: bf16[3,192,128], index: 11, kind: input, shape index: {}]
  %s12 = inlined_call_operand.vmem [shape: f32[1,128], index: 12, kind: input, shape index: {}]
  %s13 = inlined_call_operand.vmem [shape: f32[512,128], index: 13, kind: output, shape index: {}]
  %s14 = sld [smem:[#allocation0]]
  $region62: #{generator_forward.1} parent=0
    _
  %s16 = ssub.s32 1, %s14
  %s17 = scalar_select 0, %s16, %s14
  // Predicated region
  $region2: #{generator_forward.1} parent=0 // pred_check
    _
  $region3: #{generator_forward.1} parent=0 // pred_check_branch
    %19 = sbr.rel (0) target = $region5
  $region4: #{generator_forward.1} parent=0 // pred_region
    _
  $region5: #{generator_forward.1} parent=0 // pred_fallthru
    _
  // Predicated region
  $region6: #{generator_forward.1} parent=0 // pred_check
    _
  $region7: #{generator_forward.1} parent=0 // pred_check_branch
    %21 = sbr.rel (0) target = $region9
  $region8: #{generator_forward.1} parent=0 // pred_region
    _
  $region9: #{generator_forward.1} parent=0 // pred_fallthru
    _
  // Predicated region
  $region10: #{generator_forward.1} parent=0 // pred_check
    _
  $region11: #{generator_forward.1} parent=0 // pred_check_branch
    %23 = sbr.rel (0) target = $region13
  $region12: #{generator_forward.1} parent=0 // pred_region
    _
  $region13: #{generator_forward.1} parent=0 // pred_fallthru
    _
  // Predicated region
  $region14: #{generator_forward.1} parent=0 // pred_check
    _
  $region15: #{generator_forward.1} parent=0 // pred_check_branch
    %25 = sbr.rel (0) target = $region17
  $region16: #{generator_forward.1} parent=0 // pred_region
    _
  $region17: #{generator_forward.1} parent=0 // pred_fallthru
    _
  // Predicated region
  $region18: #{generator_forward.1} parent=0 // pred_check
    _
  $region19: #{generator_forward.1} parent=0 // pred_check_branch
    %27 = sbr.rel (0) target = $region21
  $region20: #{generator_forward.1} parent=0 // pred_region
    _
  $region21: #{generator_forward.1} parent=0 // pred_fallthru
    _
  // Predicated region
  $region22: #{generator_forward.1} parent=0 // pred_check
    _
  $region23: #{generator_forward.1} parent=0 // pred_check_branch
    %29 = sbr.rel (0) target = $region25
  $region24: #{generator_forward.1} parent=0 // pred_region
    _
  $region25: #{generator_forward.1} parent=0 // pred_fallthru
    _
  // Predicated region
  $region26: #{generator_forward.1} parent=0 // pred_check
    _
  $region27: #{generator_forward.1} parent=0 // pred_check_branch
    %31 = sbr.rel (0) target = $region29
  $region28: #{generator_forward.1} parent=0 // pred_region
    _
  $region29: #{generator_forward.1} parent=0 // pred_fallthru
    _
  // Predicated region
  $region30: #{generator_forward.1} parent=0 // pred_check
    _
  $region31: #{generator_forward.1} parent=0 // pred_check_branch
    %33 = sbr.rel (0) target = $region33
  $region32: #{generator_forward.1} parent=0 // pred_region
    _
  $region33: #{generator_forward.1} parent=0 // pred_fallthru
    _
  // Predicated region
  $region34: #{generator_forward.1} parent=0 // pred_check
    _
  $region35: #{generator_forward.1} parent=0 // pred_check_branch
    %35 = sbr.rel (0) target = $region37
  $region36: #{generator_forward.1} parent=0 // pred_region
    _
  $region37: #{generator_forward.1} parent=0 // pred_fallthru
    _
  // Predicated region
  $region38: #{generator_forward.1} parent=0 // pred_check
    _
  $region39: #{generator_forward.1} parent=0 // pred_check_branch
    %37 = sbr.rel (0) target = $region41
  $region40: #{generator_forward.1} parent=0 // pred_region
    _
  $region41: #{generator_forward.1} parent=0 // pred_fallthru
    _
  // Predicated region
  $region42: #{generator_forward.1} parent=0 // pred_check
    _
  $region43: #{generator_forward.1} parent=0 // pred_check_branch
    %39 = sbr.rel (0) target = $region45
  $region44: #{generator_forward.1} parent=0 // pred_region
    _
  $region45: #{generator_forward.1} parent=0 // pred_fallthru
    _
  // Predicated region
  $region46: #{generator_forward.1} parent=0 // pred_check
    _
  $region47: #{generator_forward.1} parent=0 // pred_check_branch
    %41 = sbr.rel (0) target = $region49
  $region48: #{generator_forward.1} parent=0 // pred_region
    _
  $region49: #{generator_forward.1} parent=0 // pred_fallthru
    _
  // Predicated region
  $region50: #{generator_forward.1} parent=0 // pred_check
    _
  $region51: #{generator_forward.1} parent=0 // pred_check_branch
    %43 = sbr.rel (0) target = $region53
  $region52: #{generator_forward.1} parent=0 // pred_region
    _
  $region53: #{generator_forward.1} parent=0 // pred_fallthru
    _
  %v45 = vld [vmem:[%s0] sm:$0xff]
  %v46 = vld [vmem:[%s0 + $0x8] sm:$0xff]
  %v47 = vld [vmem:[%s0 + $0x10] sm:$0xff]
  %v48 = vld [vmem:[%s0 + $0x18] sm:$0xff]
  %v49 = vld [vmem:[%s0 + $0x20] sm:$0xff]
  %v50 = vld [vmem:[%s0 + $0x28] sm:$0xff]
  %v51 = vld [vmem:[%s0 + $0x30] sm:$0xff]
  %v52 = vld [vmem:[%s0 + $0x38] sm:$0xff]
  %v53 = vld [vmem:[%s1] sm:$0xf]
  %v54 = vld [vmem:[%s1 + $0x4] sm:$0xf]
  %v55 = vld [vmem:[%s1 + $0x8] sm:$0xf]
  %v56 = vld [vmem:[%s1 + $0xc] sm:$0xf]
  %v57 = vld [vmem:[%s1 + $0x10] sm:$0xf]
  %v58 = vld [vmem:[%s1 + $0x14] sm:$0xf]
  %v59 = vld [vmem:[%s1 + $0x18] sm:$0xf]
  %v60 = vld [vmem:[%s1 + $0x1c] sm:$0xf]
  %v61 = vld [vmem:[%s1 + $0x20] sm:$0xf]
  %v62 = vld [vmem:[%s1 + $0x24] sm:$0xf]
  %v63 = vld [vmem:[%s1 + $0x28] sm:$0xf]
  %v64 = vld [vmem:[%s1 + $0x2c] sm:$0xf]
  %v65 = vld [vmem:[%s1 + $0x30] sm:$0xf]
  %v66 = vld [vmem:[%s1 + $0x34] sm:$0xf]
  %v67 = vld [vmem:[%s1 + $0x38] sm:$0xf]
  %v68 = vld [vmem:[%s1 + $0x3c] sm:$0xf]
  %v69 = vld [vmem:[%s1 + $0x40] sm:$0xf]
  %v70 = vld [vmem:[%s1 + $0x44] sm:$0xf]
  %v71 = vld [vmem:[%s1 + $0x48] sm:$0xf]
  %v72 = vld [vmem:[%s1 + $0x4c] sm:$0xf]
  %v73 = vld [vmem:[%s1 + $0x50] sm:$0xf]
  %v74 = vld [vmem:[%s1 + $0x54] sm:$0xf]
  %v75 = vld [vmem:[%s1 + $0x58] sm:$0xf]
  %v76 = vld [vmem:[%s1 + $0x5c] sm:$0xf]
  %v77 = vld [vmem:[%s1 + $0x60] sm:$0xf]
  %v78 = vld [vmem:[%s1 + $0x64] sm:$0xf]
  %v79 = vld [vmem:[%s1 + $0x68] sm:$0xf]
  %v80 = vld [vmem:[%s1 + $0x6c] sm:$0xf]
  %v81 = vld [vmem:[%s1 + $0x70] sm:$0xf]
  %v82 = vld [vmem:[%s1 + $0x74] sm:$0xf]
  %v83 = vld [vmem:[%s1 + $0x78] sm:$0xf]
  %v84 = vld [vmem:[%s1 + $0x7c] sm:$0xf]
  %v85 = vld [vmem:[%s1 + $0x80] sm:$0xf]
  %v86 = vld [vmem:[%s1 + $0x84] sm:$0xf]
  %v87 = vld [vmem:[%s1 + $0x88] sm:$0xf]
  %v88 = vld [vmem:[%s1 + $0x8c] sm:$0xf]
  %v89 = vld [vmem:[%s1 + $0x90] sm:$0xf]
  %v90 = vld [vmem:[%s1 + $0x94] sm:$0xf]
  %v91 = vld [vmem:[%s1 + $0x98] sm:$0xf]
  %v92 = vld [vmem:[%s1 + $0x9c] sm:$0xf]
  %v93 = vld [vmem:[%s1 + $0xa0] sm:$0xf]
  %v94 = vld [vmem:[%s1 + $0xa4] sm:$0xf]
  %v95 = vld [vmem:[%s1 + $0xa8] sm:$0xf]
  %v96 = vld [vmem:[%s1 + $0xac] sm:$0xf]
  %v97 = vld [vmem:[%s1 + $0xb0] sm:$0xf]
  %v98 = vld [vmem:[%s1 + $0xb4] sm:$0xf]
  %v99 = vld [vmem:[%s1 + $0xb8] sm:$0xf]
  %v100 = vld [vmem:[%s1 + $0xbc] sm:$0xf]
  %v101 = vld [vmem:[%s1 + $0xc0] sm:$0xf]
  %v102 = vld [vmem:[%s1 + $0xc4] sm:$0xf]
  %v103 = vld [vmem:[%s1 + $0xc8] sm:$0xf]
  %v104 = vld [vmem:[%s1 + $0xcc] sm:$0xf]
  %v105 = vld [vmem:[%s1 + $0xd0] sm:$0xf]
  %v106 = vld [vmem:[%s1 + $0xd4] sm:$0xf]
  %v107 = vld [vmem:[%s1 + $0xd8] sm:$0xf]
  %v108 = vld [vmem:[%s1 + $0xdc] sm:$0xf]
  %v109 = vld [vmem:[%s1 + $0xe0] sm:$0xf]
  %v110 = vld [vmem:[%s1 + $0xe4] sm:$0xf]
  %v111 = vld [vmem:[%s1 + $0xe8] sm:$0xf]
  %v112 = vld [vmem:[%s1 + $0xec] sm:$0xf]
  %v113 = vld [vmem:[%s1 + $0xf0] sm:$0xf]
  %v114 = vld [vmem:[%s1 + $0xf4] sm:$0xf]
  %v115 = vld [vmem:[%s1 + $0xf8] sm:$0xf]
  %v116 = vld [vmem:[%s1 + $0xfc] sm:$0xf]
  %v125 = vunpack.c.l.b16 %v45
  %v126 = vunpack.c.h.b16 %v45
  %v127 = vunpack.c.l.b16 %v46
  %v128 = vunpack.c.h.b16 %v46
  %v129 = vunpack.c.l.b16 %v47
  %v130 = vunpack.c.h.b16 %v47
  %v131 = vunpack.c.l.b16 %v48
  %v132 = vunpack.c.h.b16 %v48
  %v133 = vunpack.c.l.b16 %v49
  %v134 = vunpack.c.h.b16 %v49
  %v135 = vunpack.c.l.b16 %v50
  %v136 = vunpack.c.h.b16 %v50
  %v137 = vunpack.c.l.b16 %v51
  %v138 = vunpack.c.h.b16 %v51
  %v139 = vunpack.c.l.b16 %v52
  %v140 = vunpack.c.h.b16 %v52
  %v141 = vpack.c.b16 %v129, %v125
  %v142 = vpack.c.b16 %v130, %v126
  %v143 = vpack.c.b16 %v131, %v127
  %v144 = vpack.c.b16 %v132, %v128
  %v145 = vpack.c.b16 %v137, %v133
  %v146 = vpack.c.b16 %v138, %v134
  %v147 = vpack.c.b16 %v139, %v135
  %v148 = vpack.c.b16 %v140, %v136
  %v221 = vunpack.c.l.b16 %v53
  %v222 = vunpack.c.l.b16 %v54
  %v223 = vunpack.c.l.b16 %v55
  %v224 = vunpack.c.l.b16 %v56
  %v225 = vunpack.c.l.b16 %v57
  %v226 = vunpack.c.l.b16 %v58
  %v227 = vunpack.c.l.b16 %v59
  %v228 = vunpack.c.l.b16 %v60
  %v229 = vunpack.c.l.b16 %v61
  %v230 = vunpack.c.l.b16 %v62
  %v231 = vunpack.c.l.b16 %v63
  %v232 = vunpack.c.l.b16 %v64
  %v233 = vunpack.c.l.b16 %v65
  %v234 = vunpack.c.l.b16 %v66
  %v235 = vunpack.c.l.b16 %v67
  %v236 = vunpack.c.l.b16 %v68
  %v237 = vunpack.c.l.b16 %v69
  %v238 = vunpack.c.l.b16 %v70
  %v239 = vunpack.c.l.b16 %v71
  %v240 = vunpack.c.l.b16 %v72
  %v241 = vunpack.c.l.b16 %v73
  %v242 = vunpack.c.l.b16 %v74
  %v243 = vunpack.c.l.b16 %v75
  %v244 = vunpack.c.l.b16 %v76
  %v245 = vunpack.c.l.b16 %v77
  %v246 = vunpack.c.l.b16 %v78
  %v247 = vunpack.c.l.b16 %v79
  %v248 = vunpack.c.l.b16 %v80
  %v249 = vunpack.c.l.b16 %v81
  %v250 = vunpack.c.l.b16 %v82
  %v251 = vunpack.c.l.b16 %v83
  %v252 = vunpack.c.l.b16 %v84
  %v253 = vunpack.c.l.b16 %v85
  %v254 = vunpack.c.l.b16 %v86
  %v255 = vunpack.c.l.b16 %v87
  %v256 = vunpack.c.l.b16 %v88
  %v257 = vunpack.c.l.b16 %v89
  %v258 = vunpack.c.l.b16 %v90
  %v259 = vunpack.c.l.b16 %v91
  %v260 = vunpack.c.l.b16 %v92
  %v261 = vunpack.c.l.b16 %v93
  %v262 = vunpack.c.l.b16 %v94
  %v263 = vunpack.c.l.b16 %v95
  %v264 = vunpack.c.l.b16 %v96
  %v265 = vunpack.c.l.b16 %v97
  %v266 = vunpack.c.l.b16 %v98
  %v267 = vunpack.c.l.b16 %v99
  %v268 = vunpack.c.l.b16 %v100
  %v269 = vunpack.c.l.b16 %v101
  %v270 = vunpack.c.l.b16 %v102
  %v271 = vunpack.c.l.b16 %v103
  %v272 = vunpack.c.l.b16 %v104
  %v273 = vunpack.c.l.b16 %v105
  %v274 = vunpack.c.l.b16 %v106
  %v275 = vunpack.c.l.b16 %v107
  %v276 = vunpack.c.l.b16 %v108
  %v277 = vunpack.c.l.b16 %v109
  %v278 = vunpack.c.l.b16 %v110
  %v279 = vunpack.c.l.b16 %v111
  %v280 = vunpack.c.l.b16 %v112
  %v281 = vunpack.c.l.b16 %v113
  %v282 = vunpack.c.l.b16 %v114
  %v283 = vunpack.c.l.b16 %v115
  %v284 = vunpack.c.l.b16 %v116
  %v285 = vpack.c.b16 %v222, %v221
  %v286 = vpack.c.b16 %v224, %v223
  %v287 = vpack.c.b16 %v226, %v225
  %v288 = vpack.c.b16 %v228, %v227
  %v289 = vpack.c.b16 %v230, %v229
  %v290 = vpack.c.b16 %v232, %v231
  %v291 = vpack.c.b16 %v234, %v233
  %v292 = vpack.c.b16 %v236, %v235
  %v293 = vpack.c.b16 %v238, %v237
  %v294 = vpack.c.b16 %v240, %v239
  %v295 = vpack.c.b16 %v242, %v241
  %v296 = vpack.c.b16 %v244, %v243
  %v297 = vpack.c.b16 %v246, %v245
  %v298 = vpack.c.b16 %v248, %v247
  %v299 = vpack.c.b16 %v250, %v249
  %v300 = vpack.c.b16 %v252, %v251
  %v301 = vpack.c.b16 %v254, %v253
  %v302 = vpack.c.b16 %v256, %v255
  %v303 = vpack.c.b16 %v258, %v257
  %v304 = vpack.c.b16 %v260, %v259
  %v305 = vpack.c.b16 %v262, %v261
  %v306 = vpack.c.b16 %v264, %v263
  %v307 = vpack.c.b16 %v266, %v265
  %v308 = vpack.c.b16 %v268, %v267
  %v309 = vpack.c.b16 %v270, %v269
  %v310 = vpack.c.b16 %v272, %v271
  %v311 = vpack.c.b16 %v274, %v273
  %v312 = vpack.c.b16 %v276, %v275
  %v313 = vpack.c.b16 %v278, %v277
  %v314 = vpack.c.b16 %v280, %v279
  %v315 = vpack.c.b16 %v282, %v281
  %v316 = vpack.c.b16 %v284, %v283
  %349 = vmatprep.subr.bf16.mxu0 0
  %350 = vmatpush1.bf16.msra.mxu0 %v285
  %351 = vmatprep.subr.bf16.mxu0 0
  %352 = vmatpush1.bf16.msra.mxu0 %v286
  %353 = vmatprep.subr.bf16.mxu0 0
  %354 = vmatpush1.bf16.msra.mxu0 %v287
  %355 = vmatprep.subr.bf16.mxu0 0
  %356 = vmatpush1.bf16.msra.mxu0 %v288
  %357 = vmatprep.subr.bf16.mxu0 0
  %358 = vmatpush1.bf16.msra.mxu0 %v289
  %359 = vmatprep.subr.bf16.mxu0 0
  %360 = vmatpush1.bf16.msra.mxu0 %v290
  %361 = vmatprep.subr.bf16.mxu0 0
  %362 = vmatpush1.bf16.msra.mxu0 %v291
  %363 = vmatprep.subr.bf16.mxu0 0
  %364 = vmatpush1.bf16.msra.mxu0 %v292
  %365 = vmatprep.subr.bf16.mxu0 0
  %366 = vmatpush1.bf16.msra.mxu0 %v293
  %367 = vmatprep.subr.bf16.mxu0 0
  %368 = vmatpush1.bf16.msra.mxu0 %v294
  %369 = vmatprep.subr.bf16.mxu0 0
  %370 = vmatpush1.bf16.msra.mxu0 %v295
  %371 = vmatprep.subr.bf16.mxu0 0
  %372 = vmatpush1.bf16.msra.mxu0 %v296
  %373 = vmatprep.subr.bf16.mxu0 0
  %374 = vmatpush1.bf16.msra.mxu0 %v297
  %375 = vmatprep.subr.bf16.mxu0 0
  %376 = vmatpush1.bf16.msra.mxu0 %v298
  %377 = vmatprep.subr.bf16.mxu0 0
  %378 = vmatpush1.bf16.msra.mxu0 %v299
  %379 = vmatprep.subr.bf16.mxu0 0
  %380 = vmatpush1.bf16.msra.mxu0 %v300
  %381 = vmatprep.mubr.bf16.mxu0 %v142
  %382 = vmatmul.mubr.bf16.gmra.mrb[0].mxu0 %v141
  %v383 = vpop.f32.mrb[0].mxu0
  %v384 = vadd.f32 0.0, %v383
  %v385 = vpop.f32.mrb[0].mxu0
  %v386 = vpop.f32.mrb[0].mxu0
  %v387 = vadd.f32 0.0, %v386
  %v388 = vpop.f32.mrb[0].mxu0
  %389 = vmatprep.mubr.bf16.mxu0 %v146
  %390 = vmatmul.mubr.bf16.gmra.mrb[0].mxu0 %v145
  %v391 = vpop.f32.mrb[0].mxu0
  %v392 = vadd.f32 0.0, %v391
  %v393 = vpop.f32.mrb[0].mxu0
  %v394 = vpop.f32.mrb[0].mxu0
  %v395 = vadd.f32 0.0, %v394
  %v396 = vpop.f32.mrb[0].mxu0
  %397 = vdwg.mxu0
  %398 = vmatprep.subr.bf16.mxu0 0
  %399 = vmatpush1.bf16.msra.mxu0 %v301
  %400 = vmatprep.subr.bf16.mxu0 0
  %401 = vmatpush1.bf16.msra.mxu0 %v302
  %402 = vmatprep.subr.bf16.mxu0 0
  %403 = vmatpush1.bf16.msra.mxu0 %v303
  %404 = vmatprep.subr.bf16.mxu0 0
  %405 = vmatpush1.bf16.msra.mxu0 %v304
  %406 = vmatprep.subr.bf16.mxu0 0
  %407 = vmatpush1.bf16.msra.mxu0 %v305
  %408 = vmatprep.subr.bf16.mxu0 0
  %409 = vmatpush1.bf16.msra.mxu0 %v306
  %410 = vmatprep.subr.bf16.mxu0 0
  %411 = vmatpush1.bf16.msra.mxu0 %v307
  %412 = vmatprep.subr.bf16.mxu0 0
  %413 = vmatpush1.bf16.msra.mxu0 %v308
  %414 = vmatprep.subr.bf16.mxu0 0
  %415 = vmatpush1.bf16.msra.mxu0 %v309
  %416 = vmatprep.subr.bf16.mxu0 0
  %417 = vmatpush1.bf16.msra.mxu0 %v310
  %418 = vmatprep.subr.bf16.mxu0 0
  %419 = vmatpush1.bf16.msra.mxu0 %v311
  %420 = vmatprep.subr.bf16.mxu0 0
  %421 = vmatpush1.bf16.msra.mxu0 %v312
  %422 = vmatprep.subr.bf16.mxu0 0
  %423 = vmatpush1.bf16.msra.mxu0 %v313
  %424 = vmatprep.subr.bf16.mxu0 0
  %425 = vmatpush1.bf16.msra.mxu0 %v314
  %426 = vmatprep.subr.bf16.mxu0 0
  %427 = vmatpush1.bf16.msra.mxu0 %v315
  %428 = vmatprep.subr.bf16.mxu0 0
  %429 = vmatpush1.bf16.msra.mxu0 %v316
  %430 = vmatprep.mubr.bf16.mxu0 %v144
  %431 = vmatmul.mubr.bf16.gmra.mrb[0].mxu0 %v143
  %v432 = vpop.f32.mrb[0].mxu0
  %v433 = vadd.f32 %v384, %v432
  %v434 = vpop.f32.mrb[0].mxu0
  %v435 = vpop.f32.mrb[0].mxu0
  %v436 = vadd.f32 %v387, %v435
  %v437 = vpop.f32.mrb[0].mxu0
  %438 = vmatprep.mubr.bf16.mxu0 %v148
  %439 = vmatmul.mubr.bf16.gmra.mrb[0].mxu0 %v147
  %v440 = vpop.f32.mrb[0].mxu0
  %v441 = vadd.f32 %v392, %v440
  %v442 = vpop.f32.mrb[0].mxu0
  %v443 = vpop.f32.mrb[0].mxu0
  %v444 = vadd.f32 %v395, %v443
  %v445 = vpop.f32.mrb[0].mxu0
  %446 = vdwg.mxu0
  %v447 = vld [vmem:[%s2] sm:$0xff]
  %v448 = vld [vmem:[%s2 + $0x8] sm:$0xff]
  %v449 = vadd.f32 %v433, %v447
  %v450 = vadd.f32 %v436, %v448
  %v451 = vadd.f32 %v441, %v447
  %v452 = vadd.f32 %v444, %v448
  %v453 = vld [vmem:[%s3] sm:$0x1]
  %v454 = vld [vmem:[%s4] sm:$0x1]
  %v455 = vadd.f32 %v449, %v450
  %v456 = vadd.f32 %v455, %v451
  %v457 = vadd.f32 %v456, %v452
  %v458 = vrot.slane %v457, 4
  %v459 = vadd.f32 %v457, %v458
  %v460 = vrot.slane %v459, 2
  %v461 = vadd.f32 %v459, %v460
  %v462 = vrot.slane %v461, 1
  %v463 = vadd.f32 %v461, %v462
  %v464 = vmul.f32 %v463, 0.03125
  %v465 = vsub.f32 %v449, %v464
  %v466 = vsub.f32 %v450, %v464
  %v467 = vsub.f32 %v451, %v464
  %v468 = vsub.f32 %v452, %v464
  %v469 = vmul.f32 %v465, %v465
  %v470 = vmul.f32 %v466, %v466
  %v471 = vmul.f32 %v467, %v467
  %v472 = vmul.f32 %v468, %v468
  %v473 = vadd.f32 %v469, %v470
  %v474 = vadd.f32 %v473, %v471
  %v475 = vadd.f32 %v474, %v472
  %v476 = vrot.slane %v475, 4
  %v477 = vadd.f32 %v475, %v476
  %v478 = vrot.slane %v477, 2
  %v479 = vadd.f32 %v477, %v478
  %v480 = vrot.slane %v479, 1
  %v481 = vadd.f32 %v479, %v480
  %v482 = vmul.f32 %v481, 0.03125
  %v483 = vadd.f32 %v482, 1e-05
  %v484 = vrsqrt.pop %v483
  %v485 = vmul.f32 %v484, %v453
  %v486 = vlaneseq
  %v487 = vshrl.u32 %v486, 7
  %v488 = vsub.s32 0, %v487
  %v489 = vrot.slane %v485, %v488
  %v490 = vmul.f32 %v465, %v489
  %v491 = vmul.f32 %v466, %v489
  %v492 = vmul.f32 %v467, %v489
  %v493 = vmul.f32 %v468, %v489
  %v495 = vlaneseq
  %v496 = vshrl.u32 %v495, 7
  %v497 = vsub.s32 0, %v496
  %v498 = vrot.slane %v454, %v497
  %v500 = vadd.f32 %v490, %v498
  %v501 = vadd.f32 %v491, %v498
  %v502 = vadd.f32 %v492, %v498
  %v503 = vadd.f32 %v493, %v498
  %504 = vst [vmem:[#allocation2] sm:$0xff] 0.0
  %505 = vst [vmem:[#allocation2 + $0x8] sm:$0x3] 0.0
  %506 = vst [vmem:[#allocation2 + $0x10] sm:$0xff] 0.0
  %507 = vst [vmem:[#allocation2 + $0x18] sm:$0x3] 0.0
  %508 = vst [vmem:[#allocation2 + $0x20] sm:$0xff] 0.0
  %509 = vst [vmem:[#allocation2 + $0x28] sm:$0x3] 0.0
  %510 = vst [vmem:[#allocation2 + $0x30] sm:$0xff] 0.0
  %511 = vst [vmem:[#allocation2 + $0x38] sm:$0x3] 0.0
  %512 = vst [vmem:[#allocation2 + $0x40] sm:$0xff] 0.0
  %513 = vst [vmem:[#allocation2 + $0x48] sm:$0x3] 0.0
  %514 = vst [vmem:[#allocation2 + $0x50] sm:$0xff] 0.0
  %515 = vst [vmem:[#allocation2 + $0x58] sm:$0x3] 0.0
  %516 = vst [vmem:[#allocation2 + $0x60] sm:$0xff] 0.0
  %517 = vst [vmem:[#allocation2 + $0x68] sm:$0x3] 0.0
  %518 = vst [vmem:[#allocation2 + $0x70] sm:$0xff] 0.0
  %519 = vst [vmem:[#allocation2 + $0x78] sm:$0x3] 0.0
  %520 = vst [vmem:[#allocation2 + $0x80] sm:$0xff] 0.0
  %521 = vst [vmem:[#allocation2 + $0x88] sm:$0x3] 0.0
  %522 = vst [vmem:[#allocation2 + $0x90] sm:$0xff] 0.0
  %523 = vst [vmem:[#allocation2 + $0x98] sm:$0x3] 0.0
  %524 = vst [vmem:[#allocation2 + $0xa0] sm:$0xff] 0.0
  %525 = vst [vmem:[#allocation2 + $0xa8] sm:$0x3] 0.0
  %526 = vst [vmem:[#allocation2 + $0xb0] sm:$0xff] 0.0
  %527 = vst [vmem:[#allocation2 + $0xb8] sm:$0x3] 0.0
  %528 = vst [vmem:[#allocation2 + $0xc0] sm:$0xff] 0.0
  %529 = vst [vmem:[#allocation2 + $0xc8] sm:$0x3] 0.0
  %530 = vst [vmem:[#allocation2 + $0xd0] sm:$0xff] 0.0
  %531 = vst [vmem:[#allocation2 + $0xd8] sm:$0x3] 0.0
  %532 = vst [vmem:[#allocation2 + $0xe0] sm:$0xff] 0.0
  %533 = vst [vmem:[#allocation2 + $0xe8] sm:$0x3] 0.0
  %534 = vst [vmem:[#allocation2 + $0xf0] sm:$0xff] 0.0
  %535 = vst [vmem:[#allocation2 + $0xf8] sm:$0x3] 0.0
  %536 = vst [vmem:[#allocation2 + $0x100] sm:$0xff] 0.0
  %537 = vst [vmem:[#allocation2 + $0x108] sm:$0x3] 0.0
  %538 = vst [vmem:[#allocation2 + $0x110] sm:$0xff] 0.0
  %539 = vst [vmem:[#allocation2 + $0x118] sm:$0x3] 0.0
  %540 = vst [vmem:[#allocation2 + $0x120] sm:$0xff] 0.0
  %541 = vst [vmem:[#allocation2 + $0x128] sm:$0x3] 0.0
  %542 = vst [vmem:[#allocation2 + $0x130] sm:$0xff] 0.0
  %543 = vst [vmem:[#allocation2 + $0x138] sm:$0x3] 0.0
  %v548 = vcombine.high %v500, %v500
  %v550 = vunpack.c.l.s4 1966171168
  %v551 = vunpack.c.0.s8 %v550
  %v552 = vlaneseq
  %v553 = vshrl.u32 %v552, 7
  %v554 = vsub.s32 %v551, %v553
  %v555 = vrot.slane %v500, %v554
  %v557 = vunpack.c.l.s4 1966171168
  %v558 = vunpack.c.0.s8 %v557
  %v559 = vlaneseq
  %v560 = vshrl.u32 %v559, 7
  %v561 = vsub.s32 %v558, %v560
  %v562 = vrot.slane %v548, %v561
  %v563 = vcombine.high %v555, %v555
  %v564 = vcombine.high %v562, %v562
  %v566 = vunpack.c.l.s4 1966171168
  %v567 = vunpack.c.0.s8 %v566
  %v568 = vlaneseq
  %v569 = vshrl.u32 %v568, 7
  %v570 = vsub.s32 %v567, %v569
  %v571 = vrot.slane %v555, %v570
  %v573 = vunpack.c.l.s4 1966171168
  %v574 = vunpack.c.0.s8 %v573
  %v575 = vlaneseq
  %v576 = vshrl.u32 %v575, 7
  %v577 = vsub.s32 %v574, %v576
  %v578 = vrot.slane %v562, %v577
  %v580 = vunpack.c.l.s4 1966171168
  %v581 = vunpack.c.0.s8 %v580
  %v582 = vlaneseq
  %v583 = vshrl.u32 %v582, 7
  %v584 = vsub.s32 %v581, %v583
  %v585 = vrot.slane %v563, %v584
  %v587 = vunpack.c.l.s4 1966171168
  %v588 = vunpack.c.0.s8 %v587
  %v589 = vlaneseq
  %v590 = vshrl.u32 %v589, 7
  %v591 = vsub.s32 %v588, %v590
  %v592 = vrot.slane %v564, %v591
  %v593 = vcombine.high %v571, %v571
  %v594 = vcombine.high %v578, %v578
  %v595 = vcombine.high %v585, %v585
  %v596 = vcombine.high %v592, %v592
  %v597 = vcombine.high %v501, %v501
  %v599 = vunpack.c.l.s4 1966171168
  %v600 = vunpack.c.0.s8 %v599
  %v601 = vlaneseq
  %v602 = vshrl.u32 %v601, 7
  %v603 = vsub.s32 %v600, %v602
  %v604 = vrot.slane %v501, %v603
  %v606 = vunpack.c.l.s4 1966171168
  %v607 = vunpack.c.0.s8 %v606
  %v608 = vlaneseq
  %v609 = vshrl.u32 %v608, 7
  %v610 = vsub.s32 %v607, %v609
  %v611 = vrot.slane %v597, %v610
  %v612 = vcombine.high %v604, %v604
  %v613 = vcombine.high %v611, %v611
  %v615 = vunpack.c.l.s4 1966171168
  %v616 = vunpack.c.0.s8 %v615
  %v617 = vlaneseq
  %v618 = vshrl.u32 %v617, 7
  %v619 = vsub.s32 %v616, %v618
  %v620 = vrot.slane %v604, %v619
  %v622 = vunpack.c.l.s4 1966171168
  %v623 = vunpack.c.0.s8 %v622
  %v624 = vlaneseq
  %v625 = vshrl.u32 %v624, 7
  %v626 = vsub.s32 %v623, %v625
  %v627 = vrot.slane %v611, %v626
  %v629 = vunpack.c.l.s4 1966171168
  %v630 = vunpack.c.0.s8 %v629
  %v631 = vlaneseq
  %v632 = vshrl.u32 %v631, 7
  %v633 = vsub.s32 %v630, %v632
  %v634 = vrot.slane %v612, %v633
  %v636 = vunpack.c.l.s4 1966171168
  %v637 = vunpack.c.0.s8 %v636
  %v638 = vlaneseq
  %v639 = vshrl.u32 %v638, 7
  %v640 = vsub.s32 %v637, %v639
  %v641 = vrot.slane %v613, %v640
  %v642 = vcombine.high %v620, %v620
  %v643 = vcombine.high %v627, %v627
  %v644 = vcombine.high %v634, %v634
  %v645 = vcombine.high %v641, %v641
  %v646 = vcombine.high %v502, %v502
  %v648 = vunpack.c.l.s4 1966171168
  %v649 = vunpack.c.0.s8 %v648
  %v650 = vlaneseq
  %v651 = vshrl.u32 %v650, 7
  %v652 = vsub.s32 %v649, %v651
  %v653 = vrot.slane %v502, %v652
  %v655 = vunpack.c.l.s4 1966171168
  %v656 = vunpack.c.0.s8 %v655
  %v657 = vlaneseq
  %v658 = vshrl.u32 %v657, 7
  %v659 = vsub.s32 %v656, %v658
  %v660 = vrot.slane %v646, %v659
  %v661 = vcombine.high %v653, %v653
  %v662 = vcombine.high %v660, %v660
  %v664 = vunpack.c.l.s4 1966171168
  %v665 = vunpack.c.0.s8 %v664
  %v666 = vlaneseq
  %v667 = vshrl.u32 %v666, 7
  %v668 = vsub.s32 %v665, %v667
  %v669 = vrot.slane %v653, %v668
  %v671 = vunpack.c.l.s4 1966171168
  %v672 = vunpack.c.0.s8 %v671
  %v673 = vlaneseq
  %v674 = vshrl.u32 %v673, 7
  %v675 = vsub.s32 %v672, %v674
  %v676 = vrot.slane %v660, %v675
  %v678 = vunpack.c.l.s4 1966171168
  %v679 = vunpack.c.0.s8 %v678
  %v680 = vlaneseq
  %v681 = vshrl.u32 %v680, 7
  %v682 = vsub.s32 %v679, %v681
  %v683 = vrot.slane %v661, %v682
  %v685 = vunpack.c.l.s4 1966171168
  %v686 = vunpack.c.0.s8 %v685
  %v687 = vlaneseq
  %v688 = vshrl.u32 %v687, 7
  %v689 = vsub.s32 %v686, %v688
  %v690 = vrot.slane %v662, %v689
  %v691 = vcombine.high %v669, %v669
  %v692 = vcombine.high %v676, %v676
  %v693 = vcombine.high %v683, %v683
  %v694 = vcombine.high %v690, %v690
  %v695 = vcombine.high %v503, %v503
  %v697 = vunpack.c.l.s4 1966171168
  %v698 = vunpack.c.0.s8 %v697
  %v699 = vlaneseq
  %v700 = vshrl.u32 %v699, 7
  %v701 = vsub.s32 %v698, %v700
  %v702 = vrot.slane %v503, %v701
  %v704 = vunpack.c.l.s4 1966171168
  %v705 = vunpack.c.0.s8 %v704
  %v706 = vlaneseq
  %v707 = vshrl.u32 %v706, 7
  %v708 = vsub.s32 %v705, %v707
  %v709 = vrot.slane %v695, %v708
  %v710 = vcombine.high %v702, %v702
  %v711 = vcombine.high %v709, %v709
  %v713 = vunpack.c.l.s4 1966171168
  %v714 = vunpack.c.0.s8 %v713
  %v715 = vlaneseq
  %v716 = vshrl.u32 %v715, 7
  %v717 = vsub.s32 %v714, %v716
  %v718 = vrot.slane %v702, %v717
  %v720 = vunpack.c.l.s4 1966171168
  %v721 = vunpack.c.0.s8 %v720
  %v722 = vlaneseq
  %v723 = vshrl.u32 %v722, 7
  %v724 = vsub.s32 %v721, %v723
  %v725 = vrot.slane %v709, %v724
  %v727 = vunpack.c.l.s4 1966171168
  %v728 = vunpack.c.0.s8 %v727
  %v729 = vlaneseq
  %v730 = vshrl.u32 %v729, 7
  %v731 = vsub.s32 %v728, %v730
  %v732 = vrot.slane %v710, %v731
  %v734 = vunpack.c.l.s4 1966171168
  %v735 = vunpack.c.0.s8 %v734
  %v736 = vlaneseq
  %v737 = vshrl.u32 %v736, 7
  %v738 = vsub.s32 %v735, %v737
  %v739 = vrot.slane %v711, %v738
  %v740 = vcombine.high %v718, %v718
  %v741 = vcombine.high %v725, %v725
  %v742 = vcombine.high %v732, %v732
  %v743 = vcombine.high %v739, %v739
  %v744 = vlaneseq
  %v745 = vshrl.u32 %v744, 7
  %v746 = vsub.s32 0, %v745
  %v747 = vrot.slane %v571, %v746
  %v748 = vlaneseq
  %v749 = vshrl.u32 %v748, 7
  %v750 = vsub.s32 0, %v749
  %v751 = vrot.slane %v585, %v750
  %v752 = vlaneseq
  %v753 = vshrl.u32 %v752, 7
  %v754 = vsub.s32 0, %v753
  %v755 = vrot.slane %v593, %v754
  %v756 = vlaneseq
  %v757 = vshrl.u32 %v756, 7
  %v758 = vsub.s32 0, %v757
  %v759 = vrot.slane %v595, %v758
  %v760 = vlaneseq
  %v761 = vshrl.u32 %v760, 7
  %v762 = vsub.s32 0, %v761
  %v763 = vrot.slane %v578, %v762
  %v764 = vlaneseq
  %v765 = vshrl.u32 %v764, 7
  %v766 = vsub.s32 0, %v765
  %v767 = vrot.slane %v592, %v766
  %v768 = vlaneseq
  %v769 = vshrl.u32 %v768, 7
  %v770 = vsub.s32 0, %v769
  %v771 = vrot.slane %v594, %v770
  %v772 = vlaneseq
  %v773 = vshrl.u32 %v772, 7
  %v774 = vsub.s32 0, %v773
  %v775 = vrot.slane %v596, %v774
  %v776 = vlaneseq
  %v777 = vshrl.u32 %v776, 7
  %v778 = vsub.s32 0, %v777
  %v779 = vrot.slane %v620, %v778
  %v780 = vlaneseq
  %v781 = vshrl.u32 %v780, 7
  %v782 = vsub.s32 0, %v781
  %v783 = vrot.slane %v634, %v782
  %v784 = vlaneseq
  %v785 = vshrl.u32 %v784, 7
  %v786 = vsub.s32 0, %v785
  %v787 = vrot.slane %v642, %v786
  %v788 = vlaneseq
  %v789 = vshrl.u32 %v788, 7
  %v790 = vsub.s32 0, %v789
  %v791 = vrot.slane %v644, %v790
  %v792 = vlaneseq
  %v793 = vshrl.u32 %v792, 7
  %v794 = vsub.s32 0, %v793
  %v795 = vrot.slane %v627, %v794
  %v796 = vlaneseq
  %v797 = vshrl.u32 %v796, 7
  %v798 = vsub.s32 0, %v797
  %v799 = vrot.slane %v641, %v798
  %v800 = vlaneseq
  %v801 = vshrl.u32 %v800, 7
  %v802 = vsub.s32 0, %v801
  %v803 = vrot.slane %v643, %v802
  %v804 = vlaneseq
  %v805 = vshrl.u32 %v804, 7
  %v806 = vsub.s32 0, %v805
  %v807 = vrot.slane %v645, %v806
  %v808 = vlaneseq
  %v809 = vshrl.u32 %v808, 7
  %v810 = vsub.s32 0, %v809
  %v811 = vrot.slane %v669, %v810
  %v812 = vlaneseq
  %v813 = vshrl.u32 %v812, 7
  %v814 = vsub.s32 0, %v813
  %v815 = vrot.slane %v683, %v814
  %v816 = vlaneseq
  %v817 = vshrl.u32 %v816, 7
  %v818 = vsub.s32 0, %v817
  %v819 = vrot.slane %v691, %v818
  %v820 = vlaneseq
  %v821 = vshrl.u32 %v820, 7
  %v822 = vsub.s32 0, %v821
  %v823 = vrot.slane %v693, %v822
  %v824 = vlaneseq
  %v825 = vshrl.u32 %v824, 7
  %v826 = vsub.s32 0, %v825
  %v827 = vrot.slane %v676, %v826
  %v828 = vlaneseq
  %v829 = vshrl.u32 %v828, 7
  %v830 = vsub.s32 0, %v829
  %v831 = vrot.slane %v690, %v830
  %v832 = vlaneseq
  %v833 = vshrl.u32 %v832, 7
  %v834 = vsub.s32 0, %v833
  %v835 = vrot.slane %v692, %v834
  %v836 = vlaneseq
  %v837 = vshrl.u32 %v836, 7
  %v838 = vsub.s32 0, %v837
  %v839 = vrot.slane %v694, %v838
  %v840 = vlaneseq
  %v841 = vshrl.u32 %v840, 7
  %v842 = vsub.s32 0, %v841
  %v843 = vrot.slane %v718, %v842
  %v844 = vlaneseq
  %v845 = vshrl.u32 %v844, 7
  %v846 = vsub.s32 0, %v845
  %v847 = vrot.slane %v732, %v846
  %v848 = vlaneseq
  %v849 = vshrl.u32 %v848, 7
  %v850 = vsub.s32 0, %v849
  %v851 = vrot.slane %v740, %v850
  %v852 = vlaneseq
  %v853 = vshrl.u32 %v852, 7
  %v854 = vsub.s32 0, %v853
  %v855 = vrot.slane %v742, %v854
  %v856 = vlaneseq
  %v857 = vshrl.u32 %v856, 7
  %v858 = vsub.s32 0, %v857
  %v859 = vrot.slane %v725, %v858
  %v860 = vlaneseq
  %v861 = vshrl.u32 %v860, 7
  %v862 = vsub.s32 0, %v861
  %v863 = vrot.slane %v739, %v862
  %v864 = vlaneseq
  %v865 = vshrl.u32 %v864, 7
  %v866 = vsub.s32 0, %v865
  %v867 = vrot.slane %v741, %v866
  %v868 = vlaneseq
  %v869 = vshrl.u32 %v868, 7
  %v870 = vsub.s32 0, %v869
  %v871 = vrot.slane %v743, %v870
  %v872 = vcombine.low %v747, %v751
  %v873 = vcombine.low %v755, %v759
  %v875 = vunpack.c.l.s4 1983009808
  %v876 = vunpack.c.0.s8 %v875
  %v877 = vlaneseq
  %v878 = vshrl.u32 %v877, 7
  %v879 = vsub.s32 %v876, %v878
  %v880 = vrot.slane %v872, %v879
  %v882 = vunpack.c.l.s4 1983009808
  %v883 = vunpack.c.0.s8 %v882
  %v884 = vlaneseq
  %v885 = vshrl.u32 %v884, 7
  %v886 = vsub.s32 %v883, %v885
  %v887 = vrot.slane %v873, %v886
  %v888 = vcombine.low %v880, %v887
  %v889 = vcombine.low %v763, %v767
  %v890 = vcombine.low %v771, %v775
  %v892 = vunpack.c.l.s4 1983009808
  %v893 = vunpack.c.0.s8 %v892
  %v894 = vlaneseq
  %v895 = vshrl.u32 %v894, 7
  %v896 = vsub.s32 %v893, %v895
  %v897 = vrot.slane %v889, %v896
  %v899 = vunpack.c.l.s4 1983009808
  %v900 = vunpack.c.0.s8 %v899
  %v901 = vlaneseq
  %v902 = vshrl.u32 %v901, 7
  %v903 = vsub.s32 %v900, %v902
  %v904 = vrot.slane %v890, %v903
  %v905 = vcombine.low %v897, %v904
  %v906 = vcombine.low %v779, %v783
  %v907 = vcombine.low %v787, %v791
  %v909 = vunpack.c.l.s4 1983009808
  %v910 = vunpack.c.0.s8 %v909
  %v911 = vlaneseq
  %v912 = vshrl.u32 %v911, 7
  %v913 = vsub.s32 %v910, %v912
  %v914 = vrot.slane %v906, %v913
  %v916 = vunpack.c.l.s4 1983009808
  %v917 = vunpack.c.0.s8 %v916
  %v918 = vlaneseq
  %v919 = vshrl.u32 %v918, 7
  %v920 = vsub.s32 %v917, %v919
  %v921 = vrot.slane %v907, %v920
  %v922 = vcombine.low %v914, %v921
  %v923 = vcombine.low %v795, %v799
  %v924 = vcombine.low %v803, %v807
  %v926 = vunpack.c.l.s4 1983009808
  %v927 = vunpack.c.0.s8 %v926
  %v928 = vlaneseq
  %v929 = vshrl.u32 %v928, 7
  %v930 = vsub.s32 %v927, %v929
  %v931 = vrot.slane %v923, %v930
  %v933 = vunpack.c.l.s4 1983009808
  %v934 = vunpack.c.0.s8 %v933
  %v935 = vlaneseq
  %v936 = vshrl.u32 %v935, 7
  %v937 = vsub.s32 %v934, %v936
  %v938 = vrot.slane %v924, %v937
  %v939 = vcombine.low %v931, %v938
  %v940 = vcombine.low %v811, %v815
  %v941 = vcombine.low %v819, %v823
  %v943 = vunpack.c.l.s4 1983009808
  %v944 = vunpack.c.0.s8 %v943
  %v945 = vlaneseq
  %v946 = vshrl.u32 %v945, 7
  %v947 = vsub.s32 %v944, %v946
  %v948 = vrot.slane %v940, %v947
  %v950 = vunpack.c.l.s4 1983009808
  %v951 = vunpack.c.0.s8 %v950
  %v952 = vlaneseq
  %v953 = vshrl.u32 %v952, 7
  %v954 = vsub.s32 %v951, %v953
  %v955 = vrot.slane %v941, %v954
  %v956 = vcombine.low %v948, %v955
  %v957 = vcombine.low %v827, %v831
  %v958 = vcombine.low %v835, %v839
  %v960 = vunpack.c.l.s4 1983009808
  %v961 = vunpack.c.0.s8 %v960
  %v962 = vlaneseq
  %v963 = vshrl.u32 %v962, 7
  %v964 = vsub.s32 %v961, %v963
  %v965 = vrot.slane %v957, %v964
  %v967 = vunpack.c.l.s4 1983009808
  %v968 = vunpack.c.0.s8 %v967
  %v969 = vlaneseq
  %v970 = vshrl.u32 %v969, 7
  %v971 = vsub.s32 %v968, %v970
  %v972 = vrot.slane %v958, %v971
  %v973 = vcombine.low %v965, %v972
  %v974 = vcombine.low %v843, %v847
  %v975 = vcombine.low %v851, %v855
  %v977 = vunpack.c.l.s4 1983009808
  %v978 = vunpack.c.0.s8 %v977
  %v979 = vlaneseq
  %v980 = vshrl.u32 %v979, 7
  %v981 = vsub.s32 %v978, %v980
  %v982 = vrot.slane %v974, %v981
  %v984 = vunpack.c.l.s4 1983009808
  %v985 = vunpack.c.0.s8 %v984
  %v986 = vlaneseq
  %v987 = vshrl.u32 %v986, 7
  %v988 = vsub.s32 %v985, %v987
  %v989 = vrot.slane %v975, %v988
  %v990 = vcombine.low %v982, %v989
  %v991 = vcombine.low %v859, %v863
  %v992 = vcombine.low %v867, %v871
  %v994 = vunpack.c.l.s4 1983009808
  %v995 = vunpack.c.0.s8 %v994
  %v996 = vlaneseq
  %v997 = vshrl.u32 %v996, 7
  %v998 = vsub.s32 %v995, %v997
  %v999 = vrot.slane %v991, %v998
  %v1001 = vunpack.c.l.s4 1983009808
  %v1002 = vunpack.c.0.s8 %v1001
  %v1003 = vlaneseq
  %v1004 = vshrl.u32 %v1003, 7
  %v1005 = vsub.s32 %v1002, %v1004
  %v1006 = vrot.slane %v992, %v1005
  %v1007 = vcombine.low %v999, %v1006
  %s1016 = scalar_lea.vmem [#allocation2], 16
  %1017 = vst [vmem:[%s1016 + $0x1] sm:$0xff] %v888
  %1018 = vst [vmem:[%s1016 + $0x11] sm:$0xff] %v888
  %1019 = vst [vmem:[%s1016 + $0x21] sm:$0xff] %v905
  %1020 = vst [vmem:[%s1016 + $0x31] sm:$0xff] %v905
  %1021 = vst [vmem:[%s1016 + $0x41] sm:$0xff] %v922
  %1022 = vst [vmem:[%s1016 + $0x51] sm:$0xff] %v922
  %1023 = vst [vmem:[%s1016 + $0x61] sm:$0xff] %v939
  %1024 = vst [vmem:[%s1016 + $0x71] sm:$0xff] %v939
  %1025 = vst [vmem:[%s1016 + $0xa1] sm:$0xff] %v956
  %1026 = vst [vmem:[%s1016 + $0xb1] sm:$0xff] %v956
  %1027 = vst [vmem:[%s1016 + $0xc1] sm:$0xff] %v973
  %1028 = vst [vmem:[%s1016 + $0xd1] sm:$0xff] %v973
  %1029 = vst [vmem:[%s1016 + $0xe1] sm:$0xff] %v990
  %1030 = vst [vmem:[%s1016 + $0xf1] sm:$0xff] %v990
  %1031 = vst [vmem:[%s1016 + $0x101] sm:$0xff] %v1007
  %1032 = vst [vmem:[%s1016 + $0x111] sm:$0xff] %v1007
  %v1033 = vld [vmem:[#allocation2] sm:$0xff]
  %v1034 = vld [vmem:[#allocation2 + $0x10] sm:$0xff]
  %v1035 = vld [vmem:[#allocation2 + $0x20] sm:$0xff]
  %v1036 = vld [vmem:[#allocation2 + $0x30] sm:$0xff]
  %v1037 = vld [vmem:[#allocation2 + $0x40] sm:$0xff]
  %v1038 = vld [vmem:[#allocation2 + $0x50] sm:$0xff]
  %v1039 = vld [vmem:[#allocation2 + $0x60] sm:$0xff]
  %v1040 = vld [vmem:[#allocation2 + $0x70] sm:$0xff]
  %v1041 = vld [vmem:[#allocation2 + $0xa0] sm:$0xff]
  %v1042 = vld [vmem:[#allocation2 + $0xb0] sm:$0xff]
  %v1043 = vld [vmem:[#allocation2 + $0xc0] sm:$0xff]
  %v1044 = vld [vmem:[#allocation2 + $0xd0] sm:$0xff]
  %v1045 = vld [vmem:[#allocation2 + $0xe0] sm:$0xff]
  %v1046 = vld [vmem:[#allocation2 + $0xf0] sm:$0xff]
  %v1047 = vld [vmem:[#allocation2 + $0x100] sm:$0xff]
  %v1048 = vld [vmem:[#allocation2 + $0x110] sm:$0xff]
  %v1049 = vld [vmem:[#allocation2 + $0x1] sm:$0xff]
  %v1050 = vld [vmem:[#allocation2 + $0x11] sm:$0xff]
  %v1051 = vld [vmem:[#allocation2 + $0x21] sm:$0xff]
  %v1052 = vld [vmem:[#allocation2 + $0x31] sm:$0xff]
  %v1053 = vld [vmem:[#allocation2 + $0x41] sm:$0xff]
  %v1054 = vld [vmem:[#allocation2 + $0x51] sm:$0xff]
  %v1055 = vld [vmem:[#allocation2 + $0x61] sm:$0xff]
  %v1056 = vld [vmem:[#allocation2 + $0x71] sm:$0xff]
  %v1057 = vld [vmem:[#allocation2 + $0xa1] sm:$0xff]
  %v1058 = vld [vmem:[#allocation2 + $0xb1] sm:$0xff]
  %v1059 = vld [vmem:[#allocation2 + $0xc1] sm:$0xff]
  %v1060 = vld [vmem:[#allocation2 + $0xd1] sm:$0xff]
  %v1061 = vld [vmem:[#allocation2 + $0xe1] sm:$0xff]
  %v1062 = vld [vmem:[#allocation2 + $0xf1] sm:$0xff]
  %v1063 = vld [vmem:[#allocation2 + $0x101] sm:$0xff]
  %v1064 = vld [vmem:[#allocation2 + $0x111] sm:$0xff]
  %v1065 = vld [vmem:[#allocation2 + $0x2] sm:$0xff]
  %v1066 = vld [vmem:[#allocation2 + $0x12] sm:$0xff]
  %v1067 = vld [vmem:[#allocation2 + $0x22] sm:$0xff]
  %v1068 = vld [vmem:[#allocation2 + $0x32] sm:$0xff]
  %v1069 = vld [vmem:[#allocation2 + $0x42] sm:$0xff]
  %v1070 = vld [vmem:[#allocation2 + $0x52] sm:$0xff]
  %v1071 = vld [vmem:[#allocation2 + $0x62] sm:$0xff]
  %v1072 = vld [vmem:[#allocation2 + $0x72] sm:$0xff]
  %v1073 = vld [vmem:[#allocation2 + $0xa2] sm:$0xff]
  %v1074 = vld [vmem:[#allocation2 + $0xb2] sm:$0xff]
  %v1075 = vld [vmem:[#allocation2 + $0xc2] sm:$0xff]
  %v1076 = vld [vmem:[#allocation2 + $0xd2] sm:$0xff]
  %v1077 = vld [vmem:[#allocation2 + $0xe2] sm:$0xff]
  %v1078 = vld [vmem:[#allocation2 + $0xf2] sm:$0xff]
  %v1079 = vld [vmem:[#allocation2 + $0x102] sm:$0xff]
  %v1080 = vld [vmem:[#allocation2 + $0x112] sm:$0xff]
  %v1081 = vpack.c.bf16 %v1034, %v1033
  %v1082 = vpack.c.bf16 %v1050, %v1049
  %v1083 = vpack.c.bf16 %v1066, %v1065
  %v1084 = vpack.c.bf16 %v1036, %v1035
  %v1085 = vpack.c.bf16 %v1052, %v1051
  %v1086 = vpack.c.bf16 %v1068, %v1067
  %v1087 = vpack.c.bf16 %v1038, %v1037
  %v1088 = vpack.c.bf16 %v1054, %v1053
  %v1089 = vpack.c.bf16 %v1070, %v1069
  %v1090 = vpack.c.bf16 %v1040, %v1039
  %v1091 = vpack.c.bf16 %v1056, %v1055
  %v1092 = vpack.c.bf16 %v1072, %v1071
  %v1093 = vpack.c.bf16 %v1042, %v1041
  %v1094 = vpack.c.bf16 %v1058, %v1057
  %v1095 = vpack.c.bf16 %v1074, %v1073
  %v1096 = vpack.c.bf16 %v1044, %v1043
  %v1097 = vpack.c.bf16 %v1060, %v1059
  %v1098 = vpack.c.bf16 %v1076, %v1075
  %v1099 = vpack.c.bf16 %v1046, %v1045
  %v1100 = vpack.c.bf16 %v1062, %v1061
  %v1101 = vpack.c.bf16 %v1078, %v1077
  %v1102 = vpack.c.bf16 %v1048, %v1047
  %v1103 = vpack.c.bf16 %v1064, %v1063
  %v1104 = vpack.c.bf16 %v1080, %v1079
  %v1105 = vld [vmem:[%s5] sm:$0xf]
  %v1106 = vld [vmem:[%s5 + $0x4] sm:$0xf]
  %v1107 = vld [vmem:[%s5 + $0x8] sm:$0xf]
  %v1108 = vld [vmem:[%s5 + $0xc] sm:$0xf]
  %v1109 = vld [vmem:[%s5 + $0x10] sm:$0xf]
  %v1110 = vld [vmem:[%s5 + $0x14] sm:$0xf]
  %v1111 = vld [vmem:[%s5 + $0x18] sm:$0xf]
  %v1112 = vld [vmem:[%s5 + $0x1c] sm:$0xf]
  %v1113 = vld [vmem:[%s5 + $0x20] sm:$0xf]
  %v1114 = vld [vmem:[%s5 + $0x24] sm:$0xf]
  %v1115 = vld [vmem:[%s5 + $0x28] sm:$0xf]
  %v1116 = vld [vmem:[%s5 + $0x2c] sm:$0xf]
  %v1117 = vld [vmem:[%s5 + $0x30] sm:$0xf]
  %v1118 = vld [vmem:[%s5 + $0x34] sm:$0xf]
  %v1119 = vld [vmem:[%s5 + $0x38] sm:$0xf]
  %v1120 = vld [vmem:[%s5 + $0x3c] sm:$0xf]
  %v1121 = vld [vmem:[%s5 + $0x40] sm:$0xf]
  %v1122 = vld [vmem:[%s5 + $0x44] sm:$0xf]
  %v1123 = vld [vmem:[%s5 + $0x48] sm:$0xf]
  %v1124 = vld [vmem:[%s5 + $0x4c] sm:$0xf]
  %v1125 = vld [vmem:[%s5 + $0x50] sm:$0xf]
  %v1126 = vld [vmem:[%s5 + $0x54] sm:$0xf]
  %v1127 = vld [vmem:[%s5 + $0x58] sm:$0xf]
  %v1128 = vld [vmem:[%s5 + $0x5c] sm:$0xf]
  %v1129 = vld [vmem:[%s5 + $0x60] sm:$0xf]
  %v1130 = vld [vmem:[%s5 + $0x64] sm:$0xf]
  %v1131 = vld [vmem:[%s5 + $0x68] sm:$0xf]
  %v1132 = vld [vmem:[%s5 + $0x6c] sm:$0xf]
  %v1133 = vld [vmem:[%s5 + $0x70] sm:$0xf]
  %v1134 = vld [vmem:[%s5 + $0x74] sm:$0xf]
  %v1135 = vld [vmem:[%s5 + $0x78] sm:$0xf]
  %v1136 = vld [vmem:[%s5 + $0x7c] sm:$0xf]
  %v1137 = vld [vmem:[%s5 + $0x80] sm:$0xf]
  %v1138 = vld [vmem:[%s5 + $0x84] sm:$0xf]
  %v1139 = vld [vmem:[%s5 + $0x88] sm:$0xf]
  %v1140 = vld [vmem:[%s5 + $0x8c] sm:$0xf]
  %v1141 = vld [vmem:[%s5 + $0x90] sm:$0xf]
  %v1142 = vld [vmem:[%s5 + $0x94] sm:$0xf]
  %v1143 = vld [vmem:[%s5 + $0x98] sm:$0xf]
  %v1144 = vld [vmem:[%s5 + $0x9c] sm:$0xf]
  %v1145 = vld [vmem:[%s5 + $0xa0] sm:$0xf]
  %v1146 = vld [vmem:[%s5 + $0xa4] sm:$0xf]
  %v1147 = vld [vmem:[%s5 + $0xa8] sm:$0xf]
  %v1148 = vld [vmem:[%s5 + $0xac] sm:$0xf]
  %v1149 = vld [vmem:[%s5 + $0xb0] sm:$0xf]
  %v1150 = vld [vmem:[%s5 + $0xb4] sm:$0xf]
  %v1151 = vld [vmem:[%s5 + $0xb8] sm:$0xf]
  %v1152 = vld [vmem:[%s5 + $0xbc] sm:$0xf]
  %v1153 = vld [vmem:[%s1016] sm:$0xff]
  %v1154 = vld [vmem:[%s1016 + $0x10] sm:$0xff]
  %v1155 = vld [vmem:[%s1016 + $0x20] sm:$0xff]
  %v1156 = vld [vmem:[%s1016 + $0x30] sm:$0xff]
  %v1157 = vld [vmem:[%s1016 + $0x40] sm:$0xff]
  %v1158 = vld [vmem:[%s1016 + $0x50] sm:$0xff]
  %v1159 = vld [vmem:[%s1016 + $0x60] sm:$0xff]
  %v1160 = vld [vmem:[%s1016 + $0x70] sm:$0xff]
  %v1161 = vld [vmem:[%s1016 + $0xa0] sm:$0xff]
  %v1162 = vld [vmem:[%s1016 + $0xb0] sm:$0xff]
  %v1163 = vld [vmem:[%s1016 + $0xc0] sm:$0xff]
  %v1164 = vld [vmem:[%s1016 + $0xd0] sm:$0xff]
  %v1165 = vld [vmem:[%s1016 + $0xe0] sm:$0xff]
  %v1166 = vld [vmem:[%s1016 + $0xf0] sm:$0xff]
  %v1167 = vld [vmem:[%s1016 + $0x100] sm:$0xff]
  %v1168 = vld [vmem:[%s1016 + $0x110] sm:$0xff]
  %v1169 = vld [vmem:[%s1016 + $0x1] sm:$0xff]
  %v1170 = vld [vmem:[%s1016 + $0x11] sm:$0xff]
  %v1171 = vld [vmem:[%s1016 + $0x21] sm:$0xff]
  %v1172 = vld [vmem:[%s1016 + $0x31] sm:$0xff]
  %v1173 = vld [vmem:[%s1016 + $0x41] sm:$0xff]
  %v1174 = vld [vmem:[%s1016 + $0x51] sm:$0xff]
  %v1175 = vld [vmem:[%s1016 + $0x61] sm:$0xff]
  %v1176 = vld [vmem:[%s1016 + $0x71] sm:$0xff]
  %v1177 = vld [vmem:[%s1016 + $0xa1] sm:$0xff]
  %v1178 = vld [vmem:[%s1016 + $0xb1] sm:$0xff]
  %v1179 = vld [vmem:[%s1016 + $0xc1] sm:$0xff]
  %v1180 = vld [vmem:[%s1016 + $0xd1] sm:$0xff]
  %v1181 = vld [vmem:[%s1016 + $0xe1] sm:$0xff]
  %v1182 = vld [vmem:[%s1016 + $0xf1] sm:$0xff]
  %v1183 = vld [vmem:[%s1016 + $0x101] sm:$0xff]
  %v1184 = vld [vmem:[%s1016 + $0x111] sm:$0xff]
  %v1185 = vld [vmem:[%s1016 + $0x2] sm:$0xff]
  %v1186 = vld [vmem:[%s1016 + $0x12] sm:$0xff]
  %v1187 = vld [vmem:[%s1016 + $0x22] sm:$0xff]
  %v1188 = vld [vmem:[%s1016 + $0x32] sm:$0xff]
  %v1189 = vld [vmem:[%s1016 + $0x42] sm:$0xff]
  %v1190 = vld [vmem:[%s1016 + $0x52] sm:$0xff]
  %v1191 = vld [vmem:[%s1016 + $0x62] sm:$0xff]
  %v1192 = vld [vmem:[%s1016 + $0x72] sm:$0xff]
  %v1193 = vld [vmem:[%s1016 + $0xa2] sm:$0xff]
  %v1194 = vld [vmem:[%s1016 + $0xb2] sm:$0xff]
  %v1195 = vld [vmem:[%s1016 + $0xc2] sm:$0xff]
  %v1196 = vld [vmem:[%s1016 + $0xd2] sm:$0xff]
  %v1197 = vld [vmem:[%s1016 + $0xe2] sm:$0xff]
  %v1198 = vld [vmem:[%s1016 + $0xf2] sm:$0xff]
  %v1199 = vld [vmem:[%s1016 + $0x102] sm:$0xff]
  %v1200 = vld [vmem:[%s1016 + $0x112] sm:$0xff]
  %v1201 = vpack.c.bf16 %v1154, %v1153
  %v1202 = vpack.c.bf16 %v1170, %v1169
  %v1203 = vpack.c.bf16 %v1186, %v1185
  %v1204 = vpack.c.bf16 %v1156, %v1155
  %v1205 = vpack.c.bf16 %v1172, %v1171
  %v1206 = vpack.c.bf16 %v1188, %v1187
  %v1207 = vpack.c.bf16 %v1158, %v1157
  %v1208 = vpack.c.bf16 %v1174, %v1173
  %v1209 = vpack.c.bf16 %v1190, %v1189
  %v1210 = vpack.c.bf16 %v1160, %v1159
  %v1211 = vpack.c.bf16 %v1176, %v1175
  %v1212 = vpack.c.bf16 %v1192, %v1191
  %v1213 = vpack.c.bf16 %v1162, %v1161
  %v1214 = vpack.c.bf16 %v1178, %v1177
  %v1215 = vpack.c.bf16 %v1194, %v1193
  %v1216 = vpack.c.bf16 %v1164, %v1163
  %v1217 = vpack.c.bf16 %v1180, %v1179
  %v1218 = vpack.c.bf16 %v1196, %v1195
  %v1219 = vpack.c.bf16 %v1166, %v1165
  %v1220 = vpack.c.bf16 %v1182, %v1181
  %v1221 = vpack.c.bf16 %v1198, %v1197
  %v1222 = vpack.c.bf16 %v1168, %v1167
  %v1223 = vpack.c.bf16 %v1184, %v1183
  %v1224 = vpack.c.bf16 %v1200, %v1199
  %s1225 = scalar_lea.vmem %s5, 192
  %v1226 = vld [vmem:[%s1225] sm:$0xf]
  %v1227 = vld [vmem:[%s1225 + $0x4] sm:$0xf]
  %v1228 = vld [vmem:[%s1225 + $0x8] sm:$0xf]
  %v1229 = vld [vmem:[%s1225 + $0xc] sm:$0xf]
  %v1230 = vld [vmem:[%s1225 + $0x10] sm:$0xf]
  %v1231 = vld [vmem:[%s1225 + $0x14] sm:$0xf]
  %v1232 = vld [vmem:[%s1225 + $0x18] sm:$0xf]
  %v1233 = vld [vmem:[%s1225 + $0x1c] sm:$0xf]
  %v1234 = vld [vmem:[%s1225 + $0x20] sm:$0xf]
  %v1235 = vld [vmem:[%s1225 + $0x24] sm:$0xf]
  %v1236 = vld [vmem:[%s1225 + $0x28] sm:$0xf]
  %v1237 = vld [vmem:[%s1225 + $0x2c] sm:$0xf]
  %v1238 = vld [vmem:[%s1225 + $0x30] sm:$0xf]
  %v1239 = vld [vmem:[%s1225 + $0x34] sm:$0xf]
  %v1240 = vld [vmem:[%s1225 + $0x38] sm:$0xf]
  %v1241 = vld [vmem:[%s1225 + $0x3c] sm:$0xf]
  %v1242 = vld [vmem:[%s1225 + $0x40] sm:$0xf]
  %v1243 = vld [vmem:[%s1225 + $0x44] sm:$0xf]
  %v1244 = vld [vmem:[%s1225 + $0x48] sm:$0xf]
  %v1245 = vld [vmem:[%s1225 + $0x4c] sm:$0xf]
  %v1246 = vld [vmem:[%s1225 + $0x50] sm:$0xf]
  %v1247 = vld [vmem:[%s1225 + $0x54] sm:$0xf]
  %v1248 = vld [vmem:[%s1225 + $0x58] sm:$0xf]
  %v1249 = vld [vmem:[%s1225 + $0x5c] sm:$0xf]
  %v1250 = vld [vmem:[%s1225 + $0x60] sm:$0xf]
  %v1251 = vld [vmem:[%s1225 + $0x64] sm:$0xf]
  %v1252 = vld [vmem:[%s1225 + $0x68] sm:$0xf]
  %v1253 = vld [vmem:[%s1225 + $0x6c] sm:$0xf]
  %v1254 = vld [vmem:[%s1225 + $0x70] sm:$0xf]
  %v1255 = vld [vmem:[%s1225 + $0x74] sm:$0xf]
  %v1256 = vld [vmem:[%s1225 + $0x78] sm:$0xf]
  %v1257 = vld [vmem:[%s1225 + $0x7c] sm:$0xf]
  %v1258 = vld [vmem:[%s1225 + $0x80] sm:$0xf]
  %v1259 = vld [vmem:[%s1225 + $0x84] sm:$0xf]
  %v1260 = vld [vmem:[%s1225 + $0x88] sm:$0xf]
  %v1261 = vld [vmem:[%s1225 + $0x8c] sm:$0xf]
  %v1262 = vld [vmem:[%s1225 + $0x90] sm:$0xf]
  %v1263 = vld [vmem:[%s1225 + $0x94] sm:$0xf]
  %v1264 = vld [vmem:[%s1225 + $0x98] sm:$0xf]
  %v1265 = vld [vmem:[%s1225 + $0x9c] sm:$0xf]
  %v1266 = vld [vmem:[%s1225 + $0xa0] sm:$0xf]
  %v1267 = vld [vmem:[%s1225 + $0xa4] sm:$0xf]
  %v1268 = vld [vmem:[%s1225 + $0xa8] sm:$0xf]
  %v1269 = vld [vmem:[%s1225 + $0xac] sm:$0xf]
  %v1270 = vld [vmem:[%s1225 + $0xb0] sm:$0xf]
  %v1271 = vld [vmem:[%s1225 + $0xb4] sm:$0xf]
  %v1272 = vld [vmem:[%s1225 + $0xb8] sm:$0xf]
  %v1273 = vld [vmem:[%s1225 + $0xbc] sm:$0xf]
  %v1322 = vunpack.c.l.b16 %v1226
  %v1323 = vunpack.c.l.b16 %v1227
  %v1324 = vunpack.c.l.b16 %v1228
  %v1325 = vunpack.c.l.b16 %v1229
  %v1326 = vunpack.c.l.b16 %v1230
  %v1327 = vunpack.c.l.b16 %v1231
  %v1328 = vunpack.c.l.b16 %v1232
  %v1329 = vunpack.c.l.b16 %v1233
  %v1330 = vunpack.c.l.b16 %v1234
  %v1331 = vunpack.c.l.b16 %v1235
  %v1332 = vunpack.c.l.b16 %v1236
  %v1333 = vunpack.c.l.b16 %v1237
  %v1334 = vunpack.c.l.b16 %v1238
  %v1335 = vunpack.c.l.b16 %v1239
  %v1336 = vunpack.c.l.b16 %v1240
  %v1337 = vunpack.c.l.b16 %v1241
  %v1338 = vunpack.c.l.b16 %v1242
  %v1339 = vunpack.c.l.b16 %v1243
  %v1340 = vunpack.c.l.b16 %v1244
  %v1341 = vunpack.c.l.b16 %v1245
  %v1342 = vunpack.c.l.b16 %v1246
  %v1343 = vunpack.c.l.b16 %v1247
  %v1344 = vunpack.c.l.b16 %v1248
  %v1345 = vunpack.c.l.b16 %v1249
  %v1346 = vunpack.c.l.b16 %v1250
  %v1347 = vunpack.c.l.b16 %v1251
  %v1348 = vunpack.c.l.b16 %v1252
  %v1349 = vunpack.c.l.b16 %v1253
  %v1350 = vunpack.c.l.b16 %v1254
  %v1351 = vunpack.c.l.b16 %v1255
  %v1352 = vunpack.c.l.b16 %v1256
  %v1353 = vunpack.c.l.b16 %v1257
  %v1354 = vunpack.c.l.b16 %v1258
  %v1355 = vunpack.c.l.b16 %v1259
  %v1356 = vunpack.c.l.b16 %v1260
  %v1357 = vunpack.c.l.b16 %v1261
  %v1358 = vunpack.c.l.b16 %v1262
  %v1359 = vunpack.c.l.b16 %v1263
  %v1360 = vunpack.c.l.b16 %v1264
  %v1361 = vunpack.c.l.b16 %v1265
  %v1362 = vunpack.c.l.b16 %v1266
  %v1363 = vunpack.c.l.b16 %v1267
  %v1364 = vunpack.c.l.b16 %v1268
  %v1365 = vunpack.c.l.b16 %v1269
  %v1366 = vunpack.c.l.b16 %v1270
  %v1367 = vunpack.c.l.b16 %v1271
  %v1368 = vunpack.c.l.b16 %v1272
  %v1369 = vunpack.c.l.b16 %v1273
  %v1370 = vpack.c.b16 %v1323, %v1322
  %v1371 = vpack.c.b16 %v1325, %v1324
  %v1372 = vpack.c.b16 %v1327, %v1326
  %v1373 = vpack.c.b16 %v1329, %v1328
  %v1374 = vpack.c.b16 %v1331, %v1330
  %v1375 = vpack.c.b16 %v1333, %v1332
  %v1376 = vpack.c.b16 %v1335, %v1334
  %v1377 = vpack.c.b16 %v1337, %v1336
  %v1378 = vpack.c.b16 %v1339, %v1338
  %v1379 = vpack.c.b16 %v1341, %v1340
  %v1380 = vpack.c.b16 %v1343, %v1342
  %v1381 = vpack.c.b16 %v1345, %v1344
  %v1382 = vpack.c.b16 %v1347, %v1346
  %v1383 = vpack.c.b16 %v1349, %v1348
  %v1384 = vpack.c.b16 %v1351, %v1350
  %v1385 = vpack.c.b16 %v1353, %v1352
  %v1386 = vpack.c.b16 %v1355, %v1354
  %v1387 = vpack.c.b16 %v1357, %v1356
  %v1388 = vpack.c.b16 %v1359, %v1358
  %v1389 = vpack.c.b16 %v1361, %v1360
  %v1390 = vpack.c.b16 %v1363, %v1362
  %v1391 = vpack.c.b16 %v1365, %v1364
  %v1392 = vpack.c.b16 %v1367, %v1366
  %v1393 = vpack.c.b16 %v1369, %v1368
  %1418 = vmatprep.subr.bf16.mxu0 0
  %1419 = vmatpush1.bf16.msra.mxu0 %v1370
  %1420 = vmatprep.subr.bf16.mxu0 0
  %1421 = vmatpush1.bf16.msra.mxu0 %v1371
  %1422 = vmatprep.subr.bf16.mxu0 0
  %1423 = vmatpush1.bf16.msra.mxu0 %v1372
  %1424 = vmatprep.subr.bf16.mxu0 0
  %1425 = vmatpush1.bf16.msra.mxu0 %v1373
  %1426 = vmatprep.subr.bf16.mxu0 0
  %1427 = vmatpush1.bf16.msra.mxu0 %v1374
  %1428 = vmatprep.subr.bf16.mxu0 0
  %1429 = vmatpush1.bf16.msra.mxu0 %v1375
  %1430 = vmatprep.subr.bf16.mxu0 0
  %1431 = vmatpush1.bf16.msra.mxu0 %v1376
  %1432 = vmatprep.subr.bf16.mxu0 0
  %1433 = vmatpush1.bf16.msra.mxu0 %v1377
  %1434 = vmatprep.subr.bf16.mxu0 0
  %1435 = vmatpush1.bf16.msra.mxu0 %v1378
  %1436 = vmatprep.subr.bf16.mxu0 0
  %1437 = vmatpush1.bf16.msra.mxu0 %v1379
  %1438 = vmatprep.subr.bf16.mxu0 0
  %1439 = vmatpush1.bf16.msra.mxu0 %v1380
  %1440 = vmatprep.subr.bf16.mxu0 0
  %1441 = vmatpush1.bf16.msra.mxu0 %v1381
  %1442 = vmatprep.subr.bf16.mxu0 0
  %1443 = vmatpush1.bf16.msra.mxu0 %v1382
  %1444 = vmatprep.subr.bf16.mxu0 0
  %1445 = vmatpush1.bf16.msra.mxu0 %v1383
  %1446 = vmatprep.subr.bf16.mxu0 0
  %1447 = vmatpush1.bf16.msra.mxu0 %v1384
  %1448 = vmatprep.subr.bf16.mxu0 0
  %1449 = vmatpush1.bf16.msra.mxu0 %v1385
  %1450 = vmatprep.mubr.bf16.mxu0 %v1202
  %1451 = vmatmul.mubr.bf16.gmra.mrb[0].mxu0 %v1201
  %v1452 = vpop.f32.mrb[0].mxu0
  %v1453 = vadd.f32 0.0, %v1452
  %v1454 = vpop.f32.mrb[0].mxu0
  %v1455 = vpop.f32.mrb[0].mxu0
  %v1456 = vadd.f32 0.0, %v1455
  %v1457 = vpop.f32.mrb[0].mxu0
  %1458 = vmatprep.mubr.bf16.mxu0 %v1205
  %1459 = vmatmul.mubr.bf16.gmra.mrb[0].mxu0 %v1204
  %v1460 = vpop.f32.mrb[0].mxu0
  %v1461 = vadd.f32 0.0, %v1460
  %v1462 = vpop.f32.mrb[0].mxu0
  %v1463 = vpop.f32.mrb[0].mxu0
  %v1464 = vadd.f32 0.0, %v1463
  %v1465 = vpop.f32.mrb[0].mxu0
  %1466 = vmatprep.mubr.bf16.mxu0 %v1208
  %1467 = vmatmul.mubr.bf16.gmra.mrb[0].mxu0 %v1207
  %v1468 = vpop.f32.mrb[0].mxu0
  %v1469 = vadd.f32 0.0, %v1468
  %v1470 = vpop.f32.mrb[0].mxu0
  %v1471 = vpop.f32.mrb[0].mxu0
  %v1472 = vadd.f32 0.0, %v1471
  %v1473 = vpop.f32.mrb[0].mxu0
  %1474 = vmatprep.mubr.bf16.mxu0 %v1211
  %1475 = vmatmul.mubr.bf16.gmra.mrb[0].mxu0 %v1210
  %v1476 = vpop.f32.mrb[0].mxu0
  %v1477 = vadd.f32 0.0, %v1476
  %v1478 = vpop.f32.mrb[0].mxu0
  %v1479 = vpop.f32.mrb[0].mxu0
  %v1480 = vadd.f32 0.0, %v1479
  %v1481 = vpop.f32.mrb[0].mxu0
  %1482 = vmatprep.mubr.bf16.mxu0 %v1214
  %1483 = vmatmul.mubr.bf16.gmra.mrb[0].mxu0 %v1213
  %v1484 = vpop.f32.mrb[0].mxu0
  %v1485 = vadd.f32 0.0, %v1484
  %v1486 = vpop.f32.mrb[0].mxu0
  %v1487 = vpop.f32.mrb[0].mxu0
  %v1488 = vadd.f32 0.0, %v1487
  %v1489 = vpop.f32.mrb[0].mxu0
  %1490 = vmatprep.mubr.bf16.mxu0 %v1217
  %1491 = vmatmul.mubr.bf16.gmra.mrb[0].mxu0 %v1216
  %v1492 = vpop.f32.mrb[0].mxu0
  %v1493 = vadd.f32 0.0, %v1492
  %v1494 = vpop.f32.mrb[0].mxu0
  %v1495 = vpop.f32.mrb[0].mxu0
  %v1496 = vadd.f32 0.0, %v1495
  %v1497 = vpop.f32.mrb[0].mxu0
  %1498 = vmatprep.mubr.bf16.mxu0 %v1220
  %1499 = vmatmul.mubr.bf16.gmra.mrb[0].mxu0 %v1219
  %v1500 = vpop.f32.mrb[0].mxu0
  %v1501 = vadd.f32 0.0, %v1500
  %v1502 = vpop.f32.mrb[0].mxu0
  %v1503 = vpop.f32.mrb[0].mxu0
  %v1504 = vadd.f32 0.0, %v1503
  %v1505 = vpop.f32.mrb[0].mxu0
  %1506 = vmatprep.mubr.bf16.mxu0 %v1223
  %1507 = vmatmul.mubr.bf16.gmra.mrb[0].mxu0 %v1222
  %v1508 = vpop.f32.mrb[0].mxu0
  %v1509 = vadd.f32 0.0, %v1508
  %v1510 = vpop.f32.mrb[0].mxu0
  %v1511 = vpop.f32.mrb[0].mxu0
  %v1512 = vadd.f32 0.0, %v1511
  %v1513 = vpop.f32.mrb[0].mxu0
  %1514 = vdwg.mxu0
  %1515 = vmatprep.subr.bf16.mxu0 0
  %1516 = vmatpush1.bf16.msra.mxu0 %v1386
  %1517 = vmatprep.subr.bf16.mxu0 0
  %1518 = vmatpush1.bf16.msra.mxu0 %v1387
  %1519 = vmatprep.subr.bf16.mxu0 0
  %1520 = vmatpush1.bf16.msra.mxu0 %v1388
  %1521 = vmatprep.subr.bf16.mxu0 0
  %1522 = vmatpush1.bf16.msra.mxu0 %v1389
  %1523 = vmatprep.subr.bf16.mxu0 0
  %1524 = vmatpush1.bf16.msra.mxu0 %v1390
  %1525 = vmatprep.subr.bf16.mxu0 0
  %1526 = vmatpush1.bf16.msra.mxu0 %v1391
  %1527 = vmatprep.subr.bf16.mxu0 0
  %1528 = vmatpush1.bf16.msra.mxu0 %v1392
  %1529 = vmatprep.subr.bf16.mxu0 0
  %1530 = vmatpush1.bf16.msra.mxu0 %v1393
  %1531 = vmatprep.subr.bf16.mxu0 0
  %1532 = vmatpush1.bf16.msra.mxu0 0
  %1533 = vmatprep.subr.bf16.mxu0 0
  %1534 = vmatpush1.bf16.msra.mxu0 0
  %1535 = vmatprep.subr.bf16.mxu0 0
  %1536 = vmatpush1.bf16.msra.mxu0 0
  %1537 = vmatprep.subr.bf16.mxu0 0
  %1538 = vmatpush1.bf16.msra.mxu0 0
  %1539 = vmatprep.subr.bf16.mxu0 0
  %1540 = vmatpush1.bf16.msra.mxu0 0
  %1541 = vmatprep.subr.bf16.mxu0 0
  %1542 = vmatpush1.bf16.msra.mxu0 0
  %1543 = vmatprep.subr.bf16.mxu0 0
  %1544 = vmatpush1.bf16.msra.mxu0 0
  %1545 = vmatprep.subr.bf16.mxu0 0
  %1546 = vmatpush1.bf16.msra.mxu0 0
  %1547 = vmatprep.mubr.bf16.mxu0 0
  %1548 = vmatmul.mubr.bf16.gmra.mrb[0].mxu0 %v1203
  %v1549 = vpop.f32.mrb[0].mxu0
  %v1550 = vadd.f32 %v1453, %v1549
  %v1551 = vpop.f32.mrb[0].mxu0
  %v1552 = vpop.f32.mrb[0].mxu0
  %v1553 = vadd.f32 %v1456, %v1552
  %v1554 = vpop.f32.mrb[0].mxu0
  %1555 = vmatprep.mubr.bf16.mxu0 0
  %1556 = vmatmul.mubr.bf16.gmra.mrb[0].mxu0 %v1206
  %v1557 = vpop.f32.mrb[0].mxu0
  %v1558 = vadd.f32 %v1461, %v1557
  %v1559 = vpop.f32.mrb[0].mxu0
  %v1560 = vpop.f32.mrb[0].mxu0
  %v1561 = vadd.f32 %v1464, %v1560
  %v1562 = vpop.f32.mrb[0].mxu0
  %1563 = vmatprep.mubr.bf16.mxu0 0
  %1564 = vmatmul.mubr.bf16.gmra.mrb[0].mxu0 %v1209
  %v1565 = vpop.f32.mrb[0].mxu0
  %v1566 = vadd.f32 %v1469, %v1565
  %v1567 = vpop.f32.mrb[0].mxu0
  %v1568 = vpop.f32.mrb[0].mxu0
  %v1569 = vadd.f32 %v1472, %v1568
  %v1570 = vpop.f32.mrb[0].mxu0
  %1571 = vmatprep.mubr.bf16.mxu0 0
  %1572 = vmatmul.mubr.bf16.gmra.mrb[0].mxu0 %v1212
  %v1573 = vpop.f32.mrb[0].mxu0
  %v1574 = vadd.f32 %v1477, %v1573
  %v1575 = vpop.f32.mrb[0].mxu0
  %v1576 = vpop.f32.mrb[0].mxu0
  %v1577 = vadd.f32 %v1480, %v1576
  %v1578 = vpop.f32.mrb[0].mxu0
  %1579 = vmatprep.mubr.bf16.mxu0 0
  %1580 = vmatmul.mubr.bf16.gmra.mrb[0].mxu0 %v1215
  %v1581 = vpop.f32.mrb[0].mxu0
  %v1582 = vadd.f32 %v1485, %v1581
  %v1583 = vpop.f32.mrb[0].mxu0
  %v1584 = vpop.f32.mrb[0].mxu0
  %v1585 = vadd.f32 %v1488, %v1584
  %v1586 = vpop.f32.mrb[0].mxu0
  %1587 = vmatprep.mubr.bf16.mxu0 0
  %1588 = vmatmul.mubr.bf16.gmra.mrb[0].mxu0 %v1218
  %v1589 = vpop.f32.mrb[0].mxu0
  %v1590 = vadd.f32 %v1493, %v1589
  %v1591 = vpop.f32.mrb[0].mxu0
  %v1592 = vpop.f32.mrb[0].mxu0
  %v1593 = vadd.f32 %v1496, %v1592
  %v1594 = vpop.f32.mrb[0].mxu0
  %1595 = vmatprep.mubr.bf16.mxu0 0
  %1596 = vmatmul.mubr.bf16.gmra.mrb[0].mxu0 %v1221
  %v1597 = vpop.f32.mrb[0].mxu0
  %v1598 = vadd.f32 %v1501, %v1597
  %v1599 = vpop.f32.mrb[0].mxu0
  %v1600 = vpop.f32.mrb[0].mxu0
  %v1601 = vadd.f32 %v1504, %v1600
  %v1602 = vpop.f32.mrb[0].mxu0
  %1603 = vmatprep.mubr.bf16.mxu0 0
  %1604 = vmatmul.mubr.bf16.gmra.mrb[0].mxu0 %v1224
  %v1605 = vpop.f32.mrb[0].mxu0
  %v1606 = vadd.f32 %v1509, %v1605
  %v1607 = vpop.f32.mrb[0].mxu0
  %v1608 = vpop.f32.mrb[0].mxu0
  %v1609 = vadd.f32 %v1512, %v1608
  %v1610 = vpop.f32.mrb[0].mxu0
  %1611 = vdwg.mxu0
  %v1660 = vunpack.c.l.b16 %v1105
  %v1661 = vunpack.c.l.b16 %v1106
  %v1662 = vunpack.c.l.b16 %v1107
  %v1663 = vunpack.c.l.b16 %v1108
  %v1664 = vunpack.c.l.b16 %v1109
  %v1665 = vunpack.c.l.b16 %v1110
  %v1666 = vunpack.c.l.b16 %v1111
  %v1667 = vunpack.c.l.b16 %v1112
  %v1668 = vunpack.c.l.b16 %v1113
  %v1669 = vunpack.c.l.b16 %v1114
  %v1670 = vunpack.c.l.b16 %v1115
  %v1671 = vunpack.c.l.b16 %v1116
  %v1672 = vunpack.c.l.b16 %v1117
  %v1673 = vunpack.c.l.b16 %v1118
  %v1674 = vunpack.c.l.b16 %v1119
  %v1675 = vunpack.c.l.b16 %v1120
  %v1676 = vunpack.c.l.b16 %v1121
  %v1677 = vunpack.c.l.b16 %v1122
  %v1678 = vunpack.c.l.b16 %v1123
  %v1679 = vunpack.c.l.b16 %v1124
  %v1680 = vunpack.c.l.b16 %v1125
  %v1681 = vunpack.c.l.b16 %v1126
  %v1682 = vunpack.c.l.b16 %v1127
  %v1683 = vunpack.c.l.b16 %v1128
  %v1684 = vunpack.c.l.b16 %v1129
  %v1685 = vunpack.c.l.b16 %v1130
  %v1686 = vunpack.c.l.b16 %v1131
  %v1687 = vunpack.c.l.b16 %v1132
  %v1688 = vunpack.c.l.b16 %v1133
  %v1689 = vunpack.c.l.b16 %v1134
  %v1690 = vunpack.c.l.b16 %v1135
  %v1691 = vunpack.c.l.b16 %v1136
  %v1692 = vunpack.c.l.b16 %v1137
  %v1693 = vunpack.c.l.b16 %v1138
  %v1694 = vunpack.c.l.b16 %v1139
  %v1695 = vunpack.c.l.b16 %v1140
  %v1696 = vunpack.c.l.b16 %v1141
  %v1697 = vunpack.c.l.b16 %v1142
  %v1698 = vunpack.c.l.b16 %v1143
  %v1699 = vunpack.c.l.b16 %v1144
  %v1700 = vunpack.c.l.b16 %v1145
  %v1701 = vunpack.c.l.b16 %v1146
  %v1702 = vunpack.c.l.b16 %v1147
  %v1703 = vunpack.c.l.b16 %v1148
  %v1704 = vunpack.c.l.b16 %v1149
  %v1705 = vunpack.c.l.b16 %v1150
  %v1706 = vunpack.c.l.b16 %v1151
  %v1707 = vunpack.c.l.b16 %v1152
  %v1708 = vpack.c.b16 %v1661, %v1660
  %v1709 = vpack.c.b16 %v1663, %v1662
  %v1710 = vpack.c.b16 %v1665, %v1664
  %v1711 = vpack.c.b16 %v1667, %v1666
  %v1712 = vpack.c.b16 %v1669, %v1668
  %v1713 = vpack.c.b16 %v1671, %v1670
  %v1714 = vpack.c.b16 %v1673, %v1672
  %v1715 = vpack.c.b16 %v1675, %v1674
  %v1716 = vpack.c.b16 %v1677, %v1676
  %v1717 = vpack.c.b16 %v1679, %v1678
  %v1718 = vpack.c.b16 %v1681, %v1680
  %v1719 = vpack.c.b16 %v1683, %v1682
  %v1720 = vpack.c.b16 %v1685, %v1684
  %v1721 = vpack.c.b16 %v1687, %v1686
  %v1722 = vpack.c.b16 %v1689, %v1688
  %v1723 = vpack.c.b16 %v1691, %v1690
  %v1724 = vpack.c.b16 %v1693, %v1692
  %v1725 = vpack.c.b16 %v1695, %v1694
  %v1726 = vpack.c.b16 %v1697, %v1696
  %v1727 = vpack.c.b16 %v1699, %v1698
  %v1728 = vpack.c.b16 %v1701, %v1700
  %v1729 = vpack.c.b16 %v1703, %v1702
  %v1730 = vpack.c.b16 %v1705, %v1704
  %v1731 = vpack.c.b16 %v1707, %v1706
  %1756 = vmatprep.subr.bf16.mxu0 0
  %1757 = vmatpush1.bf16.msra.mxu0 %v1708
  %1758 = vmatprep.subr.bf16.mxu0 0
  %1759 = vmatpush1.bf16.msra.mxu0 %v1709
  %1760 = vmatprep.subr.bf16.mxu0 0
  %1761 = vmatpush1.bf16.msra.mxu0 %v1710
  %1762 = vmatprep.subr.bf16.mxu0 0
  %1763 = vmatpush1.bf16.msra.mxu0 %v1711
  %1764 = vmatprep.subr.bf16.mxu0 0
  %1765 = vmatpush1.bf16.msra.mxu0 %v1712
  %1766 = vmatprep.subr.bf16.mxu0 0
  %1767 = vmatpush1.bf16.msra.mxu0 %v1713
  %1768 = vmatprep.subr.bf16.mxu0 0
  %1769 = vmatpush1.bf16.msra.mxu0 %v1714
  %1770 = vmatprep.subr.bf16.mxu0 0
  %1771 = vmatpush1.bf16.msra.mxu0 %v1715
  %1772 = vmatprep.subr.bf16.mxu0 0
  %1773 = vmatpush1.bf16.msra.mxu0 %v1716
  %1774 = vmatprep.subr.bf16.mxu0 0
  %1775 = vmatpush1.bf16.msra.mxu0 %v1717
  %1776 = vmatprep.subr.bf16.mxu0 0
  %1777 = vmatpush1.bf16.msra.mxu0 %v1718
  %1778 = vmatprep.subr.bf16.mxu0 0
  %1779 = vmatpush1.bf16.msra.mxu0 %v1719
  %1780 = vmatprep.subr.bf16.mxu0 0
  %1781 = vmatpush1.bf16.msra.mxu0 %v1720
  %1782 = vmatprep.subr.bf16.mxu0 0
  %1783 = vmatpush1.bf16.msra.mxu0 %v1721
  %1784 = vmatprep.subr.bf16.mxu0 0
  %1785 = vmatpush1.bf16.msra.mxu0 %v1722
  %1786 = vmatprep.subr.bf16.mxu0 0
  %1787 = vmatpush1.bf16.msra.mxu0 %v1723
  %1788 = vmatprep.mubr.bf16.mxu0 %v1082
  %1789 = vmatmul.mubr.bf16.gmra.mrb[0].mxu0 %v1081
  %v1790 = vpop.f32.mrb[0].mxu0
  %v1791 = vadd.f32 %v1550, %v1790
  %v1792 = vpop.f32.mrb[0].mxu0
  %v1793 = vpop.f32.mrb[0].mxu0
  %v1794 = vadd.f32 %v1553, %v1793
  %v1795 = vpop.f32.mrb[0].mxu0
  %1796 = vmatprep.mubr.bf16.mxu0 %v1085
  %1797 = vmatmul.mubr.bf16.gmra.mrb[0].mxu0 %v1084
  %v1798 = vpop.f32.mrb[0].mxu0
  %v1799 = vadd.f32 %v1558, %v1798
  %v1800 = vpop.f32.mrb[0].mxu0
  %v1801 = vpop.f32.mrb[0].mxu0
  %v1802 = vadd.f32 %v1561, %v1801
  %v1803 = vpop.f32.mrb[0].mxu0
  %1804 = vmatprep.mubr.bf16.mxu0 %v1088
  %1805 = vmatmul.mubr.bf16.gmra.mrb[0].mxu0 %v1087
  %v1806 = vpop.f32.mrb[0].mxu0
  %v1807 = vadd.f32 %v1566, %v1806
  %v1808 = vpop.f32.mrb[0].mxu0
  %v1809 = vpop.f32.mrb[0].mxu0
  %v1810 = vadd.f32 %v1569, %v1809
  %v1811 = vpop.f32.mrb[0].mxu0
  %1812 = vmatprep.mubr.bf16.mxu0 %v1091
  %1813 = vmatmul.mubr.bf16.gmra.mrb[0].mxu0 %v1090
  %v1814 = vpop.f32.mrb[0].mxu0
  %v1815 = vadd.f32 %v1574, %v1814
  %v1816 = vpop.f32.mrb[0].mxu0
  %v1817 = vpop.f32.mrb[0].mxu0
  %v1818 = vadd.f32 %v1577, %v1817
  %v1819 = vpop.f32.mrb[0].mxu0
  %1820 = vmatprep.mubr.bf16.mxu0 %v1094
  %1821 = vmatmul.mubr.bf16.gmra.mrb[0].mxu0 %v1093
  %v1822 = vpop.f32.mrb[0].mxu0
  %v1823 = vadd.f32 %v1582, %v1822
  %v1824 = vpop.f32.mrb[0].mxu0
  %v1825 = vpop.f32.mrb[0].mxu0
  %v1826 = vadd.f32 %v1585, %v1825
  %v1827 = vpop.f32.mrb[0].mxu0
  %1828 = vmatprep.mubr.bf16.mxu0 %v1097
  %1829 = vmatmul.mubr.bf16.gmra.mrb[0].mxu0 %v1096
  %v1830 = vpop.f32.mrb[0].mxu0
  %v1831 = vadd.f32 %v1590, %v1830
  %v1832 = vpop.f32.mrb[0].mxu0
  %v1833 = vpop.f32.mrb[0].mxu0
  %v1834 = vadd.f32 %v1593, %v1833
  %v1835 = vpop.f32.mrb[0].mxu0
  %1836 = vmatprep.mubr.bf16.mxu0 %v1100
  %1837 = vmatmul.mubr.bf16.gmra.mrb[0].mxu0 %v1099
  %v1838 = vpop.f32.mrb[0].mxu0
  %v1839 = vadd.f32 %v1598, %v1838
  %v1840 = vpop.f32.mrb[0].mxu0
  %v1841 = vpop.f32.mrb[0].mxu0
  %v1842 = vadd.f32 %v1601, %v1841
  %v1843 = vpop.f32.mrb[0].mxu0
  %1844 = vmatprep.mubr.bf16.mxu0 %v1103
  %1845 = vmatmul.mubr.bf16.gmra.mrb[0].mxu0 %v1102
  %v1846 = vpop.f32.mrb[0].mxu0
  %v1847 = vadd.f32 %v1606, %v1846
  %v1848 = vpop.f32.mrb[0].mxu0
  %v1849 = vpop.f32.mrb[0].mxu0
  %v1850 = vadd.f32 %v1609, %v1849
  %v1851 = vpop.f32.mrb[0].mxu0
  %1852 = vdwg.mxu0
  %1853 = vmatprep.subr.bf16.mxu0 0
  %1854 = vmatpush1.bf16.msra.mxu0 %v1724
  %1855 = vmatprep.subr.bf16.mxu0 0
  %1856 = vmatpush1.bf16.msra.mxu0 %v1725
  %1857 = vmatprep.subr.bf16.mxu0 0
  %1858 = vmatpush1.bf16.msra.mxu0 %v1726
  %1859 = vmatprep.subr.bf16.mxu0 0
  %1860 = vmatpush1.bf16.msra.mxu0 %v1727
  %1861 = vmatprep.subr.bf16.mxu0 0
  %1862 = vmatpush1.bf16.msra.mxu0 %v1728
  %1863 = vmatprep.subr.bf16.mxu0 0
  %1864 = vmatpush1.bf16.msra.mxu0 %v1729
  %1865 = vmatprep.subr.bf16.mxu0 0
  %1866 = vmatpush1.bf16.msra.mxu0 %v1730
  %1867 = vmatprep.subr.bf16.mxu0 0
  %1868 = vmatpush1.bf16.msra.mxu0 %v1731
  %1869 = vmatprep.subr.bf16.mxu0 0
  %1870 = vmatpush1.bf16.msra.mxu0 0
  %1871 = vmatprep.subr.bf16.mxu0 0
  %1872 = vmatpush1.bf16.msra.mxu0 0
  %1873 = vmatprep.subr.bf16.mxu0 0
  %1874 = vmatpush1.bf16.msra.mxu0 0
  %1875 = vmatprep.subr.bf16.mxu0 0
  %1876 = vmatpush1.bf16.msra.mxu0 0
  %1877 = vmatprep.subr.bf16.mxu0 0
  %1878 = vmatpush1.bf16.msra.mxu0 0
  %1879 = vmatprep.subr.bf16.mxu0 0
  %1880 = vmatpush1.bf16.msra.mxu0 0
  %1881 = vmatprep.subr.bf16.mxu0 0
  %1882 = vmatpush1.bf16.msra.mxu0 0
  %1883 = vmatprep.subr.bf16.mxu0 0
  %1884 = vmatpush1.bf16.msra.mxu0 0
  %1885 = vmatprep.mubr.bf16.mxu0 0
  %1886 = vmatmul.mubr.bf16.gmra.mrb[0].mxu0 %v1083
  %v1887 = vpop.f32.mrb[0].mxu0
  %v1888 = vadd.f32 %v1791, %v1887
  %v1889 = vpop.f32.mrb[0].mxu0
  %v1890 = vpop.f32.mrb[0].mxu0
  %v1891 = vadd.f32 %v1794, %v1890
  %v1892 = vpop.f32.mrb[0].mxu0
  %1893 = vmatprep.mubr.bf16.mxu0 0
  %1894 = vmatmul.mubr.bf16.gmra.mrb[0].mxu0 %v1086
  %v1895 = vpop.f32.mrb[0].mxu0
  %v1896 = vadd.f32 %v1799, %v1895
  %v1897 = vpop.f32.mrb[0].mxu0
  %v1898 = vpop.f32.mrb[0].mxu0
  %v1899 = vadd.f32 %v1802, %v1898
  %v1900 = vpop.f32.mrb[0].mxu0
  %1901 = vmatprep.mubr.bf16.mxu0 0
  %1902 = vmatmul.mubr.bf16.gmra.mrb[0].mxu0 %v1089
  %v1903 = vpop.f32.mrb[0].mxu0
  %v1904 = vadd.f32 %v1807, %v1903
  %v1905 = vpop.f32.mrb[0].mxu0
  %v1906 = vpop.f32.mrb[0].mxu0
  %v1907 = vadd.f32 %v1810, %v1906
  %v1908 = vpop.f32.mrb[0].mxu0
  %1909 = vmatprep.mubr.bf16.mxu0 0
  %1910 = vmatmul.mubr.bf16.gmra.mrb[0].mxu0 %v1092
  %v1911 = vpop.f32.mrb[0].mxu0
  %v1912 = vadd.f32 %v1815, %v1911
  %v1913 = vpop.f32.mrb[0].mxu0
  %v1914 = vpop.f32.mrb[0].mxu0
  %v1915 = vadd.f32 %v1818, %v1914
  %v1916 = vpop.f32.mrb[0].mxu0
  %1917 = vmatprep.mubr.bf16.mxu0 0
  %1918 = vmatmul.mubr.bf16.gmra.mrb[0].mxu0 %v1095
  %v1919 = vpop.f32.mrb[0].mxu0
  %v1920 = vadd.f32 %v1823, %v1919
  %v1921 = vpop.f32.mrb[0].mxu0
  %v1922 = vpop.f32.mrb[0].mxu0
  %v1923 = vadd.f32 %v1826, %v1922
  %v1924 = vpop.f32.mrb[0].mxu0
  %1925 = vmatprep.mubr.bf16.mxu0 0
  %1926 = vmatmul.mubr.bf16.gmra.mrb[0].mxu0 %v1098
  %v1927 = vpop.f32.mrb[0].mxu0
  %v1928 = vadd.f32 %v1831, %v1927
  %v1929 = vpop.f32.mrb[0].mxu0
  %v1930 = vpop.f32.mrb[0].mxu0
  %v1931 = vadd.f32 %v1834, %v1930
  %v1932 = vpop.f32.mrb[0].mxu0
  %1933 = vmatprep.mubr.bf16.mxu0 0
  %1934 = vmatmul.mubr.bf16.gmra.mrb[0].mxu0 %v1101
  %v1935 = vpop.f32.mrb[0].mxu0
  %v1936 = vadd.f32 %v1839, %v1935
  %v1937 = vpop.f32.mrb[0].mxu0
  %v1938 = vpop.f32.mrb[0].mxu0
  %v1939 = vadd.f32 %v1842, %v1938
  %v1940 = vpop.f32.mrb[0].mxu0
  %1941 = vmatprep.mubr.bf16.mxu0 0
  %1942 = vmatmul.mubr.bf16.gmra.mrb[0].mxu0 %v1104
  %v1943 = vpop.f32.mrb[0].mxu0
  %v1944 = vadd.f32 %v1847, %v1943
  %v1945 = vpop.f32.mrb[0].mxu0
  %v1946 = vpop.f32.mrb[0].mxu0
  %v1947 = vadd.f32 %v1850, %v1946
  %v1948 = vpop.f32.mrb[0].mxu0
  %1949 = vdwg.mxu0
  %s1950 = scalar_lea.vmem [#allocation2], 32
  %v1951 = vld [vmem:[%s1950] sm:$0xff]
  %v1952 = vld [vmem:[%s1950 + $0x10] sm:$0xff]
  %v1953 = vld [vmem:[%s1950 + $0x20] sm:$0xff]
  %v1954 = vld [vmem:[%s1950 + $0x30] sm:$0xff]
  %v1955 = vld [vmem:[%s1950 + $0x40] sm:$0xff]
  %v1956 = vld [vmem:[%s1950 + $0x50] sm:$0xff]
  %v1957 = vld [vmem:[%s1950 + $0x60] sm:$0xff]
  %v1958 = vld [vmem:[%s1950 + $0x70] sm:$0xff]
  %v1959 = vld [vmem:[%s1950 + $0xa0] sm:$0xff]
  %v1960 = vld [vmem:[%s1950 + $0xb0] sm:$0xff]
  %v1961 = vld [vmem:[%s1950 + $0xc0] sm:$0xff]
  %v1962 = vld [vmem:[%s1950 + $0xd0] sm:$0xff]
  %v1963 = vld [vmem:[%s1950 + $0xe0] sm:$0xff]
  %v1964 = vld [vmem:[%s1950 + $0xf0] sm:$0xff]
  %v1965 = vld [vmem:[%s1950 + $0x100] sm:$0xff]
  %v1966 = vld [vmem:[%s1950 + $0x110] sm:$0xff]
  %v1967 = vld [vmem:[%s1950 + $0x1] sm:$0xff]
  %v1968 = vld [vmem:[%s1950 + $0x11] sm:$0xff]
  %v1969 = vld [vmem:[%s1950 + $0x21] sm:$0xff]
  %v1970 = vld [vmem:[%s1950 + $0x31] sm:$0xff]
  %v1971 = vld [vmem:[%s1950 + $0x41] sm:$0xff]
  %v1972 = vld [vmem:[%s1950 + $0x51] sm:$0xff]
  %v1973 = vld [vmem:[%s1950 + $0x61] sm:$0xff]
  %v1974 = vld [vmem:[%s1950 + $0x71] sm:$0xff]
  %v1975 = vld [vmem:[%s1950 + $0xa1] sm:$0xff]
  %v1976 = vld [vmem:[%s1950 + $0xb1] sm:$0xff]
  %v1977 = vld [vmem:[%s1950 + $0xc1] sm:$0xff]
  %v1978 = vld [vmem:[%s1950 + $0xd1] sm:$0xff]
  %v1979 = vld [vmem:[%s1950 + $0xe1] sm:$0xff]
  %v1980 = vld [vmem:[%s1950 + $0xf1] sm:$0xff]
  %v1981 = vld [vmem:[%s1950 + $0x101] sm:$0xff]
  %v1982 = vld [vmem:[%s1950 + $0x111] sm:$0xff]
  %v1983 = vld [vmem:[%s1950 + $0x2] sm:$0xff]
  %v1984 = vld [vmem:[%s1950 + $0x12] sm:$0xff]
  %v1985 = vld [vmem:[%s1950 + $0x22] sm:$0xff]
  %v1986 = vld [vmem:[%s1950 + $0x32] sm:$0xff]
  %v1987 = vld [vmem:[%s1950 + $0x42] sm:$0xff]
  %v1988 = vld [vmem:[%s1950 + $0x52] sm:$0xff]
  %v1989 = vld [vmem:[%s1950 + $0x62] sm:$0xff]
  %v1990 = vld [vmem:[%s1950 + $0x72] sm:$0xff]
  %v1991 = vld [vmem:[%s1950 + $0xa2] sm:$0xff]
  %v1992 = vld [vmem:[%s1950 + $0xb2] sm:$0xff]
  %v1993 = vld [vmem:[%s1950 + $0xc2] sm:$0xff]
  %v1994 = vld [vmem:[%s1950 + $0xd2] sm:$0xff]
  %v1995 = vld [vmem:[%s1950 + $0xe2] sm:$0xff]
  %v1996 = vld [vmem:[%s1950 + $0xf2] sm:$0xff]
  %v1997 = vld [vmem:[%s1950 + $0x102] sm:$0xff]
  %v1998 = vld [vmem:[%s1950 + $0x112] sm:$0xff]
  %v1999 = vpack.c.bf16 %v1952, %v1951
  %v2000 = vpack.c.bf16 %v1968, %v1967
  %v2001 = vpack.c.bf16 %v1984, %v1983
  %v2002 = vpack.c.bf16 %v1954, %v1953
  %v2003 = vpack.c.bf16 %v1970, %v1969
  %v2004 = vpack.c.bf16 %v1986, %v1985
  %v2005 = vpack.c.bf16 %v1956, %v1955
  %v2006 = vpack.c.bf16 %v1972, %v1971
  %v2007 = vpack.c.bf16 %v1988, %v1987
  %v2008 = vpack.c.bf16 %v1958, %v1957
  %v2009 = vpack.c.bf16 %v1974, %v1973
  %v2010 = vpack.c.bf16 %v1990, %v1989
  %v2011 = vpack.c.bf16 %v1960, %v1959
  %v2012 = vpack.c.bf16 %v1976, %v1975
  %v2013 = vpack.c.bf16 %v1992, %v1991
  %v2014 = vpack.c.bf16 %v1962, %v1961
  %v2015 = vpack.c.bf16 %v1978, %v1977
  %v2016 = vpack.c.bf16 %v1994, %v1993
  %v2017 = vpack.c.bf16 %v1964, %v1963
  %v2018 = vpack.c.bf16 %v1980, %v1979
  %v2019 = vpack.c.bf16 %v1996, %v1995
  %v2020 = vpack.c.bf16 %v1966, %v1965
  %v2021 = vpack.c.bf16 %v1982, %v1981
  %v2022 = vpack.c.bf16 %v1998, %v1997
  %s2023 = scalar_lea.vmem %s5, 384
  %v2024 = vld [vmem:[%s2023] sm:$0xf]
  %v2025 = vld [vmem:[%s2023 + $0x4] sm:$0xf]
  %v2026 = vld [vmem:[%s2023 + $0x8] sm:$0xf]
  %v2027 = vld [vmem:[%s2023 + $0xc] sm:$0xf]
  %v2028 = vld [vmem:[%s2023 + $0x10] sm:$0xf]
  %v2029 = vld [vmem:[%s2023 + $0x14] sm:$0xf]
  %v2030 = vld [vmem:[%s2023 + $0x18] sm:$0xf]
  %v2031 = vld [vmem:[%s2023 + $0x1c] sm:$0xf]
  %v2032 = vld [vmem:[%s2023 + $0x20] sm:$0xf]
  %v2033 = vld [vmem:[%s2023 + $0x24] sm:$0xf]
  %v2034 = vld [vmem:[%s2023 + $0x28] sm:$0xf]
  %v2035 = vld [vmem:[%s2023 + $0x2c] sm:$0xf]
  %v2036 = vld [vmem:[%s2023 + $0x30] sm:$0xf]
  %v2037 = vld [vmem:[%s2023 + $0x34] sm:$0xf]
  %v2038 = vld [vmem:[%s2023 + $0x38] sm:$0xf]
  %v2039 = vld [vmem:[%s2023 + $0x3c] sm:$0xf]
  %v2040 = vld [vmem:[%s2023 + $0x40] sm:$0xf]
  %v2041 = vld [vmem:[%s2023 + $0x44] sm:$0xf]
  %v2042 = vld [vmem:[%s2023 + $0x48] sm:$0xf]
  %v2043 = vld [vmem:[%s2023 + $0x4c] sm:$0xf]
  %v2044 = vld [vmem:[%s2023 + $0x50] sm:$0xf]
  %v2045 = vld [vmem:[%s2023 + $0x54] sm:$0xf]
  %v2046 = vld [vmem:[%s2023 + $0x58] sm:$0xf]
  %v2047 = vld [vmem:[%s2023 + $0x5c] sm:$0xf]
  %v2048 = vld [vmem:[%s2023 + $0x60] sm:$0xf]
  %v2049 = vld [vmem:[%s2023 + $0x64] sm:$0xf]
  %v2050 = vld [vmem:[%s2023 + $0x68] sm:$0xf]
  %v2051 = vld [vmem:[%s2023 + $0x6c] sm:$0xf]
  %v2052 = vld [vmem:[%s2023 + $0x70] sm:$0xf]
  %v2053 = vld [vmem:[%s2023 + $0x74] sm:$0xf]
  %v2054 = vld [vmem:[%s2023 + $0x78] sm:$0xf]
  %v2055 = vld [vmem:[%s2023 + $0x7c] sm:$0xf]
  %v2056 = vld [vmem:[%s2023 + $0x80] sm:$0xf]
  %v2057 = vld [vmem:[%s2023 + $0x84] sm:$0xf]
  %v2058 = vld [vmem:[%s2023 + $0x88] sm:$0xf]
  %v2059 = vld [vmem:[%s2023 + $0x8c] sm:$0xf]
  %v2060 = vld [vmem:[%s2023 + $0x90] sm:$0xf]
  %v2061 = vld [vmem:[%s2023 + $0x94] sm:$0xf]
  %v2062 = vld [vmem:[%s2023 + $0x98] sm:$0xf]
  %v2063 = vld [vmem:[%s2023 + $0x9c] sm:$0xf]
  %v2064 = vld [vmem:[%s2023 + $0xa0] sm:$0xf]
  %v2065 = vld [vmem:[%s2023 + $0xa4] sm:$0xf]
  %v2066 = vld [vmem:[%s2023 + $0xa8] sm:$0xf]
  %v2067 = vld [vmem:[%s2023 + $0xac] sm:$0xf]
  %v2068 = vld [vmem:[%s2023 + $0xb0] sm:$0xf]
  %v2069 = vld [vmem:[%s2023 + $0xb4] sm:$0xf]
  %v2070 = vld [vmem:[%s2023 + $0xb8] sm:$0xf]
  %v2071 = vld [vmem:[%s2023 + $0xbc] sm:$0xf]
  %v2120 = vunpack.c.l.b16 %v2024
  %v2121 = vunpack.c.l.b16 %v2025
  %v2122 = vunpack.c.l.b16 %v2026
  %v2123 = vunpack.c.l.b16 %v2027
  %v2124 = vunpack.c.l.b16 %v2028
  %v2125 = vunpack.c.l.b16 %v2029
  %v2126 = vunpack.c.l.b16 %v2030
  %v2127 = vunpack.c.l.b16 %v2031
  %v2128 = vunpack.c.l.b16 %v2032
  %v2129 = vunpack.c.l.b16 %v2033
  %v2130 = vunpack.c.l.b16 %v2034
  %v2131 = vunpack.c.l.b16 %v2035
  %v2132 = vunpack.c.l.b16 %v2036
  %v2133 = vunpack.c.l.b16 %v2037
  %v2134 = vunpack.c.l.b16 %v2038
  %v2135 = vunpack.c.l.b16 %v2039
  %v2136 = vunpack.c.l.b16 %v2040
  %v2137 = vunpack.c.l.b16 %v2041
  %v2138 = vunpack.c.l.b16 %v2042
  %v2139 = vunpack.c.l.b16 %v2043
  %v2140 = vunpack.c.l.b16 %v2044
  %v2141 = vunpack.c.l.b16 %v2045
  %v2142 = vunpack.c.l.b16 %v2046
  %v2143 = vunpack.c.l.b16 %v2047
  %v2144 = vunpack.c.l.b16 %v2048
  %v2145 = vunpack.c.l.b16 %v2049
  %v2146 = vunpack.c.l.b16 %v2050
  %v2147 = vunpack.c.l.b16 %v2051
  %v2148 = vunpack.c.l.b16 %v2052
  %v2149 = vunpack.c.l.b16 %v2053
  %v2150 = vunpack.c.l.b16 %v2054
  %v2151 = vunpack.c.l.b16 %v2055
  %v2152 = vunpack.c.l.b16 %v2056
  %v2153 = vunpack.c.l.b16 %v2057
  %v2154 = vunpack.c.l.b16 %v2058
  %v2155 = vunpack.c.l.b16 %v2059
  %v2156 = vunpack.c.l.b16 %v2060
  %v2157 = vunpack.c.l.b16 %v2061
  %v2158 = vunpack.c.l.b16 %v2062
  %v2159 = vunpack.c.l.b16 %v2063
  %v2160 = vunpack.c.l.b16 %v2064
  %v2161 = vunpack.c.l.b16 %v2065
  %v2162 = vunpack.c.l.b16 %v2066
  %v2163 = vunpack.c.l.b16 %v2067
  %v2164 = vunpack.c.l.b16 %v2068
  %v2165 = vunpack.c.l.b16 %v2069
  %v2166 = vunpack.c.l.b16 %v2070
  %v2167 = vunpack.c.l.b16 %v2071
  %v2168 = vpack.c.b16 %v2121, %v2120
  %v2169 = vpack.c.b16 %v2123, %v2122
  %v2170 = vpack.c.b16 %v2125, %v2124
  %v2171 = vpack.c.b16 %v2127, %v2126
  %v2172 = vpack.c.b16 %v2129, %v2128
  %v2173 = vpack.c.b16 %v2131, %v2130
  %v2174 = vpack.c.b16 %v2133, %v2132
  %v2175 = vpack.c.b16 %v2135, %v2134
  %v2176 = vpack.c.b16 %v2137, %v2136
  %v2177 = vpack.c.b16 %v2139, %v2138
  %v2178 = vpack.c.b16 %v2141, %v2140
  %v2179 = vpack.c.b16 %v2143, %v2142
  %v2180 = vpack.c.b16 %v2145, %v2144
  %v2181 = vpack.c.b16 %v2147, %v2146
  %v2182 = vpack.c.b16 %v2149, %v2148
  %v2183 = vpack.c.b16 %v2151, %v2150
  %v2184 = vpack.c.b16 %v2153, %v2152
  %v2185 = vpack.c.b16 %v2155, %v2154
  %v2186 = vpack.c.b16 %v2157, %v2156
  %v2187 = vpack.c.b16 %v2159, %v2158
  %v2188 = vpack.c.b16 %v2161, %v2160
  %v2189 = vpack.c.b16 %v2163, %v2162
  %v2190 = vpack.c.b16 %v2165, %v2164
  %v2191 = vpack.c.b16 %v2167, %v2166
  %2216 = vmatprep.subr.bf16.mxu0 0
  %2217 = vmatpush1.bf16.msra.mxu0 %v2168
  %2218 = vmatprep.subr.bf16.mxu0 0
  %2219 = vmatpush1.bf16.msra.mxu0 %v2169
  %2220 = vmatprep.subr.bf16.mxu0 0
  %2221 = vmatpush1.bf16.msra.mxu0 %v2170
  %2222 = vmatprep.subr.bf16.mxu0 0
  %2223 = vmatpush1.bf16.msra.mxu0 %v2171
  %2224 = vmatprep.subr.bf16.mxu0 0
  %2225 = vmatpush1.bf16.msra.mxu0 %v2172
  %2226 = vmatprep.subr.bf16.mxu0 0
  %2227 = vmatpush1.bf16.msra.mxu0 %v2173
  %2228 = vmatprep.subr.bf16.mxu0 0
  %2229 = vmatpush1.bf16.msra.mxu0 %v2174
  %2230 = vmatprep.subr.bf16.mxu0 0
  %2231 = vmatpush1.bf16.msra.mxu0 %v2175
  %2232 = vmatprep.subr.bf16.mxu0 0
  %2233 = vmatpush1.bf16.msra.mxu0 %v2176
  %2234 = vmatprep.subr.bf16.mxu0 0
  %2235 = vmatpush1.bf16.msra.mxu0 %v2177
  %2236 = vmatprep.subr.bf16.mxu0 0
  %2237 = vmatpush1.bf16.msra.mxu0 %v2178
  %2238 = vmatprep.subr.bf16.mxu0 0
  %2239 = vmatpush1.bf16.msra.mxu0 %v2179
  %2240 = vmatprep.subr.bf16.mxu0 0
  %2241 = vmatpush1.bf16.msra.mxu0 %v2180
  %2242 = vmatprep.subr.bf16.mxu0 0
  %2243 = vmatpush1.bf16.msra.mxu0 %v2181
  %2244 = vmatprep.subr.bf16.mxu0 0
  %2245 = vmatpush1.bf16.msra.mxu0 %v2182
  %2246 = vmatprep.subr.bf16.mxu0 0
  %2247 = vmatpush1.bf16.msra.mxu0 %v2183
  %2248 = vmatprep.mubr.bf16.mxu0 %v2000
  %2249 = vmatmul.mubr.bf16.gmra.mrb[0].mxu0 %v1999
  %v2250 = vpop.f32.mrb[0].mxu0
  %v2251 = vadd.f32 0.0, %v2250
  %v2252 = vpop.f32.mrb[0].mxu0
  %v2253 = vpop.f32.mrb[0].mxu0
  %v2254 = vadd.f32 0.0, %v2253
  %v2255 = vpop.f32.mrb[0].mxu0
  %2256 = vmatprep.mubr.bf16.mxu0 %v2003
  %2257 = vmatmul.mubr.bf16.gmra.mrb[0].mxu0 %v2002
  %v2258 = vpop.f32.mrb[0].mxu0
  %v2259 = vadd.f32 0.0, %v2258
  %v2260 = vpop.f32.mrb[0].mxu0
  %v2261 = vpop.f32.mrb[0].mxu0
  %v2262 = vadd.f32 0.0, %v2261
  %v2263 = vpop.f32.mrb[0].mxu0
  %2264 = vmatprep.mubr.bf16.mxu0 %v2006
  %2265 = vmatmul.mubr.bf16.gmra.mrb[0].mxu0 %v2005
  %v2266 = vpop.f32.mrb[0].mxu0
  %v2267 = vadd.f32 0.0, %v2266
  %v2268 = vpop.f32.mrb[0].mxu0
  %v2269 = vpop.f32.mrb[0].mxu0
  %v2270 = vadd.f32 0.0, %v2269
  %v2271 = vpop.f32.mrb[0].mxu0
  %2272 = vmatprep.mubr.bf16.mxu0 %v2009
  %2273 = vmatmul.mubr.bf16.gmra.mrb[0].mxu0 %v2008
  %v2274 = vpop.f32.mrb[0].mxu0
  %v2275 = vadd.f32 0.0, %v2274
  %v2276 = vpop.f32.mrb[0].mxu0
  %v2277 = vpop.f32.mrb[0].mxu0
  %v2278 = vadd.f32 0.0, %v2277
  %v2279 = vpop.f32.mrb[0].mxu0
  %2280 = vmatprep.mubr.bf16.mxu0 %v2012
  %2281 = vmatmul.mubr.bf16.gmra.mrb[0].mxu0 %v2011
  %v2282 = vpop.f32.mrb[0].mxu0
  %v2283 = vadd.f32 0.0, %v2282
  %v2284 = vpop.f32.mrb[0].mxu0
  %v2285 = vpop.f32.mrb[0].mxu0
  %v2286 = vadd.f32 0.0, %v2285
  %v2287 = vpop.f32.mrb[0].mxu0
  %2288 = vmatprep.mubr.bf16.mxu0 %v2015
  %2289 = vmatmul.mubr.bf16.gmra.mrb[0].mxu0 %v2014
  %v2290 = vpop.f32.mrb[0].mxu0
  %v2291 = vadd.f32 0.0, %v2290
  %v2292 = vpop.f32.mrb[0].mxu0
  %v2293 = vpop.f32.mrb[0].mxu0
  %v2294 = vadd.f32 0.0, %v2293
  %v2295 = vpop.f32.mrb[0].mxu0
  %2296 = vmatprep.mubr.bf16.mxu0 %v2018
  %2297 = vmatmul.mubr.bf16.gmra.mrb[0].mxu0 %v2017
  %v2298 = vpop.f32.mrb[0].mxu0
  %v2299 = vadd.f32 0.0, %v2298
  %v2300 = vpop.f32.mrb[0].mxu0
  %v2301 = vpop.f32.mrb[0].mxu0
  %v2302 = vadd.f32 0.0, %v2301
  %v2303 = vpop.f32.mrb[0].mxu0
  %2304 = vmatprep.mubr.bf16.mxu0 %v2021
  %2305 = vmatmul.mubr.bf16.gmra.mrb[0].mxu0 %v2020
  %v2306 = vpop.f32.mrb[0].mxu0
  %v2307 = vadd.f32 0.0, %v2306
  %v2308 = vpop.f32.mrb[0].mxu0
  %v2309 = vpop.f32.mrb[0].mxu0
  %v2310 = vadd.f32 0.0, %v2309
  %v2311 = vpop.f32.mrb[0].mxu0
  %2312 = vdwg.mxu0
  %2313 = vmatprep.subr.bf16.mxu0 0
  %2314 = vmatpush1.bf16.msra.mxu0 %v2184
  %2315 = vmatprep.subr.bf16.mxu0 0
  %2316 = vmatpush1.bf16.msra.mxu0 %v2185
  %2317 = vmatprep.subr.bf16.mxu0 0
  %2318 = vmatpush1.bf16.msra.mxu0 %v2186
  %2319 = vmatprep.subr.bf16.mxu0 0
  %2320 = vmatpush1.bf16.msra.mxu0 %v2187
  %2321 = vmatprep.subr.bf16.mxu0 0
  %2322 = vmatpush1.bf16.msra.mxu0 %v2188
  %2323 = vmatprep.subr.bf16.mxu0 0
  %2324 = vmatpush1.bf16.msra.mxu0 %v2189
  %2325 = vmatprep.subr.bf16.mxu0 0
  %2326 = vmatpush1.bf16.msra.mxu0 %v2190
  %2327 = vmatprep.subr.bf16.mxu0 0
  %2328 = vmatpush1.bf16.msra.mxu0 %v2191
  %2329 = vmatprep.subr.bf16.mxu0 0
  %2330 = vmatpush1.bf16.msra.mxu0 0
  %2331 = vmatprep.subr.bf16.mxu0 0
  %2332 = vmatpush1.bf16.msra.mxu0 0
  %2333 = vmatprep.subr.bf16.mxu0 0
  %2334 = vmatpush1.bf16.msra.mxu0 0
  %2335 = vmatprep.subr.bf16.mxu0 0
  %2336 = vmatpush1.bf16.msra.mxu0 0
  %2337 = vmatprep.subr.bf16.mxu0 0
  %2338 = vmatpush1.bf16.msra.mxu0 0
  %2339 = vmatprep.subr.bf16.mxu0 0
  %2340 = vmatpush1.bf16.msra.mxu0 0
  %2341 = vmatprep.subr.bf16.mxu0 0
  %2342 = vmatpush1.bf16.msra.mxu0 0
  %2343 = vmatprep.subr.bf16.mxu0 0
  %2344 = vmatpush1.bf16.msra.mxu0 0
  %2345 = vmatprep.mubr.bf16.mxu0 0
  %2346 = vmatmul.mubr.bf16.gmra.mrb[0].mxu0 %v2001
  %v2347 = vpop.f32.mrb[0].mxu0
  %v2348 = vadd.f32 %v2251, %v2347
  %v2349 = vpop.f32.mrb[0].mxu0
  %v2350 = vpop.f32.mrb[0].mxu0
  %v2351 = vadd.f32 %v2254, %v2350
  %v2352 = vpop.f32.mrb[0].mxu0
  %2353 = vmatprep.mubr.bf16.mxu0 0
  %2354 = vmatmul.mubr.bf16.gmra.mrb[0].mxu0 %v2004
  %v2355 = vpop.f32.mrb[0].mxu0
  %v2356 = vadd.f32 %v2259, %v2355
  %v2357 = vpop.f32.mrb[0].mxu0
  %v2358 = vpop.f32.mrb[0].mxu0
  %v2359 = vadd.f32 %v2262, %v2358
  %v2360 = vpop.f32.mrb[0].mxu0
  %2361 = vmatprep.mubr.bf16.mxu0 0
  %2362 = vmatmul.mubr.bf16.gmra.mrb[0].mxu0 %v2007
  %v2363 = vpop.f32.mrb[0].mxu0
  %v2364 = vadd.f32 %v2267, %v2363
  %v2365 = vpop.f32.mrb[0].mxu0
  %v2366 = vpop.f32.mrb[0].mxu0
  %v2367 = vadd.f32 %v2270, %v2366
  %v2368 = vpop.f32.mrb[0].mxu0
  %2369 = vmatprep.mubr.bf16.mxu0 0
  %2370 = vmatmul.mubr.bf16.gmra.mrb[0].mxu0 %v2010
  %v2371 = vpop.f32.mrb[0].mxu0
  %v2372 = vadd.f32 %v2275, %v2371
  %v2373 = vpop.f32.mrb[0].mxu0
  %v2374 = vpop.f32.mrb[0].mxu0
  %v2375 = vadd.f32 %v2278, %v2374
  %v2376 = vpop.f32.mrb[0].mxu0
  %2377 = vmatprep.mubr.bf16.mxu0 0
  %2378 = vmatmul.mubr.bf16.gmra.mrb[0].mxu0 %v2013
  %v2379 = vpop.f32.mrb[0].mxu0
  %v2380 = vadd.f32 %v2283, %v2379
  %v2381 = vpop.f32.mrb[0].mxu0
  %v2382 = vpop.f32.mrb[0].mxu0
  %v2383 = vadd.f32 %v2286, %v2382
  %v2384 = vpop.f32.mrb[0].mxu0
  %2385 = vmatprep.mubr.bf16.mxu0 0
  %2386 = vmatmul.mubr.bf16.gmra.mrb[0].mxu0 %v2016
  %v2387 = vpop.f32.mrb[0].mxu0
  %v2388 = vadd.f32 %v2291, %v2387
  %v2389 = vpop.f32.mrb[0].mxu0
  %v2390 = vpop.f32.mrb[0].mxu0
  %v2391 = vadd.f32 %v2294, %v2390
  %v2392 = vpop.f32.mrb[0].mxu0
  %2393 = vmatprep.mubr.bf16.mxu0 0
  %2394 = vmatmul.mubr.bf16.gmra.mrb[0].mxu0 %v2019
  %v2395 = vpop.f32.mrb[0].mxu0
  %v2396 = vadd.f32 %v2299, %v2395
  %v2397 = vpop.f32.mrb[0].mxu0
  %v2398 = vpop.f32.mrb[0].mxu0
  %v2399 = vadd.f32 %v2302, %v2398
  %v2400 = vpop.f32.mrb[0].mxu0
  %2401 = vmatprep.mubr.bf16.mxu0 0
  %2402 = vmatmul.mubr.bf16.gmra.mrb[0].mxu0 %v2022
  %v2403 = vpop.f32.mrb[0].mxu0
  %v2404 = vadd.f32 %v2307, %v2403
  %v2405 = vpop.f32.mrb[0].mxu0
  %v2406 = vpop.f32.mrb[0].mxu0
  %v2407 = vadd.f32 %v2310, %v2406
  %v2408 = vpop.f32.mrb[0].mxu0
  %2409 = vdwg.mxu0
  %v2410 = vadd.f32 %v1888, %v2348
  %v2411 = vadd.f32 %v1891, %v2351
  %v2412 = vadd.f32 %v1896, %v2356
  %v2413 = vadd.f32 %v1899, %v2359
  %v2414 = vadd.f32 %v1904, %v2364
  %v2415 = vadd.f32 %v1907, %v2367
  %v2416 = vadd.f32 %v1912, %v2372
  %v2417 = vadd.f32 %v1915, %v2375
  %v2418 = vadd.f32 %v1920, %v2380
  %v2419 = vadd.f32 %v1923, %v2383
  %v2420 = vadd.f32 %v1928, %v2388
  %v2421 = vadd.f32 %v1931, %v2391
  %v2422 = vadd.f32 %v1936, %v2396
  %v2423 = vadd.f32 %v1939, %v2399
  %v2424 = vadd.f32 %v1944, %v2404
  %v2425 = vadd.f32 %v1947, %v2407
  %v2426 = vld [vmem:[%s6] sm:$0x1]
  %v2427 = vld [vmem:[%s7] sm:$0x1]
  %v2428 = vadd.f32 %v2410, %v2411
  %v2429 = vadd.f32 %v2428, %v2412
  %v2430 = vadd.f32 %v2429, %v2413
  %v2431 = vadd.f32 %v2430, %v2414
  %v2432 = vadd.f32 %v2431, %v2415
  %v2433 = vadd.f32 %v2432, %v2416
  %v2434 = vadd.f32 %v2433, %v2417
  %v2435 = vadd.f32 %v2434, %v2418
  %v2436 = vadd.f32 %v2435, %v2419
  %v2437 = vadd.f32 %v2436, %v2420
  %v2438 = vadd.f32 %v2437, %v2421
  %v2439 = vadd.f32 %v2438, %v2422
  %v2440 = vadd.f32 %v2439, %v2423
  %v2441 = vadd.f32 %v2440, %v2424
  %v2442 = vadd.f32 %v2441, %v2425
  %v2443 = vrot.slane %v2442, 4
  %v2444 = vadd.f32 %v2442, %v2443
  %v2445 = vrot.slane %v2444, 2
  %v2446 = vadd.f32 %v2444, %v2445
  %v2447 = vrot.slane %v2446, 1
  %v2448 = vadd.f32 %v2446, %v2447
  %v2449 = vmul.f32 %v2448, 0.0078125
  %v2450 = vsub.f32 %v2410, %v2449
  %v2451 = vsub.f32 %v2411, %v2449
  %v2452 = vsub.f32 %v2412, %v2449
  %v2453 = vsub.f32 %v2413, %v2449
  %v2454 = vsub.f32 %v2414, %v2449
  %v2455 = vsub.f32 %v2415, %v2449
  %v2456 = vsub.f32 %v2416, %v2449
  %v2457 = vsub.f32 %v2417, %v2449
  %v2458 = vsub.f32 %v2418, %v2449
  %v2459 = vsub.f32 %v2419, %v2449
  %v2460 = vsub.f32 %v2420, %v2449
  %v2461 = vsub.f32 %v2421, %v2449
  %v2462 = vsub.f32 %v2422, %v2449
  %v2463 = vsub.f32 %v2423, %v2449
  %v2464 = vsub.f32 %v2424, %v2449
  %v2465 = vsub.f32 %v2425, %v2449
  %v2466 = vmul.f32 %v2450, %v2450
  %v2467 = vmul.f32 %v2451, %v2451
  %v2468 = vmul.f32 %v2452, %v2452
  %v2469 = vmul.f32 %v2453, %v2453
  %v2470 = vmul.f32 %v2454, %v2454
  %v2471 = vmul.f32 %v2455, %v2455
  %v2472 = vmul.f32 %v2456, %v2456
  %v2473 = vmul.f32 %v2457, %v2457
  %v2474 = vmul.f32 %v2458, %v2458
  %v2475 = vmul.f32 %v2459, %v2459
  %v2476 = vmul.f32 %v2460, %v2460
  %v2477 = vmul.f32 %v2461, %v2461
  %v2478 = vmul.f32 %v2462, %v2462
  %v2479 = vmul.f32 %v2463, %v2463
  %v2480 = vmul.f32 %v2464, %v2464
  %v2481 = vmul.f32 %v2465, %v2465
  %v2482 = vadd.f32 %v2466, %v2467
  %v2483 = vadd.f32 %v2482, %v2468
  %v2484 = vadd.f32 %v2483, %v2469
  %v2485 = vadd.f32 %v2484, %v2470
  %v2486 = vadd.f32 %v2485, %v2471
  %v2487 = vadd.f32 %v2486, %v2472
  %v2488 = vadd.f32 %v2487, %v2473
  %v2489 = vadd.f32 %v2488, %v2474
  %v2490 = vadd.f32 %v2489, %v2475
  %v2491 = vadd.f32 %v2490, %v2476
  %v2492 = vadd.f32 %v2491, %v2477
  %v2493 = vadd.f32 %v2492, %v2478
  %v2494 = vadd.f32 %v2493, %v2479
  %v2495 = vadd.f32 %v2494, %v2480
  %v2496 = vadd.f32 %v2495, %v2481
  %v2497 = vrot.slane %v2496, 4
  %v2498 = vadd.f32 %v2496, %v2497
  %v2499 = vrot.slane %v2498, 2
  %v2500 = vadd.f32 %v2498, %v2499
  %v2501 = vrot.slane %v2500, 1
  %v2502 = vadd.f32 %v2500, %v2501
  %v2503 = vmul.f32 %v2502, 0.0078125
  %v2504 = vadd.f32 %v2503, 0.8
  %v2505 = vrsqrt.pop %v2504
  %v2506 = vmul.f32 %v2505, %v2426
  %v2507 = vlaneseq
  %v2508 = vshrl.u32 %v2507, 7
  %v2509 = vsub.s32 0, %v2508
  %v2510 = vrot.slane %v2506, %v2509
  %v2511 = vmul.f32 %v2450, %v2510
  %v2512 = vmul.f32 %v2451, %v2510
  %v2513 = vmul.f32 %v2452, %v2510
  %v2514 = vmul.f32 %v2453, %v2510
  %v2515 = vmul.f32 %v2454, %v2510
  %v2516 = vmul.f32 %v2455, %v2510
  %v2517 = vmul.f32 %v2456, %v2510
  %v2518 = vmul.f32 %v2457, %v2510
  %v2519 = vmul.f32 %v2458, %v2510
  %v2520 = vmul.f32 %v2459, %v2510
  %v2521 = vmul.f32 %v2460, %v2510
  %v2522 = vmul.f32 %v2461, %v2510
  %v2523 = vmul.f32 %v2462, %v2510
  %v2524 = vmul.f32 %v2463, %v2510
  %v2525 = vmul.f32 %v2464, %v2510
  %v2526 = vmul.f32 %v2465, %v2510
  %v2528 = vlaneseq
  %v2529 = vshrl.u32 %v2528, 7
  %v2530 = vsub.s32 0, %v2529
  %v2531 = vrot.slane %v2427, %v2530
  %v2533 = vadd.f32 %v2511, %v2531
  %v2534 = vadd.f32 %v2512, %v2531
  %v2535 = vadd.f32 %v2513, %v2531
  %v2536 = vadd.f32 %v2514, %v2531
  %v2537 = vadd.f32 %v2515, %v2531
  %v2538 = vadd.f32 %v2516, %v2531
  %v2539 = vadd.f32 %v2517, %v2531
  %v2540 = vadd.f32 %v2518, %v2531
  %v2541 = vadd.f32 %v2519, %v2531
  %v2542 = vadd.f32 %v2520, %v2531
  %v2543 = vadd.f32 %v2521, %v2531
  %v2544 = vadd.f32 %v2522, %v2531
  %v2545 = vadd.f32 %v2523, %v2531
  %v2546 = vadd.f32 %v2524, %v2531
  %v2547 = vadd.f32 %v2525, %v2531
  %v2548 = vadd.f32 %v2526, %v2531
  %vm2549 = vcmp.ge.f32.partialorder %v2533, 0.0
  %vm2550 = vcmp.ge.f32.partialorder %v2534, 0.0
  %vm2551 = vcmp.ge.f32.partialorder %v2535, 0.0
  %vm2552 = vcmp.ge.f32.partialorder %v2536, 0.0
  %vm2553 = vcmp.ge.f32.partialorder %v2537, 0.0
  %vm2554 = vcmp.ge.f32.partialorder %v2538, 0.0
  %vm2555 = vcmp.ge.f32.partialorder %v2539, 0.0
  %vm2556 = vcmp.ge.f32.partialorder %v2540, 0.0
  %vm2557 = vcmp.ge.f32.partialorder %v2541, 0.0
  %vm2558 = vcmp.ge.f32.partialorder %v2542, 0.0
  %vm2559 = vcmp.ge.f32.partialorder %v2543, 0.0
  %vm2560 = vcmp.ge.f32.partialorder %v2544, 0.0
  %vm2561 = vcmp.ge.f32.partialorder %v2545, 0.0
  %vm2562 = vcmp.ge.f32.partialorder %v2546, 0.0
  %vm2563 = vcmp.ge.f32.partialorder %v2547, 0.0
  %vm2564 = vcmp.ge.f32.partialorder %v2548, 0.0
  %v2565 = vmul.f32 %v2533, 0.2
  %v2566 = vmul.f32 %v2534, 0.2
  %v2567 = vmul.f32 %v2535, 0.2
  %v2568 = vmul.f32 %v2536, 0.2
  %v2569 = vmul.f32 %v2537, 0.2
  %v2570 = vmul.f32 %v2538, 0.2
  %v2571 = vmul.f32 %v2539, 0.2
  %v2572 = vmul.f32 %v2540, 0.2
  %v2573 = vmul.f32 %v2541, 0.2
  %v2574 = vmul.f32 %v2542, 0.2
  %v2575 = vmul.f32 %v2543, 0.2
  %v2576 = vmul.f32 %v2544, 0.2
  %v2577 = vmul.f32 %v2545, 0.2
  %v2578 = vmul.f32 %v2546, 0.2
  %v2579 = vmul.f32 %v2547, 0.2
  %v2580 = vmul.f32 %v2548, 0.2
  %v2581 = vsel %vm2549, %v2533, %v2565
  %v2582 = vsel %vm2550, %v2534, %v2566
  %v2583 = vsel %vm2551, %v2535, %v2567
  %v2584 = vsel %vm2552, %v2536, %v2568
  %v2585 = vsel %vm2553, %v2537, %v2569
  %v2586 = vsel %vm2554, %v2538, %v2570
  %v2587 = vsel %vm2555, %v2539, %v2571
  %v2588 = vsel %vm2556, %v2540, %v2572
  %v2589 = vsel %vm2557, %v2541, %v2573
  %v2590 = vsel %vm2558, %v2542, %v2574
  %v2591 = vsel %vm2559, %v2543, %v2575
  %v2592 = vsel %vm2560, %v2544, %v2576
  %v2593 = vsel %vm2561, %v2545, %v2577
  %v2594 = vsel %vm2562, %v2546, %v2578
  %v2595 = vsel %vm2563, %v2547, %v2579
  %v2596 = vsel %vm2564, %v2548, %v2580
  %2597 = vst [vmem:[#allocation3] sm:$0xff] 0.0
  %2598 = vst [vmem:[#allocation3 + $0x8] sm:$0xff] 0.0
  %2599 = vst [vmem:[#allocation3 + $0x10] sm:$0x3] 0.0
  %2600 = vst [vmem:[#allocation3 + $0x18] sm:$0xff] 0.0
  %2601 = vst [vmem:[#allocation3 + $0x20] sm:$0xff] 0.0
  %2602 = vst [vmem:[#allocation3 + $0x28] sm:$0x3] 0.0
  %2603 = vst [vmem:[#allocation3 + $0x30] sm:$0xff] 0.0
  %2604 = vst [vmem:[#allocation3 + $0x38] sm:$0xff] 0.0
  %2605 = vst [vmem:[#allocation3 + $0x40] sm:$0x3] 0.0
  %2606 = vst [vmem:[#allocation3 + $0x48] sm:$0xff] 0.0
  %2607 = vst [vmem:[#allocation3 + $0x50] sm:$0xff] 0.0
  %2608 = vst [vmem:[#allocation3 + $0x58] sm:$0x3] 0.0
  %2609 = vst [vmem:[#allocation3 + $0x60] sm:$0xff] 0.0
  %2610 = vst [vmem:[#allocation3 + $0x68] sm:$0xff] 0.0
  %2611 = vst [vmem:[#allocation3 + $0x70] sm:$0x3] 0.0
  %2612 = vst [vmem:[#allocation3 + $0x78] sm:$0xff] 0.0
  %2613 = vst [vmem:[#allocation3 + $0x80] sm:$0xff] 0.0
  %2614 = vst [vmem:[#allocation3 + $0x88] sm:$0x3] 0.0
  %2615 = vst [vmem:[#allocation3 + $0x90] sm:$0xff] 0.0
  %2616 = vst [vmem:[#allocation3 + $0x98] sm:$0xff] 0.0
  %2617 = vst [vmem:[#allocation3 + $0xa0] sm:$0x3] 0.0
  %2618 = vst [vmem:[#allocation3 + $0xa8] sm:$0xff] 0.0
  %2619 = vst [vmem:[#allocation3 + $0xb0] sm:$0xff] 0.0
  %2620 = vst [vmem:[#allocation3 + $0xb8] sm:$0x3] 0.0
  %2621 = vst [vmem:[#allocation3 + $0xc0] sm:$0xff] 0.0
  %2622 = vst [vmem:[#allocation3 + $0xc8] sm:$0xff] 0.0
  %2623 = vst [vmem:[#allocation3 + $0xd0] sm:$0x3] 0.0
  %2624 = vst [vmem:[#allocation3 + $0xd8] sm:$0xff] 0.0
  %2625 = vst [vmem:[#allocation3 + $0xe0] sm:$0xff] 0.0
  %2626 = vst [vmem:[#allocation3 + $0xe8] sm:$0x3] 0.0
  %2627 = vst [vmem:[#allocation3 + $0xf0] sm:$0xff] 0.0
  %2628 = vst [vmem:[#allocation3 + $0xf8] sm:$0xff] 0.0
  %2629 = vst [vmem:[#allocation3 + $0x100] sm:$0x3] 0.0
  %2630 = vst [vmem:[#allocation3 + $0x108] sm:$0xff] 0.0
  %2631 = vst [vmem:[#allocation3 + $0x110] sm:$0xff] 0.0
  %2632 = vst [vmem:[#allocation3 + $0x118] sm:$0x3] 0.0
  %2633 = vst [vmem:[#allocation3 + $0x120] sm:$0xff] 0.0
  %2634 = vst [vmem:[#allocation3 + $0x128] sm:$0xff] 0.0
  %2635 = vst [vmem:[#allocation3 + $0x130] sm:$0x3] 0.0
  %2636 = vst [vmem:[#allocation3 + $0x138] sm:$0xff] 0.0
  %2637 = vst [vmem:[#allocation3 + $0x140] sm:$0xff] 0.0
  %2638 = vst [vmem:[#allocation3 + $0x148] sm:$0x3] 0.0
  %2639 = vst [vmem:[#allocation3 + $0x150] sm:$0xff] 0.0
  %2640 = vst [vmem:[#allocation3 + $0x158] sm:$0xff] 0.0
  %2641 = vst [vmem:[#allocation3 + $0x160] sm:$0x3] 0.0
  %2642 = vst [vmem:[#allocation3 + $0x168] sm:$0xff] 0.0
  %2643 = vst [vmem:[#allocation3 + $0x170] sm:$0xff] 0.0
  %2644 = vst [vmem:[#allocation3 + $0x178] sm:$0x3] 0.0
  %2645 = vst [vmem:[#allocation3 + $0x180] sm:$0xff] 0.0
  %2646 = vst [vmem:[#allocation3 + $0x188] sm:$0xff] 0.0
  %2647 = vst [vmem:[#allocation3 + $0x190] sm:$0x3] 0.0
  %2648 = vst [vmem:[#allocation3 + $0x198] sm:$0xff] 0.0
  %2649 = vst [vmem:[#allocation3 + $0x1a0] sm:$0xff] 0.0
  %2650 = vst [vmem:[#allocation3 + $0x1a8] sm:$0x3] 0.0
  %2651 = vst [vmem:[#allocation3 + $0x1b0] sm:$0xff] 0.0
  %2652 = vst [vmem:[#allocation3 + $0x1b8] sm:$0xff] 0.0
  %2653 = vst [vmem:[#allocation3 + $0x1c0] sm:$0x3] 0.0
  %2654 = vst [vmem:[#allocation3 + $0x1c8] sm:$0xff] 0.0
  %2655 = vst [vmem:[#allocation3 + $0x1d0] sm:$0xff] 0.0
  %2656 = vst [vmem:[#allocation3 + $0x1d8] sm:$0x3] 0.0
  %2657 = vst [vmem:[#allocation3 + $0x1e0] sm:$0xff] 0.0
  %2658 = vst [vmem:[#allocation3 + $0x1e8] sm:$0xff] 0.0
  %2659 = vst [vmem:[#allocation3 + $0x1f0] sm:$0x3] 0.0
  %2660 = vst [vmem:[#allocation3 + $0x1f8] sm:$0xff] 0.0
  %2661 = vst [vmem:[#allocation3 + $0x200] sm:$0xff] 0.0
  %2662 = vst [vmem:[#allocation3 + $0x208] sm:$0x3] 0.0
  %2663 = vst [vmem:[#allocation3 + $0x210] sm:$0xff] 0.0
  %2664 = vst [vmem:[#allocation3 + $0x218] sm:$0xff] 0.0
  %2665 = vst [vmem:[#allocation3 + $0x220] sm:$0x3] 0.0
  %2666 = vst [vmem:[#allocation3 + $0x228] sm:$0xff] 0.0
  %2667 = vst [vmem:[#allocation3 + $0x230] sm:$0xff] 0.0
  %2668 = vst [vmem:[#allocation3 + $0x238] sm:$0x3] 0.0
  %2669 = vst [vmem:[#allocation3 + $0x240] sm:$0xff] 0.0
  %2670 = vst [vmem:[#allocation3 + $0x248] sm:$0xff] 0.0
  %2671 = vst [vmem:[#allocation3 + $0x250] sm:$0x3] 0.0
  %2672 = vst [vmem:[#allocation3 + $0x258] sm:$0xff] 0.0
  %2673 = vst [vmem:[#allocation3 + $0x260] sm:$0xff] 0.0
  %2674 = vst [vmem:[#allocation3 + $0x268] sm:$0x3] 0.0
  %2675 = vst [vmem:[#allocation3 + $0x270] sm:$0xff] 0.0
  %2676 = vst [vmem:[#allocation3 + $0x278] sm:$0xff] 0.0
  %2677 = vst [vmem:[#allocation3 + $0x280] sm:$0x3] 0.0
  %2678 = vst [vmem:[#allocation3 + $0x288] sm:$0xff] 0.0
  %2679 = vst [vmem:[#allocation3 + $0x290] sm:$0xff] 0.0
  %2680 = vst [vmem:[#allocation3 + $0x298] sm:$0x3] 0.0
  %2681 = vst [vmem:[#allocation3 + $0x2a0] sm:$0xff] 0.0
  %2682 = vst [vmem:[#allocation3 + $0x2a8] sm:$0xff] 0.0
  %2683 = vst [vmem:[#allocation3 + $0x2b0] sm:$0x3] 0.0
  %2684 = vst [vmem:[#allocation3 + $0x2b8] sm:$0xff] 0.0
  %2685 = vst [vmem:[#allocation3 + $0x2c0] sm:$0xff] 0.0
  %2686 = vst [vmem:[#allocation3 + $0x2c8] sm:$0x3] 0.0
  %2687 = vst [vmem:[#allocation3 + $0x2d0] sm:$0xff] 0.0
  %2688 = vst [vmem:[#allocation3 + $0x2d8] sm:$0xff] 0.0
  %2689 = vst [vmem:[#allocation3 + $0x2e0] sm:$0x3] 0.0
  %2690 = vst [vmem:[#allocation3 + $0x2e8] sm:$0xff] 0.0
  %2691 = vst [vmem:[#allocation3 + $0x2f0] sm:$0xff] 0.0
  %2692 = vst [vmem:[#allocation3 + $0x2f8] sm:$0x3] 0.0
  %2693 = vst [vmem:[#allocation3 + $0x300] sm:$0xff] 0.0
  %2694 = vst [vmem:[#allocation3 + $0x308] sm:$0xff] 0.0
  %2695 = vst [vmem:[#allocation3 + $0x310] sm:$0x3] 0.0
  %2696 = vst [vmem:[#allocation3 + $0x318] sm:$0xff] 0.0
  %2697 = vst [vmem:[#allocation3 + $0x320] sm:$0xff] 0.0
  %2698 = vst [vmem:[#allocation3 + $0x328] sm:$0x3] 0.0
  %2699 = vst [vmem:[#allocation3 + $0x330] sm:$0xff] 0.0
  %2700 = vst [vmem:[#allocation3 + $0x338] sm:$0xff] 0.0
  %2701 = vst [vmem:[#allocation3 + $0x340] sm:$0x3] 0.0
  %2702 = vst [vmem:[#allocation3 + $0x348] sm:$0xff] 0.0
  %2703 = vst [vmem:[#allocation3 + $0x350] sm:$0xff] 0.0
  %2704 = vst [vmem:[#allocation3 + $0x358] sm:$0x3] 0.0
  %v2721 = vcombine.high %v2581, %v2581
  %v2723 = vunpack.c.l.s4 1966171168
  %v2724 = vunpack.c.0.s8 %v2723
  %v2725 = vlaneseq
  %v2726 = vshrl.u32 %v2725, 7
  %v2727 = vsub.s32 %v2724, %v2726
  %v2728 = vrot.slane %v2581, %v2727
  %v2730 = vunpack.c.l.s4 1966171168
  %v2731 = vunpack.c.0.s8 %v2730
  %v2732 = vlaneseq
  %v2733 = vshrl.u32 %v2732, 7
  %v2734 = vsub.s32 %v2731, %v2733
  %v2735 = vrot.slane %v2721, %v2734
  %v2736 = vcombine.high %v2728, %v2728
  %v2737 = vcombine.high %v2735, %v2735
  %v2739 = vunpack.c.l.s4 1966171168
  %v2740 = vunpack.c.0.s8 %v2739
  %v2741 = vlaneseq
  %v2742 = vshrl.u32 %v2741, 7
  %v2743 = vsub.s32 %v2740, %v2742
  %v2744 = vrot.slane %v2728, %v2743
  %v2746 = vunpack.c.l.s4 1966171168
  %v2747 = vunpack.c.0.s8 %v2746
  %v2748 = vlaneseq
  %v2749 = vshrl.u32 %v2748, 7
  %v2750 = vsub.s32 %v2747, %v2749
  %v2751 = vrot.slane %v2735, %v2750
  %v2753 = vunpack.c.l.s4 1966171168
  %v2754 = vunpack.c.0.s8 %v2753
  %v2755 = vlaneseq
  %v2756 = vshrl.u32 %v2755, 7
  %v2757 = vsub.s32 %v2754, %v2756
  %v2758 = vrot.slane %v2736, %v2757
  %v2760 = vunpack.c.l.s4 1966171168
  %v2761 = vunpack.c.0.s8 %v2760
  %v2762 = vlaneseq
  %v2763 = vshrl.u32 %v2762, 7
  %v2764 = vsub.s32 %v2761, %v2763
  %v2765 = vrot.slane %v2737, %v2764
  %v2766 = vcombine.high %v2744, %v2744
  %v2767 = vcombine.high %v2751, %v2751
  %v2768 = vcombine.high %v2758, %v2758
  %v2769 = vcombine.high %v2765, %v2765
  %v2770 = vcombine.high %v2582, %v2582
  %v2772 = vunpack.c.l.s4 1966171168
  %v2773 = vunpack.c.0.s8 %v2772
  %v2774 = vlaneseq
  %v2775 = vshrl.u32 %v2774, 7
  %v2776 = vsub.s32 %v2773, %v2775
  %v2777 = vrot.slane %v2582, %v2776
  %v2779 = vunpack.c.l.s4 1966171168
  %v2780 = vunpack.c.0.s8 %v2779
  %v2781 = vlaneseq
  %v2782 = vshrl.u32 %v2781, 7
  %v2783 = vsub.s32 %v2780, %v2782
  %v2784 = vrot.slane %v2770, %v2783
  %v2785 = vcombine.high %v2777, %v2777
  %v2786 = vcombine.high %v2784, %v2784
  %v2788 = vunpack.c.l.s4 1966171168
  %v2789 = vunpack.c.0.s8 %v2788
  %v2790 = vlaneseq
  %v2791 = vshrl.u32 %v2790, 7
  %v2792 = vsub.s32 %v2789, %v2791
  %v2793 = vrot.slane %v2777, %v2792
  %v2795 = vunpack.c.l.s4 1966171168
  %v2796 = vunpack.c.0.s8 %v2795
  %v2797 = vlaneseq
  %v2798 = vshrl.u32 %v2797, 7
  %v2799 = vsub.s32 %v2796, %v2798
  %v2800 = vrot.slane %v2784, %v2799
  %v2802 = vunpack.c.l.s4 1966171168
  %v2803 = vunpack.c.0.s8 %v2802
  %v2804 = vlaneseq
  %v2805 = vshrl.u32 %v2804, 7
  %v2806 = vsub.s32 %v2803, %v2805
  %v2807 = vrot.slane %v2785, %v2806
  %v2809 = vunpack.c.l.s4 1966171168
  %v2810 = vunpack.c.0.s8 %v2809
  %v2811 = vlaneseq
  %v2812 = vshrl.u32 %v2811, 7
  %v2813 = vsub.s32 %v2810, %v2812
  %v2814 = vrot.slane %v2786, %v2813
  %v2815 = vcombine.high %v2793, %v2793
  %v2816 = vcombine.high %v2800, %v2800
  %v2817 = vcombine.high %v2807, %v2807
  %v2818 = vcombine.high %v2814, %v2814
  %v2819 = vcombine.high %v2583, %v2583
  %v2821 = vunpack.c.l.s4 1966171168
  %v2822 = vunpack.c.0.s8 %v2821
  %v2823 = vlaneseq
  %v2824 = vshrl.u32 %v2823, 7
  %v2825 = vsub.s32 %v2822, %v2824
  %v2826 = vrot.slane %v2583, %v2825
  %v2828 = vunpack.c.l.s4 1966171168
  %v2829 = vunpack.c.0.s8 %v2828
  %v2830 = vlaneseq
  %v2831 = vshrl.u32 %v2830, 7
  %v2832 = vsub.s32 %v2829, %v2831
  %v2833 = vrot.slane %v2819, %v2832
  %v2834 = vcombine.high %v2826, %v2826
  %v2835 = vcombine.high %v2833, %v2833
  %v2837 = vunpack.c.l.s4 1966171168
  %v2838 = vunpack.c.0.s8 %v2837
  %v2839 = vlaneseq
  %v2840 = vshrl.u32 %v2839, 7
  %v2841 = vsub.s32 %v2838, %v2840
  %v2842 = vrot.slane %v2826, %v2841
  %v2844 = vunpack.c.l.s4 1966171168
  %v2845 = vunpack.c.0.s8 %v2844
  %v2846 = vlaneseq
  %v2847 = vshrl.u32 %v2846, 7
  %v2848 = vsub.s32 %v2845, %v2847
  %v2849 = vrot.slane %v2833, %v2848
  %v2851 = vunpack.c.l.s4 1966171168
  %v2852 = vunpack.c.0.s8 %v2851
  %v2853 = vlaneseq
  %v2854 = vshrl.u32 %v2853, 7
  %v2855 = vsub.s32 %v2852, %v2854
  %v2856 = vrot.slane %v2834, %v2855
  %v2858 = vunpack.c.l.s4 1966171168
  %v2859 = vunpack.c.0.s8 %v2858
  %v2860 = vlaneseq
  %v2861 = vshrl.u32 %v2860, 7
  %v2862 = vsub.s32 %v2859, %v2861
  %v2863 = vrot.slane %v2835, %v2862
  %v2864 = vcombine.high %v2842, %v2842
  %v2865 = vcombine.high %v2849, %v2849
  %v2866 = vcombine.high %v2856, %v2856
  %v2867 = vcombine.high %v2863, %v2863
  %v2868 = vcombine.high %v2584, %v2584
  %v2870 = vunpack.c.l.s4 1966171168
  %v2871 = vunpack.c.0.s8 %v2870
  %v2872 = vlaneseq
  %v2873 = vshrl.u32 %v2872, 7
  %v2874 = vsub.s32 %v2871, %v2873
  %v2875 = vrot.slane %v2584, %v2874
  %v2877 = vunpack.c.l.s4 1966171168
  %v2878 = vunpack.c.0.s8 %v2877
  %v2879 = vlaneseq
  %v2880 = vshrl.u32 %v2879, 7
  %v2881 = vsub.s32 %v2878, %v2880
  %v2882 = vrot.slane %v2868, %v2881
  %v2883 = vcombine.high %v2875, %v2875
  %v2884 = vcombine.high %v2882, %v2882
  %v2886 = vunpack.c.l.s4 1966171168
  %v2887 = vunpack.c.0.s8 %v2886
  %v2888 = vlaneseq
  %v2889 = vshrl.u32 %v2888, 7
  %v2890 = vsub.s32 %v2887, %v2889
  %v2891 = vrot.slane %v2875, %v2890
  %v2893 = vunpack.c.l.s4 1966171168
  %v2894 = vunpack.c.0.s8 %v2893
  %v2895 = vlaneseq
  %v2896 = vshrl.u32 %v2895, 7
  %v2897 = vsub.s32 %v2894, %v2896
  %v2898 = vrot.slane %v2882, %v2897
  %v2900 = vunpack.c.l.s4 1966171168
  %v2901 = vunpack.c.0.s8 %v2900
  %v2902 = vlaneseq
  %v2903 = vshrl.u32 %v2902, 7
  %v2904 = vsub.s32 %v2901, %v2903
  %v2905 = vrot.slane %v2883, %v2904
  %v2907 = vunpack.c.l.s4 1966171168
  %v2908 = vunpack.c.0.s8 %v2907
  %v2909 = vlaneseq
  %v2910 = vshrl.u32 %v2909, 7
  %v2911 = vsub.s32 %v2908, %v2910
  %v2912 = vrot.slane %v2884, %v2911
  %v2913 = vcombine.high %v2891, %v2891
  %v2914 = vcombine.high %v2898, %v2898
  %v2915 = vcombine.high %v2905, %v2905
  %v2916 = vcombine.high %v2912, %v2912
  %v2917 = vcombine.high %v2585, %v2585
  %v2919 = vunpack.c.l.s4 1966171168
  %v2920 = vunpack.c.0.s8 %v2919
  %v2921 = vlaneseq
  %v2922 = vshrl.u32 %v2921, 7
  %v2923 = vsub.s32 %v2920, %v2922
  %v2924 = vrot.slane %v2585, %v2923
  %v2926 = vunpack.c.l.s4 1966171168
  %v2927 = vunpack.c.0.s8 %v2926
  %v2928 = vlaneseq
  %v2929 = vshrl.u32 %v2928, 7
  %v2930 = vsub.s32 %v2927, %v2929
  %v2931 = vrot.slane %v2917, %v2930
  %v2932 = vcombine.high %v2924, %v2924
  %v2933 = vcombine.high %v2931, %v2931
  %v2935 = vunpack.c.l.s4 1966171168
  %v2936 = vunpack.c.0.s8 %v2935
  %v2937 = vlaneseq
  %v2938 = vshrl.u32 %v2937, 7
  %v2939 = vsub.s32 %v2936, %v2938
  %v2940 = vrot.slane %v2924, %v2939
  %v2942 = vunpack.c.l.s4 1966171168
  %v2943 = vunpack.c.0.s8 %v2942
  %v2944 = vlaneseq
  %v2945 = vshrl.u32 %v2944, 7
  %v2946 = vsub.s32 %v2943, %v2945
  %v2947 = vrot.slane %v2931, %v2946
  %v2949 = vunpack.c.l.s4 1966171168
  %v2950 = vunpack.c.0.s8 %v2949
  %v2951 = vlaneseq
  %v2952 = vshrl.u32 %v2951, 7
  %v2953 = vsub.s32 %v2950, %v2952
  %v2954 = vrot.slane %v2932, %v2953
  %v2956 = vunpack.c.l.s4 1966171168
  %v2957 = vunpack.c.0.s8 %v2956
  %v2958 = vlaneseq
  %v2959 = vshrl.u32 %v2958, 7
  %v2960 = vsub.s32 %v2957, %v2959
  %v2961 = vrot.slane %v2933, %v2960
  %v2962 = vcombine.high %v2940, %v2940
  %v2963 = vcombine.high %v2947, %v2947
  %v2964 = vcombine.high %v2954, %v2954
  %v2965 = vcombine.high %v2961, %v2961
  %v2966 = vcombine.high %v2586, %v2586
  %v2968 = vunpack.c.l.s4 1966171168
  %v2969 = vunpack.c.0.s8 %v2968
  %v2970 = vlaneseq
  %v2971 = vshrl.u32 %v2970, 7
  %v2972 = vsub.s32 %v2969, %v2971
  %v2973 = vrot.slane %v2586, %v2972
  %v2975 = vunpack.c.l.s4 1966171168
  %v2976 = vunpack.c.0.s8 %v2975
  %v2977 = vlaneseq
  %v2978 = vshrl.u32 %v2977, 7
  %v2979 = vsub.s32 %v2976, %v2978
  %v2980 = vrot.slane %v2966, %v2979
  %v2981 = vcombine.high %v2973, %v2973
  %v2982 = vcombine.high %v2980, %v2980
  %v2984 = vunpack.c.l.s4 1966171168
  %v2985 = vunpack.c.0.s8 %v2984
  %v2986 = vlaneseq
  %v2987 = vshrl.u32 %v2986, 7
  %v2988 = vsub.s32 %v2985, %v2987
  %v2989 = vrot.slane %v2973, %v2988
  %v2991 = vunpack.c.l.s4 1966171168
  %v2992 = vunpack.c.0.s8 %v2991
  %v2993 = vlaneseq
  %v2994 = vshrl.u32 %v2993, 7
  %v2995 = vsub.s32 %v2992, %v2994
  %v2996 = vrot.slane %v2980, %v2995
  %v2998 = vunpack.c.l.s4 1966171168
  %v2999 = vunpack.c.0.s8 %v2998
  %v3000 = vlaneseq
  %v3001 = vshrl.u32 %v3000, 7
  %v3002 = vsub.s32 %v2999, %v3001
  %v3003 = vrot.slane %v2981, %v3002
  %v3005 = vunpack.c.l.s4 1966171168
  %v3006 = vunpack.c.0.s8 %v3005
  %v3007 = vlaneseq
  %v3008 = vshrl.u32 %v3007, 7
  %v3009 = vsub.s32 %v3006, %v3008
  %v3010 = vrot.slane %v2982, %v3009
  %v3011 = vcombine.high %v2989, %v2989
  %v3012 = vcombine.high %v2996, %v2996
  %v3013 = vcombine.high %v3003, %v3003
  %v3014 = vcombine.high %v3010, %v3010
  %v3015 = vcombine.high %v2587, %v2587
  %v3017 = vunpack.c.l.s4 1966171168
  %v3018 = vunpack.c.0.s8 %v3017
  %v3019 = vlaneseq
  %v3020 = vshrl.u32 %v3019, 7
  %v3021 = vsub.s32 %v3018, %v3020
  %v3022 = vrot.slane %v2587, %v3021
  %v3024 = vunpack.c.l.s4 1966171168
  %v3025 = vunpack.c.0.s8 %v3024
  %v3026 = vlaneseq
  %v3027 = vshrl.u32 %v3026, 7
  %v3028 = vsub.s32 %v3025, %v3027
  %v3029 = vrot.slane %v3015, %v3028
  %v3030 = vcombine.high %v3022, %v3022
  %v3031 = vcombine.high %v3029, %v3029
  %v3033 = vunpack.c.l.s4 1966171168
  %v3034 = vunpack.c.0.s8 %v3033
  %v3035 = vlaneseq
  %v3036 = vshrl.u32 %v3035, 7
  %v3037 = vsub.s32 %v3034, %v3036
  %v3038 = vrot.slane %v3022, %v3037
  %v3040 = vunpack.c.l.s4 1966171168
  %v3041 = vunpack.c.0.s8 %v3040
  %v3042 = vlaneseq
  %v3043 = vshrl.u32 %v3042, 7
  %v3044 = vsub.s32 %v3041, %v3043
  %v3045 = vrot.slane %v3029, %v3044
  %v3047 = vunpack.c.l.s4 1966171168
  %v3048 = vunpack.c.0.s8 %v3047
  %v3049 = vlaneseq
  %v3050 = vshrl.u32 %v3049, 7
  %v3051 = vsub.s32 %v3048, %v3050
  %v3052 = vrot.slane %v3030, %v3051
  %v3054 = vunpack.c.l.s4 1966171168
  %v3055 = vunpack.c.0.s8 %v3054
  %v3056 = vlaneseq
  %v3057 = vshrl.u32 %v3056, 7
  %v3058 = vsub.s32 %v3055, %v3057
  %v3059 = vrot.slane %v3031, %v3058
  %v3060 = vcombine.high %v3038, %v3038
  %v3061 = vcombine.high %v3045, %v3045
  %v3062 = vcombine.high %v3052, %v3052
  %v3063 = vcombine.high %v3059, %v3059
  %v3064 = vcombine.high %v2588, %v2588
  %v3066 = vunpack.c.l.s4 1966171168
  %v3067 = vunpack.c.0.s8 %v3066
  %v3068 = vlaneseq
  %v3069 = vshrl.u32 %v3068, 7
  %v3070 = vsub.s32 %v3067, %v3069
  %v3071 = vrot.slane %v2588, %v3070
  %v3073 = vunpack.c.l.s4 1966171168
  %v3074 = vunpack.c.0.s8 %v3073
  %v3075 = vlaneseq
  %v3076 = vshrl.u32 %v3075, 7
  %v3077 = vsub.s32 %v3074, %v3076
  %v3078 = vrot.slane %v3064, %v3077
  %v3079 = vcombine.high %v3071, %v3071
  %v3080 = vcombine.high %v3078, %v3078
  %v3082 = vunpack.c.l.s4 1966171168
  %v3083 = vunpack.c.0.s8 %v3082
  %v3084 = vlaneseq
  %v3085 = vshrl.u32 %v3084, 7
  %v3086 = vsub.s32 %v3083, %v3085
  %v3087 = vrot.slane %v3071, %v3086
  %v3089 = vunpack.c.l.s4 1966171168
  %v3090 = vunpack.c.0.s8 %v3089
  %v3091 = vlaneseq
  %v3092 = vshrl.u32 %v3091, 7
  %v3093 = vsub.s32 %v3090, %v3092
  %v3094 = vrot.slane %v3078, %v3093
  %v3096 = vunpack.c.l.s4 1966171168
  %v3097 = vunpack.c.0.s8 %v3096
  %v3098 = vlaneseq
  %v3099 = vshrl.u32 %v3098, 7
  %v3100 = vsub.s32 %v3097, %v3099
  %v3101 = vrot.slane %v3079, %v3100
  %v3103 = vunpack.c.l.s4 1966171168
  %v3104 = vunpack.c.0.s8 %v3103
  %v3105 = vlaneseq
  %v3106 = vshrl.u32 %v3105, 7
  %v3107 = vsub.s32 %v3104, %v3106
  %v3108 = vrot.slane %v3080, %v3107
  %v3109 = vcombine.high %v3087, %v3087
  %v3110 = vcombine.high %v3094, %v3094
  %v3111 = vcombine.high %v3101, %v3101
  %v3112 = vcombine.high %v3108, %v3108
  %v3113 = vcombine.high %v2589, %v2589
  %v3115 = vunpack.c.l.s4 1966171168
  %v3116 = vunpack.c.0.s8 %v3115
  %v3117 = vlaneseq
  %v3118 = vshrl.u32 %v3117, 7
  %v3119 = vsub.s32 %v3116, %v3118
  %v3120 = vrot.slane %v2589, %v3119
  %v3122 = vunpack.c.l.s4 1966171168
  %v3123 = vunpack.c.0.s8 %v3122
  %v3124 = vlaneseq
  %v3125 = vshrl.u32 %v3124, 7
  %v3126 = vsub.s32 %v3123, %v3125
  %v3127 = vrot.slane %v3113, %v3126
  %v3128 = vcombine.high %v3120, %v3120
  %v3129 = vcombine.high %v3127, %v3127
  %v3131 = vunpack.c.l.s4 1966171168
  %v3132 = vunpack.c.0.s8 %v3131
  %v3133 = vlaneseq
  %v3134 = vshrl.u32 %v3133, 7
  %v3135 = vsub.s32 %v3132, %v3134
  %v3136 = vrot.slane %v3120, %v3135
  %v3138 = vunpack.c.l.s4 1966171168
  %v3139 = vunpack.c.0.s8 %v3138
  %v3140 = vlaneseq
  %v3141 = vshrl.u32 %v3140, 7
  %v3142 = vsub.s32 %v3139, %v3141
  %v3143 = vrot.slane %v3127, %v3142
  %v3145 = vunpack.c.l.s4 1966171168
  %v3146 = vunpack.c.0.s8 %v3145
  %v3147 = vlaneseq
  %v3148 = vshrl.u32 %v3147, 7
  %v3149 = vsub.s32 %v3146, %v3148
  %v3150 = vrot.slane %v3128, %v3149
  %v3152 = vunpack.c.l.s4 1966171168
  %v3153 = vunpack.c.0.s8 %v3152
  %v3154 = vlaneseq
  %v3155 = vshrl.u32 %v3154, 7
  %v3156 = vsub.s32 %v3153, %v3155
  %v3157 = vrot.slane %v3129, %v3156
  %v3158 = vcombine.high %v3136, %v3136
  %v3159 = vcombine.high %v3143, %v3143
  %v3160 = vcombine.high %v3150, %v3150
  %v3161 = vcombine.high %v3157, %v3157
  %v3162 = vcombine.high %v2590, %v2590
  %v3164 = vunpack.c.l.s4 1966171168
  %v3165 = vunpack.c.0.s8 %v3164
  %v3166 = vlaneseq
  %v3167 = vshrl.u32 %v3166, 7
  %v3168 = vsub.s32 %v3165, %v3167
  %v3169 = vrot.slane %v2590, %v3168
  %v3171 = vunpack.c.l.s4 1966171168
  %v3172 = vunpack.c.0.s8 %v3171
  %v3173 = vlaneseq
  %v3174 = vshrl.u32 %v3173, 7
  %v3175 = vsub.s32 %v3172, %v3174
  %v3176 = vrot.slane %v3162, %v3175
  %v3177 = vcombine.high %v3169, %v3169
  %v3178 = vcombine.high %v3176, %v3176
  %v3180 = vunpack.c.l.s4 1966171168
  %v3181 = vunpack.c.0.s8 %v3180
  %v3182 = vlaneseq
  %v3183 = vshrl.u32 %v3182, 7
  %v3184 = vsub.s32 %v3181, %v3183
  %v3185 = vrot.slane %v3169, %v3184
  %v3187 = vunpack.c.l.s4 1966171168
  %v3188 = vunpack.c.0.s8 %v3187
  %v3189 = vlaneseq
  %v3190 = vshrl.u32 %v3189, 7
  %v3191 = vsub.s32 %v3188, %v3190
  %v3192 = vrot.slane %v3176, %v3191
  %v3194 = vunpack.c.l.s4 1966171168
  %v3195 = vunpack.c.0.s8 %v3194
  %v3196 = vlaneseq
  %v3197 = vshrl.u32 %v3196, 7
  %v3198 = vsub.s32 %v3195, %v3197
  %v3199 = vrot.slane %v3177, %v3198
  %v3201 = vunpack.c.l.s4 1966171168
  %v3202 = vunpack.c.0.s8 %v3201
  %v3203 = vlaneseq
  %v3204 = vshrl.u32 %v3203, 7
  %v3205 = vsub.s32 %v3202, %v3204
  %v3206 = vrot.slane %v3178, %v3205
  %v3207 = vcombine.high %v3185, %v3185
  %v3208 = vcombine.high %v3192, %v3192
  %v3209 = vcombine.high %v3199, %v3199
  %v3210 = vcombine.high %v3206, %v3206
  %v3211 = vcombine.high %v2591, %v2591
  %v3213 = vunpack.c.l.s4 1966171168
  %v3214 = vunpack.c.0.s8 %v3213
  %v3215 = vlaneseq
  %v3216 = vshrl.u32 %v3215, 7
  %v3217 = vsub.s32 %v3214, %v3216
  %v3218 = vrot.slane %v2591, %v3217
  %v3220 = vunpack.c.l.s4 1966171168
  %v3221 = vunpack.c.0.s8 %v3220
  %v3222 = vlaneseq
  %v3223 = vshrl.u32 %v3222, 7
  %v3224 = vsub.s32 %v3221, %v3223
  %v3225 = vrot.slane %v3211, %v3224
  %v3226 = vcombine.high %v3218, %v3218
  %v3227 = vcombine.high %v3225, %v3225
  %v3229 = vunpack.c.l.s4 1966171168
  %v3230 = vunpack.c.0.s8 %v3229
  %v3231 = vlaneseq
  %v3232 = vshrl.u32 %v3231, 7
  %v3233 = vsub.s32 %v3230, %v3232
  %v3234 = vrot.slane %v3218, %v3233
  %v3236 = vunpack.c.l.s4 1966171168
  %v3237 = vunpack.c.0.s8 %v3236
  %v3238 = vlaneseq
  %v3239 = vshrl.u32 %v3238, 7
  %v3240 = vsub.s32 %v3237, %v3239
  %v3241 = vrot.slane %v3225, %v3240
  %v3243 = vunpack.c.l.s4 1966171168
  %v3244 = vunpack.c.0.s8 %v3243
  %v3245 = vlaneseq
  %v3246 = vshrl.u32 %v3245, 7
  %v3247 = vsub.s32 %v3244, %v3246
  %v3248 = vrot.slane %v3226, %v3247
  %v3250 = vunpack.c.l.s4 1966171168
  %v3251 = vunpack.c.0.s8 %v3250
  %v3252 = vlaneseq
  %v3253 = vshrl.u32 %v3252, 7
  %v3254 = vsub.s32 %v3251, %v3253
  %v3255 = vrot.slane %v3227, %v3254
  %v3256 = vcombine.high %v3234, %v3234
  %v3257 = vcombine.high %v3241, %v3241
  %v3258 = vcombine.high %v3248, %v3248
  %v3259 = vcombine.high %v3255, %v3255
  %v3260 = vcombine.high %v2592, %v2592
  %v3262 = vunpack.c.l.s4 1966171168
  %v3263 = vunpack.c.0.s8 %v3262
  %v3264 = vlaneseq
  %v3265 = vshrl.u32 %v3264, 7
  %v3266 = vsub.s32 %v3263, %v3265
  %v3267 = vrot.slane %v2592, %v3266
  %v3269 = vunpack.c.l.s4 1966171168
  %v3270 = vunpack.c.0.s8 %v3269
  %v3271 = vlaneseq
  %v3272 = vshrl.u32 %v3271, 7
  %v3273 = vsub.s32 %v3270, %v3272
  %v3274 = vrot.slane %v3260, %v3273
  %v3275 = vcombine.high %v3267, %v3267
  %v3276 = vcombine.high %v3274, %v3274
  %v3278 = vunpack.c.l.s4 1966171168
  %v3279 = vunpack.c.0.s8 %v3278
  %v3280 = vlaneseq
  %v3281 = vshrl.u32 %v3280, 7
  %v3282 = vsub.s32 %v3279, %v3281
  %v3283 = vrot.slane %v3267, %v3282
  %v3285 = vunpack.c.l.s4 1966171168
  %v3286 = vunpack.c.0.s8 %v3285
  %v3287 = vlaneseq
  %v3288 = vshrl.u32 %v3287, 7
  %v3289 = vsub.s32 %v3286, %v3288
  %v3290 = vrot.slane %v3274, %v3289
  %v3292 = vunpack.c.l.s4 1966171168
  %v3293 = vunpack.c.0.s8 %v3292
  %v3294 = vlaneseq
  %v3295 = vshrl.u32 %v3294, 7
  %v3296 = vsub.s32 %v3293, %v3295
  %v3297 = vrot.slane %v3275, %v3296
  %v3299 = vunpack.c.l.s4 1966171168
  %v3300 = vunpack.c.0.s8 %v3299
  %v3301 = vlaneseq
  %v3302 = vshrl.u32 %v3301, 7
  %v3303 = vsub.s32 %v3300, %v3302
  %v3304 = vrot.slane %v3276, %v3303
  %v3305 = vcombine.high %v3283, %v3283
  %v3306 = vcombine.high %v3290, %v3290
  %v3307 = vcombine.high %v3297, %v3297
  %v3308 = vcombine.high %v3304, %v3304
  %v3309 = vcombine.high %v2593, %v2593
  %v3311 = vunpack.c.l.s4 1966171168
  %v3312 = vunpack.c.0.s8 %v3311
  %v3313 = vlaneseq
  %v3314 = vshrl.u32 %v3313, 7
  %v3315 = vsub.s32 %v3312, %v3314
  %v3316 = vrot.slane %v2593, %v3315
  %v3318 = vunpack.c.l.s4 1966171168
  %v3319 = vunpack.c.0.s8 %v3318
  %v3320 = vlaneseq
  %v3321 = vshrl.u32 %v3320, 7
  %v3322 = vsub.s32 %v3319, %v3321
  %v3323 = vrot.slane %v3309, %v3322
  %v3324 = vcombine.high %v3316, %v3316
  %v3325 = vcombine.high %v3323, %v3323
  %v3327 = vunpack.c.l.s4 1966171168
  %v3328 = vunpack.c.0.s8 %v3327
  %v3329 = vlaneseq
  %v3330 = vshrl.u32 %v3329, 7
  %v3331 = vsub.s32 %v3328, %v3330
  %v3332 = vrot.slane %v3316, %v3331
  %v3334 = vunpack.c.l.s4 1966171168
  %v3335 = vunpack.c.0.s8 %v3334
  %v3336 = vlaneseq
  %v3337 = vshrl.u32 %v3336, 7
  %v3338 = vsub.s32 %v3335, %v3337
  %v3339 = vrot.slane %v3323, %v3338
  %v3341 = vunpack.c.l.s4 1966171168
  %v3342 = vunpack.c.0.s8 %v3341
  %v3343 = vlaneseq
  %v3344 = vshrl.u32 %v3343, 7
  %v3345 = vsub.s32 %v3342, %v3344
  %v3346 = vrot.slane %v3324, %v3345
  %v3348 = vunpack.c.l.s4 1966171168
  %v3349 = vunpack.c.0.s8 %v3348
  %v3350 = vlaneseq
  %v3351 = vshrl.u32 %v3350, 7
  %v3352 = vsub.s32 %v3349, %v3351
  %v3353 = vrot.slane %v3325, %v3352
  %v3354 = vcombine.high %v3332, %v3332
  %v3355 = vcombine.high %v3339, %v3339
  %v3356 = vcombine.high %v3346, %v3346
  %v3357 = vcombine.high %v3353, %v3353
  %v3358 = vcombine.high %v2594, %v2594
  %v3360 = vunpack.c.l.s4 1966171168
  %v3361 = vunpack.c.0.s8 %v3360
  %v3362 = vlaneseq
  %v3363 = vshrl.u32 %v3362, 7
  %v3364 = vsub.s32 %v3361, %v3363
  %v3365 = vrot.slane %v2594, %v3364
  %v3367 = vunpack.c.l.s4 1966171168
  %v3368 = vunpack.c.0.s8 %v3367
  %v3369 = vlaneseq
  %v3370 = vshrl.u32 %v3369, 7
  %v3371 = vsub.s32 %v3368, %v3370
  %v3372 = vrot.slane %v3358, %v3371
  %v3373 = vcombine.high %v3365, %v3365
  %v3374 = vcombine.high %v3372, %v3372
  %v3376 = vunpack.c.l.s4 1966171168
  %v3377 = vunpack.c.0.s8 %v3376
  %v3378 = vlaneseq
  %v3379 = vshrl.u32 %v3378, 7
  %v3380 = vsub.s32 %v3377, %v3379
  %v3381 = vrot.slane %v3365, %v3380
  %v3383 = vunpack.c.l.s4 1966171168
  %v3384 = vunpack.c.0.s8 %v3383
  %v3385 = vlaneseq
  %v3386 = vshrl.u32 %v3385, 7
  %v3387 = vsub.s32 %v3384, %v3386
  %v3388 = vrot.slane %v3372, %v3387
  %v3390 = vunpack.c.l.s4 1966171168
  %v3391 = vunpack.c.0.s8 %v3390
  %v3392 = vlaneseq
  %v3393 = vshrl.u32 %v3392, 7
  %v3394 = vsub.s32 %v3391, %v3393
  %v3395 = vrot.slane %v3373, %v3394
  %v3397 = vunpack.c.l.s4 1966171168
  %v3398 = vunpack.c.0.s8 %v3397
  %v3399 = vlaneseq
  %v3400 = vshrl.u32 %v3399, 7
  %v3401 = vsub.s32 %v3398, %v3400
  %v3402 = vrot.slane %v3374, %v3401
  %v3403 = vcombine.high %v3381, %v3381
  %v3404 = vcombine.high %v3388, %v3388
  %v3405 = vcombine.high %v3395, %v3395
  %v3406 = vcombine.high %v3402, %v3402
  %v3407 = vcombine.high %v2595, %v2595
  %v3409 = vunpack.c.l.s4 1966171168
  %v3410 = vunpack.c.0.s8 %v3409
  %v3411 = vlaneseq
  %v3412 = vshrl.u32 %v3411, 7
  %v3413 = vsub.s32 %v3410, %v3412
  %v3414 = vrot.slane %v2595, %v3413
  %v3416 = vunpack.c.l.s4 1966171168
  %v3417 = vunpack.c.0.s8 %v3416
  %v3418 = vlaneseq
  %v3419 = vshrl.u32 %v3418, 7
  %v3420 = vsub.s32 %v3417, %v3419
  %v3421 = vrot.slane %v3407, %v3420
  %v3422 = vcombine.high %v3414, %v3414
  %v3423 = vcombine.high %v3421, %v3421
  %v3425 = vunpack.c.l.s4 1966171168
  %v3426 = vunpack.c.0.s8 %v3425
  %v3427 = vlaneseq
  %v3428 = vshrl.u32 %v3427, 7
  %v3429 = vsub.s32 %v3426, %v3428
  %v3430 = vrot.slane %v3414, %v3429
  %v3432 = vunpack.c.l.s4 1966171168
  %v3433 = vunpack.c.0.s8 %v3432
  %v3434 = vlaneseq
  %v3435 = vshrl.u32 %v3434, 7
  %v3436 = vsub.s32 %v3433, %v3435
  %v3437 = vrot.slane %v3421, %v3436
  %v3439 = vunpack.c.l.s4 1966171168
  %v3440 = vunpack.c.0.s8 %v3439
  %v3441 = vlaneseq
  %v3442 = vshrl.u32 %v3441, 7
  %v3443 = vsub.s32 %v3440, %v3442
  %v3444 = vrot.slane %v3422, %v3443
  %v3446 = vunpack.c.l.s4 1966171168
  %v3447 = vunpack.c.0.s8 %v3446
  %v3448 = vlaneseq
  %v3449 = vshrl.u32 %v3448, 7
  %v3450 = vsub.s32 %v3447, %v3449
  %v3451 = vrot.slane %v3423, %v3450
  %v3452 = vcombine.high %v3430, %v3430
  %v3453 = vcombine.high %v3437, %v3437
  %v3454 = vcombine.high %v3444, %v3444
  %v3455 = vcombine.high %v3451, %v3451
  %v3456 = vcombine.high %v2596, %v2596
  %v3458 = vunpack.c.l.s4 1966171168
  %v3459 = vunpack.c.0.s8 %v3458
  %v3460 = vlaneseq
  %v3461 = vshrl.u32 %v3460, 7
  %v3462 = vsub.s32 %v3459, %v3461
  %v3463 = vrot.slane %v2596, %v3462
  %v3465 = vunpack.c.l.s4 1966171168
  %v3466 = vunpack.c.0.s8 %v3465
  %v3467 = vlaneseq
  %v3468 = vshrl.u32 %v3467, 7
  %v3469 = vsub.s32 %v3466, %v3468
  %v3470 = vrot.slane %v3456, %v3469
  %v3471 = vcombine.high %v3463, %v3463
  %v3472 = vcombine.high %v3470, %v3470
  %v3474 = vunpack.c.l.s4 1966171168
  %v3475 = vunpack.c.0.s8 %v3474
  %v3476 = vlaneseq
  %v3477 = vshrl.u32 %v3476, 7
  %v3478 = vsub.s32 %v3475, %v3477
  %v3479 = vrot.slane %v3463, %v3478
  %v3481 = vunpack.c.l.s4 1966171168
  %v3482 = vunpack.c.0.s8 %v3481
  %v3483 = vlaneseq
  %v3484 = vshrl.u32 %v3483, 7
  %v3485 = vsub.s32 %v3482, %v3484
  %v3486 = vrot.slane %v3470, %v3485
  %v3488 = vunpack.c.l.s4 1966171168
  %v3489 = vunpack.c.0.s8 %v3488
  %v3490 = vlaneseq
  %v3491 = vshrl.u32 %v3490, 7
  %v3492 = vsub.s32 %v3489, %v3491
  %v3493 = vrot.slane %v3471, %v3492
  %v3495 = vunpack.c.l.s4 1966171168
  %v3496 = vunpack.c.0.s8 %v3495
  %v3497 = vlaneseq
  %v3498 = vshrl.u32 %v3497, 7
  %v3499 = vsub.s32 %v3496, %v3498
  %v3500 = vrot.slane %v3472, %v3499
  %v3501 = vcombine.high %v3479, %v3479
  %v3502 = vcombine.high %v3486, %v3486
  %v3503 = vcombine.high %v3493, %v3493
  %v3504 = vcombine.high %v3500, %v3500
  %v3505 = vlaneseq
  %v3506 = vshrl.u32 %v3505, 7
  %v3507 = vsub.s32 0, %v3506
  %v3508 = vrot.slane %v2744, %v3507
  %v3509 = vlaneseq
  %v3510 = vshrl.u32 %v3509, 7
  %v3511 = vsub.s32 0, %v3510
  %v3512 = vrot.slane %v2758, %v3511
  %v3513 = vlaneseq
  %v3514 = vshrl.u32 %v3513, 7
  %v3515 = vsub.s32 0, %v3514
  %v3516 = vrot.slane %v2766, %v3515
  %v3517 = vlaneseq
  %v3518 = vshrl.u32 %v3517, 7
  %v3519 = vsub.s32 0, %v3518
  %v3520 = vrot.slane %v2768, %v3519
  %v3521 = vlaneseq
  %v3522 = vshrl.u32 %v3521, 7
  %v3523 = vsub.s32 0, %v3522
  %v3524 = vrot.slane %v2751, %v3523
  %v3525 = vlaneseq
  %v3526 = vshrl.u32 %v3525, 7
  %v3527 = vsub.s32 0, %v3526
  %v3528 = vrot.slane %v2765, %v3527
  %v3529 = vlaneseq
  %v3530 = vshrl.u32 %v3529, 7
  %v3531 = vsub.s32 0, %v3530
  %v3532 = vrot.slane %v2767, %v3531
  %v3533 = vlaneseq
  %v3534 = vshrl.u32 %v3533, 7
  %v3535 = vsub.s32 0, %v3534
  %v3536 = vrot.slane %v2769, %v3535
  %v3537 = vlaneseq
  %v3538 = vshrl.u32 %v3537, 7
  %v3539 = vsub.s32 0, %v3538
  %v3540 = vrot.slane %v2793, %v3539
  %v3541 = vlaneseq
  %v3542 = vshrl.u32 %v3541, 7
  %v3543 = vsub.s32 0, %v3542
  %v3544 = vrot.slane %v2807, %v3543
  %v3545 = vlaneseq
  %v3546 = vshrl.u32 %v3545, 7
  %v3547 = vsub.s32 0, %v3546
  %v3548 = vrot.slane %v2815, %v3547
  %v3549 = vlaneseq
  %v3550 = vshrl.u32 %v3549, 7
  %v3551 = vsub.s32 0, %v3550
  %v3552 = vrot.slane %v2817, %v3551
  %v3553 = vlaneseq
  %v3554 = vshrl.u32 %v3553, 7
  %v3555 = vsub.s32 0, %v3554
  %v3556 = vrot.slane %v2800, %v3555
  %v3557 = vlaneseq
  %v3558 = vshrl.u32 %v3557, 7
  %v3559 = vsub.s32 0, %v3558
  %v3560 = vrot.slane %v2814, %v3559
  %v3561 = vlaneseq
  %v3562 = vshrl.u32 %v3561, 7
  %v3563 = vsub.s32 0, %v3562
  %v3564 = vrot.slane %v2816, %v3563
  %v3565 = vlaneseq
  %v3566 = vshrl.u32 %v3565, 7
  %v3567 = vsub.s32 0, %v3566
  %v3568 = vrot.slane %v2818, %v3567
  %v3569 = vlaneseq
  %v3570 = vshrl.u32 %v3569, 7
  %v3571 = vsub.s32 0, %v3570
  %v3572 = vrot.slane %v2842, %v3571
  %v3573 = vlaneseq
  %v3574 = vshrl.u32 %v3573, 7
  %v3575 = vsub.s32 0, %v3574
  %v3576 = vrot.slane %v2856, %v3575
  %v3577 = vlaneseq
  %v3578 = vshrl.u32 %v3577, 7
  %v3579 = vsub.s32 0, %v3578
  %v3580 = vrot.slane %v2864, %v3579
  %v3581 = vlaneseq
  %v3582 = vshrl.u32 %v3581, 7
  %v3583 = vsub.s32 0, %v3582
  %v3584 = vrot.slane %v2866, %v3583
  %v3585 = vlaneseq
  %v3586 = vshrl.u32 %v3585, 7
  %v3587 = vsub.s32 0, %v3586
  %v3588 = vrot.slane %v2849, %v3587
  %v3589 = vlaneseq
  %v3590 = vshrl.u32 %v3589, 7
  %v3591 = vsub.s32 0, %v3590
  %v3592 = vrot.slane %v2863, %v3591
  %v3593 = vlaneseq
  %v3594 = vshrl.u32 %v3593, 7
  %v3595 = vsub.s32 0, %v3594
  %v3596 = vrot.slane %v2865, %v3595
  %v3597 = vlaneseq
  %v3598 = vshrl.u32 %v3597, 7
  %v3599 = vsub.s32 0, %v3598
  %v3600 = vrot.slane %v2867, %v3599
  %v3601 = vlaneseq
  %v3602 = vshrl.u32 %v3601, 7
  %v3603 = vsub.s32 0, %v3602
  %v3604 = vrot.slane %v2891, %v3603
  %v3605 = vlaneseq
  %v3606 = vshrl.u32 %v3605, 7
  %v3607 = vsub.s32 0, %v3606
  %v3608 = vrot.slane %v2905, %v3607
  %v3609 = vlaneseq
  %v3610 = vshrl.u32 %v3609, 7
  %v3611 = vsub.s32 0, %v3610
  %v3612 = vrot.slane %v2913, %v3611
  %v3613 = vlaneseq
  %v3614 = vshrl.u32 %v3613, 7
  %v3615 = vsub.s32 0, %v3614
  %v3616 = vrot.slane %v2915, %v3615
  %v3617 = vlaneseq
  %v3618 = vshrl.u32 %v3617, 7
  %v3619 = vsub.s32 0, %v3618
  %v3620 = vrot.slane %v2898, %v3619
  %v3621 = vlaneseq
  %v3622 = vshrl.u32 %v3621, 7
  %v3623 = vsub.s32 0, %v3622
  %v3624 = vrot.slane %v2912, %v3623
  %v3625 = vlaneseq
  %v3626 = vshrl.u32 %v3625, 7
  %v3627 = vsub.s32 0, %v3626
  %v3628 = vrot.slane %v2914, %v3627
  %v3629 = vlaneseq
  %v3630 = vshrl.u32 %v3629, 7
  %v3631 = vsub.s32 0, %v3630
  %v3632 = vrot.slane %v2916, %v3631
  %v3633 = vlaneseq
  %v3634 = vshrl.u32 %v3633, 7
  %v3635 = vsub.s32 0, %v3634
  %v3636 = vrot.slane %v2940, %v3635
  %v3637 = vlaneseq
  %v3638 = vshrl.u32 %v3637, 7
  %v3639 = vsub.s32 0, %v3638
  %v3640 = vrot.slane %v2954, %v3639
  %v3641 = vlaneseq
  %v3642 = vshrl.u32 %v3641, 7
  %v3643 = vsub.s32 0, %v3642
  %v3644 = vrot.slane %v2962, %v3643
  %v3645 = vlaneseq
  %v3646 = vshrl.u32 %v3645, 7
  %v3647 = vsub.s32 0, %v3646
  %v3648 = vrot.slane %v2964, %v3647
  %v3649 = vlaneseq
  %v3650 = vshrl.u32 %v3649, 7
  %v3651 = vsub.s32 0, %v3650
  %v3652 = vrot.slane %v2947, %v3651
  %v3653 = vlaneseq
  %v3654 = vshrl.u32 %v3653, 7
  %v3655 = vsub.s32 0, %v3654
  %v3656 = vrot.slane %v2961, %v3655
  %v3657 = vlaneseq
  %v3658 = vshrl.u32 %v3657, 7
  %v3659 = vsub.s32 0, %v3658
  %v3660 = vrot.slane %v2963, %v3659
  %v3661 = vlaneseq
  %v3662 = vshrl.u32 %v3661, 7
  %v3663 = vsub.s32 0, %v3662
  %v3664 = vrot.slane %v2965, %v3663
  %v3665 = vlaneseq
  %v3666 = vshrl.u32 %v3665, 7
  %v3667 = vsub.s32 0, %v3666
  %v3668 = vrot.slane %v2989, %v3667
  %v3669 = vlaneseq
  %v3670 = vshrl.u32 %v3669, 7
  %v3671 = vsub.s32 0, %v3670
  %v3672 = vrot.slane %v3003, %v3671
  %v3673 = vlaneseq
  %v3674 = vshrl.u32 %v3673, 7
  %v3675 = vsub.s32 0, %v3674
  %v3676 = vrot.slane %v3011, %v3675
  %v3677 = vlaneseq
  %v3678 = vshrl.u32 %v3677, 7
  %v3679 = vsub.s32 0, %v3678
  %v3680 = vrot.slane %v3013, %v3679
  %v3681 = vlaneseq
  %v3682 = vshrl.u32 %v3681, 7
  %v3683 = vsub.s32 0, %v3682
  %v3684 = vrot.slane %v2996, %v3683
  %v3685 = vlaneseq
  %v3686 = vshrl.u32 %v3685, 7
  %v3687 = vsub.s32 0, %v3686
  %v3688 = vrot.slane %v3010, %v3687
  %v3689 = vlaneseq
  %v3690 = vshrl.u32 %v3689, 7
  %v3691 = vsub.s32 0, %v3690
  %v3692 = vrot.slane %v3012, %v3691
  %v3693 = vlaneseq
  %v3694 = vshrl.u32 %v3693, 7
  %v3695 = vsub.s32 0, %v3694
  %v3696 = vrot.slane %v3014, %v3695
  %v3697 = vlaneseq
  %v3698 = vshrl.u32 %v3697, 7
  %v3699 = vsub.s32 0, %v3698
  %v3700 = vrot.slane %v3038, %v3699
  %v3701 = vlaneseq
  %v3702 = vshrl.u32 %v3701, 7
  %v3703 = vsub.s32 0, %v3702
  %v3704 = vrot.slane %v3052, %v3703
  %v3705 = vlaneseq
  %v3706 = vshrl.u32 %v3705, 7
  %v3707 = vsub.s32 0, %v3706
  %v3708 = vrot.slane %v3060, %v3707
  %v3709 = vlaneseq
  %v3710 = vshrl.u32 %v3709, 7
  %v3711 = vsub.s32 0, %v3710
  %v3712 = vrot.slane %v3062, %v3711
  %v3713 = vlaneseq
  %v3714 = vshrl.u32 %v3713, 7
  %v3715 = vsub.s32 0, %v3714
  %v3716 = vrot.slane %v3045, %v3715
  %v3717 = vlaneseq
  %v3718 = vshrl.u32 %v3717, 7
  %v3719 = vsub.s32 0, %v3718
  %v3720 = vrot.slane %v3059, %v3719
  %v3721 = vlaneseq
  %v3722 = vshrl.u32 %v3721, 7
  %v3723 = vsub.s32 0, %v3722
  %v3724 = vrot.slane %v3061, %v3723
  %v3725 = vlaneseq
  %v3726 = vshrl.u32 %v3725, 7
  %v3727 = vsub.s32 0, %v3726
  %v3728 = vrot.slane %v3063, %v3727
  %v3729 = vlaneseq
  %v3730 = vshrl.u32 %v3729, 7
  %v3731 = vsub.s32 0, %v3730
  %v3732 = vrot.slane %v3087, %v3731
  %v3733 = vlaneseq
  %v3734 = vshrl.u32 %v3733, 7
  %v3735 = vsub.s32 0, %v3734
  %v3736 = vrot.slane %v3101, %v3735
  %v3737 = vlaneseq
  %v3738 = vshrl.u32 %v3737, 7
  %v3739 = vsub.s32 0, %v3738
  %v3740 = vrot.slane %v3109, %v3739
  %v3741 = vlaneseq
  %v3742 = vshrl.u32 %v3741, 7
  %v3743 = vsub.s32 0, %v3742
  %v3744 = vrot.slane %v3111, %v3743
  %v3745 = vlaneseq
  %v3746 = vshrl.u32 %v3745, 7
  %v3747 = vsub.s32 0, %v3746
  %v3748 = vrot.slane %v3094, %v3747
  %v3749 = vlaneseq
  %v3750 = vshrl.u32 %v3749, 7
  %v3751 = vsub.s32 0, %v3750
  %v3752 = vrot.slane %v3108, %v3751
  %v3753 = vlaneseq
  %v3754 = vshrl.u32 %v3753, 7
  %v3755 = vsub.s32 0, %v3754
  %v3756 = vrot.slane %v3110, %v3755
  %v3757 = vlaneseq
  %v3758 = vshrl.u32 %v3757, 7
  %v3759 = vsub.s32 0, %v3758
  %v3760 = vrot.slane %v3112, %v3759
  %v3761 = vlaneseq
  %v3762 = vshrl.u32 %v3761, 7
  %v3763 = vsub.s32 0, %v3762
  %v3764 = vrot.slane %v3136, %v3763
  %v3765 = vlaneseq
  %v3766 = vshrl.u32 %v3765, 7
  %v3767 = vsub.s32 0, %v3766
  %v3768 = vrot.slane %v3150, %v3767
  %v3769 = vlaneseq
  %v3770 = vshrl.u32 %v3769, 7
  %v3771 = vsub.s32 0, %v3770
  %v3772 = vrot.slane %v3158, %v3771
  %v3773 = vlaneseq
  %v3774 = vshrl.u32 %v3773, 7
  %v3775 = vsub.s32 0, %v3774
  %v3776 = vrot.slane %v3160, %v3775
  %v3777 = vlaneseq
  %v3778 = vshrl.u32 %v3777, 7
  %v3779 = vsub.s32 0, %v3778
  %v3780 = vrot.slane %v3143, %v3779
  %v3781 = vlaneseq
  %v3782 = vshrl.u32 %v3781, 7
  %v3783 = vsub.s32 0, %v3782
  %v3784 = vrot.slane %v3157, %v3783
  %v3785 = vlaneseq
  %v3786 = vshrl.u32 %v3785, 7
  %v3787 = vsub.s32 0, %v3786
  %v3788 = vrot.slane %v3159, %v3787
  %v3789 = vlaneseq
  %v3790 = vshrl.u32 %v3789, 7
  %v3791 = vsub.s32 0, %v3790
  %v3792 = vrot.slane %v3161, %v3791
  %v3793 = vlaneseq
  %v3794 = vshrl.u32 %v3793, 7
  %v3795 = vsub.s32 0, %v3794
  %v3796 = vrot.slane %v3185, %v3795
  %v3797 = vlaneseq
  %v3798 = vshrl.u32 %v3797, 7
  %v3799 = vsub.s32 0, %v3798
  %v3800 = vrot.slane %v3199, %v3799
  %v3801 = vlaneseq
  %v3802 = vshrl.u32 %v3801, 7
  %v3803 = vsub.s32 0, %v3802
  %v3804 = vrot.slane %v3207, %v3803
  %v3805 = vlaneseq
  %v3806 = vshrl.u32 %v3805, 7
  %v3807 = vsub.s32 0, %v3806
  %v3808 = vrot.slane %v3209, %v3807
  %v3809 = vlaneseq
  %v3810 = vshrl.u32 %v3809, 7
  %v3811 = vsub.s32 0, %v3810
  %v3812 = vrot.slane %v3192, %v3811
  %v3813 = vlaneseq
  %v3814 = vshrl.u32 %v3813, 7
  %v3815 = vsub.s32 0, %v3814
  %v3816 = vrot.slane %v3206, %v3815
  %v3817 = vlaneseq
  %v3818 = vshrl.u32 %v3817, 7
  %v3819 = vsub.s32 0, %v3818
  %v3820 = vrot.slane %v3208, %v3819
  %v3821 = vlaneseq
  %v3822 = vshrl.u32 %v3821, 7
  %v3823 = vsub.s32 0, %v3822
  %v3824 = vrot.slane %v3210, %v3823
  %v3825 = vlaneseq
  %v3826 = vshrl.u32 %v3825, 7
  %v3827 = vsub.s32 0, %v3826
  %v3828 = vrot.slane %v3234, %v3827
  %v3829 = vlaneseq
  %v3830 = vshrl.u32 %v3829, 7
  %v3831 = vsub.s32 0, %v3830
  %v3832 = vrot.slane %v3248, %v3831
  %v3833 = vlaneseq
  %v3834 = vshrl.u32 %v3833, 7
  %v3835 = vsub.s32 0, %v3834
  %v3836 = vrot.slane %v3256, %v3835
  %v3837 = vlaneseq
  %v3838 = vshrl.u32 %v3837, 7
  %v3839 = vsub.s32 0, %v3838
  %v3840 = vrot.slane %v3258, %v3839
  %v3841 = vlaneseq
  %v3842 = vshrl.u32 %v3841, 7
  %v3843 = vsub.s32 0, %v3842
  %v3844 = vrot.slane %v3241, %v3843
  %v3845 = vlaneseq
  %v3846 = vshrl.u32 %v3845, 7
  %v3847 = vsub.s32 0, %v3846
  %v3848 = vrot.slane %v3255, %v3847
  %v3849 = vlaneseq
  %v3850 = vshrl.u32 %v3849, 7
  %v3851 = vsub.s32 0, %v3850
  %v3852 = vrot.slane %v3257, %v3851
  %v3853 = vlaneseq
  %v3854 = vshrl.u32 %v3853, 7
  %v3855 = vsub.s32 0, %v3854
  %v3856 = vrot.slane %v3259, %v3855
  %v3857 = vlaneseq
  %v3858 = vshrl.u32 %v3857, 7
  %v3859 = vsub.s32 0, %v3858
  %v3860 = vrot.slane %v3283, %v3859
  %v3861 = vlaneseq
  %v3862 = vshrl.u32 %v3861, 7
  %v3863 = vsub.s32 0, %v3862
  %v3864 = vrot.slane %v3297, %v3863
  %v3865 = vlaneseq
  %v3866 = vshrl.u32 %v3865, 7
  %v3867 = vsub.s32 0, %v3866
  %v3868 = vrot.slane %v3305, %v3867
  %v3869 = vlaneseq
  %v3870 = vshrl.u32 %v3869, 7
  %v3871 = vsub.s32 0, %v3870
  %v3872 = vrot.slane %v3307, %v3871
  %v3873 = vlaneseq
  %v3874 = vshrl.u32 %v3873, 7
  %v3875 = vsub.s32 0, %v3874
  %v3876 = vrot.slane %v3290, %v3875
  %v3877 = vlaneseq
  %v3878 = vshrl.u32 %v3877, 7
  %v3879 = vsub.s32 0, %v3878
  %v3880 = vrot.slane %v3304, %v3879
  %v3881 = vlaneseq
  %v3882 = vshrl.u32 %v3881, 7
  %v3883 = vsub.s32 0, %v3882
  %v3884 = vrot.slane %v3306, %v3883
  %v3885 = vlaneseq
  %v3886 = vshrl.u32 %v3885, 7
  %v3887 = vsub.s32 0, %v3886
  %v3888 = vrot.slane %v3308, %v3887
  %v3889 = vlaneseq
  %v3890 = vshrl.u32 %v3889, 7
  %v3891 = vsub.s32 0, %v3890
  %v3892 = vrot.slane %v3332, %v3891
  %v3893 = vlaneseq
  %v3894 = vshrl.u32 %v3893, 7
  %v3895 = vsub.s32 0, %v3894
  %v3896 = vrot.slane %v3346, %v3895
  %v3897 = vlaneseq
  %v3898 = vshrl.u32 %v3897, 7
  %v3899 = vsub.s32 0, %v3898
  %v3900 = vrot.slane %v3354, %v3899
  %v3901 = vlaneseq
  %v3902 = vshrl.u32 %v3901, 7
  %v3903 = vsub.s32 0, %v3902
  %v3904 = vrot.slane %v3356, %v3903
  %v3905 = vlaneseq
  %v3906 = vshrl.u32 %v3905, 7
  %v3907 = vsub.s32 0, %v3906
  %v3908 = vrot.slane %v3339, %v3907
  %v3909 = vlaneseq
  %v3910 = vshrl.u32 %v3909, 7
  %v3911 = vsub.s32 0, %v3910
  %v3912 = vrot.slane %v3353, %v3911
  %v3913 = vlaneseq
  %v3914 = vshrl.u32 %v3913, 7
  %v3915 = vsub.s32 0, %v3914
  %v3916 = vrot.slane %v3355, %v3915
  %v3917 = vlaneseq
  %v3918 = vshrl.u32 %v3917, 7
  %v3919 = vsub.s32 0, %v3918
  %v3920 = vrot.slane %v3357, %v3919
  %v3921 = vlaneseq
  %v3922 = vshrl.u32 %v3921, 7
  %v3923 = vsub.s32 0, %v3922
  %v3924 = vrot.slane %v3381, %v3923
  %v3925 = vlaneseq
  %v3926 = vshrl.u32 %v3925, 7
  %v3927 = vsub.s32 0, %v3926
  %v3928 = vrot.slane %v3395, %v3927
  %v3929 = vlaneseq
  %v3930 = vshrl.u32 %v3929, 7
  %v3931 = vsub.s32 0, %v3930
  %v3932 = vrot.slane %v3403, %v3931
  %v3933 = vlaneseq
  %v3934 = vshrl.u32 %v3933, 7
  %v3935 = vsub.s32 0, %v3934
  %v3936 = vrot.slane %v3405, %v3935
  %v3937 = vlaneseq
  %v3938 = vshrl.u32 %v3937, 7
  %v3939 = vsub.s32 0, %v3938
  %v3940 = vrot.slane %v3388, %v3939
  %v3941 = vlaneseq
  %v3942 = vshrl.u32 %v3941, 7
  %v3943 = vsub.s32 0, %v3942
  %v3944 = vrot.slane %v3402, %v3943
  %v3945 = vlaneseq
  %v3946 = vshrl.u32 %v3945, 7
  %v3947 = vsub.s32 0, %v3946
  %v3948 = vrot.slane %v3404, %v3947
  %v3949 = vlaneseq
  %v3950 = vshrl.u32 %v3949, 7
  %v3951 = vsub.s32 0, %v3950
  %v3952 = vrot.slane %v3406, %v3951
  %v3953 = vlaneseq
  %v3954 = vshrl.u32 %v3953, 7
  %v3955 = vsub.s32 0, %v3954
  %v3956 = vrot.slane %v3430, %v3955
  %v3957 = vlaneseq
  %v3958 = vshrl.u32 %v3957, 7
  %v3959 = vsub.s32 0, %v3958
  %v3960 = vrot.slane %v3444, %v3959
  %v3961 = vlaneseq
  %v3962 = vshrl.u32 %v3961, 7
  %v3963 = vsub.s32 0, %v3962
  %v3964 = vrot.slane %v3452, %v3963
  %v3965 = vlaneseq
  %v3966 = vshrl.u32 %v3965, 7
  %v3967 = vsub.s32 0, %v3966
  %v3968 = vrot.slane %v3454, %v3967
  %v3969 = vlaneseq
  %v3970 = vshrl.u32 %v3969, 7
  %v3971 = vsub.s32 0, %v3970
  %v3972 = vrot.slane %v3437, %v3971
  %v3973 = vlaneseq
  %v3974 = vshrl.u32 %v3973, 7
  %v3975 = vsub.s32 0, %v3974
  %v3976 = vrot.slane %v3451, %v3975
  %v3977 = vlaneseq
  %v3978 = vshrl.u32 %v3977, 7
  %v3979 = vsub.s32 0, %v3978
  %v3980 = vrot.slane %v3453, %v3979
  %v3981 = vlaneseq
  %v3982 = vshrl.u32 %v3981, 7
  %v3983 = vsub.s32 0, %v3982
  %v3984 = vrot.slane %v3455, %v3983
  %v3985 = vlaneseq
  %v3986 = vshrl.u32 %v3985, 7
  %v3987 = vsub.s32 0, %v3986
  %v3988 = vrot.slane %v3479, %v3987
  %v3989 = vlaneseq
  %v3990 = vshrl.u32 %v3989, 7
  %v3991 = vsub.s32 0, %v3990
  %v3992 = vrot.slane %v3493, %v3991
  %v3993 = vlaneseq
  %v3994 = vshrl.u32 %v3993, 7
  %v3995 = vsub.s32 0, %v3994
  %v3996 = vrot.slane %v3501, %v3995
  %v3997 = vlaneseq
  %v3998 = vshrl.u32 %v3997, 7
  %v3999 = vsub.s32 0, %v3998
  %v4000 = vrot.slane %v3503, %v3999
  %v4001 = vlaneseq
  %v4002 = vshrl.u32 %v4001, 7
  %v4003 = vsub.s32 0, %v4002
  %v4004 = vrot.slane %v3486, %v4003
  %v4005 = vlaneseq
  %v4006 = vshrl.u32 %v4005, 7
  %v4007 = vsub.s32 0, %v4006
  %v4008 = vrot.slane %v3500, %v4007
  %v4009 = vlaneseq
  %v4010 = vshrl.u32 %v4009, 7
  %v4011 = vsub.s32 0, %v4010
  %v4012 = vrot.slane %v3502, %v4011
  %v4013 = vlaneseq
  %v4014 = vshrl.u32 %v4013, 7
  %v4015 = vsub.s32 0, %v4014
  %v4016 = vrot.slane %v3504, %v4015
  %v4017 = vcombine.low %v3508, %v3512
  %v4018 = vcombine.low %v3516, %v3520
  %v4020 = vunpack.c.l.s4 1983009808
  %v4021 = vunpack.c.0.s8 %v4020
  %v4022 = vlaneseq
  %v4023 = vshrl.u32 %v4022, 7
  %v4024 = vsub.s32 %v4021, %v4023
  %v4025 = vrot.slane %v4017, %v4024
  %v4027 = vunpack.c.l.s4 1983009808
  %v4028 = vunpack.c.0.s8 %v4027
  %v4029 = vlaneseq
  %v4030 = vshrl.u32 %v4029, 7
  %v4031 = vsub.s32 %v4028, %v4030
  %v4032 = vrot.slane %v4018, %v4031
  %v4033 = vcombine.low %v4025, %v4032
  %v4034 = vcombine.low %v3524, %v3528
  %v4035 = vcombine.low %v3532, %v3536
  %v4037 = vunpack.c.l.s4 1983009808
  %v4038 = vunpack.c.0.s8 %v4037
  %v4039 = vlaneseq
  %v4040 = vshrl.u32 %v4039, 7
  %v4041 = vsub.s32 %v4038, %v4040
  %v4042 = vrot.slane %v4034, %v4041
  %v4044 = vunpack.c.l.s4 1983009808
  %v4045 = vunpack.c.0.s8 %v4044
  %v4046 = vlaneseq
  %v4047 = vshrl.u32 %v4046, 7
  %v4048 = vsub.s32 %v4045, %v4047
  %v4049 = vrot.slane %v4035, %v4048
  %v4050 = vcombine.low %v4042, %v4049
  %v4051 = vcombine.low %v3540, %v3544
  %v4052 = vcombine.low %v3548, %v3552
  %v4054 = vunpack.c.l.s4 1983009808
  %v4055 = vunpack.c.0.s8 %v4054
  %v4056 = vlaneseq
  %v4057 = vshrl.u32 %v4056, 7
  %v4058 = vsub.s32 %v4055, %v4057
  %v4059 = vrot.slane %v4051, %v4058
  %v4061 = vunpack.c.l.s4 1983009808
  %v4062 = vunpack.c.0.s8 %v4061
  %v4063 = vlaneseq
  %v4064 = vshrl.u32 %v4063, 7
  %v4065 = vsub.s32 %v4062, %v4064
  %v4066 = vrot.slane %v4052, %v4065
  %v4067 = vcombine.low %v4059, %v4066
  %v4068 = vcombine.low %v3556, %v3560
  %v4069 = vcombine.low %v3564, %v3568
  %v4071 = vunpack.c.l.s4 1983009808
  %v4072 = vunpack.c.0.s8 %v4071
  %v4073 = vlaneseq
  %v4074 = vshrl.u32 %v4073, 7
  %v4075 = vsub.s32 %v4072, %v4074
  %v4076 = vrot.slane %v4068, %v4075
  %v4078 = vunpack.c.l.s4 1983009808
  %v4079 = vunpack.c.0.s8 %v4078
  %v4080 = vlaneseq
  %v4081 = vshrl.u32 %v4080, 7
  %v4082 = vsub.s32 %v4079, %v4081
  %v4083 = vrot.slane %v4069, %v4082
  %v4084 = vcombine.low %v4076, %v4083
  %v4085 = vcombine.low %v3572, %v3576
  %v4086 = vcombine.low %v3580, %v3584
  %v4088 = vunpack.c.l.s4 1983009808
  %v4089 = vunpack.c.0.s8 %v4088
  %v4090 = vlaneseq
  %v4091 = vshrl.u32 %v4090, 7
  %v4092 = vsub.s32 %v4089, %v4091
  %v4093 = vrot.slane %v4085, %v4092
  %v4095 = vunpack.c.l.s4 1983009808
  %v4096 = vunpack.c.0.s8 %v4095
  %v4097 = vlaneseq
  %v4098 = vshrl.u32 %v4097, 7
  %v4099 = vsub.s32 %v4096, %v4098
  %v4100 = vrot.slane %v4086, %v4099
  %v4101 = vcombine.low %v4093, %v4100
  %v4102 = vcombine.low %v3588, %v3592
  %v4103 = vcombine.low %v3596, %v3600
  %v4105 = vunpack.c.l.s4 1983009808
  %v4106 = vunpack.c.0.s8 %v4105
  %v4107 = vlaneseq
  %v4108 = vshrl.u32 %v4107, 7
  %v4109 = vsub.s32 %v4106, %v4108
  %v4110 = vrot.slane %v4102, %v4109
  %v4112 = vunpack.c.l.s4 1983009808
  %v4113 = vunpack.c.0.s8 %v4112
  %v4114 = vlaneseq
  %v4115 = vshrl.u32 %v4114, 7
  %v4116 = vsub.s32 %v4113, %v4115
  %v4117 = vrot.slane %v4103, %v4116
  %v4118 = vcombine.low %v4110, %v4117
  %v4119 = vcombine.low %v3604, %v3608
  %v4120 = vcombine.low %v3612, %v3616
  %v4122 = vunpack.c.l.s4 1983009808
  %v4123 = vunpack.c.0.s8 %v4122
  %v4124 = vlaneseq
  %v4125 = vshrl.u32 %v4124, 7
  %v4126 = vsub.s32 %v4123, %v4125
  %v4127 = vrot.slane %v4119, %v4126
  %v4129 = vunpack.c.l.s4 1983009808
  %v4130 = vunpack.c.0.s8 %v4129
  %v4131 = vlaneseq
  %v4132 = vshrl.u32 %v4131, 7
  %v4133 = vsub.s32 %v4130, %v4132
  %v4134 = vrot.slane %v4120, %v4133
  %v4135 = vcombine.low %v4127, %v4134
  %v4136 = vcombine.low %v3620, %v3624
  %v4137 = vcombine.low %v3628, %v3632
  %v4139 = vunpack.c.l.s4 1983009808
  %v4140 = vunpack.c.0.s8 %v4139
  %v4141 = vlaneseq
  %v4142 = vshrl.u32 %v4141, 7
  %v4143 = vsub.s32 %v4140, %v4142
  %v4144 = vrot.slane %v4136, %v4143
  %v4146 = vunpack.c.l.s4 1983009808
  %v4147 = vunpack.c.0.s8 %v4146
  %v4148 = vlaneseq
  %v4149 = vshrl.u32 %v4148, 7
  %v4150 = vsub.s32 %v4147, %v4149
  %v4151 = vrot.slane %v4137, %v4150
  %v4152 = vcombine.low %v4144, %v4151
  %v4153 = vcombine.low %v3636, %v3640
  %v4154 = vcombine.low %v3644, %v3648
  %v4156 = vunpack.c.l.s4 1983009808
  %v4157 = vunpack.c.0.s8 %v4156
  %v4158 = vlaneseq
  %v4159 = vshrl.u32 %v4158, 7
  %v4160 = vsub.s32 %v4157, %v4159
  %v4161 = vrot.slane %v4153, %v4160
  %v4163 = vunpack.c.l.s4 1983009808
  %v4164 = vunpack.c.0.s8 %v4163
  %v4165 = vlaneseq
  %v4166 = vshrl.u32 %v4165, 7
  %v4167 = vsub.s32 %v4164, %v4166
  %v4168 = vrot.slane %v4154, %v4167
  %v4169 = vcombine.low %v4161, %v4168
  %v4170 = vcombine.low %v3652, %v3656
  %v4171 = vcombine.low %v3660, %v3664
  %v4173 = vunpack.c.l.s4 1983009808
  %v4174 = vunpack.c.0.s8 %v4173
  %v4175 = vlaneseq
  %v4176 = vshrl.u32 %v4175, 7
  %v4177 = vsub.s32 %v4174, %v4176
  %v4178 = vrot.slane %v4170, %v4177
  %v4180 = vunpack.c.l.s4 1983009808
  %v4181 = vunpack.c.0.s8 %v4180
  %v4182 = vlaneseq
  %v4183 = vshrl.u32 %v4182, 7
  %v4184 = vsub.s32 %v4181, %v4183
  %v4185 = vrot.slane %v4171, %v4184
  %v4186 = vcombine.low %v4178, %v4185
  %v4187 = vcombine.low %v3668, %v3672
  %v4188 = vcombine.low %v3676, %v3680
  %v4190 = vunpack.c.l.s4 1983009808
  %v4191 = vunpack.c.0.s8 %v4190
  %v4192 = vlaneseq
  %v4193 = vshrl.u32 %v4192, 7
  %v4194 = vsub.s32 %v4191, %v4193
  %v4195 = vrot.slane %v4187, %v4194
  %v4197 = vunpack.c.l.s4 1983009808
  %v4198 = vunpack.c.0.s8 %v4197
  %v4199 = vlaneseq
  %v4200 = vshrl.u32 %v4199, 7
  %v4201 = vsub.s32 %v4198, %v4200
  %v4202 = vrot.slane %v4188, %v4201
  %v4203 = vcombine.low %v4195, %v4202
  %v4204 = vcombine.low %v3684, %v3688
  %v4205 = vcombine.low %v3692, %v3696
  %v4207 = vunpack.c.l.s4 1983009808
  %v4208 = vunpack.c.0.s8 %v4207
  %v4209 = vlaneseq
  %v4210 = vshrl.u32 %v4209, 7
  %v4211 = vsub.s32 %v4208, %v4210
  %v4212 = vrot.slane %v4204, %v4211
  %v4214 = vunpack.c.l.s4 1983009808
  %v4215 = vunpack.c.0.s8 %v4214
  %v4216 = vlaneseq
  %v4217 = vshrl.u32 %v4216, 7
  %v4218 = vsub.s32 %v4215, %v4217
  %v4219 = vrot.slane %v4205, %v4218
  %v4220 = vcombine.low %v4212, %v4219
  %v4221 = vcombine.low %v3700, %v3704
  %v4222 = vcombine.low %v3708, %v3712
  %v4224 = vunpack.c.l.s4 1983009808
  %v4225 = vunpack.c.0.s8 %v4224
  %v4226 = vlaneseq
  %v4227 = vshrl.u32 %v4226, 7
  %v4228 = vsub.s32 %v4225, %v4227
  %v4229 = vrot.slane %v4221, %v4228
  %v4231 = vunpack.c.l.s4 1983009808
  %v4232 = vunpack.c.0.s8 %v4231
  %v4233 = vlaneseq
  %v4234 = vshrl.u32 %v4233, 7
  %v4235 = vsub.s32 %v4232, %v4234
  %v4236 = vrot.slane %v4222, %v4235
  %v4237 = vcombine.low %v4229, %v4236
  %v4238 = vcombine.low %v3716, %v3720
  %v4239 = vcombine.low %v3724, %v3728
  %v4241 = vunpack.c.l.s4 1983009808
  %v4242 = vunpack.c.0.s8 %v4241
  %v4243 = vlaneseq
  %v4244 = vshrl.u32 %v4243, 7
  %v4245 = vsub.s32 %v4242, %v4244
  %v4246 = vrot.slane %v4238, %v4245
  %v4248 = vunpack.c.l.s4 1983009808
  %v4249 = vunpack.c.0.s8 %v4248
  %v4250 = vlaneseq
  %v4251 = vshrl.u32 %v4250, 7
  %v4252 = vsub.s32 %v4249, %v4251
  %v4253 = vrot.slane %v4239, %v4252
  %v4254 = vcombine.low %v4246, %v4253
  %v4255 = vcombine.low %v3732, %v3736
  %v4256 = vcombine.low %v3740, %v3744
  %v4258 = vunpack.c.l.s4 1983009808
  %v4259 = vunpack.c.0.s8 %v4258
  %v4260 = vlaneseq
  %v4261 = vshrl.u32 %v4260, 7
  %v4262 = vsub.s32 %v4259, %v4261
  %v4263 = vrot.slane %v4255, %v4262
  %v4265 = vunpack.c.l.s4 1983009808
  %v4266 = vunpack.c.0.s8 %v4265
  %v4267 = vlaneseq
  %v4268 = vshrl.u32 %v4267, 7
  %v4269 = vsub.s32 %v4266, %v4268
  %v4270 = vrot.slane %v4256, %v4269
  %v4271 = vcombine.low %v4263, %v4270
  %v4272 = vcombine.low %v3748, %v3752
  %v4273 = vcombine.low %v3756, %v3760
  %v4275 = vunpack.c.l.s4 1983009808
  %v4276 = vunpack.c.0.s8 %v4275
  %v4277 = vlaneseq
  %v4278 = vshrl.u32 %v4277, 7
  %v4279 = vsub.s32 %v4276, %v4278
  %v4280 = vrot.slane %v4272, %v4279
  %v4282 = vunpack.c.l.s4 1983009808
  %v4283 = vunpack.c.0.s8 %v4282
  %v4284 = vlaneseq
  %v4285 = vshrl.u32 %v4284, 7
  %v4286 = vsub.s32 %v4283, %v4285
  %v4287 = vrot.slane %v4273, %v4286
  %v4288 = vcombine.low %v4280, %v4287
  %v4289 = vcombine.low %v3764, %v3768
  %v4290 = vcombine.low %v3772, %v3776
  %v4292 = vunpack.c.l.s4 1983009808
  %v4293 = vunpack.c.0.s8 %v4292
  %v4294 = vlaneseq
  %v4295 = vshrl.u32 %v4294, 7
  %v4296 = vsub.s32 %v4293, %v4295
  %v4297 = vrot.slane %v4289, %v4296
  %v4299 = vunpack.c.l.s4 1983009808
  %v4300 = vunpack.c.0.s8 %v4299
  %v4301 = vlaneseq
  %v4302 = vshrl.u32 %v4301, 7
  %v4303 = vsub.s32 %v4300, %v4302
  %v4304 = vrot.slane %v4290, %v4303
  %v4305 = vcombine.low %v4297, %v4304
  %v4306 = vcombine.low %v3780, %v3784
  %v4307 = vcombine.low %v3788, %v3792
  %v4309 = vunpack.c.l.s4 1983009808
  %v4310 = vunpack.c.0.s8 %v4309
  %v4311 = vlaneseq
  %v4312 = vshrl.u32 %v4311, 7
  %v4313 = vsub.s32 %v4310, %v4312
  %v4314 = vrot.slane %v4306, %v4313
  %v4316 = vunpack.c.l.s4 1983009808
  %v4317 = vunpack.c.0.s8 %v4316
  %v4318 = vlaneseq
  %v4319 = vshrl.u32 %v4318, 7
  %v4320 = vsub.s32 %v4317, %v4319
  %v4321 = vrot.slane %v4307, %v4320
  %v4322 = vcombine.low %v4314, %v4321
  %v4323 = vcombine.low %v3796, %v3800
  %v4324 = vcombine.low %v3804, %v3808
  %v4326 = vunpack.c.l.s4 1983009808
  %v4327 = vunpack.c.0.s8 %v4326
  %v4328 = vlaneseq
  %v4329 = vshrl.u32 %v4328, 7
  %v4330 = vsub.s32 %v4327, %v4329
  %v4331 = vrot.slane %v4323, %v4330
  %v4333 = vunpack.c.l.s4 1983009808
  %v4334 = vunpack.c.0.s8 %v4333
  %v4335 = vlaneseq
  %v4336 = vshrl.u32 %v4335, 7
  %v4337 = vsub.s32 %v4334, %v4336
  %v4338 = vrot.slane %v4324, %v4337
  %v4339 = vcombine.low %v4331, %v4338
  %v4340 = vcombine.low %v3812, %v3816
  %v4341 = vcombine.low %v3820, %v3824
  %v4343 = vunpack.c.l.s4 1983009808
  %v4344 = vunpack.c.0.s8 %v4343
  %v4345 = vlaneseq
  %v4346 = vshrl.u32 %v4345, 7
  %v4347 = vsub.s32 %v4344, %v4346
  %v4348 = vrot.slane %v4340, %v4347
  %v4350 = vunpack.c.l.s4 1983009808
  %v4351 = vunpack.c.0.s8 %v4350
  %v4352 = vlaneseq
  %v4353 = vshrl.u32 %v4352, 7
  %v4354 = vsub.s32 %v4351, %v4353
  %v4355 = vrot.slane %v4341, %v4354
  %v4356 = vcombine.low %v4348, %v4355
  %v4357 = vcombine.low %v3828, %v3832
  %v4358 = vcombine.low %v3836, %v3840
  %v4360 = vunpack.c.l.s4 1983009808
  %v4361 = vunpack.c.0.s8 %v4360
  %v4362 = vlaneseq
  %v4363 = vshrl.u32 %v4362, 7
  %v4364 = vsub.s32 %v4361, %v4363
  %v4365 = vrot.slane %v4357, %v4364
  %v4367 = vunpack.c.l.s4 1983009808
  %v4368 = vunpack.c.0.s8 %v4367
  %v4369 = vlaneseq
  %v4370 = vshrl.u32 %v4369, 7
  %v4371 = vsub.s32 %v4368, %v4370
  %v4372 = vrot.slane %v4358, %v4371
  %v4373 = vcombine.low %v4365, %v4372
  %v4374 = vcombine.low %v3844, %v3848
  %v4375 = vcombine.low %v3852, %v3856
  %v4377 = vunpack.c.l.s4 1983009808
  %v4378 = vunpack.c.0.s8 %v4377
  %v4379 = vlaneseq
  %v4380 = vshrl.u32 %v4379, 7
  %v4381 = vsub.s32 %v4378, %v4380
  %v4382 = vrot.slane %v4374, %v4381
  %v4384 = vunpack.c.l.s4 1983009808
  %v4385 = vunpack.c.0.s8 %v4384
  %v4386 = vlaneseq
  %v4387 = vshrl.u32 %v4386, 7
  %v4388 = vsub.s32 %v4385, %v4387
  %v4389 = vrot.slane %v4375, %v4388
  %v4390 = vcombine.low %v4382, %v4389
  %v4391 = vcombine.low %v3860, %v3864
  %v4392 = vcombine.low %v3868, %v3872
  %v4394 = vunpack.c.l.s4 1983009808
  %v4395 = vunpack.c.0.s8 %v4394
  %v4396 = vlaneseq
  %v4397 = vshrl.u32 %v4396, 7
  %v4398 = vsub.s32 %v4395, %v4397
  %v4399 = vrot.slane %v4391, %v4398
  %v4401 = vunpack.c.l.s4 1983009808
  %v4402 = vunpack.c.0.s8 %v4401
  %v4403 = vlaneseq
  %v4404 = vshrl.u32 %v4403, 7
  %v4405 = vsub.s32 %v4402, %v4404
  %v4406 = vrot.slane %v4392, %v4405
  %v4407 = vcombine.low %v4399, %v4406
  %v4408 = vcombine.low %v3876, %v3880
  %v4409 = vcombine.low %v3884, %v3888
  %v4411 = vunpack.c.l.s4 1983009808
  %v4412 = vunpack.c.0.s8 %v4411
  %v4413 = vlaneseq
  %v4414 = vshrl.u32 %v4413, 7
  %v4415 = vsub.s32 %v4412, %v4414
  %v4416 = vrot.slane %v4408, %v4415
  %v4418 = vunpack.c.l.s4 1983009808
  %v4419 = vunpack.c.0.s8 %v4418
  %v4420 = vlaneseq
  %v4421 = vshrl.u32 %v4420, 7
  %v4422 = vsub.s32 %v4419, %v4421
  %v4423 = vrot.slane %v4409, %v4422
  %v4424 = vcombine.low %v4416, %v4423
  %v4425 = vcombine.low %v3892, %v3896
  %v4426 = vcombine.low %v3900, %v3904
  %v4428 = vunpack.c.l.s4 1983009808
  %v4429 = vunpack.c.0.s8 %v4428
  %v4430 = vlaneseq
  %v4431 = vshrl.u32 %v4430, 7
  %v4432 = vsub.s32 %v4429, %v4431
  %v4433 = vrot.slane %v4425, %v4432
  %v4435 = vunpack.c.l.s4 1983009808
  %v4436 = vunpack.c.0.s8 %v4435
  %v4437 = vlaneseq
  %v4438 = vshrl.u32 %v4437, 7
  %v4439 = vsub.s32 %v4436, %v4438
  %v4440 = vrot.slane %v4426, %v4439
  %v4441 = vcombine.low %v4433, %v4440
  %v4442 = vcombine.low %v3908, %v3912
  %v4443 = vcombine.low %v3916, %v3920
  %v4445 = vunpack.c.l.s4 1983009808
  %v4446 = vunpack.c.0.s8 %v4445
  %v4447 = vlaneseq
  %v4448 = vshrl.u32 %v4447, 7
  %v4449 = vsub.s32 %v4446, %v4448
  %v4450 = vrot.slane %v4442, %v4449
  %v4452 = vunpack.c.l.s4 1983009808
  %v4453 = vunpack.c.0.s8 %v4452
  %v4454 = vlaneseq
  %v4455 = vshrl.u32 %v4454, 7
  %v4456 = vsub.s32 %v4453, %v4455
  %v4457 = vrot.slane %v4443, %v4456
  %v4458 = vcombine.low %v4450, %v4457
  %v4459 = vcombine.low %v3924, %v3928
  %v4460 = vcombine.low %v3932, %v3936
  %v4462 = vunpack.c.l.s4 1983009808
  %v4463 = vunpack.c.0.s8 %v4462
  %v4464 = vlaneseq
  %v4465 = vshrl.u32 %v4464, 7
  %v4466 = vsub.s32 %v4463, %v4465
  %v4467 = vrot.slane %v4459, %v4466
  %v4469 = vunpack.c.l.s4 1983009808
  %v4470 = vunpack.c.0.s8 %v4469
  %v4471 = vlaneseq
  %v4472 = vshrl.u32 %v4471, 7
  %v4473 = vsub.s32 %v4470, %v4472
  %v4474 = vrot.slane %v4460, %v4473
  %v4475 = vcombine.low %v4467, %v4474
  %v4476 = vcombine.low %v3940, %v3944
  %v4477 = vcombine.low %v3948, %v3952
  %v4479 = vunpack.c.l.s4 1983009808
  %v4480 = vunpack.c.0.s8 %v4479
  %v4481 = vlaneseq
  %v4482 = vshrl.u32 %v4481, 7
  %v4483 = vsub.s32 %v4480, %v4482
  %v4484 = vrot.slane %v4476, %v4483
  %v4486 = vunpack.c.l.s4 1983009808
  %v4487 = vunpack.c.0.s8 %v4486
  %v4488 = vlaneseq
  %v4489 = vshrl.u32 %v4488, 7
  %v4490 = vsub.s32 %v4487, %v4489
  %v4491 = vrot.slane %v4477, %v4490
  %v4492 = vcombine.low %v4484, %v4491
  %v4493 = vcombine.low %v3956, %v3960
  %v4494 = vcombine.low %v3964, %v3968
  %v4496 = vunpack.c.l.s4 1983009808
  %v4497 = vunpack.c.0.s8 %v4496
  %v4498 = vlaneseq
  %v4499 = vshrl.u32 %v4498, 7
  %v4500 = vsub.s32 %v4497, %v4499
  %v4501 = vrot.slane %v4493, %v4500
  %v4503 = vunpack.c.l.s4 1983009808
  %v4504 = vunpack.c.0.s8 %v4503
  %v4505 = vlaneseq
  %v4506 = vshrl.u32 %v4505, 7
  %v4507 = vsub.s32 %v4504, %v4506
  %v4508 = vrot.slane %v4494, %v4507
  %v4509 = vcombine.low %v4501, %v4508
  %v4510 = vcombine.low %v3972, %v3976
  %v4511 = vcombine.low %v3980, %v3984
  %v4513 = vunpack.c.l.s4 1983009808
  %v4514 = vunpack.c.0.s8 %v4513
  %v4515 = vlaneseq
  %v4516 = vshrl.u32 %v4515, 7
  %v4517 = vsub.s32 %v4514, %v4516
  %v4518 = vrot.slane %v4510, %v4517
  %v4520 = vunpack.c.l.s4 1983009808
  %v4521 = vunpack.c.0.s8 %v4520
  %v4522 = vlaneseq
  %v4523 = vshrl.u32 %v4522, 7
  %v4524 = vsub.s32 %v4521, %v4523
  %v4525 = vrot.slane %v4511, %v4524
  %v4526 = vcombine.low %v4518, %v4525
  %v4527 = vcombine.low %v3988, %v3992
  %v4528 = vcombine.low %v3996, %v4000
  %v4530 = vunpack.c.l.s4 1983009808
  %v4531 = vunpack.c.0.s8 %v4530
  %v4532 = vlaneseq
  %v4533 = vshrl.u32 %v4532, 7
  %v4534 = vsub.s32 %v4531, %v4533
  %v4535 = vrot.slane %v4527, %v4534
  %v4537 = vunpack.c.l.s4 1983009808
  %v4538 = vunpack.c.0.s8 %v4537
  %v4539 = vlaneseq
  %v4540 = vshrl.u32 %v4539, 7
  %v4541 = vsub.s32 %v4538, %v4540
  %v4542 = vrot.slane %v4528, %v4541
  %v4543 = vcombine.low %v4535, %v4542
  %v4544 = vcombine.low %v4004, %v4008
  %v4545 = vcombine.low %v4012, %v4016
  %v4547 = vunpack.c.l.s4 1983009808
  %v4548 = vunpack.c.0.s8 %v4547
  %v4549 = vlaneseq
  %v4550 = vshrl.u32 %v4549, 7
  %v4551 = vsub.s32 %v4548, %v4550
  %v4552 = vrot.slane %v4544, %v4551
  %v4554 = vunpack.c.l.s4 1983009808
  %v4555 = vunpack.c.0.s8 %v4554
  %v4556 = vlaneseq
  %v4557 = vshrl.u32 %v4556, 7
  %v4558 = vsub.s32 %v4555, %v4557
  %v4559 = vrot.slane %v4545, %v4558
  %v4560 = vcombine.low %v4552, %v4559
  %s4593 = scalar_lea.vmem [#allocation3], 24
  %4594 = vst [vmem:[%s4593 + $0x1] sm:$0xff] %v4033
  %4595 = vst [vmem:[%s4593 + $0x9] sm:$0xff] %v4050
  %4596 = vst [vmem:[%s4593 + $0x19] sm:$0xff] %v4033
  %4597 = vst [vmem:[%s4593 + $0x21] sm:$0xff] %v4050
  %4598 = vst [vmem:[%s4593 + $0x31] sm:$0xff] %v4067
  %4599 = vst [vmem:[%s4593 + $0x39] sm:$0xff] %v4084
  %4600 = vst [vmem:[%s4593 + $0x49] sm:$0xff] %v4067
  %4601 = vst [vmem:[%s4593 + $0x51] sm:$0xff] %v4084
  %4602 = vst [vmem:[%s4593 + $0x61] sm:$0xff] %v4101
  %4603 = vst [vmem:[%s4593 + $0x69] sm:$0xff] %v4118
  %4604 = vst [vmem:[%s4593 + $0x79] sm:$0xff] %v4101
  %4605 = vst [vmem:[%s4593 + $0x81] sm:$0xff] %v4118
  %4606 = vst [vmem:[%s4593 + $0x91] sm:$0xff] %v4135
  %4607 = vst [vmem:[%s4593 + $0x99] sm:$0xff] %v4152
  %4608 = vst [vmem:[%s4593 + $0xa9] sm:$0xff] %v4135
  %4609 = vst [vmem:[%s4593 + $0xb1] sm:$0xff] %v4152
  %4610 = vst [vmem:[%s4593 + $0xc1] sm:$0xff] %v4169
  %4611 = vst [vmem:[%s4593 + $0xc9] sm:$0xff] %v4186
  %4612 = vst [vmem:[%s4593 + $0xd9] sm:$0xff] %v4169
  %4613 = vst [vmem:[%s4593 + $0xe1] sm:$0xff] %v4186
  %4614 = vst [vmem:[%s4593 + $0xf1] sm:$0xff] %v4203
  %4615 = vst [vmem:[%s4593 + $0xf9] sm:$0xff] %v4220
  %4616 = vst [vmem:[%s4593 + $0x109] sm:$0xff] %v4203
  %4617 = vst [vmem:[%s4593 + $0x111] sm:$0xff] %v4220
  %4618 = vst [vmem:[%s4593 + $0x121] sm:$0xff] %v4237
  %4619 = vst [vmem:[%s4593 + $0x129] sm:$0xff] %v4254
  %4620 = vst [vmem:[%s4593 + $0x139] sm:$0xff] %v4237
  %4621 = vst [vmem:[%s4593 + $0x141] sm:$0xff] %v4254
  %4622 = vst [vmem:[%s4593 + $0x151] sm:$0xff] %v4271
  %4623 = vst [vmem:[%s4593 + $0x159] sm:$0xff] %v4288
  %4624 = vst [vmem:[%s4593 + $0x169] sm:$0xff] %v4271
  %4625 = vst [vmem:[%s4593 + $0x171] sm:$0xff] %v4288
  %4626 = vst [vmem:[%s4593 + $0x1b1] sm:$0xff] %v4305
  %4627 = vst [vmem:[%s4593 + $0x1b9] sm:$0xff] %v4322
  %4628 = vst [vmem:[%s4593 + $0x1c9] sm:$0xff] %v4305
  %4629 = vst [vmem:[%s4593 + $0x1d1] sm:$0xff] %v4322
  %4630 = vst [vmem:[%s4593 + $0x1e1] sm:$0xff] %v4339
  %4631 = vst [vmem:[%s4593 + $0x1e9] sm:$0xff] %v4356
  %4632 = vst [vmem:[%s4593 + $0x1f9] sm:$0xff] %v4339
  %4633 = vst [vmem:[%s4593 + $0x201] sm:$0xff] %v4356
  %4634 = vst [vmem:[%s4593 + $0x211] sm:$0xff] %v4373
  %4635 = vst [vmem:[%s4593 + $0x219] sm:$0xff] %v4390
  %4636 = vst [vmem:[%s4593 + $0x229] sm:$0xff] %v4373
  %4637 = vst [vmem:[%s4593 + $0x231] sm:$0xff] %v4390
  %4638 = vst [vmem:[%s4593 + $0x241] sm:$0xff] %v4407
  %4639 = vst [vmem:[%s4593 + $0x249] sm:$0xff] %v4424
  %4640 = vst [vmem:[%s4593 + $0x259] sm:$0xff] %v4407
  %4641 = vst [vmem:[%s4593 + $0x261] sm:$0xff] %v4424
  %4642 = vst [vmem:[%s4593 + $0x271] sm:$0xff] %v4441
  %4643 = vst [vmem:[%s4593 + $0x279] sm:$0xff] %v4458
  %4644 = vst [vmem:[%s4593 + $0x289] sm:$0xff] %v4441
  %4645 = vst [vmem:[%s4593 + $0x291] sm:$0xff] %v4458
  %4646 = vst [vmem:[%s4593 + $0x2a1] sm:$0xff] %v4475
  %4647 = vst [vmem:[%s4593 + $0x2a9] sm:$0xff] %v4492
  %4648 = vst [vmem:[%s4593 + $0x2b9] sm:$0xff] %v4475
  %4649 = vst [vmem:[%s4593 + $0x2c1] sm:$0xff] %v4492
  %4650 = vst [vmem:[%s4593 + $0x2d1] sm:$0xff] %v4509
  %4651 = vst [vmem:[%s4593 + $0x2d9] sm:$0xff] %v4526
  %4652 = vst [vmem:[%s4593 + $0x2e9] sm:$0xff] %v4509
  %4653 = vst [vmem:[%s4593 + $0x2f1] sm:$0xff] %v4526
  %4654 = vst [vmem:[%s4593 + $0x301] sm:$0xff] %v4543
  %4655 = vst [vmem:[%s4593 + $0x309] sm:$0xff] %v4560
  %4656 = vst [vmem:[%s4593 + $0x319] sm:$0xff] %v4543
  %4657 = vst [vmem:[%s4593 + $0x321] sm:$0xff] %v4560
  %v4658 = vld [vmem:[#allocation3] sm:$0xff]
  %v4659 = vld [vmem:[#allocation3 + $0x8] sm:$0xff]
  %v4660 = vld [vmem:[#allocation3 + $0x18] sm:$0xff]
  %v4661 = vld [vmem:[#allocation3 + $0x20] sm:$0xff]
  %v4662 = vld [vmem:[#allocation3 + $0x30] sm:$0xff]
  %v4663 = vld [vmem:[#allocation3 + $0x38] sm:$0xff]
  %v4664 = vld [vmem:[#allocation3 + $0x48] sm:$0xff]
  %v4665 = vld [vmem:[#allocation3 + $0x50] sm:$0xff]
  %v4666 = vld [vmem:[#allocation3 + $0x60] sm:$0xff]
  %v4667 = vld [vmem:[#allocation3 + $0x68] sm:$0xff]
  %v4668 = vld [vmem:[#allocation3 + $0x78] sm:$0xff]
  %v4669 = vld [vmem:[#allocation3 + $0x80] sm:$0xff]
  %v4670 = vld [vmem:[#allocation3 + $0x90] sm:$0xff]
  %v4671 = vld [vmem:[#allocation3 + $0x98] sm:$0xff]
  %v4672 = vld [vmem:[#allocation3 + $0xa8] sm:$0xff]
  %v4673 = vld [vmem:[#allocation3 + $0xb0] sm:$0xff]
  %v4674 = vld [vmem:[#allocation3 + $0xc0] sm:$0xff]
  %v4675 = vld [vmem:[#allocation3 + $0xc8] sm:$0xff]
  %v4676 = vld [vmem:[#allocation3 + $0xd8] sm:$0xff]
  %v4677 = vld [vmem:[#allocation3 + $0xe0] sm:$0xff]
  %v4678 = vld [vmem:[#allocation3 + $0xf0] sm:$0xff]
  %v4679 = vld [vmem:[#allocation3 + $0xf8] sm:$0xff]
  %v4680 = vld [vmem:[#allocation3 + $0x108] sm:$0xff]
  %v4681 = vld [vmem:[#allocation3 + $0x110] sm:$0xff]
  %v4682 = vld [vmem:[#allocation3 + $0x120] sm:$0xff]
  %v4683 = vld [vmem:[#allocation3 + $0x128] sm:$0xff]
  %v4684 = vld [vmem:[#allocation3 + $0x138] sm:$0xff]
  %v4685 = vld [vmem:[#allocation3 + $0x140] sm:$0xff]
  %v4686 = vld [vmem:[#allocation3 + $0x150] sm:$0xff]
  %v4687 = vld [vmem:[#allocation3 + $0x158] sm:$0xff]
  %v4688 = vld [vmem:[#allocation3 + $0x168] sm:$0xff]
  %v4689 = vld [vmem:[#allocation3 + $0x170] sm:$0xff]
  %v4690 = vld [vmem:[#allocation3 + $0x1b0] sm:$0xff]
  %v4691 = vld [vmem:[#allocation3 + $0x1b8] sm:$0xff]
  %v4692 = vld [vmem:[#allocation3 + $0x1c8] sm:$0xff]
  %v4693 = vld [vmem:[#allocation3 + $0x1d0] sm:$0xff]
  %v4694 = vld [vmem:[#allocation3 + $0x1e0] sm:$0xff]
  %v4695 = vld [vmem:[#allocation3 + $0x1e8] sm:$0xff]
  %v4696 = vld [vmem:[#allocation3 + $0x1f8] sm:$0xff]
  %v4697 = vld [vmem:[#allocation3 + $0x200] sm:$0xff]
  %v4698 = vld [vmem:[#allocation3 + $0x210] sm:$0xff]
  %v4699 = vld [vmem:[#allocation3 + $0x218] sm:$0xff]
  %v4700 = vld [vmem:[#allocation3 + $0x228] sm:$0xff]
  %v4701 = vld [vmem:[#allocation3 + $0x230] sm:$0xff]
  %v4702 = vld [vmem:[#allocation3 + $0x240] sm:$0xff]
  %v4703 = vld [vmem:[#allocation3 + $0x248] sm:$0xff]
  %v4704 = vld [vmem:[#allocation3 + $0x258] sm:$0xff]
  %v4705 = vld [vmem:[#allocation3 + $0x260] sm:$0xff]
  %v4706 = vld [vmem:[#allocation3 + $0x270] sm:$0xff]
  %v4707 = vld [vmem:[#allocation3 + $0x278] sm:$0xff]
  %v4708 = vld [vmem:[#allocation3 + $0x288] sm:$0xff]
  %v4709 = vld [vmem:[#allocation3 + $0x290] sm:$0xff]
  %v4710 = vld [vmem:[#allocation3 + $0x2a0] sm:$0xff]
  %v4711 = vld [vmem:[#allocation3 + $0x2a8] sm:$0xff]
  %v4712 = vld [vmem:[#allocation3 + $0x2b8] sm:$0xff]
  %v4713 = vld [vmem:[#allocation3 + $0x2c0] sm:$0xff]
  %v4714 = vld [vmem:[#allocation3 + $0x2d0] sm:$0xff]
  %v4715 = vld [vmem:[#allocation3 + $0x2d8] sm:$0xff]
  %v4716 = vld [vmem:[#allocation3 + $0x2e8] sm:$0xff]
  %v4717 = vld [vmem:[#allocation3 + $0x2f0] sm:$0xff]
  %v4718 = vld [vmem:[#allocation3 + $0x300] sm:$0xff]
  %v4719 = vld [vmem:[#allocation3 + $0x308] sm:$0xff]
  %v4720 = vld [vmem:[#allocation3 + $0x318] sm:$0xff]
  %v4721 = vld [vmem:[#allocation3 + $0x320] sm:$0xff]
  %v4722 = vld [vmem:[#allocation3 + $0x1] sm:$0xff]
  %v4723 = vld [vmem:[#allocation3 + $0x9] sm:$0xff]
  %v4724 = vld [vmem:[#allocation3 + $0x19] sm:$0xff]
  %v4725 = vld [vmem:[#allocation3 + $0x21] sm:$0xff]
  %v4726 = vld [vmem:[#allocation3 + $0x31] sm:$0xff]
  %v4727 = vld [vmem:[#allocation3 + $0x39] sm:$0xff]
  %v4728 = vld [vmem:[#allocation3 + $0x49] sm:$0xff]
  %v4729 = vld [vmem:[#allocation3 + $0x51] sm:$0xff]
  %v4730 = vld [vmem:[#allocation3 + $0x61] sm:$0xff]
  %v4731 = vld [vmem:[#allocation3 + $0x69] sm:$0xff]
  %v4732 = vld [vmem:[#allocation3 + $0x79] sm:$0xff]
  %v4733 = vld [vmem:[#allocation3 + $0x81] sm:$0xff]
  %v4734 = vld [vmem:[#allocation3 + $0x91] sm:$0xff]
  %v4735 = vld [vmem:[#allocation3 + $0x99] sm:$0xff]
  %v4736 = vld [vmem:[#allocation3 + $0xa9] sm:$0xff]
  %v4737 = vld [vmem:[#allocation3 + $0xb1] sm:$0xff]
  %v4738 = vld [vmem:[#allocation3 + $0xc1] sm:$0xff]
  %v4739 = vld [vmem:[#allocation3 + $0xc9] sm:$0xff]
  %v4740 = vld [vmem:[#allocation3 + $0xd9] sm:$0xff]
  %v4741 = vld [vmem:[#allocation3 + $0xe1] sm:$0xff]
  %v4742 = vld [vmem:[#allocation3 + $0xf1] sm:$0xff]
  %v4743 = vld [vmem:[#allocation3 + $0xf9] sm:$0xff]
  %v4744 = vld [vmem:[#allocation3 + $0x109] sm:$0xff]
  %v4745 = vld [vmem:[#allocation3 + $0x111] sm:$0xff]
  %v4746 = vld [vmem:[#allocation3 + $0x121] sm:$0xff]
  %v4747 = vld [vmem:[#allocation3 + $0x129] sm:$0xff]
  %v4748 = vld [vmem:[#allocation3 + $0x139] sm:$0xff]
  %v4749 = vld [vmem:[#allocation3 + $0x141] sm:$0xff]
  %v4750 = vld [vmem:[#allocation3 + $0x151] sm:$0xff]
  %v4751 = vld [vmem:[#allocation3 + $0x159] sm:$0xff]
  %v4752 = vld [vmem:[#allocation3 + $0x169] sm:$0xff]
  %v4753 = vld [vmem:[#allocation3 + $0x171] sm:$0xff]
  %v4754 = vld [vmem:[#allocation3 + $0x1b1] sm:$0xff]
  %v4755 = vld [vmem:[#allocation3 + $0x1b9] sm:$0xff]
  %v4756 = vld [vmem:[#allocation3 + $0x1c9] sm:$0xff]
  %v4757 = vld [vmem:[#allocation3 + $0x1d1] sm:$0xff]
  %v4758 = vld [vmem:[#allocation3 + $0x1e1] sm:$0xff]
  %v4759 = vld [vmem:[#allocation3 + $0x1e9] sm:$0xff]
  %v4760 = vld [vmem:[#allocation3 + $0x1f9] sm:$0xff]
  %v4761 = vld [vmem:[#allocation3 + $0x201] sm:$0xff]
  %v4762 = vld [vmem:[#allocation3 + $0x211] sm:$0xff]
  %v4763 = vld [vmem:[#allocation3 + $0x219] sm:$0xff]
  %v4764 = vld [vmem:[#allocation3 + $0x229] sm:$0xff]
  %v4765 = vld [vmem:[#allocation3 + $0x231] sm:$0xff]
  %v4766 = vld [vmem:[#allocation3 + $0x241] sm:$0xff]
  %v4767 = vld [vmem:[#allocation3 + $0x249] sm:$0xff]
  %v4768 = vld [vmem:[#allocation3 + $0x259] sm:$0xff]
  %v4769 = vld [vmem:[#allocation3 + $0x261] sm:$0xff]
  %v4770 = vld [vmem:[#allocation3 + $0x271] sm:$0xff]
  %v4771 = vld [vmem:[#allocation3 + $0x279] sm:$0xff]
  %v4772 = vld [vmem:[#allocation3 + $0x289] sm:$0xff]
  %v4773 = vld [vmem:[#allocation3 + $0x291] sm:$0xff]
  %v4774 = vld [vmem:[#allocation3 + $0x2a1] sm:$0xff]
  %v4775 = vld [vmem:[#allocation3 + $0x2a9] sm:$0xff]
  %v4776 = vld [vmem:[#allocation3 + $0x2b9] sm:$0xff]
  %v4777 = vld [vmem:[#allocation3 + $0x2c1] sm:$0xff]
  %v4778 = vld [vmem:[#allocation3 + $0x2d1] sm:$0xff]
  %v4779 = vld [vmem:[#allocation3 + $0x2d9] sm:$0xff]
  %v4780 = vld [vmem:[#allocation3 + $0x2e9] sm:$0xff]
  %v4781 = vld [vmem:[#allocation3 + $0x2f1] sm:$0xff]
  %v4782 = vld [vmem:[#allocation3 + $0x301] sm:$0xff]
  %v4783 = vld [vmem:[#allocation3 + $0x309] sm:$0xff]
  %v4784 = vld [vmem:[#allocation3 + $0x319] sm:$0xff]
  %v4785 = vld [vmem:[#allocation3 + $0x321] sm:$0xff]
  %v4786 = vld [vmem:[#allocation3 + $0x2] sm:$0xff]
  %v4787 = vld [vmem:[#allocation3 + $0xa] sm:$0xff]
  %v4788 = vld [vmem:[#allocation3 + $0x1a] sm:$0xff]
  %v4789 = vld [vmem:[#allocation3 + $0x22] sm:$0xff]
  %v4790 = vld [vmem:[#allocation3 + $0x32] sm:$0xff]
  %v4791 = vld [vmem:[#allocation3 + $0x3a] sm:$0xff]
  %v4792 = vld [vmem:[#allocation3 + $0x4a] sm:$0xff]
  %v4793 = vld [vmem:[#allocation3 + $0x52] sm:$0xff]
  %v4794 = vld [vmem:[#allocation3 + $0x62] sm:$0xff]
  %v4795 = vld [vmem:[#allocation3 + $0x6a] sm:$0xff]
  %v4796 = vld [vmem:[#allocation3 + $0x7a] sm:$0xff]
  %v4797 = vld [vmem:[#allocation3 + $0x82] sm:$0xff]
  %v4798 = vld [vmem:[#allocation3 + $0x92] sm:$0xff]
  %v4799 = vld [vmem:[#allocation3 + $0x9a] sm:$0xff]
  %v4800 = vld [vmem:[#allocation3 + $0xaa] sm:$0xff]
  %v4801 = vld [vmem:[#allocation3 + $0xb2] sm:$0xff]
  %v4802 = vld [vmem:[#allocation3 + $0xc2] sm:$0xff]
  %v4803 = vld [vmem:[#allocation3 + $0xca] sm:$0xff]
  %v4804 = vld [vmem:[#allocation3 + $0xda] sm:$0xff]
  %v4805 = vld [vmem:[#allocation3 + $0xe2] sm:$0xff]
  %v4806 = vld [vmem:[#allocation3 + $0xf2] sm:$0xff]
  %v4807 = vld [vmem:[#allocation3 + $0xfa] sm:$0xff]
  %v4808 = vld [vmem:[#allocation3 + $0x10a] sm:$0xff]
  %v4809 = vld [vmem:[#allocation3 + $0x112] sm:$0xff]
  %v4810 = vld [vmem:[#allocation3 + $0x122] sm:$0xff]
  %v4811 = vld [vmem:[#allocation3 + $0x12a] sm:$0xff]
  %v4812 = vld [vmem:[#allocation3 + $0x13a] sm:$0xff]
  %v4813 = vld [vmem:[#allocation3 + $0x142] sm:$0xff]
  %v4814 = vld [vmem:[#allocation3 + $0x152] sm:$0xff]
  %v4815 = vld [vmem:[#allocation3 + $0x15a] sm:$0xff]
  %v4816 = vld [vmem:[#allocation3 + $0x16a] sm:$0xff]
  %v4817 = vld [vmem:[#allocation3 + $0x172] sm:$0xff]
  %v4818 = vld [vmem:[#allocation3 + $0x1b2] sm:$0xff]
  %v4819 = vld [vmem:[#allocation3 + $0x1ba] sm:$0xff]
  %v4820 = vld [vmem:[#allocation3 + $0x1ca] sm:$0xff]
  %v4821 = vld [vmem:[#allocation3 + $0x1d2] sm:$0xff]
  %v4822 = vld [vmem:[#allocation3 + $0x1e2] sm:$0xff]
  %v4823 = vld [vmem:[#allocation3 + $0x1ea] sm:$0xff]
  %v4824 = vld [vmem:[#allocation3 + $0x1fa] sm:$0xff]
  %v4825 = vld [vmem:[#allocation3 + $0x202] sm:$0xff]
  %v4826 = vld [vmem:[#allocation3 + $0x212] sm:$0xff]
  %v4827 = vld [vmem:[#allocation3 + $0x21a] sm:$0xff]
  %v4828 = vld [vmem:[#allocation3 + $0x22a] sm:$0xff]
  %v4829 = vld [vmem:[#allocation3 + $0x232] sm:$0xff]
  %v4830 = vld [vmem:[#allocation3 + $0x242] sm:$0xff]
  %v4831 = vld [vmem:[#allocation3 + $0x24a] sm:$0xff]
  %v4832 = vld [vmem:[#allocation3 + $0x25a] sm:$0xff]
  %v4833 = vld [vmem:[#allocation3 + $0x262] sm:$0xff]
  %v4834 = vld [vmem:[#allocation3 + $0x272] sm:$0xff]
  %v4835 = vld [vmem:[#allocation3 + $0x27a] sm:$0xff]
  %v4836 = vld [vmem:[#allocation3 + $0x28a] sm:$0xff]
  %v4837 = vld [vmem:[#allocation3 + $0x292] sm:$0xff]
  %v4838 = vld [vmem:[#allocation3 + $0x2a2] sm:$0xff]
  %v4839 = vld [vmem:[#allocation3 + $0x2aa] sm:$0xff]
  %v4840 = vld [vmem:[#allocation3 + $0x2ba] sm:$0xff]
  %v4841 = vld [vmem:[#allocation3 + $0x2c2] sm:$0xff]
  %v4842 = vld [vmem:[#allocation3 + $0x2d2] sm:$0xff]
  %v4843 = vld [vmem:[#allocation3 + $0x2da] sm:$0xff]
  %v4844 = vld [vmem:[#allocation3 + $0x2ea] sm:$0xff]
  %v4845 = vld [vmem:[#allocation3 + $0x2f2] sm:$0xff]
  %v4846 = vld [vmem:[#allocation3 + $0x302] sm:$0xff]
  %v4847 = vld [vmem:[#allocation3 + $0x30a] sm:$0xff]
  %v4848 = vld [vmem:[#allocation3 + $0x31a] sm:$0xff]
  %v4849 = vld [vmem:[#allocation3 + $0x322] sm:$0xff]
  %v4850 = vpack.c.bf16 %v4659, %v4658
  %v4851 = vpack.c.bf16 %v4723, %v4722
  %v4852 = vpack.c.bf16 %v4787, %v4786
  %v4853 = vpack.c.bf16 %v4661, %v4660
  %v4854 = vpack.c.bf16 %v4725, %v4724
  %v4855 = vpack.c.bf16 %v4789, %v4788
  %v4856 = vpack.c.bf16 %v4663, %v4662
  %v4857 = vpack.c.bf16 %v4727, %v4726
  %v4858 = vpack.c.bf16 %v4791, %v4790
  %v4859 = vpack.c.bf16 %v4665, %v4664
  %v4860 = vpack.c.bf16 %v4729, %v4728
  %v4861 = vpack.c.bf16 %v4793, %v4792
  %v4862 = vpack.c.bf16 %v4667, %v4666
  %v4863 = vpack.c.bf16 %v4731, %v4730
  %v4864 = vpack.c.bf16 %v4795, %v4794
  %v4865 = vpack.c.bf16 %v4669, %v4668
  %v4866 = vpack.c.bf16 %v4733, %v4732
  %v4867 = vpack.c.bf16 %v4797, %v4796
  %v4868 = vpack.c.bf16 %v4671, %v4670
  %v4869 = vpack.c.bf16 %v4735, %v4734
  %v4870 = vpack.c.bf16 %v4799, %v4798
  %v4871 = vpack.c.bf16 %v4673, %v4672
  %v4872 = vpack.c.bf16 %v4737, %v4736
  %v4873 = vpack.c.bf16 %v4801, %v4800
  %v4874 = vpack.c.bf16 %v4675, %v4674
  %v4875 = vpack.c.bf16 %v4739, %v4738
  %v4876 = vpack.c.bf16 %v4803, %v4802
  %v4877 = vpack.c.bf16 %v4677, %v4676
  %v4878 = vpack.c.bf16 %v4741, %v4740
  %v4879 = vpack.c.bf16 %v4805, %v4804
  %v4880 = vpack.c.bf16 %v4679, %v4678
  %v4881 = vpack.c.bf16 %v4743, %v4742
  %v4882 = vpack.c.bf16 %v4807, %v4806
  %v4883 = vpack.c.bf16 %v4681, %v4680
  %v4884 = vpack.c.bf16 %v4745, %v4744
  %v4885 = vpack.c.bf16 %v4809, %v4808
  %v4886 = vpack.c.bf16 %v4683, %v4682
  %v4887 = vpack.c.bf16 %v4747, %v4746
  %v4888 = vpack.c.bf16 %v4811, %v4810
  %v4889 = vpack.c.bf16 %v4685, %v4684
  %v4890 = vpack.c.bf16 %v4749, %v4748
  %v4891 = vpack.c.bf16 %v4813, %v4812
  %v4892 = vpack.c.bf16 %v4687, %v4686
  %v4893 = vpack.c.bf16 %v4751, %v4750
  %v4894 = vpack.c.bf16 %v4815, %v4814
  %v4895 = vpack.c.bf16 %v4689, %v4688
  %v4896 = vpack.c.bf16 %v4753, %v4752
  %v4897 = vpack.c.bf16 %v4817, %v4816
  %v4898 = vpack.c.bf16 %v4691, %v4690
  %v4899 = vpack.c.bf16 %v4755, %v4754
  %v4900 = vpack.c.bf16 %v4819, %v4818
  %v4901 = vpack.c.bf16 %v4693, %v4692
  %v4902 = vpack.c.bf16 %v4757, %v4756
  %v4903 = vpack.c.bf16 %v4821, %v4820
  %v4904 = vpack.c.bf16 %v4695, %v4694
  %v4905 = vpack.c.bf16 %v4759, %v4758
  %v4906 = vpack.c.bf16 %v4823, %v4822
  %v4907 = vpack.c.bf16 %v4697, %v4696
  %v4908 = vpack.c.bf16 %v4761, %v4760
  %v4909 = vpack.c.bf16 %v4825, %v4824
  %v4910 = vpack.c.bf16 %v4699, %v4698
  %v4911 = vpack.c.bf16 %v4763, %v4762
  %v4912 = vpack.c.bf16 %v4827, %v4826
  %v4913 = vpack.c.bf16 %v4701, %v4700
  %v4914 = vpack.c.bf16 %v4765, %v4764
  %v4915 = vpack.c.bf16 %v4829, %v4828
  %v4916 = vpack.c.bf16 %v4703, %v4702
  %v4917 = vpack.c.bf16 %v4767, %v4766
  %v4918 = vpack.c.bf16 %v4831, %v4830
  %v4919 = vpack.c.bf16 %v4705, %v4704
  %v4920 = vpack.c.bf16 %v4769, %v4768
  %v4921 = vpack.c.bf16 %v4833, %v4832
  %v4922 = vpack.c.bf16 %v4707, %v4706
  %v4923 = vpack.c.bf16 %v4771, %v4770
  %v4924 = vpack.c.bf16 %v4835, %v4834
  %v4925 = vpack.c.bf16 %v4709, %v4708
  %v4926 = vpack.c.bf16 %v4773, %v4772
  %v4927 = vpack.c.bf16 %v4837, %v4836
  %v4928 = vpack.c.bf16 %v4711, %v4710
  %v4929 = vpack.c.bf16 %v4775, %v4774
  %v4930 = vpack.c.bf16 %v4839, %v4838
  %v4931 = vpack.c.bf16 %v4713, %v4712
  %v4932 = vpack.c.bf16 %v4777, %v4776
  %v4933 = vpack.c.bf16 %v4841, %v4840
  %v4934 = vpack.c.bf16 %v4715, %v4714
  %v4935 = vpack.c.bf16 %v4779, %v4778
  %v4936 = vpack.c.bf16 %v4843, %v4842
  %v4937 = vpack.c.bf16 %v4717, %v4716
  %v4938 = vpack.c.bf16 %v4781, %v4780
  %v4939 = vpack.c.bf16 %v4845, %v4844
  %v4940 = vpack.c.bf16 %v4719, %v4718
  %v4941 = vpack.c.bf16 %v4783, %v4782
  %v4942 = vpack.c.bf16 %v4847, %v4846
  %v4943 = vpack.c.bf16 %v4721, %v4720
  %v4944 = vpack.c.bf16 %v4785, %v4784
  %v4945 = vpack.c.bf16 %v4849, %v4848
  %v4946 = vld [vmem:[%s8] sm:$0xf]
  %v4947 = vld [vmem:[%s8 + $0x4] sm:$0xf]
  %v4948 = vld [vmem:[%s8 + $0x8] sm:$0xf]
  %v4949 = vld [vmem:[%s8 + $0xc] sm:$0xf]
  %v4950 = vld [vmem:[%s8 + $0x10] sm:$0xf]
  %v4951 = vld [vmem:[%s8 + $0x14] sm:$0xf]
  %v4952 = vld [vmem:[%s8 + $0x18] sm:$0xf]
  %v4953 = vld [vmem:[%s8 + $0x1c] sm:$0xf]
  %v4954 = vld [vmem:[%s8 + $0x20] sm:$0xf]
  %v4955 = vld [vmem:[%s8 + $0x24] sm:$0xf]
  %v4956 = vld [vmem:[%s8 + $0x28] sm:$0xf]
  %v4957 = vld [vmem:[%s8 + $0x2c] sm:$0xf]
  %v4958 = vld [vmem:[%s8 + $0x30] sm:$0xf]
  %v4959 = vld [vmem:[%s8 + $0x34] sm:$0xf]
  %v4960 = vld [vmem:[%s8 + $0x38] sm:$0xf]
  %v4961 = vld [vmem:[%s8 + $0x3c] sm:$0xf]
  %v4962 = vld [vmem:[%s8 + $0x40] sm:$0xf]
  %v4963 = vld [vmem:[%s8 + $0x44] sm:$0xf]
  %v4964 = vld [vmem:[%s8 + $0x48] sm:$0xf]
  %v4965 = vld [vmem:[%s8 + $0x4c] sm:$0xf]
  %v4966 = vld [vmem:[%s8 + $0x50] sm:$0xf]
  %v4967 = vld [vmem:[%s8 + $0x54] sm:$0xf]
  %v4968 = vld [vmem:[%s8 + $0x58] sm:$0xf]
  %v4969 = vld [vmem:[%s8 + $0x5c] sm:$0xf]
  %v4970 = vld [vmem:[%s8 + $0x60] sm:$0xf]
  %v4971 = vld [vmem:[%s8 + $0x64] sm:$0xf]
  %v4972 = vld [vmem:[%s8 + $0x68] sm:$0xf]
  %v4973 = vld [vmem:[%s8 + $0x6c] sm:$0xf]
  %v4974 = vld [vmem:[%s8 + $0x70] sm:$0xf]
  %v4975 = vld [vmem:[%s8 + $0x74] sm:$0xf]
  %v4976 = vld [vmem:[%s8 + $0x78] sm:$0xf]
  %v4977 = vld [vmem:[%s8 + $0x7c] sm:$0xf]
  %v4978 = vld [vmem:[%s8 + $0x80] sm:$0xf]
  %v4979 = vld [vmem:[%s8 + $0x84] sm:$0xf]
  %v4980 = vld [vmem:[%s8 + $0x88] sm:$0xf]
  %v4981 = vld [vmem:[%s8 + $0x8c] sm:$0xf]
  %v4982 = vld [vmem:[%s8 + $0x90] sm:$0xf]
  %v4983 = vld [vmem:[%s8 + $0x94] sm:$0xf]
  %v4984 = vld [vmem:[%s8 + $0x98] sm:$0xf]
  %v4985 = vld [vmem:[%s8 + $0x9c] sm:$0xf]
  %v4986 = vld [vmem:[%s8 + $0xa0] sm:$0xf]
  %v4987 = vld [vmem:[%s8 + $0xa4] sm:$0xf]
  %v4988 = vld [vmem:[%s8 + $0xa8] sm:$0xf]
  %v4989 = vld [vmem:[%s8 + $0xac] sm:$0xf]
  %v4990 = vld [vmem:[%s8 + $0xb0] sm:$0xf]
  %v4991 = vld [vmem:[%s8 + $0xb4] sm:$0xf]
  %v4992 = vld [vmem:[%s8 + $0xb8] sm:$0xf]
  %v4993 = vld [vmem:[%s8 + $0xbc] sm:$0xf]
  %v4994 = vld [vmem:[%s4593] sm:$0xff]
  %v4995 = vld [vmem:[%s4593 + $0x8] sm:$0xff]
  %v4996 = vld [vmem:[%s4593 + $0x18] sm:$0xff]
  %v4997 = vld [vmem:[%s4593 + $0x20] sm:$0xff]
  %v4998 = vld [vmem:[%s4593 + $0x30] sm:$0xff]
  %v4999 = vld [vmem:[%s4593 + $0x38] sm:$0xff]
  %v5000 = vld [vmem:[%s4593 + $0x48] sm:$0xff]
  %v5001 = vld [vmem:[%s4593 + $0x50] sm:$0xff]
  %v5002 = vld [vmem:[%s4593 + $0x60] sm:$0xff]
  %v5003 = vld [vmem:[%s4593 + $0x68] sm:$0xff]
  %v5004 = vld [vmem:[%s4593 + $0x78] sm:$0xff]
  %v5005 = vld [vmem:[%s4593 + $0x80] sm:$0xff]
  %v5006 = vld [vmem:[%s4593 + $0x90] sm:$0xff]
  %v5007 = vld [vmem:[%s4593 + $0x98] sm:$0xff]
  %v5008 = vld [vmem:[%s4593 + $0xa8] sm:$0xff]
  %v5009 = vld [vmem:[%s4593 + $0xb0] sm:$0xff]
  %v5010 = vld [vmem:[%s4593 + $0xc0] sm:$0xff]
  %v5011 = vld [vmem:[%s4593 + $0xc8] sm:$0xff]
  %v5012 = vld [vmem:[%s4593 + $0xd8] sm:$0xff]
  %v5013 = vld [vmem:[%s4593 + $0xe0] sm:$0xff]
  %v5014 = vld [vmem:[%s4593 + $0xf0] sm:$0xff]
  %v5015 = vld [vmem:[%s4593 + $0xf8] sm:$0xff]
  %v5016 = vld [vmem:[%s4593 + $0x108] sm:$0xff]
  %v5017 = vld [vmem:[%s4593 + $0x110] sm:$0xff]
  %v5018 = vld [vmem:[%s4593 + $0x120] sm:$0xff]
  %v5019 = vld [vmem:[%s4593 + $0x128] sm:$0xff]
  %v5020 = vld [vmem:[%s4593 + $0x138] sm:$0xff]
  %v5021 = vld [vmem:[%s4593 + $0x140] sm:$0xff]
  %v5022 = vld [vmem:[%s4593 + $0x150] sm:$0xff]
  %v5023 = vld [vmem:[%s4593 + $0x158] sm:$0xff]
  %v5024 = vld [vmem:[%s4593 + $0x168] sm:$0xff]
  %v5025 = vld [vmem:[%s4593 + $0x170] sm:$0xff]
  %v5026 = vld [vmem:[%s4593 + $0x1b0] sm:$0xff]
  %v5027 = vld [vmem:[%s4593 + $0x1b8] sm:$0xff]
  %v5028 = vld [vmem:[%s4593 + $0x1c8] sm:$0xff]
  %v5029 = vld [vmem:[%s4593 + $0x1d0] sm:$0xff]
  %v5030 = vld [vmem:[%s4593 + $0x1e0] sm:$0xff]
  %v5031 = vld [vmem:[%s4593 + $0x1e8] sm:$0xff]
  %v5032 = vld [vmem:[%s4593 + $0x1f8] sm:$0xff]
  %v5033 = vld [vmem:[%s4593 + $0x200] sm:$0xff]
  %v5034 = vld [vmem:[%s4593 + $0x210] sm:$0xff]
  %v5035 = vld [vmem:[%s4593 + $0x218] sm:$0xff]
  %v5036 = vld [vmem:[%s4593 + $0x228] sm:$0xff]
  %v5037 = vld [vmem:[%s4593 + $0x230] sm:$0xff]
  %v5038 = vld [vmem:[%s4593 + $0x240] sm:$0xff]
  %v5039 = vld [vmem:[%s4593 + $0x248] sm:$0xff]
  %v5040 = vld [vmem:[%s4593 + $0x258] sm:$0xff]
  %v5041 = vld [vmem:[%s4593 + $0x260] sm:$0xff]
  %v5042 = vld [vmem:[%s4593 + $0x270] sm:$0xff]
  %v5043 = vld [vmem:[%s4593 + $0x278] sm:$0xff]
  %v5044 = vld [vmem:[%s4593 + $0x288] sm:$0xff]
  %v5045 = vld [vmem:[%s4593 + $0x290] sm:$0xff]
  %v5046 = vld [vmem:[%s4593 + $0x2a0] sm:$0xff]
  %v5047 = vld [vmem:[%s4593 + $0x2a8] sm:$0xff]
  %v5048 = vld [vmem:[%s4593 + $0x2b8] sm:$0xff]
  %v5049 = vld [vmem:[%s4593 + $0x2c0] sm:$0xff]
  %v5050 = vld [vmem:[%s4593 + $0x2d0] sm:$0xff]
  %v5051 = vld [vmem:[%s4593 + $0x2d8] sm:$0xff]
  %v5052 = vld [vmem:[%s4593 + $0x2e8] sm:$0xff]
  %v5053 = vld [vmem:[%s4593 + $0x2f0] sm:$0xff]
  %v5054 = vld [vmem:[%s4593 + $0x300] sm:$0xff]
  %v5055 = vld [vmem:[%s4593 + $0x308] sm:$0xff]
  %v5056 = vld [vmem:[%s4593 + $0x318] sm:$0xff]
  %v5057 = vld [vmem:[%s4593 + $0x320] sm:$0xff]
  %v5058 = vld [vmem:[%s4593 + $0x1] sm:$0xff]
  %v5059 = vld [vmem:[%s4593 + $0x9] sm:$0xff]
  %v5060 = vld [vmem:[%s4593 + $0x19] sm:$0xff]
  %v5061 = vld [vmem:[%s4593 + $0x21] sm:$0xff]
  %v5062 = vld [vmem:[%s4593 + $0x31] sm:$0xff]
  %v5063 = vld [vmem:[%s4593 + $0x39] sm:$0xff]
  %v5064 = vld [vmem:[%s4593 + $0x49] sm:$0xff]
  %v5065 = vld [vmem:[%s4593 + $0x51] sm:$0xff]
  %v5066 = vld [vmem:[%s4593 + $0x61] sm:$0xff]
  %v5067 = vld [vmem:[%s4593 + $0x69] sm:$0xff]
  %v5068 = vld [vmem:[%s4593 + $0x79] sm:$0xff]
  %v5069 = vld [vmem:[%s4593 + $0x81] sm:$0xff]
  %v5070 = vld [vmem:[%s4593 + $0x91] sm:$0xff]
  %v5071 = vld [vmem:[%s4593 + $0x99] sm:$0xff]
  %v5072 = vld [vmem:[%s4593 + $0xa9] sm:$0xff]
  %v5073 = vld [vmem:[%s4593 + $0xb1] sm:$0xff]
  %v5074 = vld [vmem:[%s4593 + $0xc1] sm:$0xff]
  %v5075 = vld [vmem:[%s4593 + $0xc9] sm:$0xff]
  %v5076 = vld [vmem:[%s4593 + $0xd9] sm:$0xff]
  %v5077 = vld [vmem:[%s4593 + $0xe1] sm:$0xff]
  %v5078 = vld [vmem:[%s4593 + $0xf1] sm:$0xff]
  %v5079 = vld [vmem:[%s4593 + $0xf9] sm:$0xff]
  %v5080 = vld [vmem:[%s4593 + $0x109] sm:$0xff]
  %v5081 = vld [vmem:[%s4593 + $0x111] sm:$0xff]
  %v5082 = vld [vmem:[%s4593 + $0x121] sm:$0xff]
  %v5083 = vld [vmem:[%s4593 + $0x129] sm:$0xff]
  %v5084 = vld [vmem:[%s4593 + $0x139] sm:$0xff]
  %v5085 = vld [vmem:[%s4593 + $0x141] sm:$0xff]
  %v5086 = vld [vmem:[%s4593 + $0x151] sm:$0xff]
  %v5087 = vld [vmem:[%s4593 + $0x159] sm:$0xff]
  %v5088 = vld [vmem:[%s4593 + $0x169] sm:$0xff]
  %v5089 = vld [vmem:[%s4593 + $0x171] sm:$0xff]
  %v5090 = vld [vmem:[%s4593 + $0x1b1] sm:$0xff]
  %v5091 = vld [vmem:[%s4593 + $0x1b9] sm:$0xff]
  %v5092 = vld [vmem:[%s4593 + $0x1c9] sm:$0xff]
  %v5093 = vld [vmem:[%s4593 + $0x1d1] sm:$0xff]
  %v5094 = vld [vmem:[%s4593 + $0x1e1] sm:$0xff]
  %v5095 = vld [vmem:[%s4593 + $0x1e9] sm:$0xff]
  %v5096 = vld [vmem:[%s4593 + $0x1f9] sm:$0xff]
  %v5097 = vld [vmem:[%s4593 + $0x201] sm:$0xff]
  %v5098 = vld [vmem:[%s4593 + $0x211] sm:$0xff]
  %v5099 = vld [vmem:[%s4593 + $0x219] sm:$0xff]
  %v5100 = vld [vmem:[%s4593 + $0x229] sm:$0xff]
  %v5101 = vld [vmem:[%s4593 + $0x231] sm:$0xff]
  %v5102 = vld [vmem:[%s4593 + $0x241] sm:$0xff]
  %v5103 = vld [vmem:[%s4593 + $0x249] sm:$0xff]
  %v5104 = vld [vmem:[%s4593 + $0x259] sm:$0xff]
  %v5105 = vld [vmem:[%s4593 + $0x261] sm:$0xff]
  %v5106 = vld [vmem:[%s4593 + $0x271] sm:$0xff]
  %v5107 = vld [vmem:[%s4593 + $0x279] sm:$0xff]
  %v5108 = vld [vmem:[%s4593 + $0x289] sm:$0xff]
  %v5109 = vld [vmem:[%s4593 + $0x291] sm:$0xff]
  %v5110 = vld [vmem:[%s4593 + $0x2a1] sm:$0xff]
  %v5111 = vld [vmem:[%s4593 + $0x2a9] sm:$0xff]
  %v5112 = vld [vmem:[%s4593 + $0x2b9] sm:$0xff]
  %v5113 = vld [vmem:[%s4593 + $0x2c1] sm:$0xff]
  %v5114 = vld [vmem:[%s4593 + $0x2d1] sm:$0xff]
  %v5115 = vld [vmem:[%s4593 + $0x2d9] sm:$0xff]
  %v5116 = vld [vmem:[%s4593 + $0x2e9] sm:$0xff]
  %v5117 = vld [vmem:[%s4593 + $0x2f1] sm:$0xff]
  %v5118 = vld [vmem:[%s4593 + $0x301] sm:$0xff]
  %v5119 = vld [vmem:[%s4593 + $0x309] sm:$0xff]
  %v5120 = vld [vmem:[%s4593 + $0x319] sm:$0xff]
  %v5121 = vld [vmem:[%s4593 + $0x321] sm:$0xff]
  %v5122 = vld [vmem:[%s4593 + $0x2] sm:$0xff]
  %v5123 = vld [vmem:[%s4593 + $0xa] sm:$0xff]
  %v5124 = vld [vmem:[%s4593 + $0x1a] sm:$0xff]
  %v5125 = vld [vmem:[%s4593 + $0x22] sm:$0xff]
  %v5126 = vld [vmem:[%s4593 + $0x32] sm:$0xff]
  %v5127 = vld [vmem:[%s4593 + $0x3a] sm:$0xff]
  %v5128 = vld [vmem:[%s4593 + $0x4a] sm:$0xff]
  %v5129 = vld [vmem:[%s4593 + $0x52] sm:$0xff]
  %v5130 = vld [vmem:[%s4593 + $0x62] sm:$0xff]
  %v5131 = vld [vmem:[%s4593 + $0x6a] sm:$0xff]
  %v5132 = vld [vmem:[%s4593 + $0x7a] sm:$0xff]
  %v5133 = vld [vmem:[%s4593 + $0x82] sm:$0xff]
  %v5134 = vld [vmem:[%s4593 + $0x92] sm:$0xff]
  %v5135 = vld [vmem:[%s4593 + $0x9a] sm:$0xff]
  %v5136 = vld [vmem:[%s4593 + $0xaa] sm:$0xff]
  %v5137 = vld [vmem:[%s4593 + $0xb2] sm:$0xff]
  %v5138 = vld [vmem:[%s4593 + $0xc2] sm:$0xff]
  %v5139 = vld [vmem:[%s4593 + $0xca] sm:$0xff]
  %v5140 = vld [vmem:[%s4593 + $0xda] sm:$0xff]
  %v5141 = vld [vmem:[%s4593 + $0xe2] sm:$0xff]
  %v5142 = vld [vmem:[%s4593 + $0xf2] sm:$0xff]
  %v5143 = vld [vmem:[%s4593 + $0xfa] sm:$0xff]
  %v5144 = vld [vmem:[%s4593 + $0x10a] sm:$0xff]
  %v5145 = vld [vmem:[%s4593 + $0x112] sm:$0xff]
  %v5146 = vld [vmem:[%s4593 + $0x122] sm:$0xff]
  %v5147 = vld [vmem:[%s4593 + $0x12a] sm:$0xff]
  %v5148 = vld [vmem:[%s4593 + $0x13a] sm:$0xff]
  %v5149 = vld [vmem:[%s4593 + $0x142] sm:$0xff]
  %v5150 = vld [vmem:[%s4593 + $0x152] sm:$0xff]
  %v5151 = vld [vmem:[%s4593 + $0x15a] sm:$0xff]
  %v5152 = vld [vmem:[%s4593 + $0x16a] sm:$0xff]
  %v5153 = vld [vmem:[%s4593 + $0x172] sm:$0xff]
  %v5154 = vld [vmem:[%s4593 + $0x1b2] sm:$0xff]
  %v5155 = vld [vmem:[%s4593 + $0x1ba] sm:$0xff]
  %v5156 = vld [vmem:[%s4593 + $0x1ca] sm:$0xff]
  %v5157 = vld [vmem:[%s4593 + $0x1d2] sm:$0xff]
  %v5158 = vld [vmem:[%s4593 + $0x1e2] sm:$0xff]
  %v5159 = vld [vmem:[%s4593 + $0x1ea] sm:$0xff]
  %v5160 = vld [vmem:[%s4593 + $0x1fa] sm:$0xff]
  %v5161 = vld [vmem:[%s4593 + $0x202] sm:$0xff]
  %v5162 = vld [vmem:[%s4593 + $0x212] sm:$0xff]
  %v5163 = vld [vmem:[%s4593 + $0x21a] sm:$0xff]
  %v5164 = vld [vmem:[%s4593 + $0x22a] sm:$0xff]
  %v5165 = vld [vmem:[%s4593 + $0x232] sm:$0xff]
  %v5166 = vld [vmem:[%s4593 + $0x242] sm:$0xff]
  %v5167 = vld [vmem:[%s4593 + $0x24a] sm:$0xff]
  %v5168 = vld [vmem:[%s4593 + $0x25a] sm:$0xff]
  %v5169 = vld [vmem:[%s4593 + $0x262] sm:$0xff]
  %v5170 = vld [vmem:[%s4593 + $0x272] sm:$0xff]
  %v5171 = vld [vmem:[%s4593 + $0x27a] sm:$0xff]
  %v5172 = vld [vmem:[%s4593 + $0x28a] sm:$0xff]
  %v5173 = vld [vmem:[%s4593 + $0x292] sm:$0xff]
  %v5174 = vld [vmem:[%s4593 + $0x2a2] sm:$0xff]
  %v5175 = vld [vmem:[%s4593 + $0x2aa] sm:$0xff]
  %v5176 = vld [vmem:[%s4593 + $0x2ba] sm:$0xff]
  %v5177 = vld [vmem:[%s4593 + $0x2c2] sm:$0xff]
  %v5178 = vld [vmem:[%s4593 + $0x2d2] sm:$0xff]
  %v5179 = vld [vmem:[%s4593 + $0x2da] sm:$0xff]
  %v5180 = vld [vmem:[%s4593 + $0x2ea] sm:$0xff]
  %v5181 = vld [vmem:[%s4593 + $0x2f2] sm:$0xff]
  %v5182 = vld [vmem:[%s4593 + $0x302] sm:$0xff]
  %v5183 = vld [vmem:[%s4593 + $0x30a] sm:$0xff]
  %v5184 = vld [vmem:[%s4593 + $0x31a] sm:$0xff]
  %v5185 = vld [vmem:[%s4593 + $0x322] sm:$0xff]
  %v5186 = vpack.c.bf16 %v4995, %v4994
  %v5187 = vpack.c.bf16 %v5059, %v5058
  %v5188 = vpack.c.bf16 %v5123, %v5122
  %v5189 = vpack.c.bf16 %v4997, %v4996
  %v5190 = vpack.c.bf16 %v5061, %v5060
  %v5191 = vpack.c.bf16 %v5125, %v5124
  %v5192 = vpack.c.bf16 %v4999, %v4998
  %v5193 = vpack.c.bf16 %v5063, %v5062
  %v5194 = vpack.c.bf16 %v5127, %v5126
  %v5195 = vpack.c.bf16 %v5001, %v5000
  %v5196 = vpack.c.bf16 %v5065, %v5064
  %v5197 = vpack.c.bf16 %v5129, %v5128
  %v5198 = vpack.c.bf16 %v5003, %v5002
  %v5199 = vpack.c.bf16 %v5067, %v5066
  %v5200 = vpack.c.bf16 %v5131, %v5130
  %v5201 = vpack.c.bf16 %v5005, %v5004
  %v5202 = vpack.c.bf16 %v5069, %v5068
  %v5203 = vpack.c.bf16 %v5133, %v5132
  %v5204 = vpack.c.bf16 %v5007, %v5006
  %v5205 = vpack.c.bf16 %v5071, %v5070
  %v5206 = vpack.c.bf16 %v5135, %v5134
  %v5207 = vpack.c.bf16 %v5009, %v5008
  %v5208 = vpack.c.bf16 %v5073, %v5072
  %v5209 = vpack.c.bf16 %v5137, %v5136
  %v5210 = vpack.c.bf16 %v5011, %v5010
  %v5211 = vpack.c.bf16 %v5075, %v5074
  %v5212 = vpack.c.bf16 %v5139, %v5138
  %v5213 = vpack.c.bf16 %v5013, %v5012
  %v5214 = vpack.c.bf16 %v5077, %v5076
  %v5215 = vpack.c.bf16 %v5141, %v5140
  %v5216 = vpack.c.bf16 %v5015, %v5014
  %v5217 = vpack.c.bf16 %v5079, %v5078
  %v5218 = vpack.c.bf16 %v5143, %v5142
  %v5219 = vpack.c.bf16 %v5017, %v5016
  %v5220 = vpack.c.bf16 %v5081, %v5080
  %v5221 = vpack.c.bf16 %v5145, %v5144
  %v5222 = vpack.c.bf16 %v5019, %v5018
  %v5223 = vpack.c.bf16 %v5083, %v5082
  %v5224 = vpack.c.bf16 %v5147, %v5146
  %v5225 = vpack.c.bf16 %v5021, %v5020
  %v5226 = vpack.c.bf16 %v5085, %v5084
  %v5227 = vpack.c.bf16 %v5149, %v5148
  %v5228 = vpack.c.bf16 %v5023, %v5022
  %v5229 = vpack.c.bf16 %v5087, %v5086
  %v5230 = vpack.c.bf16 %v5151, %v5150
  %v5231 = vpack.c.bf16 %v5025, %v5024
  %v5232 = vpack.c.bf16 %v5089, %v5088
  %v5233 = vpack.c.bf16 %v5153, %v5152
  %v5234 = vpack.c.bf16 %v5027, %v5026
  %v5235 = vpack.c.bf16 %v5091, %v5090
  %v5236 = vpack.c.bf16 %v5155, %v5154
  %v5237 = vpack.c.bf16 %v5029, %v5028
  %v5238 = vpack.c.bf16 %v5093, %v5092
  %v5239 = vpack.c.bf16 %v5157, %v5156
  %v5240 = vpack.c.bf16 %v5031, %v5030
  %v5241 = vpack.c.bf16 %v5095, %v5094
  %v5242 = vpack.c.bf16 %v5159, %v5158
  %v5243 = vpack.c.bf16 %v5033, %v5032
  %v5244 = vpack.c.bf16 %v5097, %v5096
  %v5245 = vpack.c.bf16 %v5161, %v5160
  %v5246 = vpack.c.bf16 %v5035, %v5034
  %v5247 = vpack.c.bf16 %v5099, %v5098
  %v5248 = vpack.c.bf16 %v5163, %v5162
  %v5249 = vpack.c.bf16 %v5037, %v5036
  %v5250 = vpack.c.bf16 %v5101, %v5100
  %v5251 = vpack.c.bf16 %v5165, %v5164
  %v5252 = vpack.c.bf16 %v5039, %v5038
  %v5253 = vpack.c.bf16 %v5103, %v5102
  %v5254 = vpack.c.bf16 %v5167, %v5166
  %v5255 = vpack.c.bf16 %v5041, %v5040
  %v5256 = vpack.c.bf16 %v5105, %v5104
  %v5257 = vpack.c.bf16 %v5169, %v5168
  %v5258 = vpack.c.bf16 %v5043, %v5042
  %v5259 = vpack.c.bf16 %v5107, %v5106
  %v5260 = vpack.c.bf16 %v5171, %v5170
  %v5261 = vpack.c.bf16 %v5045, %v5044
  %v5262 = vpack.c.bf16 %v5109, %v5108
  %v5263 = vpack.c.bf16 %v5173, %v5172
  %v5264 = vpack.c.bf16 %v5047, %v5046
  %v5265 = vpack.c.bf16 %v5111, %v5110
  %v5266 = vpack.c.bf16 %v5175, %v5174
  %v5267 = vpack.c.bf16 %v5049, %v5048
  %v5268 = vpack.c.bf16 %v5113, %v5112
  %v5269 = vpack.c.bf16 %v5177, %v5176
  %v5270 = vpack.c.bf16 %v5051, %v5050
  %v5271 = vpack.c.bf16 %v5115, %v5114
  %v5272 = vpack.c.bf16 %v5179, %v5178
  %v5273 = vpack.c.bf16 %v5053, %v5052
  %v5274 = vpack.c.bf16 %v5117, %v5116
  %v5275 = vpack.c.bf16 %v5181, %v5180
  %v5276 = vpack.c.bf16 %v5055, %v5054
  %v5277 = vpack.c.bf16 %v5119, %v5118
  %v5278 = vpack.c.bf16 %v5183, %v5182
  %v5279 = vpack.c.bf16 %v5057, %v5056
  %v5280 = vpack.c.bf16 %v5121, %v5120
  %v5281 = vpack.c.bf16 %v5185, %v5184
  %s5282 = scalar_lea.vmem %s8, 192
  %v5283 = vld [vmem:[%s5282] sm:$0xf]
  %v5284 = vld [vmem:[%s5282 + $0x4] sm:$0xf]
  %v5285 = vld [vmem:[%s5282 + $0x8] sm:$0xf]
  %v5286 = vld [vmem:[%s5282 + $0xc] sm:$0xf]
  %v5287 = vld [vmem:[%s5282 + $0x10] sm:$0xf]
  %v5288 = vld [vmem:[%s5282 + $0x14] sm:$0xf]
  %v5289 = vld [vmem:[%s5282 + $0x18] sm:$0xf]
  %v5290 = vld [vmem:[%s5282 + $0x1c] sm:$0xf]
  %v5291 = vld [vmem:[%s5282 + $0x20] sm:$0xf]
  %v5292 = vld [vmem:[%s5282 + $0x24] sm:$0xf]
  %v5293 = vld [vmem:[%s5282 + $0x28] sm:$0xf]
  %v5294 = vld [vmem:[%s5282 + $0x2c] sm:$0xf]
  %v5295 = vld [vmem:[%s5282 + $0x30] sm:$0xf]
  %v5296 = vld [vmem:[%s5282 + $0x34] sm:$0xf]
  %v5297 = vld [vmem:[%s5282 + $0x38] sm:$0xf]
  %v5298 = vld [vmem:[%s5282 + $0x3c] sm:$0xf]
  %v5299 = vld [vmem:[%s5282 + $0x40] sm:$0xf]
  %v5300 = vld [vmem:[%s5282 + $0x44] sm:$0xf]
  %v5301 = vld [vmem:[%s5282 + $0x48] sm:$0xf]
  %v5302 = vld [vmem:[%s5282 + $0x4c] sm:$0xf]
  %v5303 = vld [vmem:[%s5282 + $0x50] sm:$0xf]
  %v5304 = vld [vmem:[%s5282 + $0x54] sm:$0xf]
  %v5305 = vld [vmem:[%s5282 + $0x58] sm:$0xf]
  %v5306 = vld [vmem:[%s5282 + $0x5c] sm:$0xf]
  %v5307 = vld [vmem:[%s5282 + $0x60] sm:$0xf]
  %v5308 = vld [vmem:[%s5282 + $0x64] sm:$0xf]
  %v5309 = vld [vmem:[%s5282 + $0x68] sm:$0xf]
  %v5310 = vld [vmem:[%s5282 + $0x6c] sm:$0xf]
  %v5311 = vld [vmem:[%s5282 + $0x70] sm:$0xf]
  %v5312 = vld [vmem:[%s5282 + $0x74] sm:$0xf]
  %v5313 = vld [vmem:[%s5282 + $0x78] sm:$0xf]
  %v5314 = vld [vmem:[%s5282 + $0x7c] sm:$0xf]
  %v5315 = vld [vmem:[%s5282 + $0x80] sm:$0xf]
  %v5316 = vld [vmem:[%s5282 + $0x84] sm:$0xf]
  %v5317 = vld [vmem:[%s5282 + $0x88] sm:$0xf]
  %v5318 = vld [vmem:[%s5282 + $0x8c] sm:$0xf]
  %v5319 = vld [vmem:[%s5282 + $0x90] sm:$0xf]
  %v5320 = vld [vmem:[%s5282 + $0x94] sm:$0xf]
  %v5321 = vld [vmem:[%s5282 + $0x98] sm:$0xf]
  %v5322 = vld [vmem:[%s5282 + $0x9c] sm:$0xf]
  %v5323 = vld [vmem:[%s5282 + $0xa0] sm:$0xf]
  %v5324 = vld [vmem:[%s5282 + $0xa4] sm:$0xf]
  %v5325 = vld [vmem:[%s5282 + $0xa8] sm:$0xf]
  %v5326 = vld [vmem:[%s5282 + $0xac] sm:$0xf]
  %v5327 = vld [vmem:[%s5282 + $0xb0] sm:$0xf]
  %v5328 = vld [vmem:[%s5282 + $0xb4] sm:$0xf]
  %v5329 = vld [vmem:[%s5282 + $0xb8] sm:$0xf]
  %v5330 = vld [vmem:[%s5282 + $0xbc] sm:$0xf]
  %v5379 = vunpack.c.l.b16 %v5283
  %v5380 = vunpack.c.l.b16 %v5284
  %v5381 = vunpack.c.l.b16 %v5285
  %v5382 = vunpack.c.l.b16 %v5286
  %v5383 = vunpack.c.l.b16 %v5287
  %v5384 = vunpack.c.l.b16 %v5288
  %v5385 = vunpack.c.l.b16 %v5289
  %v5386 = vunpack.c.l.b16 %v5290
  %v5387 = vunpack.c.l.b16 %v5291
  %v5388 = vunpack.c.l.b16 %v5292
  %v5389 = vunpack.c.l.b16 %v5293
  %v5390 = vunpack.c.l.b16 %v5294
  %v5391 = vunpack.c.l.b16 %v5295
  %v5392 = vunpack.c.l.b16 %v5296
  %v5393 = vunpack.c.l.b16 %v5297
  %v5394 = vunpack.c.l.b16 %v5298
  %v5395 = vunpack.c.l.b16 %v5299
  %v5396 = vunpack.c.l.b16 %v5300
  %v5397 = vunpack.c.l.b16 %v5301
  %v5398 = vunpack.c.l.b16 %v5302
  %v5399 = vunpack.c.l.b16 %v5303
  %v5400 = vunpack.c.l.b16 %v5304
  %v5401 = vunpack.c.l.b16 %v5305
  %v5402 = vunpack.c.l.b16 %v5306
  %v5403 = vunpack.c.l.b16 %v5307
  %v5404 = vunpack.c.l.b16 %v5308
  %v5405 = vunpack.c.l.b16 %v5309
  %v5406 = vunpack.c.l.b16 %v5310
  %v5407 = vunpack.c.l.b16 %v5311
  %v5408 = vunpack.c.l.b16 %v5312
  %v5409 = vunpack.c.l.b16 %v5313
  %v5410 = vunpack.c.l.b16 %v5314
  %v5411 = vunpack.c.l.b16 %v5315
  %v5412 = vunpack.c.l.b16 %v5316
  %v5413 = vunpack.c.l.b16 %v5317
  %v5414 = vunpack.c.l.b16 %v5318
  %v5415 = vunpack.c.l.b16 %v5319
  %v5416 = vunpack.c.l.b16 %v5320
  %v5417 = vunpack.c.l.b16 %v5321
  %v5418 = vunpack.c.l.b16 %v5322
  %v5419 = vunpack.c.l.b16 %v5323
  %v5420 = vunpack.c.l.b16 %v5324
  %v5421 = vunpack.c.l.b16 %v5325
  %v5422 = vunpack.c.l.b16 %v5326
  %v5423 = vunpack.c.l.b16 %v5327
  %v5424 = vunpack.c.l.b16 %v5328
  %v5425 = vunpack.c.l.b16 %v5329
  %v5426 = vunpack.c.l.b16 %v5330
  %v5427 = vpack.c.b16 %v5380, %v5379
  %v5428 = vpack.c.b16 %v5382, %v5381
  %v5429 = vpack.c.b16 %v5384, %v5383
  %v5430 = vpack.c.b16 %v5386, %v5385
  %v5431 = vpack.c.b16 %v5388, %v5387
  %v5432 = vpack.c.b16 %v5390, %v5389
  %v5433 = vpack.c.b16 %v5392, %v5391
  %v5434 = vpack.c.b16 %v5394, %v5393
  %v5435 = vpack.c.b16 %v5396, %v5395
  %v5436 = vpack.c.b16 %v5398, %v5397
  %v5437 = vpack.c.b16 %v5400, %v5399
  %v5438 = vpack.c.b16 %v5402, %v5401
  %v5439 = vpack.c.b16 %v5404, %v5403
  %v5440 = vpack.c.b16 %v5406, %v5405
  %v5441 = vpack.c.b16 %v5408, %v5407
  %v5442 = vpack.c.b16 %v5410, %v5409
  %v5443 = vpack.c.b16 %v5412, %v5411
  %v5444 = vpack.c.b16 %v5414, %v5413
  %v5445 = vpack.c.b16 %v5416, %v5415
  %v5446 = vpack.c.b16 %v5418, %v5417
  %v5447 = vpack.c.b16 %v5420, %v5419
  %v5448 = vpack.c.b16 %v5422, %v5421
  %v5449 = vpack.c.b16 %v5424, %v5423
  %v5450 = vpack.c.b16 %v5426, %v5425
  %5475 = vmatprep.subr.bf16.mxu0 0
  %5476 = vmatpush1.bf16.msra.mxu0 %v5427
  %5477 = vmatprep.subr.bf16.mxu0 0
  %5478 = vmatpush1.bf16.msra.mxu0 %v5428
  %5479 = vmatprep.subr.bf16.mxu0 0
  %5480 = vmatpush1.bf16.msra.mxu0 %v5429
  %5481 = vmatprep.subr.bf16.mxu0 0
  %5482 = vmatpush1.bf16.msra.mxu0 %v5430
  %5483 = vmatprep.subr.bf16.mxu0 0
  %5484 = vmatpush1.bf16.msra.mxu0 %v5431
  %5485 = vmatprep.subr.bf16.mxu0 0
  %5486 = vmatpush1.bf16.msra.mxu0 %v5432
  %5487 = vmatprep.subr.bf16.mxu0 0
  %5488 = vmatpush1.bf16.msra.mxu0 %v5433
  %5489 = vmatprep.subr.bf16.mxu0 0
  %5490 = vmatpush1.bf16.msra.mxu0 %v5434
  %5491 = vmatprep.subr.bf16.mxu0 0
  %5492 = vmatpush1.bf16.msra.mxu0 %v5435
  %5493 = vmatprep.subr.bf16.mxu0 0
  %5494 = vmatpush1.bf16.msra.mxu0 %v5436
  %5495 = vmatprep.subr.bf16.mxu0 0
  %5496 = vmatpush1.bf16.msra.mxu0 %v5437
  %5497 = vmatprep.subr.bf16.mxu0 0
  %5498 = vmatpush1.bf16.msra.mxu0 %v5438
  %5499 = vmatprep.subr.bf16.mxu0 0
  %5500 = vmatpush1.bf16.msra.mxu0 %v5439
  %5501 = vmatprep.subr.bf16.mxu0 0
  %5502 = vmatpush1.bf16.msra.mxu0 %v5440
  %5503 = vmatprep.subr.bf16.mxu0 0
  %5504 = vmatpush1.bf16.msra.mxu0 %v5441
  %5505 = vmatprep.subr.bf16.mxu0 0
  %5506 = vmatpush1.bf16.msra.mxu0 %v5442
  %5507 = vmatprep.mubr.bf16.mxu0 %v5187
  %5508 = vmatmul.mubr.bf16.gmra.mrb[0].mxu0 %v5186
  %v5509 = vpop.f32.mrb[0].mxu0
  %v5510 = vadd.f32 0.0, %v5509
  %v5511 = vpop.f32.mrb[0].mxu0
  %v5512 = vpop.f32.mrb[0].mxu0
  %v5513 = vadd.f32 0.0, %v5512
  %v5514 = vpop.f32.mrb[0].mxu0
  %5515 = vmatprep.mubr.bf16.mxu0 %v5190
  %5516 = vmatmul.mubr.bf16.gmra.mrb[0].mxu0 %v5189
  %v5517 = vpop.f32.mrb[0].mxu0
  %v5518 = vadd.f32 0.0, %v5517
  %v5519 = vpop.f32.mrb[0].mxu0
  %v5520 = vpop.f32.mrb[0].mxu0
  %v5521 = vadd.f32 0.0, %v5520
  %v5522 = vpop.f32.mrb[0].mxu0
  %5523 = vmatprep.mubr.bf16.mxu0 %v5193
  %5524 = vmatmul.mubr.bf16.gmra.mrb[0].mxu0 %v5192
  %v5525 = vpop.f32.mrb[0].mxu0
  %v5526 = vadd.f32 0.0, %v5525
  %v5527 = vpop.f32.mrb[0].mxu0
  %v5528 = vpop.f32.mrb[0].mxu0
  %v5529 = vadd.f32 0.0, %v5528
  %v5530 = vpop.f32.mrb[0].mxu0
  %5531 = vmatprep.mubr.bf16.mxu0 %v5196
  %5532 = vmatmul.mubr.bf16.gmra.mrb[0].mxu0 %v5195
  %v5533 = vpop.f32.mrb[0].mxu0
  %v5534 = vadd.f32 0.0, %v5533
  %v5535 = vpop.f32.mrb[0].mxu0
  %v5536 = vpop.f32.mrb[0].mxu0
  %v5537 = vadd.f32 0.0, %v5536
  %v5538 = vpop.f32.mrb[0].mxu0
  %5539 = vmatprep.mubr.bf16.mxu0 %v5199
  %5540 = vmatmul.mubr.bf16.gmra.mrb[0].mxu0 %v5198
  %v5541 = vpop.f32.mrb[0].mxu0
  %v5542 = vadd.f32 0.0, %v5541
  %v5543 = vpop.f32.mrb[0].mxu0
  %v5544 = vpop.f32.mrb[0].mxu0
  %v5545 = vadd.f32 0.0, %v5544
  %v5546 = vpop.f32.mrb[0].mxu0
  %5547 = vmatprep.mubr.bf16.mxu0 %v5202
  %5548 = vmatmul.mubr.bf16.gmra.mrb[0].mxu0 %v5201
  %v5549 = vpop.f32.mrb[0].mxu0
  %v5550 = vadd.f32 0.0, %v5549
  %v5551 = vpop.f32.mrb[0].mxu0
  %v5552 = vpop.f32.mrb[0].mxu0
  %v5553 = vadd.f32 0.0, %v5552
  %v5554 = vpop.f32.mrb[0].mxu0
  %5555 = vmatprep.mubr.bf16.mxu0 %v5205
  %5556 = vmatmul.mubr.bf16.gmra.mrb[0].mxu0 %v5204
  %v5557 = vpop.f32.mrb[0].mxu0
  %v5558 = vadd.f32 0.0, %v5557
  %v5559 = vpop.f32.mrb[0].mxu0
  %v5560 = vpop.f32.mrb[0].mxu0
  %v5561 = vadd.f32 0.0, %v5560
  %v5562 = vpop.f32.mrb[0].mxu0
  %5563 = vmatprep.mubr.bf16.mxu0 %v5208
  %5564 = vmatmul.mubr.bf16.gmra.mrb[0].mxu0 %v5207
  %v5565 = vpop.f32.mrb[0].mxu0
  %v5566 = vadd.f32 0.0, %v5565
  %v5567 = vpop.f32.mrb[0].mxu0
  %v5568 = vpop.f32.mrb[0].mxu0
  %v5569 = vadd.f32 0.0, %v5568
  %v5570 = vpop.f32.mrb[0].mxu0
  %5571 = vmatprep.mubr.bf16.mxu0 %v5211
  %5572 = vmatmul.mubr.bf16.gmra.mrb[0].mxu0 %v5210
  %v5573 = vpop.f32.mrb[0].mxu0
  %v5574 = vadd.f32 0.0, %v5573
  %v5575 = vpop.f32.mrb[0].mxu0
  %v5576 = vpop.f32.mrb[0].mxu0
  %v5577 = vadd.f32 0.0, %v5576
  %v5578 = vpop.f32.mrb[0].mxu0
  %5579 = vmatprep.mubr.bf16.mxu0 %v5214
  %5580 = vmatmul.mubr.bf16.gmra.mrb[0].mxu0 %v5213
  %v5581 = vpop.f32.mrb[0].mxu0
  %v5582 = vadd.f32 0.0, %v5581
  %v5583 = vpop.f32.mrb[0].mxu0
  %v5584 = vpop.f32.mrb[0].mxu0
  %v5585 = vadd.f32 0.0, %v5584
  %v5586 = vpop.f32.mrb[0].mxu0
  %5587 = vmatprep.mubr.bf16.mxu0 %v5217
  %5588 = vmatmul.mubr.bf16.gmra.mrb[0].mxu0 %v5216
  %v5589 = vpop.f32.mrb[0].mxu0
  %v5590 = vadd.f32 0.0, %v5589
  %v5591 = vpop.f32.mrb[0].mxu0
  %v5592 = vpop.f32.mrb[0].mxu0
  %v5593 = vadd.f32 0.0, %v5592
  %v5594 = vpop.f32.mrb[0].mxu0
  %5595 = vmatprep.mubr.bf16.mxu0 %v5220
  %5596 = vmatmul.mubr.bf16.gmra.mrb[0].mxu0 %v5219
  %v5597 = vpop.f32.mrb[0].mxu0
  %v5598 = vadd.f32 0.0, %v5597
  %v5599 = vpop.f32.mrb[0].mxu0
  %v5600 = vpop.f32.mrb[0].mxu0
  %v5601 = vadd.f32 0.0, %v5600
  %v5602 = vpop.f32.mrb[0].mxu0
  %5603 = vmatprep.mubr.bf16.mxu0 %v5223
  %5604 = vmatmul.mubr.bf16.gmra.mrb[0].mxu0 %v5222
  %v5605 = vpop.f32.mrb[0].mxu0
  %v5606 = vadd.f32 0.0, %v5605
  %v5607 = vpop.f32.mrb[0].mxu0
  %v5608 = vpop.f32.mrb[0].mxu0
  %v5609 = vadd.f32 0.0, %v5608
  %v5610 = vpop.f32.mrb[0].mxu0
  %5611 = vmatprep.mubr.bf16.mxu0 %v5226
  %5612 = vmatmul.mubr.bf16.gmra.mrb[0].mxu0 %v5225
  %v5613 = vpop.f32.mrb[0].mxu0
  %v5614 = vadd.f32 0.0, %v5613
  %v5615 = vpop.f32.mrb[0].mxu0
  %v5616 = vpop.f32.mrb[0].mxu0
  %v5617 = vadd.f32 0.0, %v5616
  %v5618 = vpop.f32.mrb[0].mxu0
  %5619 = vmatprep.mubr.bf16.mxu0 %v5229
  %5620 = vmatmul.mubr.bf16.gmra.mrb[0].mxu0 %v5228
  %v5621 = vpop.f32.mrb[0].mxu0
  %v5622 = vadd.f32 0.0, %v5621
  %v5623 = vpop.f32.mrb[0].mxu0
  %v5624 = vpop.f32.mrb[0].mxu0
  %v5625 = vadd.f32 0.0, %v5624
  %v5626 = vpop.f32.mrb[0].mxu0
  %5627 = vmatprep.mubr.bf16.mxu0 %v5232
  %5628 = vmatmul.mubr.bf16.gmra.mrb[0].mxu0 %v5231
  %v5629 = vpop.f32.mrb[0].mxu0
  %v5630 = vadd.f32 0.0, %v5629
  %v5631 = vpop.f32.mrb[0].mxu0
  %v5632 = vpop.f32.mrb[0].mxu0
  %v5633 = vadd.f32 0.0, %v5632
  %v5634 = vpop.f32.mrb[0].mxu0
  %5635 = vmatprep.mubr.bf16.mxu0 %v5235
  %5636 = vmatmul.mubr.bf16.gmra.mrb[0].mxu0 %v5234
  %v5637 = vpop.f32.mrb[0].mxu0
  %v5638 = vadd.f32 0.0, %v5637
  %v5639 = vpop.f32.mrb[0].mxu0
  %v5640 = vpop.f32.mrb[0].mxu0
  %v5641 = vadd.f32 0.0, %v5640
  %v5642 = vpop.f32.mrb[0].mxu0
  %5643 = vmatprep.mubr.bf16.mxu0 %v5238
  %5644 = vmatmul.mubr.bf16.gmra.mrb[0].mxu0 %v5237
  %v5645 = vpop.f32.mrb[0].mxu0
  %v5646 = vadd.f32 0.0, %v5645
  %v5647 = vpop.f32.mrb[0].mxu0
  %v5648 = vpop.f32.mrb[0].mxu0
  %v5649 = vadd.f32 0.0, %v5648
  %v5650 = vpop.f32.mrb[0].mxu0
  %5651 = vmatprep.mubr.bf16.mxu0 %v5241
  %5652 = vmatmul.mubr.bf16.gmra.mrb[0].mxu0 %v5240
  %v5653 = vpop.f32.mrb[0].mxu0
  %v5654 = vadd.f32 0.0, %v5653
  %v5655 = vpop.f32.mrb[0].mxu0
  %v5656 = vpop.f32.mrb[0].mxu0
  %v5657 = vadd.f32 0.0, %v5656
  %v5658 = vpop.f32.mrb[0].mxu0
  %5659 = vmatprep.mubr.bf16.mxu0 %v5244
  %5660 = vmatmul.mubr.bf16.gmra.mrb[0].mxu0 %v5243
  %v5661 = vpop.f32.mrb[0].mxu0
  %v5662 = vadd.f32 0.0, %v5661
  %v5663 = vpop.f32.mrb[0].mxu0
  %v5664 = vpop.f32.mrb[0].mxu0
  %v5665 = vadd.f32 0.0, %v5664
  %v5666 = vpop.f32.mrb[0].mxu0
  %5667 = vmatprep.mubr.bf16.mxu0 %v5247
  %5668 = vmatmul.mubr.bf16.gmra.mrb[0].mxu0 %v5246
  %v5669 = vpop.f32.mrb[0].mxu0
  %v5670 = vadd.f32 0.0, %v5669
  %v5671 = vpop.f32.mrb[0].mxu0
  %v5672 = vpop.f32.mrb[0].mxu0
  %v5673 = vadd.f32 0.0, %v5672
  %v5674 = vpop.f32.mrb[0].mxu0
  %5675 = vmatprep.mubr.bf16.mxu0 %v5250
  %5676 = vmatmul.mubr.bf16.gmra.mrb[0].mxu0 %v5249
  %v5677 = vpop.f32.mrb[0].mxu0
  %v5678 = vadd.f32 0.0, %v5677
  %v5679 = vpop.f32.mrb[0].mxu0
  %v5680 = vpop.f32.mrb[0].mxu0
  %v5681 = vadd.f32 0.0, %v5680
  %v5682 = vpop.f32.mrb[0].mxu0
  %5683 = vmatprep.mubr.bf16.mxu0 %v5253
  %5684 = vmatmul.mubr.bf16.gmra.mrb[0].mxu0 %v5252
  %v5685 = vpop.f32.mrb[0].mxu0
  %v5686 = vadd.f32 0.0, %v5685
  %v5687 = vpop.f32.mrb[0].mxu0
  %v5688 = vpop.f32.mrb[0].mxu0
  %v5689 = vadd.f32 0.0, %v5688
  %v5690 = vpop.f32.mrb[0].mxu0
  %5691 = vmatprep.mubr.bf16.mxu0 %v5256
  %5692 = vmatmul.mubr.bf16.gmra.mrb[0].mxu0 %v5255
  %v5693 = vpop.f32.mrb[0].mxu0
  %v5694 = vadd.f32 0.0, %v5693
  %v5695 = vpop.f32.mrb[0].mxu0
  %v5696 = vpop.f32.mrb[0].mxu0
  %v5697 = vadd.f32 0.0, %v5696
  %v5698 = vpop.f32.mrb[0].mxu0
  %5699 = vmatprep.mubr.bf16.mxu0 %v5259
  %5700 = vmatmul.mubr.bf16.gmra.mrb[0].mxu0 %v5258
  %v5701 = vpop.f32.mrb[0].mxu0
  %v5702 = vadd.f32 0.0, %v5701
  %v5703 = vpop.f32.mrb[0].mxu0
  %v5704 = vpop.f32.mrb[0].mxu0
  %v5705 = vadd.f32 0.0, %v5704
  %v5706 = vpop.f32.mrb[0].mxu0
  %5707 = vmatprep.mubr.bf16.mxu0 %v5262
  %5708 = vmatmul.mubr.bf16.gmra.mrb[0].mxu0 %v5261
  %v5709 = vpop.f32.mrb[0].mxu0
  %v5710 = vadd.f32 0.0, %v5709
  %v5711 = vpop.f32.mrb[0].mxu0
  %v5712 = vpop.f32.mrb[0].mxu0
  %v5713 = vadd.f32 0.0, %v5712
  %v5714 = vpop.f32.mrb[0].mxu0
  %5715 = vmatprep.mubr.bf16.mxu0 %v5265
  %5716 = vmatmul.mubr.bf16.gmra.mrb[0].mxu0 %v5264
  %v5717 = vpop.f32.mrb[0].mxu0
  %v5718 = vadd.f32 0.0, %v5717
  %v5719 = vpop.f32.mrb[0].mxu0
  %v5720 = vpop.f32.mrb[0].mxu0
  %v5721 = vadd.f32 0.0, %v5720
  %v5722 = vpop.f32.mrb[0].mxu0
  %5723 = vmatprep.mubr.bf16.mxu0 %v5268
  %5724 = vmatmul.mubr.bf16.gmra.mrb[0].mxu0 %v5267
  %v5725 = vpop.f32.mrb[0].mxu0
  %v5726 = vadd.f32 0.0, %v5725
  %v5727 = vpop.f32.mrb[0].mxu0
  %v5728 = vpop.f32.mrb[0].mxu0
  %v5729 = vadd.f32 0.0, %v5728
  %v5730 = vpop.f32.mrb[0].mxu0
  %5731 = vmatprep.mubr.bf16.mxu0 %v5271
  %5732 = vmatmul.mubr.bf16.gmra.mrb[0].mxu0 %v5270
  %v5733 = vpop.f32.mrb[0].mxu0
  %v5734 = vadd.f32 0.0, %v5733
  %v5735 = vpop.f32.mrb[0].mxu0
  %v5736 = vpop.f32.mrb[0].mxu0
  %v5737 = vadd.f32 0.0, %v5736
  %v5738 = vpop.f32.mrb[0].mxu0
  %5739 = vmatprep.mubr.bf16.mxu0 %v5274
  %5740 = vmatmul.mubr.bf16.gmra.mrb[0].mxu0 %v5273
  %v5741 = vpop.f32.mrb[0].mxu0
  %v5742 = vadd.f32 0.0, %v5741
  %v5743 = vpop.f32.mrb[0].mxu0
  %v5744 = vpop.f32.mrb[0].mxu0
  %v5745 = vadd.f32 0.0, %v5744
  %v5746 = vpop.f32.mrb[0].mxu0
  %5747 = vmatprep.mubr.bf16.mxu0 %v5277
  %5748 = vmatmul.mubr.bf16.gmra.mrb[0].mxu0 %v5276
  %v5749 = vpop.f32.mrb[0].mxu0
  %v5750 = vadd.f32 0.0, %v5749
  %v5751 = vpop.f32.mrb[0].mxu0
  %v5752 = vpop.f32.mrb[0].mxu0
  %v5753 = vadd.f32 0.0, %v5752
  %v5754 = vpop.f32.mrb[0].mxu0
  %5755 = vmatprep.mubr.bf16.mxu0 %v5280
  %5756 = vmatmul.mubr.bf16.gmra.mrb[0].mxu0 %v5279
  %v5757 = vpop.f32.mrb[0].mxu0
  %v5758 = vadd.f32 0.0, %v5757
  %v5759 = vpop.f32.mrb[0].mxu0
  %v5760 = vpop.f32.mrb[0].mxu0
  %v5761 = vadd.f32 0.0, %v5760
  %v5762 = vpop.f32.mrb[0].mxu0
  %5763 = vdwg.mxu0
  %5764 = vmatprep.subr.bf16.mxu0 0
  %5765 = vmatpush1.bf16.msra.mxu0 %v5443
  %5766 = vmatprep.subr.bf16.mxu0 0
  %5767 = vmatpush1.bf16.msra.mxu0 %v5444
  %5768 = vmatprep.subr.bf16.mxu0 0
  %5769 = vmatpush1.bf16.msra.mxu0 %v5445
  %5770 = vmatprep.subr.bf16.mxu0 0
  %5771 = vmatpush1.bf16.msra.mxu0 %v5446
  %5772 = vmatprep.subr.bf16.mxu0 0
  %5773 = vmatpush1.bf16.msra.mxu0 %v5447
  %5774 = vmatprep.subr.bf16.mxu0 0
  %5775 = vmatpush1.bf16.msra.mxu0 %v5448
  %5776 = vmatprep.subr.bf16.mxu0 0
  %5777 = vmatpush1.bf16.msra.mxu0 %v5449
  %5778 = vmatprep.subr.bf16.mxu0 0
  %5779 = vmatpush1.bf16.msra.mxu0 %v5450
  %5780 = vmatprep.subr.bf16.mxu0 0
  %5781 = vmatpush1.bf16.msra.mxu0 0
  %5782 = vmatprep.subr.bf16.mxu0 0
  %5783 = vmatpush1.bf16.msra.mxu0 0
  %5784 = vmatprep.subr.bf16.mxu0 0
  %5785 = vmatpush1.bf16.msra.mxu0 0
  %5786 = vmatprep.subr.bf16.mxu0 0
  %5787 = vmatpush1.bf16.msra.mxu0 0
  %5788 = vmatprep.subr.bf16.mxu0 0
  %5789 = vmatpush1.bf16.msra.mxu0 0
  %5790 = vmatprep.subr.bf16.mxu0 0
  %5791 = vmatpush1.bf16.msra.mxu0 0
  %5792 = vmatprep.subr.bf16.mxu0 0
  %5793 = vmatpush1.bf16.msra.mxu0 0
  %5794 = vmatprep.subr.bf16.mxu0 0
  %5795 = vmatpush1.bf16.msra.mxu0 0
  %5796 = vmatprep.mubr.bf16.mxu0 0
  %5797 = vmatmul.mubr.bf16.gmra.mrb[0].mxu0 %v5188
  %v5798 = vpop.f32.mrb[0].mxu0
  %v5799 = vadd.f32 %v5510, %v5798
  %v5800 = vpop.f32.mrb[0].mxu0
  %v5801 = vpop.f32.mrb[0].mxu0
  %v5802 = vadd.f32 %v5513, %v5801
  %v5803 = vpop.f32.mrb[0].mxu0
  %5804 = vmatprep.mubr.bf16.mxu0 0
  %5805 = vmatmul.mubr.bf16.gmra.mrb[0].mxu0 %v5191
  %v5806 = vpop.f32.mrb[0].mxu0
  %v5807 = vadd.f32 %v5518, %v5806
  %v5808 = vpop.f32.mrb[0].mxu0
  %v5809 = vpop.f32.mrb[0].mxu0
  %v5810 = vadd.f32 %v5521, %v5809
  %v5811 = vpop.f32.mrb[0].mxu0
  %5812 = vmatprep.mubr.bf16.mxu0 0
  %5813 = vmatmul.mubr.bf16.gmra.mrb[0].mxu0 %v5194
  %v5814 = vpop.f32.mrb[0].mxu0
  %v5815 = vadd.f32 %v5526, %v5814
  %v5816 = vpop.f32.mrb[0].mxu0
  %v5817 = vpop.f32.mrb[0].mxu0
  %v5818 = vadd.f32 %v5529, %v5817
  %v5819 = vpop.f32.mrb[0].mxu0
  %5820 = vmatprep.mubr.bf16.mxu0 0
  %5821 = vmatmul.mubr.bf16.gmra.mrb[0].mxu0 %v5197
  %v5822 = vpop.f32.mrb[0].mxu0
  %v5823 = vadd.f32 %v5534, %v5822
  %v5824 = vpop.f32.mrb[0].mxu0
  %v5825 = vpop.f32.mrb[0].mxu0
  %v5826 = vadd.f32 %v5537, %v5825
  %v5827 = vpop.f32.mrb[0].mxu0
  %5828 = vmatprep.mubr.bf16.mxu0 0
  %5829 = vmatmul.mubr.bf16.gmra.mrb[0].mxu0 %v5200
  %v5830 = vpop.f32.mrb[0].mxu0
  %v5831 = vadd.f32 %v5542, %v5830
  %v5832 = vpop.f32.mrb[0].mxu0
  %v5833 = vpop.f32.mrb[0].mxu0
  %v5834 = vadd.f32 %v5545, %v5833
  %v5835 = vpop.f32.mrb[0].mxu0
  %5836 = vmatprep.mubr.bf16.mxu0 0
  %5837 = vmatmul.mubr.bf16.gmra.mrb[0].mxu0 %v5203
  %v5838 = vpop.f32.mrb[0].mxu0
  %v5839 = vadd.f32 %v5550, %v5838
  %v5840 = vpop.f32.mrb[0].mxu0
  %v5841 = vpop.f32.mrb[0].mxu0
  %v5842 = vadd.f32 %v5553, %v5841
  %v5843 = vpop.f32.mrb[0].mxu0
  %5844 = vmatprep.mubr.bf16.mxu0 0
  %5845 = vmatmul.mubr.bf16.gmra.mrb[0].mxu0 %v5206
  %v5846 = vpop.f32.mrb[0].mxu0
  %v5847 = vadd.f32 %v5558, %v5846
  %v5848 = vpop.f32.mrb[0].mxu0
  %v5849 = vpop.f32.mrb[0].mxu0
  %v5850 = vadd.f32 %v5561, %v5849
  %v5851 = vpop.f32.mrb[0].mxu0
  %5852 = vmatprep.mubr.bf16.mxu0 0
  %5853 = vmatmul.mubr.bf16.gmra.mrb[0].mxu0 %v5209
  %v5854 = vpop.f32.mrb[0].mxu0
  %v5855 = vadd.f32 %v5566, %v5854
  %v5856 = vpop.f32.mrb[0].mxu0
  %v5857 = vpop.f32.mrb[0].mxu0
  %v5858 = vadd.f32 %v5569, %v5857
  %v5859 = vpop.f32.mrb[0].mxu0
  %5860 = vmatprep.mubr.bf16.mxu0 0
  %5861 = vmatmul.mubr.bf16.gmra.mrb[0].mxu0 %v5212
  %v5862 = vpop.f32.mrb[0].mxu0
  %v5863 = vadd.f32 %v5574, %v5862
  %v5864 = vpop.f32.mrb[0].mxu0
  %v5865 = vpop.f32.mrb[0].mxu0
  %v5866 = vadd.f32 %v5577, %v5865
  %v5867 = vpop.f32.mrb[0].mxu0
  %5868 = vmatprep.mubr.bf16.mxu0 0
  %5869 = vmatmul.mubr.bf16.gmra.mrb[0].mxu0 %v5215
  %v5870 = vpop.f32.mrb[0].mxu0
  %v5871 = vadd.f32 %v5582, %v5870
  %v5872 = vpop.f32.mrb[0].mxu0
  %v5873 = vpop.f32.mrb[0].mxu0
  %v5874 = vadd.f32 %v5585, %v5873
  %v5875 = vpop.f32.mrb[0].mxu0
  %5876 = vmatprep.mubr.bf16.mxu0 0
  %5877 = vmatmul.mubr.bf16.gmra.mrb[0].mxu0 %v5218
  %v5878 = vpop.f32.mrb[0].mxu0
  %v5879 = vadd.f32 %v5590, %v5878
  %v5880 = vpop.f32.mrb[0].mxu0
  %v5881 = vpop.f32.mrb[0].mxu0
  %v5882 = vadd.f32 %v5593, %v5881
  %v5883 = vpop.f32.mrb[0].mxu0
  %5884 = vmatprep.mubr.bf16.mxu0 0
  %5885 = vmatmul.mubr.bf16.gmra.mrb[0].mxu0 %v5221
  %v5886 = vpop.f32.mrb[0].mxu0
  %v5887 = vadd.f32 %v5598, %v5886
  %v5888 = vpop.f32.mrb[0].mxu0
  %v5889 = vpop.f32.mrb[0].mxu0
  %v5890 = vadd.f32 %v5601, %v5889
  %v5891 = vpop.f32.mrb[0].mxu0
  %5892 = vmatprep.mubr.bf16.mxu0 0
  %5893 = vmatmul.mubr.bf16.gmra.mrb[0].mxu0 %v5224
  %v5894 = vpop.f32.mrb[0].mxu0
  %v5895 = vadd.f32 %v5606, %v5894
  %v5896 = vpop.f32.mrb[0].mxu0
  %v5897 = vpop.f32.mrb[0].mxu0
  %v5898 = vadd.f32 %v5609, %v5897
  %v5899 = vpop.f32.mrb[0].mxu0
  %5900 = vmatprep.mubr.bf16.mxu0 0
  %5901 = vmatmul.mubr.bf16.gmra.mrb[0].mxu0 %v5227
  %v5902 = vpop.f32.mrb[0].mxu0
  %v5903 = vadd.f32 %v5614, %v5902
  %v5904 = vpop.f32.mrb[0].mxu0
  %v5905 = vpop.f32.mrb[0].mxu0
  %v5906 = vadd.f32 %v5617, %v5905
  %v5907 = vpop.f32.mrb[0].mxu0
  %5908 = vmatprep.mubr.bf16.mxu0 0
  %5909 = vmatmul.mubr.bf16.gmra.mrb[0].mxu0 %v5230
  %v5910 = vpop.f32.mrb[0].mxu0
  %v5911 = vadd.f32 %v5622, %v5910
  %v5912 = vpop.f32.mrb[0].mxu0
  %v5913 = vpop.f32.mrb[0].mxu0
  %v5914 = vadd.f32 %v5625, %v5913
  %v5915 = vpop.f32.mrb[0].mxu0
  %5916 = vmatprep.mubr.bf16.mxu0 0
  %5917 = vmatmul.mubr.bf16.gmra.mrb[0].mxu0 %v5233
  %v5918 = vpop.f32.mrb[0].mxu0
  %v5919 = vadd.f32 %v5630, %v5918
  %v5920 = vpop.f32.mrb[0].mxu0
  %v5921 = vpop.f32.mrb[0].mxu0
  %v5922 = vadd.f32 %v5633, %v5921
  %v5923 = vpop.f32.mrb[0].mxu0
  %5924 = vmatprep.mubr.bf16.mxu0 0
  %5925 = vmatmul.mubr.bf16.gmra.mrb[0].mxu0 %v5236
  %v5926 = vpop.f32.mrb[0].mxu0
  %v5927 = vadd.f32 %v5638, %v5926
  %v5928 = vpop.f32.mrb[0].mxu0
  %v5929 = vpop.f32.mrb[0].mxu0
  %v5930 = vadd.f32 %v5641, %v5929
  %v5931 = vpop.f32.mrb[0].mxu0
  %5932 = vmatprep.mubr.bf16.mxu0 0
  %5933 = vmatmul.mubr.bf16.gmra.mrb[0].mxu0 %v5239
  %v5934 = vpop.f32.mrb[0].mxu0
  %v5935 = vadd.f32 %v5646, %v5934
  %v5936 = vpop.f32.mrb[0].mxu0
  %v5937 = vpop.f32.mrb[0].mxu0
  %v5938 = vadd.f32 %v5649, %v5937
  %v5939 = vpop.f32.mrb[0].mxu0
  %5940 = vmatprep.mubr.bf16.mxu0 0
  %5941 = vmatmul.mubr.bf16.gmra.mrb[0].mxu0 %v5242
  %v5942 = vpop.f32.mrb[0].mxu0
  %v5943 = vadd.f32 %v5654, %v5942
  %v5944 = vpop.f32.mrb[0].mxu0
  %v5945 = vpop.f32.mrb[0].mxu0
  %v5946 = vadd.f32 %v5657, %v5945
  %v5947 = vpop.f32.mrb[0].mxu0
  %5948 = vmatprep.mubr.bf16.mxu0 0
  %5949 = vmatmul.mubr.bf16.gmra.mrb[0].mxu0 %v5245
  %v5950 = vpop.f32.mrb[0].mxu0
  %v5951 = vadd.f32 %v5662, %v5950
  %v5952 = vpop.f32.mrb[0].mxu0
  %v5953 = vpop.f32.mrb[0].mxu0
  %v5954 = vadd.f32 %v5665, %v5953
  %v5955 = vpop.f32.mrb[0].mxu0
  %5956 = vmatprep.mubr.bf16.mxu0 0
  %5957 = vmatmul.mubr.bf16.gmra.mrb[0].mxu0 %v5248
  %v5958 = vpop.f32.mrb[0].mxu0
  %v5959 = vadd.f32 %v5670, %v5958
  %v5960 = vpop.f32.mrb[0].mxu0
  %v5961 = vpop.f32.mrb[0].mxu0
  %v5962 = vadd.f32 %v5673, %v5961
  %v5963 = vpop.f32.mrb[0].mxu0
  %5964 = vmatprep.mubr.bf16.mxu0 0
  %5965 = vmatmul.mubr.bf16.gmra.mrb[0].mxu0 %v5251
  %v5966 = vpop.f32.mrb[0].mxu0
  %v5967 = vadd.f32 %v5678, %v5966
  %v5968 = vpop.f32.mrb[0].mxu0
  %v5969 = vpop.f32.mrb[0].mxu0
  %v5970 = vadd.f32 %v5681, %v5969
  %v5971 = vpop.f32.mrb[0].mxu0
  %5972 = vmatprep.mubr.bf16.mxu0 0
  %5973 = vmatmul.mubr.bf16.gmra.mrb[0].mxu0 %v5254
  %v5974 = vpop.f32.mrb[0].mxu0
  %v5975 = vadd.f32 %v5686, %v5974
  %v5976 = vpop.f32.mrb[0].mxu0
  %v5977 = vpop.f32.mrb[0].mxu0
  %v5978 = vadd.f32 %v5689, %v5977
  %v5979 = vpop.f32.mrb[0].mxu0
  %5980 = vmatprep.mubr.bf16.mxu0 0
  %5981 = vmatmul.mubr.bf16.gmra.mrb[0].mxu0 %v5257
  %v5982 = vpop.f32.mrb[0].mxu0
  %v5983 = vadd.f32 %v5694, %v5982
  %v5984 = vpop.f32.mrb[0].mxu0
  %v5985 = vpop.f32.mrb[0].mxu0
  %v5986 = vadd.f32 %v5697, %v5985
  %v5987 = vpop.f32.mrb[0].mxu0
  %5988 = vmatprep.mubr.bf16.mxu0 0
  %5989 = vmatmul.mubr.bf16.gmra.mrb[0].mxu0 %v5260
  %v5990 = vpop.f32.mrb[0].mxu0
  %v5991 = vadd.f32 %v5702, %v5990
  %v5992 = vpop.f32.mrb[0].mxu0
  %v5993 = vpop.f32.mrb[0].mxu0
  %v5994 = vadd.f32 %v5705, %v5993
  %v5995 = vpop.f32.mrb[0].mxu0
  %5996 = vmatprep.mubr.bf16.mxu0 0
  %5997 = vmatmul.mubr.bf16.gmra.mrb[0].mxu0 %v5263
  %v5998 = vpop.f32.mrb[0].mxu0
  %v5999 = vadd.f32 %v5710, %v5998
  %v6000 = vpop.f32.mrb[0].mxu0
  %v6001 = vpop.f32.mrb[0].mxu0
  %v6002 = vadd.f32 %v5713, %v6001
  %v6003 = vpop.f32.mrb[0].mxu0
  %6004 = vmatprep.mubr.bf16.mxu0 0
  %6005 = vmatmul.mubr.bf16.gmra.mrb[0].mxu0 %v5266
  %v6006 = vpop.f32.mrb[0].mxu0
  %v6007 = vadd.f32 %v5718, %v6006
  %v6008 = vpop.f32.mrb[0].mxu0
  %v6009 = vpop.f32.mrb[0].mxu0
  %v6010 = vadd.f32 %v5721, %v6009
  %v6011 = vpop.f32.mrb[0].mxu0
  %6012 = vmatprep.mubr.bf16.mxu0 0
  %6013 = vmatmul.mubr.bf16.gmra.mrb[0].mxu0 %v5269
  %v6014 = vpop.f32.mrb[0].mxu0
  %v6015 = vadd.f32 %v5726, %v6014
  %v6016 = vpop.f32.mrb[0].mxu0
  %v6017 = vpop.f32.mrb[0].mxu0
  %v6018 = vadd.f32 %v5729, %v6017
  %v6019 = vpop.f32.mrb[0].mxu0
  %6020 = vmatprep.mubr.bf16.mxu0 0
  %6021 = vmatmul.mubr.bf16.gmra.mrb[0].mxu0 %v5272
  %v6022 = vpop.f32.mrb[0].mxu0
  %v6023 = vadd.f32 %v5734, %v6022
  %v6024 = vpop.f32.mrb[0].mxu0
  %v6025 = vpop.f32.mrb[0].mxu0
  %v6026 = vadd.f32 %v5737, %v6025
  %v6027 = vpop.f32.mrb[0].mxu0
  %6028 = vmatprep.mubr.bf16.mxu0 0
  %6029 = vmatmul.mubr.bf16.gmra.mrb[0].mxu0 %v5275
  %v6030 = vpop.f32.mrb[0].mxu0
  %v6031 = vadd.f32 %v5742, %v6030
  %v6032 = vpop.f32.mrb[0].mxu0
  %v6033 = vpop.f32.mrb[0].mxu0
  %v6034 = vadd.f32 %v5745, %v6033
  %v6035 = vpop.f32.mrb[0].mxu0
  %6036 = vmatprep.mubr.bf16.mxu0 0
  %6037 = vmatmul.mubr.bf16.gmra.mrb[0].mxu0 %v5278
  %v6038 = vpop.f32.mrb[0].mxu0
  %v6039 = vadd.f32 %v5750, %v6038
  %v6040 = vpop.f32.mrb[0].mxu0
  %v6041 = vpop.f32.mrb[0].mxu0
  %v6042 = vadd.f32 %v5753, %v6041
  %v6043 = vpop.f32.mrb[0].mxu0
  %6044 = vmatprep.mubr.bf16.mxu0 0
  %6045 = vmatmul.mubr.bf16.gmra.mrb[0].mxu0 %v5281
  %v6046 = vpop.f32.mrb[0].mxu0
  %v6047 = vadd.f32 %v5758, %v6046
  %v6048 = vpop.f32.mrb[0].mxu0
  %v6049 = vpop.f32.mrb[0].mxu0
  %v6050 = vadd.f32 %v5761, %v6049
  %v6051 = vpop.f32.mrb[0].mxu0
  %6052 = vdwg.mxu0
  %v6101 = vunpack.c.l.b16 %v4946
  %v6102 = vunpack.c.l.b16 %v4947
  %v6103 = vunpack.c.l.b16 %v4948
  %v6104 = vunpack.c.l.b16 %v4949
  %v6105 = vunpack.c.l.b16 %v4950
  %v6106 = vunpack.c.l.b16 %v4951
  %v6107 = vunpack.c.l.b16 %v4952
  %v6108 = vunpack.c.l.b16 %v4953
  %v6109 = vunpack.c.l.b16 %v4954
  %v6110 = vunpack.c.l.b16 %v4955
  %v6111 = vunpack.c.l.b16 %v4956
  %v6112 = vunpack.c.l.b16 %v4957
  %v6113 = vunpack.c.l.b16 %v4958
  %v6114 = vunpack.c.l.b16 %v4959
  %v6115 = vunpack.c.l.b16 %v4960
  %v6116 = vunpack.c.l.b16 %v4961
  %v6117 = vunpack.c.l.b16 %v4962
  %v6118 = vunpack.c.l.b16 %v4963
  %v6119 = vunpack.c.l.b16 %v4964
  %v6120 = vunpack.c.l.b16 %v4965
  %v6121 = vunpack.c.l.b16 %v4966
  %v6122 = vunpack.c.l.b16 %v4967
  %v6123 = vunpack.c.l.b16 %v4968
  %v6124 = vunpack.c.l.b16 %v4969
  %v6125 = vunpack.c.l.b16 %v4970
  %v6126 = vunpack.c.l.b16 %v4971
  %v6127 = vunpack.c.l.b16 %v4972
  %v6128 = vunpack.c.l.b16 %v4973
  %v6129 = vunpack.c.l.b16 %v4974
  %v6130 = vunpack.c.l.b16 %v4975
  %v6131 = vunpack.c.l.b16 %v4976
  %v6132 = vunpack.c.l.b16 %v4977
  %v6133 = vunpack.c.l.b16 %v4978
  %v6134 = vunpack.c.l.b16 %v4979
  %v6135 = vunpack.c.l.b16 %v4980
  %v6136 = vunpack.c.l.b16 %v4981
  %v6137 = vunpack.c.l.b16 %v4982
  %v6138 = vunpack.c.l.b16 %v4983
  %v6139 = vunpack.c.l.b16 %v4984
  %v6140 = vunpack.c.l.b16 %v4985
  %v6141 = vunpack.c.l.b16 %v4986
  %v6142 = vunpack.c.l.b16 %v4987
  %v6143 = vunpack.c.l.b16 %v4988
  %v6144 = vunpack.c.l.b16 %v4989
  %v6145 = vunpack.c.l.b16 %v4990
  %v6146 = vunpack.c.l.b16 %v4991
  %v6147 = vunpack.c.l.b16 %v4992
  %v6148 = vunpack.c.l.b16 %v4993
  %v6149 = vpack.c.b16 %v6102, %v6101
  %v6150 = vpack.c.b16 %v6104, %v6103
  %v6151 = vpack.c.b16 %v6106, %v6105
  %v6152 = vpack.c.b16 %v6108, %v6107
  %v6153 = vpack.c.b16 %v6110, %v6109
  %v6154 = vpack.c.b16 %v6112, %v6111
  %v6155 = vpack.c.b16 %v6114, %v6113
  %v6156 = vpack.c.b16 %v6116, %v6115
  %v6157 = vpack.c.b16 %v6118, %v6117
  %v6158 = vpack.c.b16 %v6120, %v6119
  %v6159 = vpack.c.b16 %v6122, %v6121
  %v6160 = vpack.c.b16 %v6124, %v6123
  %v6161 = vpack.c.b16 %v6126, %v6125
  %v6162 = vpack.c.b16 %v6128, %v6127
  %v6163 = vpack.c.b16 %v6130, %v6129
  %v6164 = vpack.c.b16 %v6132, %v6131
  %v6165 = vpack.c.b16 %v6134, %v6133
  %v6166 = vpack.c.b16 %v6136, %v6135
  %v6167 = vpack.c.b16 %v6138, %v6137
  %v6168 = vpack.c.b16 %v6140, %v6139
  %v6169 = vpack.c.b16 %v6142, %v6141
  %v6170 = vpack.c.b16 %v6144, %v6143
  %v6171 = vpack.c.b16 %v6146, %v6145
  %v6172 = vpack.c.b16 %v6148, %v6147
  %6197 = vmatprep.subr.bf16.mxu0 0
  %6198 = vmatpush1.bf16.msra.mxu0 %v6149
  %6199 = vmatprep.subr.bf16.mxu0 0
  %6200 = vmatpush1.bf16.msra.mxu0 %v6150
  %6201 = vmatprep.subr.bf16.mxu0 0
  %6202 = vmatpush1.bf16.msra.mxu0 %v6151
  %6203 = vmatprep.subr.bf16.mxu0 0
  %6204 = vmatpush1.bf16.msra.mxu0 %v6152
  %6205 = vmatprep.subr.bf16.mxu0 0
  %6206 = vmatpush1.bf16.msra.mxu0 %v6153
  %6207 = vmatprep.subr.bf16.mxu0 0
  %6208 = vmatpush1.bf16.msra.mxu0 %v6154
  %6209 = vmatprep.subr.bf16.mxu0 0
  %6210 = vmatpush1.bf16.msra.mxu0 %v6155
  %6211 = vmatprep.subr.bf16.mxu0 0
  %6212 = vmatpush1.bf16.msra.mxu0 %v6156
  %6213 = vmatprep.subr.bf16.mxu0 0
  %6214 = vmatpush1.bf16.msra.mxu0 %v6157
  %6215 = vmatprep.subr.bf16.mxu0 0
  %6216 = vmatpush1.bf16.msra.mxu0 %v6158
  %6217 = vmatprep.subr.bf16.mxu0 0
  %6218 = vmatpush1.bf16.msra.mxu0 %v6159
  %6219 = vmatprep.subr.bf16.mxu0 0
  %6220 = vmatpush1.bf16.msra.mxu0 %v6160
  %6221 = vmatprep.subr.bf16.mxu0 0
  %6222 = vmatpush1.bf16.msra.mxu0 %v6161
  %6223 = vmatprep.subr.bf16.mxu0 0
  %6224 = vmatpush1.bf16.msra.mxu0 %v6162
  %6225 = vmatprep.subr.bf16.mxu0 0
  %6226 = vmatpush1.bf16.msra.mxu0 %v6163
  %6227 = vmatprep.subr.bf16.mxu0 0
  %6228 = vmatpush1.bf16.msra.mxu0 %v6164
  %6229 = vmatprep.mubr.bf16.mxu0 %v4851
  %6230 = vmatmul.mubr.bf16.gmra.mrb[0].mxu0 %v4850
  %v6231 = vpop.f32.mrb[0].mxu0
  %v6232 = vadd.f32 %v5799, %v6231
  %v6233 = vpop.f32.mrb[0].mxu0
  %v6234 = vpop.f32.mrb[0].mxu0
  %v6235 = vadd.f32 %v5802, %v6234
  %v6236 = vpop.f32.mrb[0].mxu0
  %6237 = vmatprep.mubr.bf16.mxu0 %v4854
  %6238 = vmatmul.mubr.bf16.gmra.mrb[0].mxu0 %v4853
  %v6239 = vpop.f32.mrb[0].mxu0
  %v6240 = vadd.f32 %v5807, %v6239
  %v6241 = vpop.f32.mrb[0].mxu0
  %v6242 = vpop.f32.mrb[0].mxu0
  %v6243 = vadd.f32 %v5810, %v6242
  %v6244 = vpop.f32.mrb[0].mxu0
  %6245 = vmatprep.mubr.bf16.mxu0 %v4857
  %6246 = vmatmul.mubr.bf16.gmra.mrb[0].mxu0 %v4856
  %v6247 = vpop.f32.mrb[0].mxu0
  %v6248 = vadd.f32 %v5815, %v6247
  %v6249 = vpop.f32.mrb[0].mxu0
  %v6250 = vpop.f32.mrb[0].mxu0
  %v6251 = vadd.f32 %v5818, %v6250
  %v6252 = vpop.f32.mrb[0].mxu0
  %6253 = vmatprep.mubr.bf16.mxu0 %v4860
  %6254 = vmatmul.mubr.bf16.gmra.mrb[0].mxu0 %v4859
  %v6255 = vpop.f32.mrb[0].mxu0
  %v6256 = vadd.f32 %v5823, %v6255
  %v6257 = vpop.f32.mrb[0].mxu0
  %v6258 = vpop.f32.mrb[0].mxu0
  %v6259 = vadd.f32 %v5826, %v6258
  %v6260 = vpop.f32.mrb[0].mxu0
  %6261 = vmatprep.mubr.bf16.mxu0 %v4863
  %6262 = vmatmul.mubr.bf16.gmra.mrb[0].mxu0 %v4862
  %v6263 = vpop.f32.mrb[0].mxu0
  %v6264 = vadd.f32 %v5831, %v6263
  %v6265 = vpop.f32.mrb[0].mxu0
  %v6266 = vpop.f32.mrb[0].mxu0
  %v6267 = vadd.f32 %v5834, %v6266
  %v6268 = vpop.f32.mrb[0].mxu0
  %6269 = vmatprep.mubr.bf16.mxu0 %v4866
  %6270 = vmatmul.mubr.bf16.gmra.mrb[0].mxu0 %v4865
  %v6271 = vpop.f32.mrb[0].mxu0
  %v6272 = vadd.f32 %v5839, %v6271
  %v6273 = vpop.f32.mrb[0].mxu0
  %v6274 = vpop.f32.mrb[0].mxu0
  %v6275 = vadd.f32 %v5842, %v6274
  %v6276 = vpop.f32.mrb[0].mxu0
  %6277 = vmatprep.mubr.bf16.mxu0 %v4869
  %6278 = vmatmul.mubr.bf16.gmra.mrb[0].mxu0 %v4868
  %v6279 = vpop.f32.mrb[0].mxu0
  %v6280 = vadd.f32 %v5847, %v6279
  %v6281 = vpop.f32.mrb[0].mxu0
  %v6282 = vpop.f32.mrb[0].mxu0
  %v6283 = vadd.f32 %v5850, %v6282
  %v6284 = vpop.f32.mrb[0].mxu0
  %6285 = vmatprep.mubr.bf16.mxu0 %v4872
  %6286 = vmatmul.mubr.bf16.gmra.mrb[0].mxu0 %v4871
  %v6287 = vpop.f32.mrb[0].mxu0
  %v6288 = vadd.f32 %v5855, %v6287
  %v6289 = vpop.f32.mrb[0].mxu0
  %v6290 = vpop.f32.mrb[0].mxu0
  %v6291 = vadd.f32 %v5858, %v6290
  %v6292 = vpop.f32.mrb[0].mxu0
  %6293 = vmatprep.mubr.bf16.mxu0 %v4875
  %6294 = vmatmul.mubr.bf16.gmra.mrb[0].mxu0 %v4874
  %v6295 = vpop.f32.mrb[0].mxu0
  %v6296 = vadd.f32 %v5863, %v6295
  %v6297 = vpop.f32.mrb[0].mxu0
  %v6298 = vpop.f32.mrb[0].mxu0
  %v6299 = vadd.f32 %v5866, %v6298
  %v6300 = vpop.f32.mrb[0].mxu0
  %6301 = vmatprep.mubr.bf16.mxu0 %v4878
  %6302 = vmatmul.mubr.bf16.gmra.mrb[0].mxu0 %v4877
  %v6303 = vpop.f32.mrb[0].mxu0
  %v6304 = vadd.f32 %v5871, %v6303
  %v6305 = vpop.f32.mrb[0].mxu0
  %v6306 = vpop.f32.mrb[0].mxu0
  %v6307 = vadd.f32 %v5874, %v6306
  %v6308 = vpop.f32.mrb[0].mxu0
  %6309 = vmatprep.mubr.bf16.mxu0 %v4881
  %6310 = vmatmul.mubr.bf16.gmra.mrb[0].mxu0 %v4880
  %v6311 = vpop.f32.mrb[0].mxu0
  %v6312 = vadd.f32 %v5879, %v6311
  %v6313 = vpop.f32.mrb[0].mxu0
  %v6314 = vpop.f32.mrb[0].mxu0
  %v6315 = vadd.f32 %v5882, %v6314
  %v6316 = vpop.f32.mrb[0].mxu0
  %6317 = vmatprep.mubr.bf16.mxu0 %v4884
  %6318 = vmatmul.mubr.bf16.gmra.mrb[0].mxu0 %v4883
  %v6319 = vpop.f32.mrb[0].mxu0
  %v6320 = vadd.f32 %v5887, %v6319
  %v6321 = vpop.f32.mrb[0].mxu0
  %v6322 = vpop.f32.mrb[0].mxu0
  %v6323 = vadd.f32 %v5890, %v6322
  %v6324 = vpop.f32.mrb[0].mxu0
  %6325 = vmatprep.mubr.bf16.mxu0 %v4887
  %6326 = vmatmul.mubr.bf16.gmra.mrb[0].mxu0 %v4886
  %v6327 = vpop.f32.mrb[0].mxu0
  %v6328 = vadd.f32 %v5895, %v6327
  %v6329 = vpop.f32.mrb[0].mxu0
  %v6330 = vpop.f32.mrb[0].mxu0
  %v6331 = vadd.f32 %v5898, %v6330
  %v6332 = vpop.f32.mrb[0].mxu0
  %6333 = vmatprep.mubr.bf16.mxu0 %v4890
  %6334 = vmatmul.mubr.bf16.gmra.mrb[0].mxu0 %v4889
  %v6335 = vpop.f32.mrb[0].mxu0
  %v6336 = vadd.f32 %v5903, %v6335
  %v6337 = vpop.f32.mrb[0].mxu0
  %v6338 = vpop.f32.mrb[0].mxu0
  %v6339 = vadd.f32 %v5906, %v6338
  %v6340 = vpop.f32.mrb[0].mxu0
  %6341 = vmatprep.mubr.bf16.mxu0 %v4893
  %6342 = vmatmul.mubr.bf16.gmra.mrb[0].mxu0 %v4892
  %v6343 = vpop.f32.mrb[0].mxu0
  %v6344 = vadd.f32 %v5911, %v6343
  %v6345 = vpop.f32.mrb[0].mxu0
  %v6346 = vpop.f32.mrb[0].mxu0
  %v6347 = vadd.f32 %v5914, %v6346
  %v6348 = vpop.f32.mrb[0].mxu0
  %6349 = vmatprep.mubr.bf16.mxu0 %v4896
  %6350 = vmatmul.mubr.bf16.gmra.mrb[0].mxu0 %v4895
  %v6351 = vpop.f32.mrb[0].mxu0
  %v6352 = vadd.f32 %v5919, %v6351
  %v6353 = vpop.f32.mrb[0].mxu0
  %v6354 = vpop.f32.mrb[0].mxu0
  %v6355 = vadd.f32 %v5922, %v6354
  %v6356 = vpop.f32.mrb[0].mxu0
  %6357 = vmatprep.mubr.bf16.mxu0 %v4899
  %6358 = vmatmul.mubr.bf16.gmra.mrb[0].mxu0 %v4898
  %v6359 = vpop.f32.mrb[0].mxu0
  %v6360 = vadd.f32 %v5927, %v6359
  %v6361 = vpop.f32.mrb[0].mxu0
  %v6362 = vpop.f32.mrb[0].mxu0
  %v6363 = vadd.f32 %v5930, %v6362
  %v6364 = vpop.f32.mrb[0].mxu0
  %6365 = vmatprep.mubr.bf16.mxu0 %v4902
  %6366 = vmatmul.mubr.bf16.gmra.mrb[0].mxu0 %v4901
  %v6367 = vpop.f32.mrb[0].mxu0
  %v6368 = vadd.f32 %v5935, %v6367
  %v6369 = vpop.f32.mrb[0].mxu0
  %v6370 = vpop.f32.mrb[0].mxu0
  %v6371 = vadd.f32 %v5938, %v6370
  %v6372 = vpop.f32.mrb[0].mxu0
  %6373 = vmatprep.mubr.bf16.mxu0 %v4905
  %6374 = vmatmul.mubr.bf16.gmra.mrb[0].mxu0 %v4904
  %v6375 = vpop.f32.mrb[0].mxu0
  %v6376 = vadd.f32 %v5943, %v6375
  %v6377 = vpop.f32.mrb[0].mxu0
  %v6378 = vpop.f32.mrb[0].mxu0
  %v6379 = vadd.f32 %v5946, %v6378
  %v6380 = vpop.f32.mrb[0].mxu0
  %6381 = vmatprep.mubr.bf16.mxu0 %v4908
  %6382 = vmatmul.mubr.bf16.gmra.mrb[0].mxu0 %v4907
  %v6383 = vpop.f32.mrb[0].mxu0
  %v6384 = vadd.f32 %v5951, %v6383
  %v6385 = vpop.f32.mrb[0].mxu0
  %v6386 = vpop.f32.mrb[0].mxu0
  %v6387 = vadd.f32 %v5954, %v6386
  %v6388 = vpop.f32.mrb[0].mxu0
  %6389 = vmatprep.mubr.bf16.mxu0 %v4911
  %6390 = vmatmul.mubr.bf16.gmra.mrb[0].mxu0 %v4910
  %v6391 = vpop.f32.mrb[0].mxu0
  %v6392 = vadd.f32 %v5959, %v6391
  %v6393 = vpop.f32.mrb[0].mxu0
  %v6394 = vpop.f32.mrb[0].mxu0
  %v6395 = vadd.f32 %v5962, %v6394
  %v6396 = vpop.f32.mrb[0].mxu0
  %6397 = vmatprep.mubr.bf16.mxu0 %v4914
  %6398 = vmatmul.mubr.bf16.gmra.mrb[0].mxu0 %v4913
  %v6399 = vpop.f32.mrb[0].mxu0
  %v6400 = vadd.f32 %v5967, %v6399
  %v6401 = vpop.f32.mrb[0].mxu0
  %v6402 = vpop.f32.mrb[0].mxu0
  %v6403 = vadd.f32 %v5970, %v6402
  %v6404 = vpop.f32.mrb[0].mxu0
  %6405 = vmatprep.mubr.bf16.mxu0 %v4917
  %6406 = vmatmul.mubr.bf16.gmra.mrb[0].mxu0 %v4916
  %v6407 = vpop.f32.mrb[0].mxu0
  %v6408 = vadd.f32 %v5975, %v6407
  %v6409 = vpop.f32.mrb[0].mxu0
  %v6410 = vpop.f32.mrb[0].mxu0
  %v6411 = vadd.f32 %v5978, %v6410
  %v6412 = vpop.f32.mrb[0].mxu0
  %6413 = vmatprep.mubr.bf16.mxu0 %v4920
  %6414 = vmatmul.mubr.bf16.gmra.mrb[0].mxu0 %v4919
  %v6415 = vpop.f32.mrb[0].mxu0
  %v6416 = vadd.f32 %v5983, %v6415
  %v6417 = vpop.f32.mrb[0].mxu0
  %v6418 = vpop.f32.mrb[0].mxu0
  %v6419 = vadd.f32 %v5986, %v6418
  %v6420 = vpop.f32.mrb[0].mxu0
  %6421 = vmatprep.mubr.bf16.mxu0 %v4923
  %6422 = vmatmul.mubr.bf16.gmra.mrb[0].mxu0 %v4922
  %v6423 = vpop.f32.mrb[0].mxu0
  %v6424 = vadd.f32 %v5991, %v6423
  %v6425 = vpop.f32.mrb[0].mxu0
  %v6426 = vpop.f32.mrb[0].mxu0
  %v6427 = vadd.f32 %v5994, %v6426
  %v6428 = vpop.f32.mrb[0].mxu0
  %6429 = vmatprep.mubr.bf16.mxu0 %v4926
  %6430 = vmatmul.mubr.bf16.gmra.mrb[0].mxu0 %v4925
  %v6431 = vpop.f32.mrb[0].mxu0
  %v6432 = vadd.f32 %v5999, %v6431
  %v6433 = vpop.f32.mrb[0].mxu0
  %v6434 = vpop.f32.mrb[0].mxu0
  %v6435 = vadd.f32 %v6002, %v6434
  %v6436 = vpop.f32.mrb[0].mxu0
  %6437 = vmatprep.mubr.bf16.mxu0 %v4929
  %6438 = vmatmul.mubr.bf16.gmra.mrb[0].mxu0 %v4928
  %v6439 = vpop.f32.mrb[0].mxu0
  %v6440 = vadd.f32 %v6007, %v6439
  %v6441 = vpop.f32.mrb[0].mxu0
  %v6442 = vpop.f32.mrb[0].mxu0
  %v6443 = vadd.f32 %v6010, %v6442
  %v6444 = vpop.f32.mrb[0].mxu0
  %6445 = vmatprep.mubr.bf16.mxu0 %v4932
  %6446 = vmatmul.mubr.bf16.gmra.mrb[0].mxu0 %v4931
  %v6447 = vpop.f32.mrb[0].mxu0
  %v6448 = vadd.f32 %v6015, %v6447
  %v6449 = vpop.f32.mrb[0].mxu0
  %v6450 = vpop.f32.mrb[0].mxu0
  %v6451 = vadd.f32 %v6018, %v6450
  %v6452 = vpop.f32.mrb[0].mxu0
  %6453 = vmatprep.mubr.bf16.mxu0 %v4935
  %6454 = vmatmul.mubr.bf16.gmra.mrb[0].mxu0 %v4934
  %v6455 = vpop.f32.mrb[0].mxu0
  %v6456 = vadd.f32 %v6023, %v6455
  %v6457 = vpop.f32.mrb[0].mxu0
  %v6458 = vpop.f32.mrb[0].mxu0
  %v6459 = vadd.f32 %v6026, %v6458
  %v6460 = vpop.f32.mrb[0].mxu0
  %6461 = vmatprep.mubr.bf16.mxu0 %v4938
  %6462 = vmatmul.mubr.bf16.gmra.mrb[0].mxu0 %v4937
  %v6463 = vpop.f32.mrb[0].mxu0
  %v6464 = vadd.f32 %v6031, %v6463
  %v6465 = vpop.f32.mrb[0].mxu0
  %v6466 = vpop.f32.mrb[0].mxu0
  %v6467 = vadd.f32 %v6034, %v6466
  %v6468 = vpop.f32.mrb[0].mxu0
  %6469 = vmatprep.mubr.bf16.mxu0 %v4941
  %6470 = vmatmul.mubr.bf16.gmra.mrb[0].mxu0 %v4940
  %v6471 = vpop.f32.mrb[0].mxu0
  %v6472 = vadd.f32 %v6039, %v6471
  %v6473 = vpop.f32.mrb[0].mxu0
  %v6474 = vpop.f32.mrb[0].mxu0
  %v6475 = vadd.f32 %v6042, %v6474
  %v6476 = vpop.f32.mrb[0].mxu0
  %6477 = vmatprep.mubr.bf16.mxu0 %v4944
  %6478 = vmatmul.mubr.bf16.gmra.mrb[0].mxu0 %v4943
  %v6479 = vpop.f32.mrb[0].mxu0
  %v6480 = vadd.f32 %v6047, %v6479
  %v6481 = vpop.f32.mrb[0].mxu0
  %v6482 = vpop.f32.mrb[0].mxu0
  %v6483 = vadd.f32 %v6050, %v6482
  %v6484 = vpop.f32.mrb[0].mxu0
  %6485 = vdwg.mxu0
  %6486 = vmatprep.subr.bf16.mxu0 0
  %6487 = vmatpush1.bf16.msra.mxu0 %v6165
  %6488 = vmatprep.subr.bf16.mxu0 0
  %6489 = vmatpush1.bf16.msra.mxu0 %v6166
  %6490 = vmatprep.subr.bf16.mxu0 0
  %6491 = vmatpush1.bf16.msra.mxu0 %v6167
  %6492 = vmatprep.subr.bf16.mxu0 0
  %6493 = vmatpush1.bf16.msra.mxu0 %v6168
  %6494 = vmatprep.subr.bf16.mxu0 0
  %6495 = vmatpush1.bf16.msra.mxu0 %v6169
  %6496 = vmatprep.subr.bf16.mxu0 0
  %6497 = vmatpush1.bf16.msra.mxu0 %v6170
  %6498 = vmatprep.subr.bf16.mxu0 0
  %6499 = vmatpush1.bf16.msra.mxu0 %v6171
  %6500 = vmatprep.subr.bf16.mxu0 0
  %6501 = vmatpush1.bf16.msra.mxu0 %v6172
  %6502 = vmatprep.subr.bf16.mxu0 0
  %6503 = vmatpush1.bf16.msra.mxu0 0
  %6504 = vmatprep.subr.bf16.mxu0 0
  %6505 = vmatpush1.bf16.msra.mxu0 0
  %6506 = vmatprep.subr.bf16.mxu0 0
  %6507 = vmatpush1.bf16.msra.mxu0 0
  %6508 = vmatprep.subr.bf16.mxu0 0
  %6509 = vmatpush1.bf16.msra.mxu0 0
  %6510 = vmatprep.subr.bf16.mxu0 0
  %6511 = vmatpush1.bf16.msra.mxu0 0
  %6512 = vmatprep.subr.bf16.mxu0 0
  %6513 = vmatpush1.bf16.msra.mxu0 0
  %6514 = vmatprep.subr.bf16.mxu0 0
  %6515 = vmatpush1.bf16.msra.mxu0 0
  %6516 = vmatprep.subr.bf16.mxu0 0
  %6517 = vmatpush1.bf16.msra.mxu0 0
  %6518 = vmatprep.mubr.bf16.mxu0 0
  %6519 = vmatmul.mubr.bf16.gmra.mrb[0].mxu0 %v4852
  %v6520 = vpop.f32.mrb[0].mxu0
  %v6521 = vadd.f32 %v6232, %v6520
  %v6522 = vpop.f32.mrb[0].mxu0
  %v6523 = vpop.f32.mrb[0].mxu0
  %v6524 = vadd.f32 %v6235, %v6523
  %v6525 = vpop.f32.mrb[0].mxu0
  %6526 = vmatprep.mubr.bf16.mxu0 0
  %6527 = vmatmul.mubr.bf16.gmra.mrb[0].mxu0 %v4855
  %v6528 = vpop.f32.mrb[0].mxu0
  %v6529 = vadd.f32 %v6240, %v6528
  %v6530 = vpop.f32.mrb[0].mxu0
  %v6531 = vpop.f32.mrb[0].mxu0
  %v6532 = vadd.f32 %v6243, %v6531
  %v6533 = vpop.f32.mrb[0].mxu0
  %6534 = vmatprep.mubr.bf16.mxu0 0
  %6535 = vmatmul.mubr.bf16.gmra.mrb[0].mxu0 %v4858
  %v6536 = vpop.f32.mrb[0].mxu0
  %v6537 = vadd.f32 %v6248, %v6536
  %v6538 = vpop.f32.mrb[0].mxu0
  %v6539 = vpop.f32.mrb[0].mxu0
  %v6540 = vadd.f32 %v6251, %v6539
  %v6541 = vpop.f32.mrb[0].mxu0
  %6542 = vmatprep.mubr.bf16.mxu0 0
  %6543 = vmatmul.mubr.bf16.gmra.mrb[0].mxu0 %v4861
  %v6544 = vpop.f32.mrb[0].mxu0
  %v6545 = vadd.f32 %v6256, %v6544
  %v6546 = vpop.f32.mrb[0].mxu0
  %v6547 = vpop.f32.mrb[0].mxu0
  %v6548 = vadd.f32 %v6259, %v6547
  %v6549 = vpop.f32.mrb[0].mxu0
  %6550 = vmatprep.mubr.bf16.mxu0 0
  %6551 = vmatmul.mubr.bf16.gmra.mrb[0].mxu0 %v4864
  %v6552 = vpop.f32.mrb[0].mxu0
  %v6553 = vadd.f32 %v6264, %v6552
  %v6554 = vpop.f32.mrb[0].mxu0
  %v6555 = vpop.f32.mrb[0].mxu0
  %v6556 = vadd.f32 %v6267, %v6555
  %v6557 = vpop.f32.mrb[0].mxu0
  %6558 = vmatprep.mubr.bf16.mxu0 0
  %6559 = vmatmul.mubr.bf16.gmra.mrb[0].mxu0 %v4867
  %v6560 = vpop.f32.mrb[0].mxu0
  %v6561 = vadd.f32 %v6272, %v6560
  %v6562 = vpop.f32.mrb[0].mxu0
  %v6563 = vpop.f32.mrb[0].mxu0
  %v6564 = vadd.f32 %v6275, %v6563
  %v6565 = vpop.f32.mrb[0].mxu0
  %6566 = vmatprep.mubr.bf16.mxu0 0
  %6567 = vmatmul.mubr.bf16.gmra.mrb[0].mxu0 %v4870
  %v6568 = vpop.f32.mrb[0].mxu0
  %v6569 = vadd.f32 %v6280, %v6568
  %v6570 = vpop.f32.mrb[0].mxu0
  %v6571 = vpop.f32.mrb[0].mxu0
  %v6572 = vadd.f32 %v6283, %v6571
  %v6573 = vpop.f32.mrb[0].mxu0
  %6574 = vmatprep.mubr.bf16.mxu0 0
  %6575 = vmatmul.mubr.bf16.gmra.mrb[0].mxu0 %v4873
  %v6576 = vpop.f32.mrb[0].mxu0
  %v6577 = vadd.f32 %v6288, %v6576
  %v6578 = vpop.f32.mrb[0].mxu0
  %v6579 = vpop.f32.mrb[0].mxu0
  %v6580 = vadd.f32 %v6291, %v6579
  %v6581 = vpop.f32.mrb[0].mxu0
  %6582 = vmatprep.mubr.bf16.mxu0 0
  %6583 = vmatmul.mubr.bf16.gmra.mrb[0].mxu0 %v4876
  %v6584 = vpop.f32.mrb[0].mxu0
  %v6585 = vadd.f32 %v6296, %v6584
  %v6586 = vpop.f32.mrb[0].mxu0
  %v6587 = vpop.f32.mrb[0].mxu0
  %v6588 = vadd.f32 %v6299, %v6587
  %v6589 = vpop.f32.mrb[0].mxu0
  %6590 = vmatprep.mubr.bf16.mxu0 0
  %6591 = vmatmul.mubr.bf16.gmra.mrb[0].mxu0 %v4879
  %v6592 = vpop.f32.mrb[0].mxu0
  %v6593 = vadd.f32 %v6304, %v6592
  %v6594 = vpop.f32.mrb[0].mxu0
  %v6595 = vpop.f32.mrb[0].mxu0
  %v6596 = vadd.f32 %v6307, %v6595
  %v6597 = vpop.f32.mrb[0].mxu0
  %6598 = vmatprep.mubr.bf16.mxu0 0
  %6599 = vmatmul.mubr.bf16.gmra.mrb[0].mxu0 %v4882
  %v6600 = vpop.f32.mrb[0].mxu0
  %v6601 = vadd.f32 %v6312, %v6600
  %v6602 = vpop.f32.mrb[0].mxu0
  %v6603 = vpop.f32.mrb[0].mxu0
  %v6604 = vadd.f32 %v6315, %v6603
  %v6605 = vpop.f32.mrb[0].mxu0
  %6606 = vmatprep.mubr.bf16.mxu0 0
  %6607 = vmatmul.mubr.bf16.gmra.mrb[0].mxu0 %v4885
  %v6608 = vpop.f32.mrb[0].mxu0
  %v6609 = vadd.f32 %v6320, %v6608
  %v6610 = vpop.f32.mrb[0].mxu0
  %v6611 = vpop.f32.mrb[0].mxu0
  %v6612 = vadd.f32 %v6323, %v6611
  %v6613 = vpop.f32.mrb[0].mxu0
  %6614 = vmatprep.mubr.bf16.mxu0 0
  %6615 = vmatmul.mubr.bf16.gmra.mrb[0].mxu0 %v4888
  %v6616 = vpop.f32.mrb[0].mxu0
  %v6617 = vadd.f32 %v6328, %v6616
  %v6618 = vpop.f32.mrb[0].mxu0
  %v6619 = vpop.f32.mrb[0].mxu0
  %v6620 = vadd.f32 %v6331, %v6619
  %v6621 = vpop.f32.mrb[0].mxu0
  %6622 = vmatprep.mubr.bf16.mxu0 0
  %6623 = vmatmul.mubr.bf16.gmra.mrb[0].mxu0 %v4891
  %v6624 = vpop.f32.mrb[0].mxu0
  %v6625 = vadd.f32 %v6336, %v6624
  %v6626 = vpop.f32.mrb[0].mxu0
  %v6627 = vpop.f32.mrb[0].mxu0
  %v6628 = vadd.f32 %v6339, %v6627
  %v6629 = vpop.f32.mrb[0].mxu0
  %6630 = vmatprep.mubr.bf16.mxu0 0
  %6631 = vmatmul.mubr.bf16.gmra.mrb[0].mxu0 %v4894
  %v6632 = vpop.f32.mrb[0].mxu0
  %v6633 = vadd.f32 %v6344, %v6632
  %v6634 = vpop.f32.mrb[0].mxu0
  %v6635 = vpop.f32.mrb[0].mxu0
  %v6636 = vadd.f32 %v6347, %v6635
  %v6637 = vpop.f32.mrb[0].mxu0
  %6638 = vmatprep.mubr.bf16.mxu0 0
  %6639 = vmatmul.mubr.bf16.gmra.mrb[0].mxu0 %v4897
  %v6640 = vpop.f32.mrb[0].mxu0
  %v6641 = vadd.f32 %v6352, %v6640
  %v6642 = vpop.f32.mrb[0].mxu0
  %v6643 = vpop.f32.mrb[0].mxu0
  %v6644 = vadd.f32 %v6355, %v6643
  %v6645 = vpop.f32.mrb[0].mxu0
  %6646 = vmatprep.mubr.bf16.mxu0 0
  %6647 = vmatmul.mubr.bf16.gmra.mrb[0].mxu0 %v4900
  %v6648 = vpop.f32.mrb[0].mxu0
  %v6649 = vadd.f32 %v6360, %v6648
  %v6650 = vpop.f32.mrb[0].mxu0
  %v6651 = vpop.f32.mrb[0].mxu0
  %v6652 = vadd.f32 %v6363, %v6651
  %v6653 = vpop.f32.mrb[0].mxu0
  %6654 = vmatprep.mubr.bf16.mxu0 0
  %6655 = vmatmul.mubr.bf16.gmra.mrb[0].mxu0 %v4903
  %v6656 = vpop.f32.mrb[0].mxu0
  %v6657 = vadd.f32 %v6368, %v6656
  %v6658 = vpop.f32.mrb[0].mxu0
  %v6659 = vpop.f32.mrb[0].mxu0
  %v6660 = vadd.f32 %v6371, %v6659
  %v6661 = vpop.f32.mrb[0].mxu0
  %6662 = vmatprep.mubr.bf16.mxu0 0
  %6663 = vmatmul.mubr.bf16.gmra.mrb[0].mxu0 %v4906
  %v6664 = vpop.f32.mrb[0].mxu0
  %v6665 = vadd.f32 %v6376, %v6664
  %v6666 = vpop.f32.mrb[0].mxu0
  %v6667 = vpop.f32.mrb[0].mxu0
  %v6668 = vadd.f32 %v6379, %v6667
  %v6669 = vpop.f32.mrb[0].mxu0
  %6670 = vmatprep.mubr.bf16.mxu0 0
  %6671 = vmatmul.mubr.bf16.gmra.mrb[0].mxu0 %v4909
  %v6672 = vpop.f32.mrb[0].mxu0
  %v6673 = vadd.f32 %v6384, %v6672
  %v6674 = vpop.f32.mrb[0].mxu0
  %v6675 = vpop.f32.mrb[0].mxu0
  %v6676 = vadd.f32 %v6387, %v6675
  %v6677 = vpop.f32.mrb[0].mxu0
  %6678 = vmatprep.mubr.bf16.mxu0 0
  %6679 = vmatmul.mubr.bf16.gmra.mrb[0].mxu0 %v4912
  %v6680 = vpop.f32.mrb[0].mxu0
  %v6681 = vadd.f32 %v6392, %v6680
  %v6682 = vpop.f32.mrb[0].mxu0
  %v6683 = vpop.f32.mrb[0].mxu0
  %v6684 = vadd.f32 %v6395, %v6683
  %v6685 = vpop.f32.mrb[0].mxu0
  %6686 = vmatprep.mubr.bf16.mxu0 0
  %6687 = vmatmul.mubr.bf16.gmra.mrb[0].mxu0 %v4915
  %v6688 = vpop.f32.mrb[0].mxu0
  %v6689 = vadd.f32 %v6400, %v6688
  %v6690 = vpop.f32.mrb[0].mxu0
  %v6691 = vpop.f32.mrb[0].mxu0
  %v6692 = vadd.f32 %v6403, %v6691
  %v6693 = vpop.f32.mrb[0].mxu0
  %6694 = vmatprep.mubr.bf16.mxu0 0
  %6695 = vmatmul.mubr.bf16.gmra.mrb[0].mxu0 %v4918
  %v6696 = vpop.f32.mrb[0].mxu0
  %v6697 = vadd.f32 %v6408, %v6696
  %v6698 = vpop.f32.mrb[0].mxu0
  %v6699 = vpop.f32.mrb[0].mxu0
  %v6700 = vadd.f32 %v6411, %v6699
  %v6701 = vpop.f32.mrb[0].mxu0
  %6702 = vmatprep.mubr.bf16.mxu0 0
  %6703 = vmatmul.mubr.bf16.gmra.mrb[0].mxu0 %v4921
  %v6704 = vpop.f32.mrb[0].mxu0
  %v6705 = vadd.f32 %v6416, %v6704
  %v6706 = vpop.f32.mrb[0].mxu0
  %v6707 = vpop.f32.mrb[0].mxu0
  %v6708 = vadd.f32 %v6419, %v6707
  %v6709 = vpop.f32.mrb[0].mxu0
  %6710 = vmatprep.mubr.bf16.mxu0 0
  %6711 = vmatmul.mubr.bf16.gmra.mrb[0].mxu0 %v4924
  %v6712 = vpop.f32.mrb[0].mxu0
  %v6713 = vadd.f32 %v6424, %v6712
  %v6714 = vpop.f32.mrb[0].mxu0
  %v6715 = vpop.f32.mrb[0].mxu0
  %v6716 = vadd.f32 %v6427, %v6715
  %v6717 = vpop.f32.mrb[0].mxu0
  %6718 = vmatprep.mubr.bf16.mxu0 0
  %6719 = vmatmul.mubr.bf16.gmra.mrb[0].mxu0 %v4927
  %v6720 = vpop.f32.mrb[0].mxu0
  %v6721 = vadd.f32 %v6432, %v6720
  %v6722 = vpop.f32.mrb[0].mxu0
  %v6723 = vpop.f32.mrb[0].mxu0
  %v6724 = vadd.f32 %v6435, %v6723
  %v6725 = vpop.f32.mrb[0].mxu0
  %6726 = vmatprep.mubr.bf16.mxu0 0
  %6727 = vmatmul.mubr.bf16.gmra.mrb[0].mxu0 %v4930
  %v6728 = vpop.f32.mrb[0].mxu0
  %v6729 = vadd.f32 %v6440, %v6728
  %v6730 = vpop.f32.mrb[0].mxu0
  %v6731 = vpop.f32.mrb[0].mxu0
  %v6732 = vadd.f32 %v6443, %v6731
  %v6733 = vpop.f32.mrb[0].mxu0
  %6734 = vmatprep.mubr.bf16.mxu0 0
  %6735 = vmatmul.mubr.bf16.gmra.mrb[0].mxu0 %v4933
  %v6736 = vpop.f32.mrb[0].mxu0
  %v6737 = vadd.f32 %v6448, %v6736
  %v6738 = vpop.f32.mrb[0].mxu0
  %v6739 = vpop.f32.mrb[0].mxu0
  %v6740 = vadd.f32 %v6451, %v6739
  %v6741 = vpop.f32.mrb[0].mxu0
  %6742 = vmatprep.mubr.bf16.mxu0 0
  %6743 = vmatmul.mubr.bf16.gmra.mrb[0].mxu0 %v4936
  %v6744 = vpop.f32.mrb[0].mxu0
  %v6745 = vadd.f32 %v6456, %v6744
  %v6746 = vpop.f32.mrb[0].mxu0
  %v6747 = vpop.f32.mrb[0].mxu0
  %v6748 = vadd.f32 %v6459, %v6747
  %v6749 = vpop.f32.mrb[0].mxu0
  %6750 = vmatprep.mubr.bf16.mxu0 0
  %6751 = vmatmul.mubr.bf16.gmra.mrb[0].mxu0 %v4939
  %v6752 = vpop.f32.mrb[0].mxu0
  %v6753 = vadd.f32 %v6464, %v6752
  %v6754 = vpop.f32.mrb[0].mxu0
  %v6755 = vpop.f32.mrb[0].mxu0
  %v6756 = vadd.f32 %v6467, %v6755
  %v6757 = vpop.f32.mrb[0].mxu0
  %6758 = vmatprep.mubr.bf16.mxu0 0
  %6759 = vmatmul.mubr.bf16.gmra.mrb[0].mxu0 %v4942
  %v6760 = vpop.f32.mrb[0].mxu0
  %v6761 = vadd.f32 %v6472, %v6760
  %v6762 = vpop.f32.mrb[0].mxu0
  %v6763 = vpop.f32.mrb[0].mxu0
  %v6764 = vadd.f32 %v6475, %v6763
  %v6765 = vpop.f32.mrb[0].mxu0
  %6766 = vmatprep.mubr.bf16.mxu0 0
  %6767 = vmatmul.mubr.bf16.gmra.mrb[0].mxu0 %v4945
  %v6768 = vpop.f32.mrb[0].mxu0
  %v6769 = vadd.f32 %v6480, %v6768
  %v6770 = vpop.f32.mrb[0].mxu0
  %v6771 = vpop.f32.mrb[0].mxu0
  %v6772 = vadd.f32 %v6483, %v6771
  %v6773 = vpop.f32.mrb[0].mxu0
  %6774 = vdwg.mxu0
  %s6775 = scalar_lea.vmem [#allocation3], 48
  %v6776 = vld [vmem:[%s6775] sm:$0xff]
  %v6777 = vld [vmem:[%s6775 + $0x8] sm:$0xff]
  %v6778 = vld [vmem:[%s6775 + $0x18] sm:$0xff]
  %v6779 = vld [vmem:[%s6775 + $0x20] sm:$0xff]
  %v6780 = vld [vmem:[%s6775 + $0x30] sm:$0xff]
  %v6781 = vld [vmem:[%s6775 + $0x38] sm:$0xff]
  %v6782 = vld [vmem:[%s6775 + $0x48] sm:$0xff]
  %v6783 = vld [vmem:[%s6775 + $0x50] sm:$0xff]
  %v6784 = vld [vmem:[%s6775 + $0x60] sm:$0xff]
  %v6785 = vld [vmem:[%s6775 + $0x68] sm:$0xff]
  %v6786 = vld [vmem:[%s6775 + $0x78] sm:$0xff]
  %v6787 = vld [vmem:[%s6775 + $0x80] sm:$0xff]
  %v6788 = vld [vmem:[%s6775 + $0x90] sm:$0xff]
  %v6789 = vld [vmem:[%s6775 + $0x98] sm:$0xff]
  %v6790 = vld [vmem:[%s6775 + $0xa8] sm:$0xff]
  %v6791 = vld [vmem:[%s6775 + $0xb0] sm:$0xff]
  %v6792 = vld [vmem:[%s6775 + $0xc0] sm:$0xff]
  %v6793 = vld [vmem:[%s6775 + $0xc8] sm:$0xff]
  %v6794 = vld [vmem:[%s6775 + $0xd8] sm:$0xff]
  %v6795 = vld [vmem:[%s6775 + $0xe0] sm:$0xff]
  %v6796 = vld [vmem:[%s6775 + $0xf0] sm:$0xff]
  %v6797 = vld [vmem:[%s6775 + $0xf8] sm:$0xff]
  %v6798 = vld [vmem:[%s6775 + $0x108] sm:$0xff]
  %v6799 = vld [vmem:[%s6775 + $0x110] sm:$0xff]
  %v6800 = vld [vmem:[%s6775 + $0x120] sm:$0xff]
  %v6801 = vld [vmem:[%s6775 + $0x128] sm:$0xff]
  %v6802 = vld [vmem:[%s6775 + $0x138] sm:$0xff]
  %v6803 = vld [vmem:[%s6775 + $0x140] sm:$0xff]
  %v6804 = vld [vmem:[%s6775 + $0x150] sm:$0xff]
  %v6805 = vld [vmem:[%s6775 + $0x158] sm:$0xff]
  %v6806 = vld [vmem:[%s6775 + $0x168] sm:$0xff]
  %v6807 = vld [vmem:[%s6775 + $0x170] sm:$0xff]
  %v6808 = vld [vmem:[%s6775 + $0x1b0] sm:$0xff]
  %v6809 = vld [vmem:[%s6775 + $0x1b8] sm:$0xff]
  %v6810 = vld [vmem:[%s6775 + $0x1c8] sm:$0xff]
  %v6811 = vld [vmem:[%s6775 + $0x1d0] sm:$0xff]
  %v6812 = vld [vmem:[%s6775 + $0x1e0] sm:$0xff]
  %v6813 = vld [vmem:[%s6775 + $0x1e8] sm:$0xff]
  %v6814 = vld [vmem:[%s6775 + $0x1f8] sm:$0xff]
  %v6815 = vld [vmem:[%s6775 + $0x200] sm:$0xff]
  %v6816 = vld [vmem:[%s6775 + $0x210] sm:$0xff]
  %v6817 = vld [vmem:[%s6775 + $0x218] sm:$0xff]
  %v6818 = vld [vmem:[%s6775 + $0x228] sm:$0xff]
  %v6819 = vld [vmem:[%s6775 + $0x230] sm:$0xff]
  %v6820 = vld [vmem:[%s6775 + $0x240] sm:$0xff]
  %v6821 = vld [vmem:[%s6775 + $0x248] sm:$0xff]
  %v6822 = vld [vmem:[%s6775 + $0x258] sm:$0xff]
  %v6823 = vld [vmem:[%s6775 + $0x260] sm:$0xff]
  %v6824 = vld [vmem:[%s6775 + $0x270] sm:$0xff]
  %v6825 = vld [vmem:[%s6775 + $0x278] sm:$0xff]
  %v6826 = vld [vmem:[%s6775 + $0x288] sm:$0xff]
  %v6827 = vld [vmem:[%s6775 + $0x290] sm:$0xff]
  %v6828 = vld [vmem:[%s6775 + $0x2a0] sm:$0xff]
  %v6829 = vld [vmem:[%s6775 + $0x2a8] sm:$0xff]
  %v6830 = vld [vmem:[%s6775 + $0x2b8] sm:$0xff]
  %v6831 = vld [vmem:[%s6775 + $0x2c0] sm:$0xff]
  %v6832 = vld [vmem:[%s6775 + $0x2d0] sm:$0xff]
  %v6833 = vld [vmem:[%s6775 + $0x2d8] sm:$0xff]
  %v6834 = vld [vmem:[%s6775 + $0x2e8] sm:$0xff]
  %v6835 = vld [vmem:[%s6775 + $0x2f0] sm:$0xff]
  %v6836 = vld [vmem:[%s6775 + $0x300] sm:$0xff]
  %v6837 = vld [vmem:[%s6775 + $0x308] sm:$0xff]
  %v6838 = vld [vmem:[%s6775 + $0x318] sm:$0xff]
  %v6839 = vld [vmem:[%s6775 + $0x320] sm:$0xff]
  %v6840 = vld [vmem:[%s6775 + $0x1] sm:$0xff]
  %v6841 = vld [vmem:[%s6775 + $0x9] sm:$0xff]
  %v6842 = vld [vmem:[%s6775 + $0x19] sm:$0xff]
  %v6843 = vld [vmem:[%s6775 + $0x21] sm:$0xff]
  %v6844 = vld [vmem:[%s6775 + $0x31] sm:$0xff]
  %v6845 = vld [vmem:[%s6775 + $0x39] sm:$0xff]
  %v6846 = vld [vmem:[%s6775 + $0x49] sm:$0xff]
  %v6847 = vld [vmem:[%s6775 + $0x51] sm:$0xff]
  %v6848 = vld [vmem:[%s6775 + $0x61] sm:$0xff]
  %v6849 = vld [vmem:[%s6775 + $0x69] sm:$0xff]
  %v6850 = vld [vmem:[%s6775 + $0x79] sm:$0xff]
  %v6851 = vld [vmem:[%s6775 + $0x81] sm:$0xff]
  %v6852 = vld [vmem:[%s6775 + $0x91] sm:$0xff]
  %v6853 = vld [vmem:[%s6775 + $0x99] sm:$0xff]
  %v6854 = vld [vmem:[%s6775 + $0xa9] sm:$0xff]
  %v6855 = vld [vmem:[%s6775 + $0xb1] sm:$0xff]
  %v6856 = vld [vmem:[%s6775 + $0xc1] sm:$0xff]
  %v6857 = vld [vmem:[%s6775 + $0xc9] sm:$0xff]
  %v6858 = vld [vmem:[%s6775 + $0xd9] sm:$0xff]
  %v6859 = vld [vmem:[%s6775 + $0xe1] sm:$0xff]
  %v6860 = vld [vmem:[%s6775 + $0xf1] sm:$0xff]
  %v6861 = vld [vmem:[%s6775 + $0xf9] sm:$0xff]
  %v6862 = vld [vmem:[%s6775 + $0x109] sm:$0xff]
  %v6863 = vld [vmem:[%s6775 + $0x111] sm:$0xff]
  %v6864 = vld [vmem:[%s6775 + $0x121] sm:$0xff]
  %v6865 = vld [vmem:[%s6775 + $0x129] sm:$0xff]
  %v6866 = vld [vmem:[%s6775 + $0x139] sm:$0xff]
  %v6867 = vld [vmem:[%s6775 + $0x141] sm:$0xff]
  %v6868 = vld [vmem:[%s6775 + $0x151] sm:$0xff]
  %v6869 = vld [vmem:[%s6775 + $0x159] sm:$0xff]
  %v6870 = vld [vmem:[%s6775 + $0x169] sm:$0xff]
  %v6871 = vld [vmem:[%s6775 + $0x171] sm:$0xff]
  %v6872 = vld [vmem:[%s6775 + $0x1b1] sm:$0xff]
  %v6873 = vld [vmem:[%s6775 + $0x1b9] sm:$0xff]
  %v6874 = vld [vmem:[%s6775 + $0x1c9] sm:$0xff]
  %v6875 = vld [vmem:[%s6775 + $0x1d1] sm:$0xff]
  %v6876 = vld [vmem:[%s6775 + $0x1e1] sm:$0xff]
  %v6877 = vld [vmem:[%s6775 + $0x1e9] sm:$0xff]
  %v6878 = vld [vmem:[%s6775 + $0x1f9] sm:$0xff]
  %v6879 = vld [vmem:[%s6775 + $0x201] sm:$0xff]
  %v6880 = vld [vmem:[%s6775 + $0x211] sm:$0xff]
  %v6881 = vld [vmem:[%s6775 + $0x219] sm:$0xff]
  %v6882 = vld [vmem:[%s6775 + $0x229] sm:$0xff]
  %v6883 = vld [vmem:[%s6775 + $0x231] sm:$0xff]
  %v6884 = vld [vmem:[%s6775 + $0x241] sm:$0xff]
  %v6885 = vld [vmem:[%s6775 + $0x249] sm:$0xff]
  %v6886 = vld [vmem:[%s6775 + $0x259] sm:$0xff]
  %v6887 = vld [vmem:[%s6775 + $0x261] sm:$0xff]
  %v6888 = vld [vmem:[%s6775 + $0x271] sm:$0xff]
  %v6889 = vld [vmem:[%s6775 + $0x279] sm:$0xff]
  %v6890 = vld [vmem:[%s6775 + $0x289] sm:$0xff]
  %v6891 = vld [vmem:[%s6775 + $0x291] sm:$0xff]
  %v6892 = vld [vmem:[%s6775 + $0x2a1] sm:$0xff]
  %v6893 = vld [vmem:[%s6775 + $0x2a9] sm:$0xff]
  %v6894 = vld [vmem:[%s6775 + $0x2b9] sm:$0xff]
  %v6895 = vld [vmem:[%s6775 + $0x2c1] sm:$0xff]
  %v6896 = vld [vmem:[%s6775 + $0x2d1] sm:$0xff]
  %v6897 = vld [vmem:[%s6775 + $0x2d9] sm:$0xff]
  %v6898 = vld [vmem:[%s6775 + $0x2e9] sm:$0xff]
  %v6899 = vld [vmem:[%s6775 + $0x2f1] sm:$0xff]
  %v6900 = vld [vmem:[%s6775 + $0x301] sm:$0xff]
  %v6901 = vld [vmem:[%s6775 + $0x309] sm:$0xff]
  %v6902 = vld [vmem:[%s6775 + $0x319] sm:$0xff]
  %v6903 = vld [vmem:[%s6775 + $0x321] sm:$0xff]
  %v6904 = vld [vmem:[%s6775 + $0x2] sm:$0xff]
  %v6905 = vld [vmem:[%s6775 + $0xa] sm:$0xff]
  %v6906 = vld [vmem:[%s6775 + $0x1a] sm:$0xff]
  %v6907 = vld [vmem:[%s6775 + $0x22] sm:$0xff]
  %v6908 = vld [vmem:[%s6775 + $0x32] sm:$0xff]
  %v6909 = vld [vmem:[%s6775 + $0x3a] sm:$0xff]
  %v6910 = vld [vmem:[%s6775 + $0x4a] sm:$0xff]
  %v6911 = vld [vmem:[%s6775 + $0x52] sm:$0xff]
  %v6912 = vld [vmem:[%s6775 + $0x62] sm:$0xff]
  %v6913 = vld [vmem:[%s6775 + $0x6a] sm:$0xff]
  %v6914 = vld [vmem:[%s6775 + $0x7a] sm:$0xff]
  %v6915 = vld [vmem:[%s6775 + $0x82] sm:$0xff]
  %v6916 = vld [vmem:[%s6775 + $0x92] sm:$0xff]
  %v6917 = vld [vmem:[%s6775 + $0x9a] sm:$0xff]
  %v6918 = vld [vmem:[%s6775 + $0xaa] sm:$0xff]
  %v6919 = vld [vmem:[%s6775 + $0xb2] sm:$0xff]
  %v6920 = vld [vmem:[%s6775 + $0xc2] sm:$0xff]
  %v6921 = vld [vmem:[%s6775 + $0xca] sm:$0xff]
  %v6922 = vld [vmem:[%s6775 + $0xda] sm:$0xff]
  %v6923 = vld [vmem:[%s6775 + $0xe2] sm:$0xff]
  %v6924 = vld [vmem:[%s6775 + $0xf2] sm:$0xff]
  %v6925 = vld [vmem:[%s6775 + $0xfa] sm:$0xff]
  %v6926 = vld [vmem:[%s6775 + $0x10a] sm:$0xff]
  %v6927 = vld [vmem:[%s6775 + $0x112] sm:$0xff]
  %v6928 = vld [vmem:[%s6775 + $0x122] sm:$0xff]
  %v6929 = vld [vmem:[%s6775 + $0x12a] sm:$0xff]
  %v6930 = vld [vmem:[%s6775 + $0x13a] sm:$0xff]
  %v6931 = vld [vmem:[%s6775 + $0x142] sm:$0xff]
  %v6932 = vld [vmem:[%s6775 + $0x152] sm:$0xff]
  %v6933 = vld [vmem:[%s6775 + $0x15a] sm:$0xff]
  %v6934 = vld [vmem:[%s6775 + $0x16a] sm:$0xff]
  %v6935 = vld [vmem:[%s6775 + $0x172] sm:$0xff]
  %v6936 = vld [vmem:[%s6775 + $0x1b2] sm:$0xff]
  %v6937 = vld [vmem:[%s6775 + $0x1ba] sm:$0xff]
  %v6938 = vld [vmem:[%s6775 + $0x1ca] sm:$0xff]
  %v6939 = vld [vmem:[%s6775 + $0x1d2] sm:$0xff]
  %v6940 = vld [vmem:[%s6775 + $0x1e2] sm:$0xff]
  %v6941 = vld [vmem:[%s6775 + $0x1ea] sm:$0xff]
  %v6942 = vld [vmem:[%s6775 + $0x1fa] sm:$0xff]
  %v6943 = vld [vmem:[%s6775 + $0x202] sm:$0xff]
  %v6944 = vld [vmem:[%s6775 + $0x212] sm:$0xff]
  %v6945 = vld [vmem:[%s6775 + $0x21a] sm:$0xff]
  %v6946 = vld [vmem:[%s6775 + $0x22a] sm:$0xff]
  %v6947 = vld [vmem:[%s6775 + $0x232] sm:$0xff]
  %v6948 = vld [vmem:[%s6775 + $0x242] sm:$0xff]
  %v6949 = vld [vmem:[%s6775 + $0x24a] sm:$0xff]
  %v6950 = vld [vmem:[%s6775 + $0x25a] sm:$0xff]
  %v6951 = vld [vmem:[%s6775 + $0x262] sm:$0xff]
  %v6952 = vld [vmem:[%s6775 + $0x272] sm:$0xff]
  %v6953 = vld [vmem:[%s6775 + $0x27a] sm:$0xff]
  %v6954 = vld [vmem:[%s6775 + $0x28a] sm:$0xff]
  %v6955 = vld [vmem:[%s6775 + $0x292] sm:$0xff]
  %v6956 = vld [vmem:[%s6775 + $0x2a2] sm:$0xff]
  %v6957 = vld [vmem:[%s6775 + $0x2aa] sm:$0xff]
  %v6958 = vld [vmem:[%s6775 + $0x2ba] sm:$0xff]
  %v6959 = vld [vmem:[%s6775 + $0x2c2] sm:$0xff]
  %v6960 = vld [vmem:[%s6775 + $0x2d2] sm:$0xff]
  %v6961 = vld [vmem:[%s6775 + $0x2da] sm:$0xff]
  %v6962 = vld [vmem:[%s6775 + $0x2ea] sm:$0xff]
  %v6963 = vld [vmem:[%s6775 + $0x2f2] sm:$0xff]
  %v6964 = vld [vmem:[%s6775 + $0x302] sm:$0xff]
  %v6965 = vld [vmem:[%s6775 + $0x30a] sm:$0xff]
  %v6966 = vld [vmem:[%s6775 + $0x31a] sm:$0xff]
  %v6967 = vld [vmem:[%s6775 + $0x322] sm:$0xff]
  %v6968 = vpack.c.bf16 %v6777, %v6776
  %v6969 = vpack.c.bf16 %v6841, %v6840
  %v6970 = vpack.c.bf16 %v6905, %v6904
  %v6971 = vpack.c.bf16 %v6779, %v6778
  %v6972 = vpack.c.bf16 %v6843, %v6842
  %v6973 = vpack.c.bf16 %v6907, %v6906
  %v6974 = vpack.c.bf16 %v6781, %v6780
  %v6975 = vpack.c.bf16 %v6845, %v6844
  %v6976 = vpack.c.bf16 %v6909, %v6908
  %v6977 = vpack.c.bf16 %v6783, %v6782
  %v6978 = vpack.c.bf16 %v6847, %v6846
  %v6979 = vpack.c.bf16 %v6911, %v6910
  %v6980 = vpack.c.bf16 %v6785, %v6784
  %v6981 = vpack.c.bf16 %v6849, %v6848
  %v6982 = vpack.c.bf16 %v6913, %v6912
  %v6983 = vpack.c.bf16 %v6787, %v6786
  %v6984 = vpack.c.bf16 %v6851, %v6850
  %v6985 = vpack.c.bf16 %v6915, %v6914
  %v6986 = vpack.c.bf16 %v6789, %v6788
  %v6987 = vpack.c.bf16 %v6853, %v6852
  %v6988 = vpack.c.bf16 %v6917, %v6916
  %v6989 = vpack.c.bf16 %v6791, %v6790
  %v6990 = vpack.c.bf16 %v6855, %v6854
  %v6991 = vpack.c.bf16 %v6919, %v6918
  %v6992 = vpack.c.bf16 %v6793, %v6792
  %v6993 = vpack.c.bf16 %v6857, %v6856
  %v6994 = vpack.c.bf16 %v6921, %v6920
  %v6995 = vpack.c.bf16 %v6795, %v6794
  %v6996 = vpack.c.bf16 %v6859, %v6858
  %v6997 = vpack.c.bf16 %v6923, %v6922
  %v6998 = vpack.c.bf16 %v6797, %v6796
  %v6999 = vpack.c.bf16 %v6861, %v6860
  %v7000 = vpack.c.bf16 %v6925, %v6924
  %v7001 = vpack.c.bf16 %v6799, %v6798
  %v7002 = vpack.c.bf16 %v6863, %v6862
  %v7003 = vpack.c.bf16 %v6927, %v6926
  %v7004 = vpack.c.bf16 %v6801, %v6800
  %v7005 = vpack.c.bf16 %v6865, %v6864
  %v7006 = vpack.c.bf16 %v6929, %v6928
  %v7007 = vpack.c.bf16 %v6803, %v6802
  %v7008 = vpack.c.bf16 %v6867, %v6866
  %v7009 = vpack.c.bf16 %v6931, %v6930
  %v7010 = vpack.c.bf16 %v6805, %v6804
  %v7011 = vpack.c.bf16 %v6869, %v6868
  %v7012 = vpack.c.bf16 %v6933, %v6932
  %v7013 = vpack.c.bf16 %v6807, %v6806
  %v7014 = vpack.c.bf16 %v6871, %v6870
  %v7015 = vpack.c.bf16 %v6935, %v6934
  %v7016 = vpack.c.bf16 %v6809, %v6808
  %v7017 = vpack.c.bf16 %v6873, %v6872
  %v7018 = vpack.c.bf16 %v6937, %v6936
  %v7019 = vpack.c.bf16 %v6811, %v6810
  %v7020 = vpack.c.bf16 %v6875, %v6874
  %v7021 = vpack.c.bf16 %v6939, %v6938
  %v7022 = vpack.c.bf16 %v6813, %v6812
  %v7023 = vpack.c.bf16 %v6877, %v6876
  %v7024 = vpack.c.bf16 %v6941, %v6940
  %v7025 = vpack.c.bf16 %v6815, %v6814
  %v7026 = vpack.c.bf16 %v6879, %v6878
  %v7027 = vpack.c.bf16 %v6943, %v6942
  %v7028 = vpack.c.bf16 %v6817, %v6816
  %v7029 = vpack.c.bf16 %v6881, %v6880
  %v7030 = vpack.c.bf16 %v6945, %v6944
  %v7031 = vpack.c.bf16 %v6819, %v6818
  %v7032 = vpack.c.bf16 %v6883, %v6882
  %v7033 = vpack.c.bf16 %v6947, %v6946
  %v7034 = vpack.c.bf16 %v6821, %v6820
  %v7035 = vpack.c.bf16 %v6885, %v6884
  %v7036 = vpack.c.bf16 %v6949, %v6948
  %v7037 = vpack.c.bf16 %v6823, %v6822
  %v7038 = vpack.c.bf16 %v6887, %v6886
  %v7039 = vpack.c.bf16 %v6951, %v6950
  %v7040 = vpack.c.bf16 %v6825, %v6824
  %v7041 = vpack.c.bf16 %v6889, %v6888
  %v7042 = vpack.c.bf16 %v6953, %v6952
  %v7043 = vpack.c.bf16 %v6827, %v6826
  %v7044 = vpack.c.bf16 %v6891, %v6890
  %v7045 = vpack.c.bf16 %v6955, %v6954
  %v7046 = vpack.c.bf16 %v6829, %v6828
  %v7047 = vpack.c.bf16 %v6893, %v6892
  %v7048 = vpack.c.bf16 %v6957, %v6956
  %v7049 = vpack.c.bf16 %v6831, %v6830
  %v7050 = vpack.c.bf16 %v6895, %v6894
  %v7051 = vpack.c.bf16 %v6959, %v6958
  %v7052 = vpack.c.bf16 %v6833, %v6832
  %v7053 = vpack.c.bf16 %v6897, %v6896
  %v7054 = vpack.c.bf16 %v6961, %v6960
  %v7055 = vpack.c.bf16 %v6835, %v6834
  %v7056 = vpack.c.bf16 %v6899, %v6898
  %v7057 = vpack.c.bf16 %v6963, %v6962
  %v7058 = vpack.c.bf16 %v6837, %v6836
  %v7059 = vpack.c.bf16 %v6901, %v6900
  %v7060 = vpack.c.bf16 %v6965, %v6964
  %v7061 = vpack.c.bf16 %v6839, %v6838
  %v7062 = vpack.c.bf16 %v6903, %v6902
  %v7063 = vpack.c.bf16 %v6967, %v6966
  %s7064 = scalar_lea.vmem %s8, 384
  %v7065 = vld [vmem:[%s7064] sm:$0xf]
  %v7066 = vld [vmem:[%s7064 + $0x4] sm:$0xf]
  %v7067 = vld [vmem:[%s7064 + $0x8] sm:$0xf]
  %v7068 = vld [vmem:[%s7064 + $0xc] sm:$0xf]
  %v7069 = vld [vmem:[%s7064 + $0x10] sm:$0xf]
  %v7070 = vld [vmem:[%s7064 + $0x14] sm:$0xf]
  %v7071 = vld [vmem:[%s7064 + $0x18] sm:$0xf]
  %v7072 = vld [vmem:[%s7064 + $0x1c] sm:$0xf]
  %v7073 = vld [vmem:[%s7064 + $0x20] sm:$0xf]
  %v7074 = vld [vmem:[%s7064 + $0x24] sm:$0xf]
  %v7075 = vld [vmem:[%s7064 + $0x28] sm:$0xf]
  %v7076 = vld [vmem:[%s7064 + $0x2c] sm:$0xf]
  %v7077 = vld [vmem:[%s7064 + $0x30] sm:$0xf]
  %v7078 = vld [vmem:[%s7064 + $0x34] sm:$0xf]
  %v7079 = vld [vmem:[%s7064 + $0x38] sm:$0xf]
  %v7080 = vld [vmem:[%s7064 + $0x3c] sm:$0xf]
  %v7081 = vld [vmem:[%s7064 + $0x40] sm:$0xf]
  %v7082 = vld [vmem:[%s7064 + $0x44] sm:$0xf]
  %v7083 = vld [vmem:[%s7064 + $0x48] sm:$0xf]
  %v7084 = vld [vmem:[%s7064 + $0x4c] sm:$0xf]
  %v7085 = vld [vmem:[%s7064 + $0x50] sm:$0xf]
  %v7086 = vld [vmem:[%s7064 + $0x54] sm:$0xf]
  %v7087 = vld [vmem:[%s7064 + $0x58] sm:$0xf]
  %v7088 = vld [vmem:[%s7064 + $0x5c] sm:$0xf]
  %v7089 = vld [vmem:[%s7064 + $0x60] sm:$0xf]
  %v7090 = vld [vmem:[%s7064 + $0x64] sm:$0xf]
  %v7091 = vld [vmem:[%s7064 + $0x68] sm:$0xf]
  %v7092 = vld [vmem:[%s7064 + $0x6c] sm:$0xf]
  %v7093 = vld [vmem:[%s7064 + $0x70] sm:$0xf]
  %v7094 = vld [vmem:[%s7064 + $0x74] sm:$0xf]
  %v7095 = vld [vmem:[%s7064 + $0x78] sm:$0xf]
  %v7096 = vld [vmem:[%s7064 + $0x7c] sm:$0xf]
  %v7097 = vld [vmem:[%s7064 + $0x80] sm:$0xf]
  %v7098 = vld [vmem:[%s7064 + $0x84] sm:$0xf]
  %v7099 = vld [vmem:[%s7064 + $0x88] sm:$0xf]
  %v7100 = vld [vmem:[%s7064 + $0x8c] sm:$0xf]
  %v7101 = vld [vmem:[%s7064 + $0x90] sm:$0xf]
  %v7102 = vld [vmem:[%s7064 + $0x94] sm:$0xf]
  %v7103 = vld [vmem:[%s7064 + $0x98] sm:$0xf]
  %v7104 = vld [vmem:[%s7064 + $0x9c] sm:$0xf]
  %v7105 = vld [vmem:[%s7064 + $0xa0] sm:$0xf]
  %v7106 = vld [vmem:[%s7064 + $0xa4] sm:$0xf]
  %v7107 = vld [vmem:[%s7064 + $0xa8] sm:$0xf]
  %v7108 = vld [vmem:[%s7064 + $0xac] sm:$0xf]
  %v7109 = vld [vmem:[%s7064 + $0xb0] sm:$0xf]
  %v7110 = vld [vmem:[%s7064 + $0xb4] sm:$0xf]
  %v7111 = vld [vmem:[%s7064 + $0xb8] sm:$0xf]
  %v7112 = vld [vmem:[%s7064 + $0xbc] sm:$0xf]
  %v7161 = vunpack.c.l.b16 %v7065
  %v7162 = vunpack.c.l.b16 %v7066
  %v7163 = vunpack.c.l.b16 %v7067
  %v7164 = vunpack.c.l.b16 %v7068
  %v7165 = vunpack.c.l.b16 %v7069
  %v7166 = vunpack.c.l.b16 %v7070
  %v7167 = vunpack.c.l.b16 %v7071
  %v7168 = vunpack.c.l.b16 %v7072
  %v7169 = vunpack.c.l.b16 %v7073
  %v7170 = vunpack.c.l.b16 %v7074
  %v7171 = vunpack.c.l.b16 %v7075
  %v7172 = vunpack.c.l.b16 %v7076
  %v7173 = vunpack.c.l.b16 %v7077
  %v7174 = vunpack.c.l.b16 %v7078
  %v7175 = vunpack.c.l.b16 %v7079
  %v7176 = vunpack.c.l.b16 %v7080
  %v7177 = vunpack.c.l.b16 %v7081
  %v7178 = vunpack.c.l.b16 %v7082
  %v7179 = vunpack.c.l.b16 %v7083
  %v7180 = vunpack.c.l.b16 %v7084
  %v7181 = vunpack.c.l.b16 %v7085
  %v7182 = vunpack.c.l.b16 %v7086
  %v7183 = vunpack.c.l.b16 %v7087
  %v7184 = vunpack.c.l.b16 %v7088
  %v7185 = vunpack.c.l.b16 %v7089
  %v7186 = vunpack.c.l.b16 %v7090
  %v7187 = vunpack.c.l.b16 %v7091
  %v7188 = vunpack.c.l.b16 %v7092
  %v7189 = vunpack.c.l.b16 %v7093
  %v7190 = vunpack.c.l.b16 %v7094
  %v7191 = vunpack.c.l.b16 %v7095
  %v7192 = vunpack.c.l.b16 %v7096
  %v7193 = vunpack.c.l.b16 %v7097
  %v7194 = vunpack.c.l.b16 %v7098
  %v7195 = vunpack.c.l.b16 %v7099
  %v7196 = vunpack.c.l.b16 %v7100
  %v7197 = vunpack.c.l.b16 %v7101
  %v7198 = vunpack.c.l.b16 %v7102
  %v7199 = vunpack.c.l.b16 %v7103
  %v7200 = vunpack.c.l.b16 %v7104
  %v7201 = vunpack.c.l.b16 %v7105
  %v7202 = vunpack.c.l.b16 %v7106
  %v7203 = vunpack.c.l.b16 %v7107
  %v7204 = vunpack.c.l.b16 %v7108
  %v7205 = vunpack.c.l.b16 %v7109
  %v7206 = vunpack.c.l.b16 %v7110
  %v7207 = vunpack.c.l.b16 %v7111
  %v7208 = vunpack.c.l.b16 %v7112
  %v7209 = vpack.c.b16 %v7162, %v7161
  %v7210 = vpack.c.b16 %v7164, %v7163
  %v7211 = vpack.c.b16 %v7166, %v7165
  %v7212 = vpack.c.b16 %v7168, %v7167
  %v7213 = vpack.c.b16 %v7170, %v7169
  %v7214 = vpack.c.b16 %v7172, %v7171
  %v7215 = vpack.c.b16 %v7174, %v7173
  %v7216 = vpack.c.b16 %v7176, %v7175
  %v7217 = vpack.c.b16 %v7178, %v7177
  %v7218 = vpack.c.b16 %v7180, %v7179
  %v7219 = vpack.c.b16 %v7182, %v7181
  %v7220 = vpack.c.b16 %v7184, %v7183
  %v7221 = vpack.c.b16 %v7186, %v7185
  %v7222 = vpack.c.b16 %v7188, %v7187
  %v7223 = vpack.c.b16 %v7190, %v7189
  %v7224 = vpack.c.b16 %v7192, %v7191
  %v7225 = vpack.c.b16 %v7194, %v7193
  %v7226 = vpack.c.b16 %v7196, %v7195
  %v7227 = vpack.c.b16 %v7198, %v7197
  %v7228 = vpack.c.b16 %v7200, %v7199
  %v7229 = vpack.c.b16 %v7202, %v7201
  %v7230 = vpack.c.b16 %v7204, %v7203
  %v7231 = vpack.c.b16 %v7206, %v7205
  %v7232 = vpack.c.b16 %v7208, %v7207
  %7257 = vmatprep.subr.bf16.mxu0 0
  %7258 = vmatpush1.bf16.msra.mxu0 %v7209
  %7259 = vmatprep.subr.bf16.mxu0 0
  %7260 = vmatpush1.bf16.msra.mxu0 %v7210
  %7261 = vmatprep.subr.bf16.mxu0 0
  %7262 = vmatpush1.bf16.msra.mxu0 %v7211
  %7263 = vmatprep.subr.bf16.mxu0 0
  %7264 = vmatpush1.bf16.msra.mxu0 %v7212
  %7265 = vmatprep.subr.bf16.mxu0 0
  %7266 = vmatpush1.bf16.msra.mxu0 %v7213
  %7267 = vmatprep.subr.bf16.mxu0 0
  %7268 = vmatpush1.bf16.msra.mxu0 %v7214
  %7269 = vmatprep.subr.bf16.mxu0 0
  %7270 = vmatpush1.bf16.msra.mxu0 %v7215
  %7271 = vmatprep.subr.bf16.mxu0 0
  %7272 = vmatpush1.bf16.msra.mxu0 %v7216
  %7273 = vmatprep.subr.bf16.mxu0 0
  %7274 = vmatpush1.bf16.msra.mxu0 %v7217
  %7275 = vmatprep.subr.bf16.mxu0 0
  %7276 = vmatpush1.bf16.msra.mxu0 %v7218
  %7277 = vmatprep.subr.bf16.mxu0 0
  %7278 = vmatpush1.bf16.msra.mxu0 %v7219
  %7279 = vmatprep.subr.bf16.mxu0 0
  %7280 = vmatpush1.bf16.msra.mxu0 %v7220
  %7281 = vmatprep.subr.bf16.mxu0 0
  %7282 = vmatpush1.bf16.msra.mxu0 %v7221
  %7283 = vmatprep.subr.bf16.mxu0 0
  %7284 = vmatpush1.bf16.msra.mxu0 %v7222
  %7285 = vmatprep.subr.bf16.mxu0 0
  %7286 = vmatpush1.bf16.msra.mxu0 %v7223
  %7287 = vmatprep.subr.bf16.mxu0 0
  %7288 = vmatpush1.bf16.msra.mxu0 %v7224
  %7289 = vmatprep.mubr.bf16.mxu0 %v6969
  %7290 = vmatmul.mubr.bf16.gmra.mrb[0].mxu0 %v6968
  %v7291 = vpop.f32.mrb[0].mxu0
  %v7292 = vadd.f32 0.0, %v7291
  %v7293 = vpop.f32.mrb[0].mxu0
  %v7294 = vpop.f32.mrb[0].mxu0
  %v7295 = vadd.f32 0.0, %v7294
  %v7296 = vpop.f32.mrb[0].mxu0
  %7297 = vmatprep.mubr.bf16.mxu0 %v6972
  %7298 = vmatmul.mubr.bf16.gmra.mrb[0].mxu0 %v6971
  %v7299 = vpop.f32.mrb[0].mxu0
  %v7300 = vadd.f32 0.0, %v7299
  %v7301 = vpop.f32.mrb[0].mxu0
  %v7302 = vpop.f32.mrb[0].mxu0
  %v7303 = vadd.f32 0.0, %v7302
  %v7304 = vpop.f32.mrb[0].mxu0
  %7305 = vmatprep.mubr.bf16.mxu0 %v6975
  %7306 = vmatmul.mubr.bf16.gmra.mrb[0].mxu0 %v6974
  %v7307 = vpop.f32.mrb[0].mxu0
  %v7308 = vadd.f32 0.0, %v7307
  %v7309 = vpop.f32.mrb[0].mxu0
  %v7310 = vpop.f32.mrb[0].mxu0
  %v7311 = vadd.f32 0.0, %v7310
  %v7312 = vpop.f32.mrb[0].mxu0
  %7313 = vmatprep.mubr.bf16.mxu0 %v6978
  %7314 = vmatmul.mubr.bf16.gmra.mrb[0].mxu0 %v6977
  %v7315 = vpop.f32.mrb[0].mxu0
  %v7316 = vadd.f32 0.0, %v7315
  %v7317 = vpop.f32.mrb[0].mxu0
  %v7318 = vpop.f32.mrb[0].mxu0
  %v7319 = vadd.f32 0.0, %v7318
  %v7320 = vpop.f32.mrb[0].mxu0
  %7321 = vmatprep.mubr.bf16.mxu0 %v6981
  %7322 = vmatmul.mubr.bf16.gmra.mrb[0].mxu0 %v6980
  %v7323 = vpop.f32.mrb[0].mxu0
  %v7324 = vadd.f32 0.0, %v7323
  %v7325 = vpop.f32.mrb[0].mxu0
  %v7326 = vpop.f32.mrb[0].mxu0
  %v7327 = vadd.f32 0.0, %v7326
  %v7328 = vpop.f32.mrb[0].mxu0
  %7329 = vmatprep.mubr.bf16.mxu0 %v6984
  %7330 = vmatmul.mubr.bf16.gmra.mrb[0].mxu0 %v6983
  %v7331 = vpop.f32.mrb[0].mxu0
  %v7332 = vadd.f32 0.0, %v7331
  %v7333 = vpop.f32.mrb[0].mxu0
  %v7334 = vpop.f32.mrb[0].mxu0
  %v7335 = vadd.f32 0.0, %v7334
  %v7336 = vpop.f32.mrb[0].mxu0
  %7337 = vmatprep.mubr.bf16.mxu0 %v6987
  %7338 = vmatmul.mubr.bf16.gmra.mrb[0].mxu0 %v6986
  %v7339 = vpop.f32.mrb[0].mxu0
  %v7340 = vadd.f32 0.0, %v7339
  %v7341 = vpop.f32.mrb[0].mxu0
  %v7342 = vpop.f32.mrb[0].mxu0
  %v7343 = vadd.f32 0.0, %v7342
  %v7344 = vpop.f32.mrb[0].mxu0
  %7345 = vmatprep.mubr.bf16.mxu0 %v6990
  %7346 = vmatmul.mubr.bf16.gmra.mrb[0].mxu0 %v6989
  %v7347 = vpop.f32.mrb[0].mxu0
  %v7348 = vadd.f32 0.0, %v7347
  %v7349 = vpop.f32.mrb[0].mxu0
  %v7350 = vpop.f32.mrb[0].mxu0
  %v7351 = vadd.f32 0.0, %v7350
  %v7352 = vpop.f32.mrb[0].mxu0
  %7353 = vmatprep.mubr.bf16.mxu0 %v6993
  %7354 = vmatmul.mubr.bf16.gmra.mrb[0].mxu0 %v6992
  %v7355 = vpop.f32.mrb[0].mxu0
  %v7356 = vadd.f32 0.0, %v7355
  %v7357 = vpop.f32.mrb[0].mxu0
  %v7358 = vpop.f32.mrb[0].mxu0
  %v7359 = vadd.f32 0.0, %v7358
  %v7360 = vpop.f32.mrb[0].mxu0
  %7361 = vmatprep.mubr.bf16.mxu0 %v6996
  %7362 = vmatmul.mubr.bf16.gmra.mrb[0].mxu0 %v6995
  %v7363 = vpop.f32.mrb[0].mxu0
  %v7364 = vadd.f32 0.0, %v7363
  %v7365 = vpop.f32.mrb[0].mxu0
  %v7366 = vpop.f32.mrb[0].mxu0
  %v7367 = vadd.f32 0.0, %v7366
  %v7368 = vpop.f32.mrb[0].mxu0
  %7369 = vmatprep.mubr.bf16.mxu0 %v6999
  %7370 = vmatmul.mubr.bf16.gmra.mrb[0].mxu0 %v6998
  %v7371 = vpop.f32.mrb[0].mxu0
  %v7372 = vadd.f32 0.0, %v7371
  %v7373 = vpop.f32.mrb[0].mxu0
  %v7374 = vpop.f32.mrb[0].mxu0
  %v7375 = vadd.f32 0.0, %v7374
  %v7376 = vpop.f32.mrb[0].mxu0
  %7377 = vmatprep.mubr.bf16.mxu0 %v7002
  %7378 = vmatmul.mubr.bf16.gmra.mrb[0].mxu0 %v7001
  %v7379 = vpop.f32.mrb[0].mxu0
  %v7380 = vadd.f32 0.0, %v7379
  %v7381 = vpop.f32.mrb[0].mxu0
  %v7382 = vpop.f32.mrb[0].mxu0
  %v7383 = vadd.f32 0.0, %v7382
  %v7384 = vpop.f32.mrb[0].mxu0
  %7385 = vmatprep.mubr.bf16.mxu0 %v7005
  %7386 = vmatmul.mubr.bf16.gmra.mrb[0].mxu0 %v7004
  %v7387 = vpop.f32.mrb[0].mxu0
  %v7388 = vadd.f32 0.0, %v7387
  %v7389 = vpop.f32.mrb[0].mxu0
  %v7390 = vpop.f32.mrb[0].mxu0
  %v7391 = vadd.f32 0.0, %v7390
  %v7392 = vpop.f32.mrb[0].mxu0
  %7393 = vmatprep.mubr.bf16.mxu0 %v7008
  %7394 = vmatmul.mubr.bf16.gmra.mrb[0].mxu0 %v7007
  %v7395 = vpop.f32.mrb[0].mxu0
  %v7396 = vadd.f32 0.0, %v7395
  %v7397 = vpop.f32.mrb[0].mxu0
  %v7398 = vpop.f32.mrb[0].mxu0
  %v7399 = vadd.f32 0.0, %v7398
  %v7400 = vpop.f32.mrb[0].mxu0
  %7401 = vmatprep.mubr.bf16.mxu0 %v7011
  %7402 = vmatmul.mubr.bf16.gmra.mrb[0].mxu0 %v7010
  %v7403 = vpop.f32.mrb[0].mxu0
  %v7404 = vadd.f32 0.0, %v7403
  %v7405 = vpop.f32.mrb[0].mxu0
  %v7406 = vpop.f32.mrb[0].mxu0
  %v7407 = vadd.f32 0.0, %v7406
  %v7408 = vpop.f32.mrb[0].mxu0
  %7409 = vmatprep.mubr.bf16.mxu0 %v7014
  %7410 = vmatmul.mubr.bf16.gmra.mrb[0].mxu0 %v7013
  %v7411 = vpop.f32.mrb[0].mxu0
  %v7412 = vadd.f32 0.0, %v7411
  %v7413 = vpop.f32.mrb[0].mxu0
  %v7414 = vpop.f32.mrb[0].mxu0
  %v7415 = vadd.f32 0.0, %v7414
  %v7416 = vpop.f32.mrb[0].mxu0
  %7417 = vmatprep.mubr.bf16.mxu0 %v7017
  %7418 = vmatmul.mubr.bf16.gmra.mrb[0].mxu0 %v7016
  %v7419 = vpop.f32.mrb[0].mxu0
  %v7420 = vadd.f32 0.0, %v7419
  %v7421 = vpop.f32.mrb[0].mxu0
  %v7422 = vpop.f32.mrb[0].mxu0
  %v7423 = vadd.f32 0.0, %v7422
  %v7424 = vpop.f32.mrb[0].mxu0
  %7425 = vmatprep.mubr.bf16.mxu0 %v7020
  %7426 = vmatmul.mubr.bf16.gmra.mrb[0].mxu0 %v7019
  %v7427 = vpop.f32.mrb[0].mxu0
  %v7428 = vadd.f32 0.0, %v7427
  %v7429 = vpop.f32.mrb[0].mxu0
  %v7430 = vpop.f32.mrb[0].mxu0
  %v7431 = vadd.f32 0.0, %v7430
  %v7432 = vpop.f32.mrb[0].mxu0
  %7433 = vmatprep.mubr.bf16.mxu0 %v7023
  %7434 = vmatmul.mubr.bf16.gmra.mrb[0].mxu0 %v7022
  %v7435 = vpop.f32.mrb[0].mxu0
  %v7436 = vadd.f32 0.0, %v7435
  %v7437 = vpop.f32.mrb[0].mxu0
  %v7438 = vpop.f32.mrb[0].mxu0
  %v7439 = vadd.f32 0.0, %v7438
  %v7440 = vpop.f32.mrb[0].mxu0
  %7441 = vmatprep.mubr.bf16.mxu0 %v7026
  %7442 = vmatmul.mubr.bf16.gmra.mrb[0].mxu0 %v7025
  %v7443 = vpop.f32.mrb[0].mxu0
  %v7444 = vadd.f32 0.0, %v7443
  %v7445 = vpop.f32.mrb[0].mxu0
  %v7446 = vpop.f32.mrb[0].mxu0
  %v7447 = vadd.f32 0.0, %v7446
  %v7448 = vpop.f32.mrb[0].mxu0
  %7449 = vmatprep.mubr.bf16.mxu0 %v7029
  %7450 = vmatmul.mubr.bf16.gmra.mrb[0].mxu0 %v7028
  %v7451 = vpop.f32.mrb[0].mxu0
  %v7452 = vadd.f32 0.0, %v7451
  %v7453 = vpop.f32.mrb[0].mxu0
  %v7454 = vpop.f32.mrb[0].mxu0
  %v7455 = vadd.f32 0.0, %v7454
  %v7456 = vpop.f32.mrb[0].mxu0
  %7457 = vmatprep.mubr.bf16.mxu0 %v7032
  %7458 = vmatmul.mubr.bf16.gmra.mrb[0].mxu0 %v7031
  %v7459 = vpop.f32.mrb[0].mxu0
  %v7460 = vadd.f32 0.0, %v7459
  %v7461 = vpop.f32.mrb[0].mxu0
  %v7462 = vpop.f32.mrb[0].mxu0
  %v7463 = vadd.f32 0.0, %v7462
  %v7464 = vpop.f32.mrb[0].mxu0
  %7465 = vmatprep.mubr.bf16.mxu0 %v7035
  %7466 = vmatmul.mubr.bf16.gmra.mrb[0].mxu0 %v7034
  %v7467 = vpop.f32.mrb[0].mxu0
  %v7468 = vadd.f32 0.0, %v7467
  %v7469 = vpop.f32.mrb[0].mxu0
  %v7470 = vpop.f32.mrb[0].mxu0
  %v7471 = vadd.f32 0.0, %v7470
  %v7472 = vpop.f32.mrb[0].mxu0
  %7473 = vmatprep.mubr.bf16.mxu0 %v7038
  %7474 = vmatmul.mubr.bf16.gmra.mrb[0].mxu0 %v7037
  %v7475 = vpop.f32.mrb[0].mxu0
  %v7476 = vadd.f32 0.0, %v7475
  %v7477 = vpop.f32.mrb[0].mxu0
  %v7478 = vpop.f32.mrb[0].mxu0
  %v7479 = vadd.f32 0.0, %v7478
  %v7480 = vpop.f32.mrb[0].mxu0
  %7481 = vmatprep.mubr.bf16.mxu0 %v7041
  %7482 = vmatmul.mubr.bf16.gmra.mrb[0].mxu0 %v7040
  %v7483 = vpop.f32.mrb[0].mxu0
  %v7484 = vadd.f32 0.0, %v7483
  %v7485 = vpop.f32.mrb[0].mxu0
  %v7486 = vpop.f32.mrb[0].mxu0
  %v7487 = vadd.f32 0.0, %v7486
  %v7488 = vpop.f32.mrb[0].mxu0
  %7489 = vmatprep.mubr.bf16.mxu0 %v7044
  %7490 = vmatmul.mubr.bf16.gmra.mrb[0].mxu0 %v7043
  %v7491 = vpop.f32.mrb[0].mxu0
  %v7492 = vadd.f32 0.0, %v7491
  %v7493 = vpop.f32.mrb[0].mxu0
  %v7494 = vpop.f32.mrb[0].mxu0
  %v7495 = vadd.f32 0.0, %v7494
  %v7496 = vpop.f32.mrb[0].mxu0
  %7497 = vmatprep.mubr.bf16.mxu0 %v7047
  %7498 = vmatmul.mubr.bf16.gmra.mrb[0].mxu0 %v7046
  %v7499 = vpop.f32.mrb[0].mxu0
  %v7500 = vadd.f32 0.0, %v7499
  %v7501 = vpop.f32.mrb[0].mxu0
  %v7502 = vpop.f32.mrb[0].mxu0
  %v7503 = vadd.f32 0.0, %v7502
  %v7504 = vpop.f32.mrb[0].mxu0
  %7505 = vmatprep.mubr.bf16.mxu0 %v7050
  %7506 = vmatmul.mubr.bf16.gmra.mrb[0].mxu0 %v7049
  %v7507 = vpop.f32.mrb[0].mxu0
  %v7508 = vadd.f32 0.0, %v7507
  %v7509 = vpop.f32.mrb[0].mxu0
  %v7510 = vpop.f32.mrb[0].mxu0
  %v7511 = vadd.f32 0.0, %v7510
  %v7512 = vpop.f32.mrb[0].mxu0
  %7513 = vmatprep.mubr.bf16.mxu0 %v7053
  %7514 = vmatmul.mubr.bf16.gmra.mrb[0].mxu0 %v7052
  %v7515 = vpop.f32.mrb[0].mxu0
  %v7516 = vadd.f32 0.0, %v7515
  %v7517 = vpop.f32.mrb[0].mxu0
  %v7518 = vpop.f32.mrb[0].mxu0
  %v7519 = vadd.f32 0.0, %v7518
  %v7520 = vpop.f32.mrb[0].mxu0
  %7521 = vmatprep.mubr.bf16.mxu0 %v7056
  %7522 = vmatmul.mubr.bf16.gmra.mrb[0].mxu0 %v7055
  %v7523 = vpop.f32.mrb[0].mxu0
  %v7524 = vadd.f32 0.0, %v7523
  %v7525 = vpop.f32.mrb[0].mxu0
  %v7526 = vpop.f32.mrb[0].mxu0
  %v7527 = vadd.f32 0.0, %v7526
  %v7528 = vpop.f32.mrb[0].mxu0
  %7529 = vmatprep.mubr.bf16.mxu0 %v7059
  %7530 = vmatmul.mubr.bf16.gmra.mrb[0].mxu0 %v7058
  %v7531 = vpop.f32.mrb[0].mxu0
  %v7532 = vadd.f32 0.0, %v7531
  %v7533 = vpop.f32.mrb[0].mxu0
  %v7534 = vpop.f32.mrb[0].mxu0
  %v7535 = vadd.f32 0.0, %v7534
  %v7536 = vpop.f32.mrb[0].mxu0
  %7537 = vmatprep.mubr.bf16.mxu0 %v7062
  %7538 = vmatmul.mubr.bf16.gmra.mrb[0].mxu0 %v7061
  %v7539 = vpop.f32.mrb[0].mxu0
  %v7540 = vadd.f32 0.0, %v7539
  %v7541 = vpop.f32.mrb[0].mxu0
  %v7542 = vpop.f32.mrb[0].mxu0
  %v7543 = vadd.f32 0.0, %v7542
  %v7544 = vpop.f32.mrb[0].mxu0
  %7545 = vdwg.mxu0
  %7546 = vmatprep.subr.bf16.mxu0 0
  %7547 = vmatpush1.bf16.msra.mxu0 %v7225
  %7548 = vmatprep.subr.bf16.mxu0 0
  %7549 = vmatpush1.bf16.msra.mxu0 %v7226
  %7550 = vmatprep.subr.bf16.mxu0 0
  %7551 = vmatpush1.bf16.msra.mxu0 %v7227
  %7552 = vmatprep.subr.bf16.mxu0 0
  %7553 = vmatpush1.bf16.msra.mxu0 %v7228
  %7554 = vmatprep.subr.bf16.mxu0 0
  %7555 = vmatpush1.bf16.msra.mxu0 %v7229
  %7556 = vmatprep.subr.bf16.mxu0 0
  %7557 = vmatpush1.bf16.msra.mxu0 %v7230
  %7558 = vmatprep.subr.bf16.mxu0 0
  %7559 = vmatpush1.bf16.msra.mxu0 %v7231
  %7560 = vmatprep.subr.bf16.mxu0 0
  %7561 = vmatpush1.bf16.msra.mxu0 %v7232
  %7562 = vmatprep.subr.bf16.mxu0 0
  %7563 = vmatpush1.bf16.msra.mxu0 0
  %7564 = vmatprep.subr.bf16.mxu0 0
  %7565 = vmatpush1.bf16.msra.mxu0 0
  %7566 = vmatprep.subr.bf16.mxu0 0
  %7567 = vmatpush1.bf16.msra.mxu0 0
  %7568 = vmatprep.subr.bf16.mxu0 0
  %7569 = vmatpush1.bf16.msra.mxu0 0
  %7570 = vmatprep.subr.bf16.mxu0 0
  %7571 = vmatpush1.bf16.msra.mxu0 0
  %7572 = vmatprep.subr.bf16.mxu0 0
  %7573 = vmatpush1.bf16.msra.mxu0 0
  %7574 = vmatprep.subr.bf16.mxu0 0
  %7575 = vmatpush1.bf16.msra.mxu0 0
  %7576 = vmatprep.subr.bf16.mxu0 0
  %7577 = vmatpush1.bf16.msra.mxu0 0
  %7578 = vmatprep.mubr.bf16.mxu0 0
  %7579 = vmatmul.mubr.bf16.gmra.mrb[0].mxu0 %v6970
  %v7580 = vpop.f32.mrb[0].mxu0
  %v7581 = vadd.f32 %v7292, %v7580
  %v7582 = vpop.f32.mrb[0].mxu0
  %v7583 = vpop.f32.mrb[0].mxu0
  %v7584 = vadd.f32 %v7295, %v7583
  %v7585 = vpop.f32.mrb[0].mxu0
  %7586 = vmatprep.mubr.bf16.mxu0 0
  %7587 = vmatmul.mubr.bf16.gmra.mrb[0].mxu0 %v6973
  %v7588 = vpop.f32.mrb[0].mxu0
  %v7589 = vadd.f32 %v7300, %v7588
  %v7590 = vpop.f32.mrb[0].mxu0
  %v7591 = vpop.f32.mrb[0].mxu0
  %v7592 = vadd.f32 %v7303, %v7591
  %v7593 = vpop.f32.mrb[0].mxu0
  %7594 = vmatprep.mubr.bf16.mxu0 0
  %7595 = vmatmul.mubr.bf16.gmra.mrb[0].mxu0 %v6976
  %v7596 = vpop.f32.mrb[0].mxu0
  %v7597 = vadd.f32 %v7308, %v7596
  %v7598 = vpop.f32.mrb[0].mxu0
  %v7599 = vpop.f32.mrb[0].mxu0
  %v7600 = vadd.f32 %v7311, %v7599
  %v7601 = vpop.f32.mrb[0].mxu0
  %7602 = vmatprep.mubr.bf16.mxu0 0
  %7603 = vmatmul.mubr.bf16.gmra.mrb[0].mxu0 %v6979
  %v7604 = vpop.f32.mrb[0].mxu0
  %v7605 = vadd.f32 %v7316, %v7604
  %v7606 = vpop.f32.mrb[0].mxu0
  %v7607 = vpop.f32.mrb[0].mxu0
  %v7608 = vadd.f32 %v7319, %v7607
  %v7609 = vpop.f32.mrb[0].mxu0
  %7610 = vmatprep.mubr.bf16.mxu0 0
  %7611 = vmatmul.mubr.bf16.gmra.mrb[0].mxu0 %v6982
  %v7612 = vpop.f32.mrb[0].mxu0
  %v7613 = vadd.f32 %v7324, %v7612
  %v7614 = vpop.f32.mrb[0].mxu0
  %v7615 = vpop.f32.mrb[0].mxu0
  %v7616 = vadd.f32 %v7327, %v7615
  %v7617 = vpop.f32.mrb[0].mxu0
  %7618 = vmatprep.mubr.bf16.mxu0 0
  %7619 = vmatmul.mubr.bf16.gmra.mrb[0].mxu0 %v6985
  %v7620 = vpop.f32.mrb[0].mxu0
  %v7621 = vadd.f32 %v7332, %v7620
  %v7622 = vpop.f32.mrb[0].mxu0
  %v7623 = vpop.f32.mrb[0].mxu0
  %v7624 = vadd.f32 %v7335, %v7623
  %v7625 = vpop.f32.mrb[0].mxu0
  %7626 = vmatprep.mubr.bf16.mxu0 0
  %7627 = vmatmul.mubr.bf16.gmra.mrb[0].mxu0 %v6988
  %v7628 = vpop.f32.mrb[0].mxu0
  %v7629 = vadd.f32 %v7340, %v7628
  %v7630 = vpop.f32.mrb[0].mxu0
  %v7631 = vpop.f32.mrb[0].mxu0
  %v7632 = vadd.f32 %v7343, %v7631
  %v7633 = vpop.f32.mrb[0].mxu0
  %7634 = vmatprep.mubr.bf16.mxu0 0
  %7635 = vmatmul.mubr.bf16.gmra.mrb[0].mxu0 %v6991
  %v7636 = vpop.f32.mrb[0].mxu0
  %v7637 = vadd.f32 %v7348, %v7636
  %v7638 = vpop.f32.mrb[0].mxu0
  %v7639 = vpop.f32.mrb[0].mxu0
  %v7640 = vadd.f32 %v7351, %v7639
  %v7641 = vpop.f32.mrb[0].mxu0
  %7642 = vmatprep.mubr.bf16.mxu0 0
  %7643 = vmatmul.mubr.bf16.gmra.mrb[0].mxu0 %v6994
  %v7644 = vpop.f32.mrb[0].mxu0
  %v7645 = vadd.f32 %v7356, %v7644
  %v7646 = vpop.f32.mrb[0].mxu0
  %v7647 = vpop.f32.mrb[0].mxu0
  %v7648 = vadd.f32 %v7359, %v7647
  %v7649 = vpop.f32.mrb[0].mxu0
  %7650 = vmatprep.mubr.bf16.mxu0 0
  %7651 = vmatmul.mubr.bf16.gmra.mrb[0].mxu0 %v6997
  %v7652 = vpop.f32.mrb[0].mxu0
  %v7653 = vadd.f32 %v7364, %v7652
  %v7654 = vpop.f32.mrb[0].mxu0
  %v7655 = vpop.f32.mrb[0].mxu0
  %v7656 = vadd.f32 %v7367, %v7655
  %v7657 = vpop.f32.mrb[0].mxu0
  %7658 = vmatprep.mubr.bf16.mxu0 0
  %7659 = vmatmul.mubr.bf16.gmra.mrb[0].mxu0 %v7000
  %v7660 = vpop.f32.mrb[0].mxu0
  %v7661 = vadd.f32 %v7372, %v7660
  %v7662 = vpop.f32.mrb[0].mxu0
  %v7663 = vpop.f32.mrb[0].mxu0
  %v7664 = vadd.f32 %v7375, %v7663
  %v7665 = vpop.f32.mrb[0].mxu0
  %7666 = vmatprep.mubr.bf16.mxu0 0
  %7667 = vmatmul.mubr.bf16.gmra.mrb[0].mxu0 %v7003
  %v7668 = vpop.f32.mrb[0].mxu0
  %v7669 = vadd.f32 %v7380, %v7668
  %v7670 = vpop.f32.mrb[0].mxu0
  %v7671 = vpop.f32.mrb[0].mxu0
  %v7672 = vadd.f32 %v7383, %v7671
  %v7673 = vpop.f32.mrb[0].mxu0
  %7674 = vmatprep.mubr.bf16.mxu0 0
  %7675 = vmatmul.mubr.bf16.gmra.mrb[0].mxu0 %v7006
  %v7676 = vpop.f32.mrb[0].mxu0
  %v7677 = vadd.f32 %v7388, %v7676
  %v7678 = vpop.f32.mrb[0].mxu0
  %v7679 = vpop.f32.mrb[0].mxu0
  %v7680 = vadd.f32 %v7391, %v7679
  %v7681 = vpop.f32.mrb[0].mxu0
  %7682 = vmatprep.mubr.bf16.mxu0 0
  %7683 = vmatmul.mubr.bf16.gmra.mrb[0].mxu0 %v7009
  %v7684 = vpop.f32.mrb[0].mxu0
  %v7685 = vadd.f32 %v7396, %v7684
  %v7686 = vpop.f32.mrb[0].mxu0
  %v7687 = vpop.f32.mrb[0].mxu0
  %v7688 = vadd.f32 %v7399, %v7687
  %v7689 = vpop.f32.mrb[0].mxu0
  %7690 = vmatprep.mubr.bf16.mxu0 0
  %7691 = vmatmul.mubr.bf16.gmra.mrb[0].mxu0 %v7012
  %v7692 = vpop.f32.mrb[0].mxu0
  %v7693 = vadd.f32 %v7404, %v7692
  %v7694 = vpop.f32.mrb[0].mxu0
  %v7695 = vpop.f32.mrb[0].mxu0
  %v7696 = vadd.f32 %v7407, %v7695
  %v7697 = vpop.f32.mrb[0].mxu0
  %7698 = vmatprep.mubr.bf16.mxu0 0
  %7699 = vmatmul.mubr.bf16.gmra.mrb[0].mxu0 %v7015
  %v7700 = vpop.f32.mrb[0].mxu0
  %v7701 = vadd.f32 %v7412, %v7700
  %v7702 = vpop.f32.mrb[0].mxu0
  %v7703 = vpop.f32.mrb[0].mxu0
  %v7704 = vadd.f32 %v7415, %v7703
  %v7705 = vpop.f32.mrb[0].mxu0
  %7706 = vmatprep.mubr.bf16.mxu0 0
  %7707 = vmatmul.mubr.bf16.gmra.mrb[0].mxu0 %v7018
  %v7708 = vpop.f32.mrb[0].mxu0
  %v7709 = vadd.f32 %v7420, %v7708
  %v7710 = vpop.f32.mrb[0].mxu0
  %v7711 = vpop.f32.mrb[0].mxu0
  %v7712 = vadd.f32 %v7423, %v7711
  %v7713 = vpop.f32.mrb[0].mxu0
  %7714 = vmatprep.mubr.bf16.mxu0 0
  %7715 = vmatmul.mubr.bf16.gmra.mrb[0].mxu0 %v7021
  %v7716 = vpop.f32.mrb[0].mxu0
  %v7717 = vadd.f32 %v7428, %v7716
  %v7718 = vpop.f32.mrb[0].mxu0
  %v7719 = vpop.f32.mrb[0].mxu0
  %v7720 = vadd.f32 %v7431, %v7719
  %v7721 = vpop.f32.mrb[0].mxu0
  %7722 = vmatprep.mubr.bf16.mxu0 0
  %7723 = vmatmul.mubr.bf16.gmra.mrb[0].mxu0 %v7024
  %v7724 = vpop.f32.mrb[0].mxu0
  %v7725 = vadd.f32 %v7436, %v7724
  %v7726 = vpop.f32.mrb[0].mxu0
  %v7727 = vpop.f32.mrb[0].mxu0
  %v7728 = vadd.f32 %v7439, %v7727
  %v7729 = vpop.f32.mrb[0].mxu0
  %7730 = vmatprep.mubr.bf16.mxu0 0
  %7731 = vmatmul.mubr.bf16.gmra.mrb[0].mxu0 %v7027
  %v7732 = vpop.f32.mrb[0].mxu0
  %v7733 = vadd.f32 %v7444, %v7732
  %v7734 = vpop.f32.mrb[0].mxu0
  %v7735 = vpop.f32.mrb[0].mxu0
  %v7736 = vadd.f32 %v7447, %v7735
  %v7737 = vpop.f32.mrb[0].mxu0
  %7738 = vmatprep.mubr.bf16.mxu0 0
  %7739 = vmatmul.mubr.bf16.gmra.mrb[0].mxu0 %v7030
  %v7740 = vpop.f32.mrb[0].mxu0
  %v7741 = vadd.f32 %v7452, %v7740
  %v7742 = vpop.f32.mrb[0].mxu0
  %v7743 = vpop.f32.mrb[0].mxu0
  %v7744 = vadd.f32 %v7455, %v7743
  %v7745 = vpop.f32.mrb[0].mxu0
  %7746 = vmatprep.mubr.bf16.mxu0 0
  %7747 = vmatmul.mubr.bf16.gmra.mrb[0].mxu0 %v7033
  %v7748 = vpop.f32.mrb[0].mxu0
  %v7749 = vadd.f32 %v7460, %v7748
  %v7750 = vpop.f32.mrb[0].mxu0
  %v7751 = vpop.f32.mrb[0].mxu0
  %v7752 = vadd.f32 %v7463, %v7751
  %v7753 = vpop.f32.mrb[0].mxu0
  %7754 = vmatprep.mubr.bf16.mxu0 0
  %7755 = vmatmul.mubr.bf16.gmra.mrb[0].mxu0 %v7036
  %v7756 = vpop.f32.mrb[0].mxu0
  %v7757 = vadd.f32 %v7468, %v7756
  %v7758 = vpop.f32.mrb[0].mxu0
  %v7759 = vpop.f32.mrb[0].mxu0
  %v7760 = vadd.f32 %v7471, %v7759
  %v7761 = vpop.f32.mrb[0].mxu0
  %7762 = vmatprep.mubr.bf16.mxu0 0
  %7763 = vmatmul.mubr.bf16.gmra.mrb[0].mxu0 %v7039
  %v7764 = vpop.f32.mrb[0].mxu0
  %v7765 = vadd.f32 %v7476, %v7764
  %v7766 = vpop.f32.mrb[0].mxu0
  %v7767 = vpop.f32.mrb[0].mxu0
  %v7768 = vadd.f32 %v7479, %v7767
  %v7769 = vpop.f32.mrb[0].mxu0
  %7770 = vmatprep.mubr.bf16.mxu0 0
  %7771 = vmatmul.mubr.bf16.gmra.mrb[0].mxu0 %v7042
  %v7772 = vpop.f32.mrb[0].mxu0
  %v7773 = vadd.f32 %v7484, %v7772
  %v7774 = vpop.f32.mrb[0].mxu0
  %v7775 = vpop.f32.mrb[0].mxu0
  %v7776 = vadd.f32 %v7487, %v7775
  %v7777 = vpop.f32.mrb[0].mxu0
  %7778 = vmatprep.mubr.bf16.mxu0 0
  %7779 = vmatmul.mubr.bf16.gmra.mrb[0].mxu0 %v7045
  %v7780 = vpop.f32.mrb[0].mxu0
  %v7781 = vadd.f32 %v7492, %v7780
  %v7782 = vpop.f32.mrb[0].mxu0
  %v7783 = vpop.f32.mrb[0].mxu0
  %v7784 = vadd.f32 %v7495, %v7783
  %v7785 = vpop.f32.mrb[0].mxu0
  %7786 = vmatprep.mubr.bf16.mxu0 0
  %7787 = vmatmul.mubr.bf16.gmra.mrb[0].mxu0 %v7048
  %v7788 = vpop.f32.mrb[0].mxu0
  %v7789 = vadd.f32 %v7500, %v7788
  %v7790 = vpop.f32.mrb[0].mxu0
  %v7791 = vpop.f32.mrb[0].mxu0
  %v7792 = vadd.f32 %v7503, %v7791
  %v7793 = vpop.f32.mrb[0].mxu0
  %7794 = vmatprep.mubr.bf16.mxu0 0
  %7795 = vmatmul.mubr.bf16.gmra.mrb[0].mxu0 %v7051
  %v7796 = vpop.f32.mrb[0].mxu0
  %v7797 = vadd.f32 %v7508, %v7796
  %v7798 = vpop.f32.mrb[0].mxu0
  %v7799 = vpop.f32.mrb[0].mxu0
  %v7800 = vadd.f32 %v7511, %v7799
  %v7801 = vpop.f32.mrb[0].mxu0
  %7802 = vmatprep.mubr.bf16.mxu0 0
  %7803 = vmatmul.mubr.bf16.gmra.mrb[0].mxu0 %v7054
  %v7804 = vpop.f32.mrb[0].mxu0
  %v7805 = vadd.f32 %v7516, %v7804
  %v7806 = vpop.f32.mrb[0].mxu0
  %v7807 = vpop.f32.mrb[0].mxu0
  %v7808 = vadd.f32 %v7519, %v7807
  %v7809 = vpop.f32.mrb[0].mxu0
  %7810 = vmatprep.mubr.bf16.mxu0 0
  %7811 = vmatmul.mubr.bf16.gmra.mrb[0].mxu0 %v7057
  %v7812 = vpop.f32.mrb[0].mxu0
  %v7813 = vadd.f32 %v7524, %v7812
  %v7814 = vpop.f32.mrb[0].mxu0
  %v7815 = vpop.f32.mrb[0].mxu0
  %v7816 = vadd.f32 %v7527, %v7815
  %v7817 = vpop.f32.mrb[0].mxu0
  %7818 = vmatprep.mubr.bf16.mxu0 0
  %7819 = vmatmul.mubr.bf16.gmra.mrb[0].mxu0 %v7060
  %v7820 = vpop.f32.mrb[0].mxu0
  %v7821 = vadd.f32 %v7532, %v7820
  %v7822 = vpop.f32.mrb[0].mxu0
  %v7823 = vpop.f32.mrb[0].mxu0
  %v7824 = vadd.f32 %v7535, %v7823
  %v7825 = vpop.f32.mrb[0].mxu0
  %7826 = vmatprep.mubr.bf16.mxu0 0
  %7827 = vmatmul.mubr.bf16.gmra.mrb[0].mxu0 %v7063
  %v7828 = vpop.f32.mrb[0].mxu0
  %v7829 = vadd.f32 %v7540, %v7828
  %v7830 = vpop.f32.mrb[0].mxu0
  %v7831 = vpop.f32.mrb[0].mxu0
  %v7832 = vadd.f32 %v7543, %v7831
  %v7833 = vpop.f32.mrb[0].mxu0
  %7834 = vdwg.mxu0
  %v7835 = vadd.f32 %v6521, %v7581
  %v7836 = vadd.f32 %v6524, %v7584
  %v7837 = vadd.f32 %v6529, %v7589
  %v7838 = vadd.f32 %v6532, %v7592
  %v7839 = vadd.f32 %v6537, %v7597
  %v7840 = vadd.f32 %v6540, %v7600
  %v7841 = vadd.f32 %v6545, %v7605
  %v7842 = vadd.f32 %v6548, %v7608
  %v7843 = vadd.f32 %v6553, %v7613
  %v7844 = vadd.f32 %v6556, %v7616
  %v7845 = vadd.f32 %v6561, %v7621
  %v7846 = vadd.f32 %v6564, %v7624
  %v7847 = vadd.f32 %v6569, %v7629
  %v7848 = vadd.f32 %v6572, %v7632
  %v7849 = vadd.f32 %v6577, %v7637
  %v7850 = vadd.f32 %v6580, %v7640
  %v7851 = vadd.f32 %v6585, %v7645
  %v7852 = vadd.f32 %v6588, %v7648
  %v7853 = vadd.f32 %v6593, %v7653
  %v7854 = vadd.f32 %v6596, %v7656
  %v7855 = vadd.f32 %v6601, %v7661
  %v7856 = vadd.f32 %v6604, %v7664
  %v7857 = vadd.f32 %v6609, %v7669
  %v7858 = vadd.f32 %v6612, %v7672
  %v7859 = vadd.f32 %v6617, %v7677
  %v7860 = vadd.f32 %v6620, %v7680
  %v7861 = vadd.f32 %v6625, %v7685
  %v7862 = vadd.f32 %v6628, %v7688
  %v7863 = vadd.f32 %v6633, %v7693
  %v7864 = vadd.f32 %v6636, %v7696
  %v7865 = vadd.f32 %v6641, %v7701
  %v7866 = vadd.f32 %v6644, %v7704
  %v7867 = vadd.f32 %v6649, %v7709
  %v7868 = vadd.f32 %v6652, %v7712
  %v7869 = vadd.f32 %v6657, %v7717
  %v7870 = vadd.f32 %v6660, %v7720
  %v7871 = vadd.f32 %v6665, %v7725
  %v7872 = vadd.f32 %v6668, %v7728
  %v7873 = vadd.f32 %v6673, %v7733
  %v7874 = vadd.f32 %v6676, %v7736
  %v7875 = vadd.f32 %v6681, %v7741
  %v7876 = vadd.f32 %v6684, %v7744
  %v7877 = vadd.f32 %v6689, %v7749
  %v7878 = vadd.f32 %v6692, %v7752
  %v7879 = vadd.f32 %v6697, %v7757
  %v7880 = vadd.f32 %v6700, %v7760
  %v7881 = vadd.f32 %v6705, %v7765
  %v7882 = vadd.f32 %v6708, %v7768
  %v7883 = vadd.f32 %v6713, %v7773
  %v7884 = vadd.f32 %v6716, %v7776
  %v7885 = vadd.f32 %v6721, %v7781
  %v7886 = vadd.f32 %v6724, %v7784
  %v7887 = vadd.f32 %v6729, %v7789
  %v7888 = vadd.f32 %v6732, %v7792
  %v7889 = vadd.f32 %v6737, %v7797
  %v7890 = vadd.f32 %v6740, %v7800
  %v7891 = vadd.f32 %v6745, %v7805
  %v7892 = vadd.f32 %v6748, %v7808
  %v7893 = vadd.f32 %v6753, %v7813
  %v7894 = vadd.f32 %v6756, %v7816
  %v7895 = vadd.f32 %v6761, %v7821
  %v7896 = vadd.f32 %v6764, %v7824
  %v7897 = vadd.f32 %v6769, %v7829
  %v7898 = vadd.f32 %v6772, %v7832
  %v7899 = vld [vmem:[%s9] sm:$0x1]
  %v7900 = vld [vmem:[%s10] sm:$0x1]
  %vm7901 = vcmask 523264
  %v7902 = vsel %vm7901, %v7835, 0.0
  %v7903 = vsel %vm7901, %v7836, 0.0
  %v7904 = vadd.f32 %v7902, %v7903
  %v7905 = vsel %vm7901, %v7837, 0.0
  %v7906 = vadd.f32 %v7904, %v7905
  %v7907 = vsel %vm7901, %v7838, 0.0
  %v7908 = vadd.f32 %v7906, %v7907
  %v7909 = vsel %vm7901, %v7839, 0.0
  %v7910 = vadd.f32 %v7908, %v7909
  %v7911 = vsel %vm7901, %v7840, 0.0
  %v7912 = vadd.f32 %v7910, %v7911
  %v7913 = vsel %vm7901, %v7841, 0.0
  %v7914 = vadd.f32 %v7912, %v7913
  %v7915 = vsel %vm7901, %v7842, 0.0
  %v7916 = vadd.f32 %v7914, %v7915
  %v7917 = vsel %vm7901, %v7843, 0.0
  %v7918 = vadd.f32 %v7916, %v7917
  %v7919 = vsel %vm7901, %v7844, 0.0
  %v7920 = vadd.f32 %v7918, %v7919
  %v7921 = vsel %vm7901, %v7845, 0.0
  %v7922 = vadd.f32 %v7920, %v7921
  %v7923 = vsel %vm7901, %v7846, 0.0
  %v7924 = vadd.f32 %v7922, %v7923
  %v7925 = vsel %vm7901, %v7847, 0.0
  %v7926 = vadd.f32 %v7924, %v7925
  %v7927 = vsel %vm7901, %v7848, 0.0
  %v7928 = vadd.f32 %v7926, %v7927
  %v7929 = vsel %vm7901, %v7849, 0.0
  %v7930 = vadd.f32 %v7928, %v7929
  %v7931 = vsel %vm7901, %v7850, 0.0
  %v7932 = vadd.f32 %v7930, %v7931
  %v7933 = vsel %vm7901, %v7851, 0.0
  %v7934 = vadd.f32 %v7932, %v7933
  %v7935 = vsel %vm7901, %v7852, 0.0
  %v7936 = vadd.f32 %v7934, %v7935
  %v7937 = vsel %vm7901, %v7853, 0.0
  %v7938 = vadd.f32 %v7936, %v7937
  %v7939 = vsel %vm7901, %v7854, 0.0
  %v7940 = vadd.f32 %v7938, %v7939
  %v7941 = vsel %vm7901, %v7855, 0.0
  %v7942 = vadd.f32 %v7940, %v7941
  %v7943 = vsel %vm7901, %v7856, 0.0
  %v7944 = vadd.f32 %v7942, %v7943
  %v7945 = vsel %vm7901, %v7857, 0.0
  %v7946 = vadd.f32 %v7944, %v7945
  %v7947 = vsel %vm7901, %v7858, 0.0
  %v7948 = vadd.f32 %v7946, %v7947
  %v7949 = vsel %vm7901, %v7859, 0.0
  %v7950 = vadd.f32 %v7948, %v7949
  %v7951 = vsel %vm7901, %v7860, 0.0
  %v7952 = vadd.f32 %v7950, %v7951
  %v7953 = vsel %vm7901, %v7861, 0.0
  %v7954 = vadd.f32 %v7952, %v7953
  %v7955 = vsel %vm7901, %v7862, 0.0
  %v7956 = vadd.f32 %v7954, %v7955
  %v7957 = vsel %vm7901, %v7863, 0.0
  %v7958 = vadd.f32 %v7956, %v7957
  %v7959 = vsel %vm7901, %v7864, 0.0
  %v7960 = vadd.f32 %v7958, %v7959
  %v7961 = vsel %vm7901, %v7865, 0.0
  %v7962 = vadd.f32 %v7960, %v7961
  %v7963 = vsel %vm7901, %v7866, 0.0
  %v7964 = vadd.f32 %v7962, %v7963
  %v7965 = vsel %vm7901, %v7867, 0.0
  %v7966 = vadd.f32 %v7964, %v7965
  %v7967 = vsel %vm7901, %v7868, 0.0
  %v7968 = vadd.f32 %v7966, %v7967
  %v7969 = vsel %vm7901, %v7869, 0.0
  %v7970 = vadd.f32 %v7968, %v7969
  %v7971 = vsel %vm7901, %v7870, 0.0
  %v7972 = vadd.f32 %v7970, %v7971
  %v7973 = vsel %vm7901, %v7871, 0.0
  %v7974 = vadd.f32 %v7972, %v7973
  %v7975 = vsel %vm7901, %v7872, 0.0
  %v7976 = vadd.f32 %v7974, %v7975
  %v7977 = vsel %vm7901, %v7873, 0.0
  %v7978 = vadd.f32 %v7976, %v7977
  %v7979 = vsel %vm7901, %v7874, 0.0
  %v7980 = vadd.f32 %v7978, %v7979
  %v7981 = vsel %vm7901, %v7875, 0.0
  %v7982 = vadd.f32 %v7980, %v7981
  %v7983 = vsel %vm7901, %v7876, 0.0
  %v7984 = vadd.f32 %v7982, %v7983
  %v7985 = vsel %vm7901, %v7877, 0.0
  %v7986 = vadd.f32 %v7984, %v7985
  %v7987 = vsel %vm7901, %v7878, 0.0
  %v7988 = vadd.f32 %v7986, %v7987
  %v7989 = vsel %vm7901, %v7879, 0.0
  %v7990 = vadd.f32 %v7988, %v7989
  %v7991 = vsel %vm7901, %v7880, 0.0
  %v7992 = vadd.f32 %v7990, %v7991
  %v7993 = vsel %vm7901, %v7881, 0.0
  %v7994 = vadd.f32 %v7992, %v7993
  %v7995 = vsel %vm7901, %v7882, 0.0
  %v7996 = vadd.f32 %v7994, %v7995
  %v7997 = vsel %vm7901, %v7883, 0.0
  %v7998 = vadd.f32 %v7996, %v7997
  %v7999 = vsel %vm7901, %v7884, 0.0
  %v8000 = vadd.f32 %v7998, %v7999
  %v8001 = vsel %vm7901, %v7885, 0.0
  %v8002 = vadd.f32 %v8000, %v8001
  %v8003 = vsel %vm7901, %v7886, 0.0
  %v8004 = vadd.f32 %v8002, %v8003
  %v8005 = vsel %vm7901, %v7887, 0.0
  %v8006 = vadd.f32 %v8004, %v8005
  %v8007 = vsel %vm7901, %v7888, 0.0
  %v8008 = vadd.f32 %v8006, %v8007
  %v8009 = vsel %vm7901, %v7889, 0.0
  %v8010 = vadd.f32 %v8008, %v8009
  %v8011 = vsel %vm7901, %v7890, 0.0
  %v8012 = vadd.f32 %v8010, %v8011
  %v8013 = vsel %vm7901, %v7891, 0.0
  %v8014 = vadd.f32 %v8012, %v8013
  %v8015 = vsel %vm7901, %v7892, 0.0
  %v8016 = vadd.f32 %v8014, %v8015
  %v8017 = vsel %vm7901, %v7893, 0.0
  %v8018 = vadd.f32 %v8016, %v8017
  %v8019 = vsel %vm7901, %v7894, 0.0
  %v8020 = vadd.f32 %v8018, %v8019
  %v8021 = vsel %vm7901, %v7895, 0.0
  %v8022 = vadd.f32 %v8020, %v8021
  %v8023 = vsel %vm7901, %v7896, 0.0
  %v8024 = vadd.f32 %v8022, %v8023
  %v8025 = vsel %vm7901, %v7897, 0.0
  %v8026 = vadd.f32 %v8024, %v8025
  %v8027 = vsel %vm7901, %v7898, 0.0
  %v8028 = vadd.f32 %v8026, %v8027
  %v8029 = vrot.slane %v8028, 4
  %v8030 = vadd.f32 %v8028, %v8029
  %v8031 = vrot.slane %v8030, 2
  %v8032 = vadd.f32 %v8030, %v8031
  %v8033 = vrot.slane %v8032, 1
  %v8034 = vadd.f32 %v8032, %v8033
  %v8035 = vmul.f32 %v8034, 0.001953125
  %v8036 = vsub.f32 %v7835, %v8035
  %v8037 = vsub.f32 %v7836, %v8035
  %v8038 = vsub.f32 %v7837, %v8035
  %v8039 = vsub.f32 %v7838, %v8035
  %v8040 = vsub.f32 %v7839, %v8035
  %v8041 = vsub.f32 %v7840, %v8035
  %v8042 = vsub.f32 %v7841, %v8035
  %v8043 = vsub.f32 %v7842, %v8035
  %v8044 = vsub.f32 %v7843, %v8035
  %v8045 = vsub.f32 %v7844, %v8035
  %v8046 = vsub.f32 %v7845, %v8035
  %v8047 = vsub.f32 %v7846, %v8035
  %v8048 = vsub.f32 %v7847, %v8035
  %v8049 = vsub.f32 %v7848, %v8035
  %v8050 = vsub.f32 %v7849, %v8035
  %v8051 = vsub.f32 %v7850, %v8035
  %v8052 = vsub.f32 %v7851, %v8035
  %v8053 = vsub.f32 %v7852, %v8035
  %v8054 = vsub.f32 %v7853, %v8035
  %v8055 = vsub.f32 %v7854, %v8035
  %v8056 = vsub.f32 %v7855, %v8035
  %v8057 = vsub.f32 %v7856, %v8035
  %v8058 = vsub.f32 %v7857, %v8035
  %v8059 = vsub.f32 %v7858, %v8035
  %v8060 = vsub.f32 %v7859, %v8035
  %v8061 = vsub.f32 %v7860, %v8035
  %v8062 = vsub.f32 %v7861, %v8035
  %v8063 = vsub.f32 %v7862, %v8035
  %v8064 = vsub.f32 %v7863, %v8035
  %v8065 = vsub.f32 %v7864, %v8035
  %v8066 = vsub.f32 %v7865, %v8035
  %v8067 = vsub.f32 %v7866, %v8035
  %v8068 = vsub.f32 %v7867, %v8035
  %v8069 = vsub.f32 %v7868, %v8035
  %v8070 = vsub.f32 %v7869, %v8035
  %v8071 = vsub.f32 %v7870, %v8035
  %v8072 = vsub.f32 %v7871, %v8035
  %v8073 = vsub.f32 %v7872, %v8035
  %v8074 = vsub.f32 %v7873, %v8035
  %v8075 = vsub.f32 %v7874, %v8035
  %v8076 = vsub.f32 %v7875, %v8035
  %v8077 = vsub.f32 %v7876, %v8035
  %v8078 = vsub.f32 %v7877, %v8035
  %v8079 = vsub.f32 %v7878, %v8035
  %v8080 = vsub.f32 %v7879, %v8035
  %v8081 = vsub.f32 %v7880, %v8035
  %v8082 = vsub.f32 %v7881, %v8035
  %v8083 = vsub.f32 %v7882, %v8035
  %v8084 = vsub.f32 %v7883, %v8035
  %v8085 = vsub.f32 %v7884, %v8035
  %v8086 = vsub.f32 %v7885, %v8035
  %v8087 = vsub.f32 %v7886, %v8035
  %v8088 = vsub.f32 %v7887, %v8035
  %v8089 = vsub.f32 %v7888, %v8035
  %v8090 = vsub.f32 %v7889, %v8035
  %v8091 = vsub.f32 %v7890, %v8035
  %v8092 = vsub.f32 %v7891, %v8035
  %v8093 = vsub.f32 %v7892, %v8035
  %v8094 = vsub.f32 %v7893, %v8035
  %v8095 = vsub.f32 %v7894, %v8035
  %v8096 = vsub.f32 %v7895, %v8035
  %v8097 = vsub.f32 %v7896, %v8035
  %v8098 = vsub.f32 %v7897, %v8035
  %v8099 = vsub.f32 %v7898, %v8035
  %v8100 = vmul.f32 %v8036, %v8036
  %v8101 = vmul.f32 %v8037, %v8037
  %v8102 = vmul.f32 %v8038, %v8038
  %v8103 = vmul.f32 %v8039, %v8039
  %v8104 = vmul.f32 %v8040, %v8040
  %v8105 = vmul.f32 %v8041, %v8041
  %v8106 = vmul.f32 %v8042, %v8042
  %v8107 = vmul.f32 %v8043, %v8043
  %v8108 = vmul.f32 %v8044, %v8044
  %v8109 = vmul.f32 %v8045, %v8045
  %v8110 = vmul.f32 %v8046, %v8046
  %v8111 = vmul.f32 %v8047, %v8047
  %v8112 = vmul.f32 %v8048, %v8048
  %v8113 = vmul.f32 %v8049, %v8049
  %v8114 = vmul.f32 %v8050, %v8050
  %v8115 = vmul.f32 %v8051, %v8051
  %v8116 = vmul.f32 %v8052, %v8052
  %v8117 = vmul.f32 %v8053, %v8053
  %v8118 = vmul.f32 %v8054, %v8054
  %v8119 = vmul.f32 %v8055, %v8055
  %v8120 = vmul.f32 %v8056, %v8056
  %v8121 = vmul.f32 %v8057, %v8057
  %v8122 = vmul.f32 %v8058, %v8058
  %v8123 = vmul.f32 %v8059, %v8059
  %v8124 = vmul.f32 %v8060, %v8060
  %v8125 = vmul.f32 %v8061, %v8061
  %v8126 = vmul.f32 %v8062, %v8062
  %v8127 = vmul.f32 %v8063, %v8063
  %v8128 = vmul.f32 %v8064, %v8064
  %v8129 = vmul.f32 %v8065, %v8065
  %v8130 = vmul.f32 %v8066, %v8066
  %v8131 = vmul.f32 %v8067, %v8067
  %v8132 = vmul.f32 %v8068, %v8068
  %v8133 = vmul.f32 %v8069, %v8069
  %v8134 = vmul.f32 %v8070, %v8070
  %v8135 = vmul.f32 %v8071, %v8071
  %v8136 = vmul.f32 %v8072, %v8072
  %v8137 = vmul.f32 %v8073, %v8073
  %v8138 = vmul.f32 %v8074, %v8074
  %v8139 = vmul.f32 %v8075, %v8075
  %v8140 = vmul.f32 %v8076, %v8076
  %v8141 = vmul.f32 %v8077, %v8077
  %v8142 = vmul.f32 %v8078, %v8078
  %v8143 = vmul.f32 %v8079, %v8079
  %v8144 = vmul.f32 %v8080, %v8080
  %v8145 = vmul.f32 %v8081, %v8081
  %v8146 = vmul.f32 %v8082, %v8082
  %v8147 = vmul.f32 %v8083, %v8083
  %v8148 = vmul.f32 %v8084, %v8084
  %v8149 = vmul.f32 %v8085, %v8085
  %v8150 = vmul.f32 %v8086, %v8086
  %v8151 = vmul.f32 %v8087, %v8087
  %v8152 = vmul.f32 %v8088, %v8088
  %v8153 = vmul.f32 %v8089, %v8089
  %v8154 = vmul.f32 %v8090, %v8090
  %v8155 = vmul.f32 %v8091, %v8091
  %v8156 = vmul.f32 %v8092, %v8092
  %v8157 = vmul.f32 %v8093, %v8093
  %v8158 = vmul.f32 %v8094, %v8094
  %v8159 = vmul.f32 %v8095, %v8095
  %v8160 = vmul.f32 %v8096, %v8096
  %v8161 = vmul.f32 %v8097, %v8097
  %v8162 = vmul.f32 %v8098, %v8098
  %v8163 = vmul.f32 %v8099, %v8099
  %v8164 = vsel %vm7901, %v8100, 0.0
  %v8165 = vsel %vm7901, %v8101, 0.0
  %v8166 = vadd.f32 %v8164, %v8165
  %v8167 = vsel %vm7901, %v8102, 0.0
  %v8168 = vadd.f32 %v8166, %v8167
  %v8169 = vsel %vm7901, %v8103, 0.0
  %v8170 = vadd.f32 %v8168, %v8169
  %v8171 = vsel %vm7901, %v8104, 0.0
  %v8172 = vadd.f32 %v8170, %v8171
  %v8173 = vsel %vm7901, %v8105, 0.0
  %v8174 = vadd.f32 %v8172, %v8173
  %v8175 = vsel %vm7901, %v8106, 0.0
  %v8176 = vadd.f32 %v8174, %v8175
  %v8177 = vsel %vm7901, %v8107, 0.0
  %v8178 = vadd.f32 %v8176, %v8177
  %v8179 = vsel %vm7901, %v8108, 0.0
  %v8180 = vadd.f32 %v8178, %v8179
  %v8181 = vsel %vm7901, %v8109, 0.0
  %v8182 = vadd.f32 %v8180, %v8181
  %v8183 = vsel %vm7901, %v8110, 0.0
  %v8184 = vadd.f32 %v8182, %v8183
  %v8185 = vsel %vm7901, %v8111, 0.0
  %v8186 = vadd.f32 %v8184, %v8185
  %v8187 = vsel %vm7901, %v8112, 0.0
  %v8188 = vadd.f32 %v8186, %v8187
  %v8189 = vsel %vm7901, %v8113, 0.0
  %v8190 = vadd.f32 %v8188, %v8189
  %v8191 = vsel %vm7901, %v8114, 0.0
  %v8192 = vadd.f32 %v8190, %v8191
  %v8193 = vsel %vm7901, %v8115, 0.0
  %v8194 = vadd.f32 %v8192, %v8193
  %v8195 = vsel %vm7901, %v8116, 0.0
  %v8196 = vadd.f32 %v8194, %v8195
  %v8197 = vsel %vm7901, %v8117, 0.0
  %v8198 = vadd.f32 %v8196, %v8197
  %v8199 = vsel %vm7901, %v8118, 0.0
  %v8200 = vadd.f32 %v8198, %v8199
  %v8201 = vsel %vm7901, %v8119, 0.0
  %v8202 = vadd.f32 %v8200, %v8201
  %v8203 = vsel %vm7901, %v8120, 0.0
  %v8204 = vadd.f32 %v8202, %v8203
  %v8205 = vsel %vm7901, %v8121, 0.0
  %v8206 = vadd.f32 %v8204, %v8205
  %v8207 = vsel %vm7901, %v8122, 0.0
  %v8208 = vadd.f32 %v8206, %v8207
  %v8209 = vsel %vm7901, %v8123, 0.0
  %v8210 = vadd.f32 %v8208, %v8209
  %v8211 = vsel %vm7901, %v8124, 0.0
  %v8212 = vadd.f32 %v8210, %v8211
  %v8213 = vsel %vm7901, %v8125, 0.0
  %v8214 = vadd.f32 %v8212, %v8213
  %v8215 = vsel %vm7901, %v8126, 0.0
  %v8216 = vadd.f32 %v8214, %v8215
  %v8217 = vsel %vm7901, %v8127, 0.0
  %v8218 = vadd.f32 %v8216, %v8217
  %v8219 = vsel %vm7901, %v8128, 0.0
  %v8220 = vadd.f32 %v8218, %v8219
  %v8221 = vsel %vm7901, %v8129, 0.0
  %v8222 = vadd.f32 %v8220, %v8221
  %v8223 = vsel %vm7901, %v8130, 0.0
  %v8224 = vadd.f32 %v8222, %v8223
  %v8225 = vsel %vm7901, %v8131, 0.0
  %v8226 = vadd.f32 %v8224, %v8225
  %v8227 = vsel %vm7901, %v8132, 0.0
  %v8228 = vadd.f32 %v8226, %v8227
  %v8229 = vsel %vm7901, %v8133, 0.0
  %v8230 = vadd.f32 %v8228, %v8229
  %v8231 = vsel %vm7901, %v8134, 0.0
  %v8232 = vadd.f32 %v8230, %v8231
  %v8233 = vsel %vm7901, %v8135, 0.0
  %v8234 = vadd.f32 %v8232, %v8233
  %v8235 = vsel %vm7901, %v8136, 0.0
  %v8236 = vadd.f32 %v8234, %v8235
  %v8237 = vsel %vm7901, %v8137, 0.0
  %v8238 = vadd.f32 %v8236, %v8237
  %v8239 = vsel %vm7901, %v8138, 0.0
  %v8240 = vadd.f32 %v8238, %v8239
  %v8241 = vsel %vm7901, %v8139, 0.0
  %v8242 = vadd.f32 %v8240, %v8241
  %v8243 = vsel %vm7901, %v8140, 0.0
  %v8244 = vadd.f32 %v8242, %v8243
  %v8245 = vsel %vm7901, %v8141, 0.0
  %v8246 = vadd.f32 %v8244, %v8245
  %v8247 = vsel %vm7901, %v8142, 0.0
  %v8248 = vadd.f32 %v8246, %v8247
  %v8249 = vsel %vm7901, %v8143, 0.0
  %v8250 = vadd.f32 %v8248, %v8249
  %v8251 = vsel %vm7901, %v8144, 0.0
  %v8252 = vadd.f32 %v8250, %v8251
  %v8253 = vsel %vm7901, %v8145, 0.0
  %v8254 = vadd.f32 %v8252, %v8253
  %v8255 = vsel %vm7901, %v8146, 0.0
  %v8256 = vadd.f32 %v8254, %v8255
  %v8257 = vsel %vm7901, %v8147, 0.0
  %v8258 = vadd.f32 %v8256, %v8257
  %v8259 = vsel %vm7901, %v8148, 0.0
  %v8260 = vadd.f32 %v8258, %v8259
  %v8261 = vsel %vm7901, %v8149, 0.0
  %v8262 = vadd.f32 %v8260, %v8261
  %v8263 = vsel %vm7901, %v8150, 0.0
  %v8264 = vadd.f32 %v8262, %v8263
  %v8265 = vsel %vm7901, %v8151, 0.0
  %v8266 = vadd.f32 %v8264, %v8265
  %v8267 = vsel %vm7901, %v8152, 0.0
  %v8268 = vadd.f32 %v8266, %v8267
  %v8269 = vsel %vm7901, %v8153, 0.0
  %v8270 = vadd.f32 %v8268, %v8269
  %v8271 = vsel %vm7901, %v8154, 0.0
  %v8272 = vadd.f32 %v8270, %v8271
  %v8273 = vsel %vm7901, %v8155, 0.0
  %v8274 = vadd.f32 %v8272, %v8273
  %v8275 = vsel %vm7901, %v8156, 0.0
  %v8276 = vadd.f32 %v8274, %v8275
  %v8277 = vsel %vm7901, %v8157, 0.0
  %v8278 = vadd.f32 %v8276, %v8277
  %v8279 = vsel %vm7901, %v8158, 0.0
  %v8280 = vadd.f32 %v8278, %v8279
  %v8281 = vsel %vm7901, %v8159, 0.0
  %v8282 = vadd.f32 %v8280, %v8281
  %v8283 = vsel %vm7901, %v8160, 0.0
  %v8284 = vadd.f32 %v8282, %v8283
  %v8285 = vsel %vm7901, %v8161, 0.0
  %v8286 = vadd.f32 %v8284, %v8285
  %v8287 = vsel %vm7901, %v8162, 0.0
  %v8288 = vadd.f32 %v8286, %v8287
  %v8289 = vsel %vm7901, %v8163, 0.0
  %v8290 = vadd.f32 %v8288, %v8289
  %v8291 = vrot.slane %v8290, 4
  %v8292 = vadd.f32 %v8290, %v8291
  %v8293 = vrot.slane %v8292, 2
  %v8294 = vadd.f32 %v8292, %v8293
  %v8295 = vrot.slane %v8294, 1
  %v8296 = vadd.f32 %v8294, %v8295
  %v8297 = vmul.f32 %v8296, 0.001953125
  %v8298 = vadd.f32 %v8297, 0.8
  %v8299 = vrsqrt.pop %v8298
  %v8300 = vmul.f32 %v8299, %v7899
  %v8301 = vlaneseq
  %v8302 = vshrl.u32 %v8301, 7
  %v8303 = vsub.s32 0, %v8302
  %v8304 = vrot.slane %v8300, %v8303
  %v8305 = vmul.f32 %v8036, %v8304
  %v8306 = vmul.f32 %v8037, %v8304
  %v8307 = vmul.f32 %v8038, %v8304
  %v8308 = vmul.f32 %v8039, %v8304
  %v8309 = vmul.f32 %v8040, %v8304
  %v8310 = vmul.f32 %v8041, %v8304
  %v8311 = vmul.f32 %v8042, %v8304
  %v8312 = vmul.f32 %v8043, %v8304
  %v8313 = vmul.f32 %v8044, %v8304
  %v8314 = vmul.f32 %v8045, %v8304
  %v8315 = vmul.f32 %v8046, %v8304
  %v8316 = vmul.f32 %v8047, %v8304
  %v8317 = vmul.f32 %v8048, %v8304
  %v8318 = vmul.f32 %v8049, %v8304
  %v8319 = vmul.f32 %v8050, %v8304
  %v8320 = vmul.f32 %v8051, %v8304
  %v8321 = vmul.f32 %v8052, %v8304
  %v8322 = vmul.f32 %v8053, %v8304
  %v8323 = vmul.f32 %v8054, %v8304
  %v8324 = vmul.f32 %v8055, %v8304
  %v8325 = vmul.f32 %v8056, %v8304
  %v8326 = vmul.f32 %v8057, %v8304
  %v8327 = vmul.f32 %v8058, %v8304
  %v8328 = vmul.f32 %v8059, %v8304
  %v8329 = vmul.f32 %v8060, %v8304
  %v8330 = vmul.f32 %v8061, %v8304
  %v8331 = vmul.f32 %v8062, %v8304
  %v8332 = vmul.f32 %v8063, %v8304
  %v8333 = vmul.f32 %v8064, %v8304
  %v8334 = vmul.f32 %v8065, %v8304
  %v8335 = vmul.f32 %v8066, %v8304
  %v8336 = vmul.f32 %v8067, %v8304
  %v8337 = vmul.f32 %v8068, %v8304
  %v8338 = vmul.f32 %v8069, %v8304
  %v8339 = vmul.f32 %v8070, %v8304
  %v8340 = vmul.f32 %v8071, %v8304
  %v8341 = vmul.f32 %v8072, %v8304
  %v8342 = vmul.f32 %v8073, %v8304
  %v8343 = vmul.f32 %v8074, %v8304
  %v8344 = vmul.f32 %v8075, %v8304
  %v8345 = vmul.f32 %v8076, %v8304
  %v8346 = vmul.f32 %v8077, %v8304
  %v8347 = vmul.f32 %v8078, %v8304
  %v8348 = vmul.f32 %v8079, %v8304
  %v8349 = vmul.f32 %v8080, %v8304
  %v8350 = vmul.f32 %v8081, %v8304
  %v8351 = vmul.f32 %v8082, %v8304
  %v8352 = vmul.f32 %v8083, %v8304
  %v8353 = vmul.f32 %v8084, %v8304
  %v8354 = vmul.f32 %v8085, %v8304
  %v8355 = vmul.f32 %v8086, %v8304
  %v8356 = vmul.f32 %v8087, %v8304
  %v8357 = vmul.f32 %v8088, %v8304
  %v8358 = vmul.f32 %v8089, %v8304
  %v8359 = vmul.f32 %v8090, %v8304
  %v8360 = vmul.f32 %v8091, %v8304
  %v8361 = vmul.f32 %v8092, %v8304
  %v8362 = vmul.f32 %v8093, %v8304
  %v8363 = vmul.f32 %v8094, %v8304
  %v8364 = vmul.f32 %v8095, %v8304
  %v8365 = vmul.f32 %v8096, %v8304
  %v8366 = vmul.f32 %v8097, %v8304
  %v8367 = vmul.f32 %v8098, %v8304
  %v8368 = vmul.f32 %v8099, %v8304
  %v8370 = vlaneseq
  %v8371 = vshrl.u32 %v8370, 7
  %v8372 = vsub.s32 0, %v8371
  %v8373 = vrot.slane %v7900, %v8372
  %v8375 = vadd.f32 %v8305, %v8373
  %v8376 = vadd.f32 %v8306, %v8373
  %v8377 = vadd.f32 %v8307, %v8373
  %v8378 = vadd.f32 %v8308, %v8373
  %v8379 = vadd.f32 %v8309, %v8373
  %v8380 = vadd.f32 %v8310, %v8373
  %v8381 = vadd.f32 %v8311, %v8373
  %v8382 = vadd.f32 %v8312, %v8373
  %v8383 = vadd.f32 %v8313, %v8373
  %v8384 = vadd.f32 %v8314, %v8373
  %v8385 = vadd.f32 %v8315, %v8373
  %v8386 = vadd.f32 %v8316, %v8373
  %v8387 = vadd.f32 %v8317, %v8373
  %v8388 = vadd.f32 %v8318, %v8373
  %v8389 = vadd.f32 %v8319, %v8373
  %v8390 = vadd.f32 %v8320, %v8373
  %v8391 = vadd.f32 %v8321, %v8373
  %v8392 = vadd.f32 %v8322, %v8373
  %v8393 = vadd.f32 %v8323, %v8373
  %v8394 = vadd.f32 %v8324, %v8373
  %v8395 = vadd.f32 %v8325, %v8373
  %v8396 = vadd.f32 %v8326, %v8373
  %v8397 = vadd.f32 %v8327, %v8373
  %v8398 = vadd.f32 %v8328, %v8373
  %v8399 = vadd.f32 %v8329, %v8373
  %v8400 = vadd.f32 %v8330, %v8373
  %v8401 = vadd.f32 %v8331, %v8373
  %v8402 = vadd.f32 %v8332, %v8373
  %v8403 = vadd.f32 %v8333, %v8373
  %v8404 = vadd.f32 %v8334, %v8373
  %v8405 = vadd.f32 %v8335, %v8373
  %v8406 = vadd.f32 %v8336, %v8373
  %v8407 = vadd.f32 %v8337, %v8373
  %v8408 = vadd.f32 %v8338, %v8373
  %v8409 = vadd.f32 %v8339, %v8373
  %v8410 = vadd.f32 %v8340, %v8373
  %v8411 = vadd.f32 %v8341, %v8373
  %v8412 = vadd.f32 %v8342, %v8373
  %v8413 = vadd.f32 %v8343, %v8373
  %v8414 = vadd.f32 %v8344, %v8373
  %v8415 = vadd.f32 %v8345, %v8373
  %v8416 = vadd.f32 %v8346, %v8373
  %v8417 = vadd.f32 %v8347, %v8373
  %v8418 = vadd.f32 %v8348, %v8373
  %v8419 = vadd.f32 %v8349, %v8373
  %v8420 = vadd.f32 %v8350, %v8373
  %v8421 = vadd.f32 %v8351, %v8373
  %v8422 = vadd.f32 %v8352, %v8373
  %v8423 = vadd.f32 %v8353, %v8373
  %v8424 = vadd.f32 %v8354, %v8373
  %v8425 = vadd.f32 %v8355, %v8373
  %v8426 = vadd.f32 %v8356, %v8373
  %v8427 = vadd.f32 %v8357, %v8373
  %v8428 = vadd.f32 %v8358, %v8373
  %v8429 = vadd.f32 %v8359, %v8373
  %v8430 = vadd.f32 %v8360, %v8373
  %v8431 = vadd.f32 %v8361, %v8373
  %v8432 = vadd.f32 %v8362, %v8373
  %v8433 = vadd.f32 %v8363, %v8373
  %v8434 = vadd.f32 %v8364, %v8373
  %v8435 = vadd.f32 %v8365, %v8373
  %v8436 = vadd.f32 %v8366, %v8373
  %v8437 = vadd.f32 %v8367, %v8373
  %v8438 = vadd.f32 %v8368, %v8373
  %vm8439 = vcmp.ge.f32.partialorder %v8375, 0.0
  %vm8440 = vcmp.ge.f32.partialorder %v8376, 0.0
  %vm8441 = vcmp.ge.f32.partialorder %v8377, 0.0
  %vm8442 = vcmp.ge.f32.partialorder %v8378, 0.0
  %vm8443 = vcmp.ge.f32.partialorder %v8379, 0.0
  %vm8444 = vcmp.ge.f32.partialorder %v8380, 0.0
  %vm8445 = vcmp.ge.f32.partialorder %v8381, 0.0
  %vm8446 = vcmp.ge.f32.partialorder %v8382, 0.0
  %vm8447 = vcmp.ge.f32.partialorder %v8383, 0.0
  %vm8448 = vcmp.ge.f32.partialorder %v8384, 0.0
  %vm8449 = vcmp.ge.f32.partialorder %v8385, 0.0
  %vm8450 = vcmp.ge.f32.partialorder %v8386, 0.0
  %vm8451 = vcmp.ge.f32.partialorder %v8387, 0.0
  %vm8452 = vcmp.ge.f32.partialorder %v8388, 0.0
  %vm8453 = vcmp.ge.f32.partialorder %v8389, 0.0
  %vm8454 = vcmp.ge.f32.partialorder %v8390, 0.0
  %vm8455 = vcmp.ge.f32.partialorder %v8391, 0.0
  %vm8456 = vcmp.ge.f32.partialorder %v8392, 0.0
  %vm8457 = vcmp.ge.f32.partialorder %v8393, 0.0
  %vm8458 = vcmp.ge.f32.partialorder %v8394, 0.0
  %vm8459 = vcmp.ge.f32.partialorder %v8395, 0.0
  %vm8460 = vcmp.ge.f32.partialorder %v8396, 0.0
  %vm8461 = vcmp.ge.f32.partialorder %v8397, 0.0
  %vm8462 = vcmp.ge.f32.partialorder %v8398, 0.0
  %vm8463 = vcmp.ge.f32.partialorder %v8399, 0.0
  %vm8464 = vcmp.ge.f32.partialorder %v8400, 0.0
  %vm8465 = vcmp.ge.f32.partialorder %v8401, 0.0
  %vm8466 = vcmp.ge.f32.partialorder %v8402, 0.0
  %vm8467 = vcmp.ge.f32.partialorder %v8403, 0.0
  %vm8468 = vcmp.ge.f32.partialorder %v8404, 0.0
  %vm8469 = vcmp.ge.f32.partialorder %v8405, 0.0
  %vm8470 = vcmp.ge.f32.partialorder %v8406, 0.0
  %vm8471 = vcmp.ge.f32.partialorder %v8407, 0.0
  %vm8472 = vcmp.ge.f32.partialorder %v8408, 0.0
  %vm8473 = vcmp.ge.f32.partialorder %v8409, 0.0
  %vm8474 = vcmp.ge.f32.partialorder %v8410, 0.0
  %vm8475 = vcmp.ge.f32.partialorder %v8411, 0.0
  %vm8476 = vcmp.ge.f32.partialorder %v8412, 0.0
  %vm8477 = vcmp.ge.f32.partialorder %v8413, 0.0
  %vm8478 = vcmp.ge.f32.partialorder %v8414, 0.0
  %vm8479 = vcmp.ge.f32.partialorder %v8415, 0.0
  %vm8480 = vcmp.ge.f32.partialorder %v8416, 0.0
  %vm8481 = vcmp.ge.f32.partialorder %v8417, 0.0
  %vm8482 = vcmp.ge.f32.partialorder %v8418, 0.0
  %vm8483 = vcmp.ge.f32.partialorder %v8419, 0.0
  %vm8484 = vcmp.ge.f32.partialorder %v8420, 0.0
  %vm8485 = vcmp.ge.f32.partialorder %v8421, 0.0
  %vm8486 = vcmp.ge.f32.partialorder %v8422, 0.0
  %vm8487 = vcmp.ge.f32.partialorder %v8423, 0.0
  %vm8488 = vcmp.ge.f32.partialorder %v8424, 0.0
  %vm8489 = vcmp.ge.f32.partialorder %v8425, 0.0
  %vm8490 = vcmp.ge.f32.partialorder %v8426, 0.0
  %vm8491 = vcmp.ge.f32.partialorder %v8427, 0.0
  %vm8492 = vcmp.ge.f32.partialorder %v8428, 0.0
  %vm8493 = vcmp.ge.f32.partialorder %v8429, 0.0
  %vm8494 = vcmp.ge.f32.partialorder %v8430, 0.0
  %vm8495 = vcmp.ge.f32.partialorder %v8431, 0.0
  %vm8496 = vcmp.ge.f32.partialorder %v8432, 0.0
  %vm8497 = vcmp.ge.f32.partialorder %v8433, 0.0
  %vm8498 = vcmp.ge.f32.partialorder %v8434, 0.0
  %vm8499 = vcmp.ge.f32.partialorder %v8435, 0.0
  %vm8500 = vcmp.ge.f32.partialorder %v8436, 0.0
  %vm8501 = vcmp.ge.f32.partialorder %v8437, 0.0
  %vm8502 = vcmp.ge.f32.partialorder %v8438, 0.0
  %v8503 = vmul.f32 %v8375, 0.2
  %v8504 = vmul.f32 %v8376, 0.2
  %v8505 = vmul.f32 %v8377, 0.2
  %v8506 = vmul.f32 %v8378, 0.2
  %v8507 = vmul.f32 %v8379, 0.2
  %v8508 = vmul.f32 %v8380, 0.2
  %v8509 = vmul.f32 %v8381, 0.2
  %v8510 = vmul.f32 %v8382, 0.2
  %v8511 = vmul.f32 %v8383, 0.2
  %v8512 = vmul.f32 %v8384, 0.2
  %v8513 = vmul.f32 %v8385, 0.2
  %v8514 = vmul.f32 %v8386, 0.2
  %v8515 = vmul.f32 %v8387, 0.2
  %v8516 = vmul.f32 %v8388, 0.2
  %v8517 = vmul.f32 %v8389, 0.2
  %v8518 = vmul.f32 %v8390, 0.2
  %v8519 = vmul.f32 %v8391, 0.2
  %v8520 = vmul.f32 %v8392, 0.2
  %v8521 = vmul.f32 %v8393, 0.2
  %v8522 = vmul.f32 %v8394, 0.2
  %v8523 = vmul.f32 %v8395, 0.2
  %v8524 = vmul.f32 %v8396, 0.2
  %v8525 = vmul.f32 %v8397, 0.2
  %v8526 = vmul.f32 %v8398, 0.2
  %v8527 = vmul.f32 %v8399, 0.2
  %v8528 = vmul.f32 %v8400, 0.2
  %v8529 = vmul.f32 %v8401, 0.2
  %v8530 = vmul.f32 %v8402, 0.2
  %v8531 = vmul.f32 %v8403, 0.2
  %v8532 = vmul.f32 %v8404, 0.2
  %v8533 = vmul.f32 %v8405, 0.2
  %v8534 = vmul.f32 %v8406, 0.2
  %v8535 = vmul.f32 %v8407, 0.2
  %v8536 = vmul.f32 %v8408, 0.2
  %v8537 = vmul.f32 %v8409, 0.2
  %v8538 = vmul.f32 %v8410, 0.2
  %v8539 = vmul.f32 %v8411, 0.2
  %v8540 = vmul.f32 %v8412, 0.2
  %v8541 = vmul.f32 %v8413, 0.2
  %v8542 = vmul.f32 %v8414, 0.2
  %v8543 = vmul.f32 %v8415, 0.2
  %v8544 = vmul.f32 %v8416, 0.2
  %v8545 = vmul.f32 %v8417, 0.2
  %v8546 = vmul.f32 %v8418, 0.2
  %v8547 = vmul.f32 %v8419, 0.2
  %v8548 = vmul.f32 %v8420, 0.2
  %v8549 = vmul.f32 %v8421, 0.2
  %v8550 = vmul.f32 %v8422, 0.2
  %v8551 = vmul.f32 %v8423, 0.2
  %v8552 = vmul.f32 %v8424, 0.2
  %v8553 = vmul.f32 %v8425, 0.2
  %v8554 = vmul.f32 %v8426, 0.2
  %v8555 = vmul.f32 %v8427, 0.2
  %v8556 = vmul.f32 %v8428, 0.2
  %v8557 = vmul.f32 %v8429, 0.2
  %v8558 = vmul.f32 %v8430, 0.2
  %v8559 = vmul.f32 %v8431, 0.2
  %v8560 = vmul.f32 %v8432, 0.2
  %v8561 = vmul.f32 %v8433, 0.2
  %v8562 = vmul.f32 %v8434, 0.2
  %v8563 = vmul.f32 %v8435, 0.2
  %v8564 = vmul.f32 %v8436, 0.2
  %v8565 = vmul.f32 %v8437, 0.2
  %v8566 = vmul.f32 %v8438, 0.2
  %v8567 = vsel %vm8439, %v8375, %v8503
  %v8568 = vsel %vm8440, %v8376, %v8504
  %v8569 = vsel %vm8441, %v8377, %v8505
  %v8570 = vsel %vm8442, %v8378, %v8506
  %v8571 = vsel %vm8443, %v8379, %v8507
  %v8572 = vsel %vm8444, %v8380, %v8508
  %v8573 = vsel %vm8445, %v8381, %v8509
  %v8574 = vsel %vm8446, %v8382, %v8510
  %v8575 = vsel %vm8447, %v8383, %v8511
  %v8576 = vsel %vm8448, %v8384, %v8512
  %v8577 = vsel %vm8449, %v8385, %v8513
  %v8578 = vsel %vm8450, %v8386, %v8514
  %v8579 = vsel %vm8451, %v8387, %v8515
  %v8580 = vsel %vm8452, %v8388, %v8516
  %v8581 = vsel %vm8453, %v8389, %v8517
  %v8582 = vsel %vm8454, %v8390, %v8518
  %v8583 = vsel %vm8455, %v8391, %v8519
  %v8584 = vsel %vm8456, %v8392, %v8520
  %v8585 = vsel %vm8457, %v8393, %v8521
  %v8586 = vsel %vm8458, %v8394, %v8522
  %v8587 = vsel %vm8459, %v8395, %v8523
  %v8588 = vsel %vm8460, %v8396, %v8524
  %v8589 = vsel %vm8461, %v8397, %v8525
  %v8590 = vsel %vm8462, %v8398, %v8526
  %v8591 = vsel %vm8463, %v8399, %v8527
  %v8592 = vsel %vm8464, %v8400, %v8528
  %v8593 = vsel %vm8465, %v8401, %v8529
  %v8594 = vsel %vm8466, %v8402, %v8530
  %v8595 = vsel %vm8467, %v8403, %v8531
  %v8596 = vsel %vm8468, %v8404, %v8532
  %v8597 = vsel %vm8469, %v8405, %v8533
  %v8598 = vsel %vm8470, %v8406, %v8534
  %v8599 = vsel %vm8471, %v8407, %v8535
  %v8600 = vsel %vm8472, %v8408, %v8536
  %v8601 = vsel %vm8473, %v8409, %v8537
  %v8602 = vsel %vm8474, %v8410, %v8538
  %v8603 = vsel %vm8475, %v8411, %v8539
  %v8604 = vsel %vm8476, %v8412, %v8540
  %v8605 = vsel %vm8477, %v8413, %v8541
  %v8606 = vsel %vm8478, %v8414, %v8542
  %v8607 = vsel %vm8479, %v8415, %v8543
  %v8608 = vsel %vm8480, %v8416, %v8544
  %v8609 = vsel %vm8481, %v8417, %v8545
  %v8610 = vsel %vm8482, %v8418, %v8546
  %v8611 = vsel %vm8483, %v8419, %v8547
  %v8612 = vsel %vm8484, %v8420, %v8548
  %v8613 = vsel %vm8485, %v8421, %v8549
  %v8614 = vsel %vm8486, %v8422, %v8550
  %v8615 = vsel %vm8487, %v8423, %v8551
  %v8616 = vsel %vm8488, %v8424, %v8552
  %v8617 = vsel %vm8489, %v8425, %v8553
  %v8618 = vsel %vm8490, %v8426, %v8554
  %v8619 = vsel %vm8491, %v8427, %v8555
  %v8620 = vsel %vm8492, %v8428, %v8556
  %v8621 = vsel %vm8493, %v8429, %v8557
  %v8622 = vsel %vm8494, %v8430, %v8558
  %v8623 = vsel %vm8495, %v8431, %v8559
  %v8624 = vsel %vm8496, %v8432, %v8560
  %v8625 = vsel %vm8497, %v8433, %v8561
  %v8626 = vsel %vm8498, %v8434, %v8562
  %v8627 = vsel %vm8499, %v8435, %v8563
  %v8628 = vsel %vm8500, %v8436, %v8564
  %v8629 = vsel %vm8501, %v8437, %v8565
  %v8630 = vsel %vm8502, %v8438, %v8566
  %8631 = vst.msk [vmem:[#allocation4] sm:$0xff] %vm7901, 0.0
  %8632 = vst.msk [vmem:[#allocation4 + $0x8] sm:$0xff] %vm7901, 0.0
  %vm8633 = vcmask 517120
  %8634 = vst.msk [vmem:[#allocation4 + $0x10] sm:$0x3] %vm8633, 0.0
  %8635 = vst.msk [vmem:[#allocation4 + $0x18] sm:$0xff] %vm7901, 0.0
  %8636 = vst.msk [vmem:[#allocation4 + $0x20] sm:$0xff] %vm7901, 0.0
  %8637 = vst.msk [vmem:[#allocation4 + $0x28] sm:$0x3] %vm8633, 0.0
  %8638 = vst.msk [vmem:[#allocation4 + $0x30] sm:$0xff] %vm7901, 0.0
  %8639 = vst.msk [vmem:[#allocation4 + $0x38] sm:$0xff] %vm7901, 0.0
  %8640 = vst.msk [vmem:[#allocation4 + $0x40] sm:$0x3] %vm8633, 0.0
  %8641 = vst.msk [vmem:[#allocation4 + $0x48] sm:$0xff] %vm7901, 0.0
  %8642 = vst.msk [vmem:[#allocation4 + $0x50] sm:$0xff] %vm7901, 0.0
  %8643 = vst.msk [vmem:[#allocation4 + $0x58] sm:$0x3] %vm8633, 0.0
  %8644 = vst.msk [vmem:[#allocation4 + $0x60] sm:$0xff] %vm7901, 0.0
  %8645 = vst.msk [vmem:[#allocation4 + $0x68] sm:$0xff] %vm7901, 0.0
  %8646 = vst.msk [vmem:[#allocation4 + $0x70] sm:$0x3] %vm8633, 0.0
  %8647 = vst.msk [vmem:[#allocation4 + $0x78] sm:$0xff] %vm7901, 0.0
  %8648 = vst.msk [vmem:[#allocation4 + $0x80] sm:$0xff] %vm7901, 0.0
  %8649 = vst.msk [vmem:[#allocation4 + $0x88] sm:$0x3] %vm8633, 0.0
  %8650 = vst.msk [vmem:[#allocation4 + $0x90] sm:$0xff] %vm7901, 0.0
  %8651 = vst.msk [vmem:[#allocation4 + $0x98] sm:$0xff] %vm7901, 0.0
  %8652 = vst.msk [vmem:[#allocation4 + $0xa0] sm:$0x3] %vm8633, 0.0
  %8653 = vst.msk [vmem:[#allocation4 + $0xa8] sm:$0xff] %vm7901, 0.0
  %8654 = vst.msk [vmem:[#allocation4 + $0xb0] sm:$0xff] %vm7901, 0.0
  %8655 = vst.msk [vmem:[#allocation4 + $0xb8] sm:$0x3] %vm8633, 0.0
  %8656 = vst.msk [vmem:[#allocation4 + $0xc0] sm:$0xff] %vm7901, 0.0
  %8657 = vst.msk [vmem:[#allocation4 + $0xc8] sm:$0xff] %vm7901, 0.0
  %8658 = vst.msk [vmem:[#allocation4 + $0xd0] sm:$0x3] %vm8633, 0.0
  %8659 = vst.msk [vmem:[#allocation4 + $0xd8] sm:$0xff] %vm7901, 0.0
  %8660 = vst.msk [vmem:[#allocation4 + $0xe0] sm:$0xff] %vm7901, 0.0
  %8661 = vst.msk [vmem:[#allocation4 + $0xe8] sm:$0x3] %vm8633, 0.0
  %8662 = vst.msk [vmem:[#allocation4 + $0xf0] sm:$0xff] %vm7901, 0.0
  %8663 = vst.msk [vmem:[#allocation4 + $0xf8] sm:$0xff] %vm7901, 0.0
  %8664 = vst.msk [vmem:[#allocation4 + $0x100] sm:$0x3] %vm8633, 0.0
  %8665 = vst.msk [vmem:[#allocation4 + $0x108] sm:$0xff] %vm7901, 0.0
  %8666 = vst.msk [vmem:[#allocation4 + $0x110] sm:$0xff] %vm7901, 0.0
  %8667 = vst.msk [vmem:[#allocation4 + $0x118] sm:$0x3] %vm8633, 0.0
  %8668 = vst.msk [vmem:[#allocation4 + $0x120] sm:$0xff] %vm7901, 0.0
  %8669 = vst.msk [vmem:[#allocation4 + $0x128] sm:$0xff] %vm7901, 0.0
  %8670 = vst.msk [vmem:[#allocation4 + $0x130] sm:$0x3] %vm8633, 0.0
  %8671 = vst.msk [vmem:[#allocation4 + $0x138] sm:$0xff] %vm7901, 0.0
  %8672 = vst.msk [vmem:[#allocation4 + $0x140] sm:$0xff] %vm7901, 0.0
  %8673 = vst.msk [vmem:[#allocation4 + $0x148] sm:$0x3] %vm8633, 0.0
  %8674 = vst.msk [vmem:[#allocation4 + $0x150] sm:$0xff] %vm7901, 0.0
  %8675 = vst.msk [vmem:[#allocation4 + $0x158] sm:$0xff] %vm7901, 0.0
  %8676 = vst.msk [vmem:[#allocation4 + $0x160] sm:$0x3] %vm8633, 0.0
  %8677 = vst.msk [vmem:[#allocation4 + $0x168] sm:$0xff] %vm7901, 0.0
  %8678 = vst.msk [vmem:[#allocation4 + $0x170] sm:$0xff] %vm7901, 0.0
  %8679 = vst.msk [vmem:[#allocation4 + $0x178] sm:$0x3] %vm8633, 0.0
  %8680 = vst.msk [vmem:[#allocation4 + $0x180] sm:$0xff] %vm7901, 0.0
  %8681 = vst.msk [vmem:[#allocation4 + $0x188] sm:$0xff] %vm7901, 0.0
  %8682 = vst.msk [vmem:[#allocation4 + $0x190] sm:$0x3] %vm8633, 0.0
  %8683 = vst.msk [vmem:[#allocation4 + $0x198] sm:$0xff] %vm7901, 0.0
  %8684 = vst.msk [vmem:[#allocation4 + $0x1a0] sm:$0xff] %vm7901, 0.0
  %8685 = vst.msk [vmem:[#allocation4 + $0x1a8] sm:$0x3] %vm8633, 0.0
  %8686 = vst.msk [vmem:[#allocation4 + $0x1b0] sm:$0xff] %vm7901, 0.0
  %8687 = vst.msk [vmem:[#allocation4 + $0x1b8] sm:$0xff] %vm7901, 0.0
  %8688 = vst.msk [vmem:[#allocation4 + $0x1c0] sm:$0x3] %vm8633, 0.0
  %8689 = vst.msk [vmem:[#allocation4 + $0x1c8] sm:$0xff] %vm7901, 0.0
  %8690 = vst.msk [vmem:[#allocation4 + $0x1d0] sm:$0xff] %vm7901, 0.0
  %8691 = vst.msk [vmem:[#allocation4 + $0x1d8] sm:$0x3] %vm8633, 0.0
  %8692 = vst.msk [vmem:[#allocation4 + $0x1e0] sm:$0xff] %vm7901, 0.0
  %8693 = vst.msk [vmem:[#allocation4 + $0x1e8] sm:$0xff] %vm7901, 0.0
  %8694 = vst.msk [vmem:[#allocation4 + $0x1f0] sm:$0x3] %vm8633, 0.0
  %8695 = vst.msk [vmem:[#allocation4 + $0x1f8] sm:$0xff] %vm7901, 0.0
  %8696 = vst.msk [vmem:[#allocation4 + $0x200] sm:$0xff] %vm7901, 0.0
  %8697 = vst.msk [vmem:[#allocation4 + $0x208] sm:$0x3] %vm8633, 0.0
  %8698 = vst.msk [vmem:[#allocation4 + $0x210] sm:$0xff] %vm7901, 0.0
  %8699 = vst.msk [vmem:[#allocation4 + $0x218] sm:$0xff] %vm7901, 0.0
  %8700 = vst.msk [vmem:[#allocation4 + $0x220] sm:$0x3] %vm8633, 0.0
  %8701 = vst.msk [vmem:[#allocation4 + $0x228] sm:$0xff] %vm7901, 0.0
  %8702 = vst.msk [vmem:[#allocation4 + $0x230] sm:$0xff] %vm7901, 0.0
  %8703 = vst.msk [vmem:[#allocation4 + $0x238] sm:$0x3] %vm8633, 0.0
  %8704 = vst.msk [vmem:[#allocation4 + $0x240] sm:$0xff] %vm7901, 0.0
  %8705 = vst.msk [vmem:[#allocation4 + $0x248] sm:$0xff] %vm7901, 0.0
  %8706 = vst.msk [vmem:[#allocation4 + $0x250] sm:$0x3] %vm8633, 0.0
  %8707 = vst.msk [vmem:[#allocation4 + $0x258] sm:$0xff] %vm7901, 0.0
  %8708 = vst.msk [vmem:[#allocation4 + $0x260] sm:$0xff] %vm7901, 0.0
  %8709 = vst.msk [vmem:[#allocation4 + $0x268] sm:$0x3] %vm8633, 0.0
  %8710 = vst.msk [vmem:[#allocation4 + $0x270] sm:$0xff] %vm7901, 0.0
  %8711 = vst.msk [vmem:[#allocation4 + $0x278] sm:$0xff] %vm7901, 0.0
  %8712 = vst.msk [vmem:[#allocation4 + $0x280] sm:$0x3] %vm8633, 0.0
  %8713 = vst.msk [vmem:[#allocation4 + $0x288] sm:$0xff] %vm7901, 0.0
  %8714 = vst.msk [vmem:[#allocation4 + $0x290] sm:$0xff] %vm7901, 0.0
  %8715 = vst.msk [vmem:[#allocation4 + $0x298] sm:$0x3] %vm8633, 0.0
  %8716 = vst.msk [vmem:[#allocation4 + $0x2a0] sm:$0xff] %vm7901, 0.0
  %8717 = vst.msk [vmem:[#allocation4 + $0x2a8] sm:$0xff] %vm7901, 0.0
  %8718 = vst.msk [vmem:[#allocation4 + $0x2b0] sm:$0x3] %vm8633, 0.0
  %8719 = vst.msk [vmem:[#allocation4 + $0x2b8] sm:$0xff] %vm7901, 0.0
  %8720 = vst.msk [vmem:[#allocation4 + $0x2c0] sm:$0xff] %vm7901, 0.0
  %8721 = vst.msk [vmem:[#allocation4 + $0x2c8] sm:$0x3] %vm8633, 0.0
  %8722 = vst.msk [vmem:[#allocation4 + $0x2d0] sm:$0xff] %vm7901, 0.0
  %8723 = vst.msk [vmem:[#allocation4 + $0x2d8] sm:$0xff] %vm7901, 0.0
  %8724 = vst.msk [vmem:[#allocation4 + $0x2e0] sm:$0x3] %vm8633, 0.0
  %8725 = vst.msk [vmem:[#allocation4 + $0x2e8] sm:$0xff] %vm7901, 0.0
  %8726 = vst.msk [vmem:[#allocation4 + $0x2f0] sm:$0xff] %vm7901, 0.0
  %8727 = vst.msk [vmem:[#allocation4 + $0x2f8] sm:$0x3] %vm8633, 0.0
  %8728 = vst.msk [vmem:[#allocation4 + $0x300] sm:$0xff] %vm7901, 0.0
  %8729 = vst.msk [vmem:[#allocation4 + $0x308] sm:$0xff] %vm7901, 0.0
  %8730 = vst.msk [vmem:[#allocation4 + $0x310] sm:$0x3] %vm8633, 0.0
  %8731 = vst.msk [vmem:[#allocation4 + $0x318] sm:$0xff] %vm7901, 0.0
  %8732 = vst.msk [vmem:[#allocation4 + $0x320] sm:$0xff] %vm7901, 0.0
  %8733 = vst.msk [vmem:[#allocation4 + $0x328] sm:$0x3] %vm8633, 0.0
  %8734 = vst.msk [vmem:[#allocation4 + $0x330] sm:$0xff] %vm7901, 0.0
  %8735 = vst.msk [vmem:[#allocation4 + $0x338] sm:$0xff] %vm7901, 0.0
  %8736 = vst.msk [vmem:[#allocation4 + $0x340] sm:$0x3] %vm8633, 0.0
  %8737 = vst.msk [vmem:[#allocation4 + $0x348] sm:$0xff] %vm7901, 0.0
  %8738 = vst.msk [vmem:[#allocation4 + $0x350] sm:$0xff] %vm7901, 0.0
  %8739 = vst.msk [vmem:[#allocation4 + $0x358] sm:$0x3] %vm8633, 0.0
  %s8740 = scalar_lea.vmem [#allocation4], 24
  %8741 = vst.msk [vmem:[%s8740 + $0x1] sm:$0xff] %vm7901, %v8567
  %8742 = vst.msk [vmem:[%s8740 + $0x9] sm:$0xff] %vm7901, %v8568
  %8743 = vst.msk [vmem:[%s8740 + $0x19] sm:$0xff] %vm7901, %v8569
  %8744 = vst.msk [vmem:[%s8740 + $0x21] sm:$0xff] %vm7901, %v8570
  %8745 = vst.msk [vmem:[%s8740 + $0x31] sm:$0xff] %vm7901, %v8571
  %8746 = vst.msk [vmem:[%s8740 + $0x39] sm:$0xff] %vm7901, %v8572
  %8747 = vst.msk [vmem:[%s8740 + $0x49] sm:$0xff] %vm7901, %v8573
  %8748 = vst.msk [vmem:[%s8740 + $0x51] sm:$0xff] %vm7901, %v8574
  %8749 = vst.msk [vmem:[%s8740 + $0x61] sm:$0xff] %vm7901, %v8575
  %8750 = vst.msk [vmem:[%s8740 + $0x69] sm:$0xff] %vm7901, %v8576
  %8751 = vst.msk [vmem:[%s8740 + $0x79] sm:$0xff] %vm7901, %v8577
  %8752 = vst.msk [vmem:[%s8740 + $0x81] sm:$0xff] %vm7901, %v8578
  %8753 = vst.msk [vmem:[%s8740 + $0x91] sm:$0xff] %vm7901, %v8579
  %8754 = vst.msk [vmem:[%s8740 + $0x99] sm:$0xff] %vm7901, %v8580
  %8755 = vst.msk [vmem:[%s8740 + $0xa9] sm:$0xff] %vm7901, %v8581
  %8756 = vst.msk [vmem:[%s8740 + $0xb1] sm:$0xff] %vm7901, %v8582
  %8757 = vst.msk [vmem:[%s8740 + $0xc1] sm:$0xff] %vm7901, %v8583
  %8758 = vst.msk [vmem:[%s8740 + $0xc9] sm:$0xff] %vm7901, %v8584
  %8759 = vst.msk [vmem:[%s8740 + $0xd9] sm:$0xff] %vm7901, %v8585
  %8760 = vst.msk [vmem:[%s8740 + $0xe1] sm:$0xff] %vm7901, %v8586
  %8761 = vst.msk [vmem:[%s8740 + $0xf1] sm:$0xff] %vm7901, %v8587
  %8762 = vst.msk [vmem:[%s8740 + $0xf9] sm:$0xff] %vm7901, %v8588
  %8763 = vst.msk [vmem:[%s8740 + $0x109] sm:$0xff] %vm7901, %v8589
  %8764 = vst.msk [vmem:[%s8740 + $0x111] sm:$0xff] %vm7901, %v8590
  %8765 = vst.msk [vmem:[%s8740 + $0x121] sm:$0xff] %vm7901, %v8591
  %8766 = vst.msk [vmem:[%s8740 + $0x129] sm:$0xff] %vm7901, %v8592
  %8767 = vst.msk [vmem:[%s8740 + $0x139] sm:$0xff] %vm7901, %v8593
  %8768 = vst.msk [vmem:[%s8740 + $0x141] sm:$0xff] %vm7901, %v8594
  %8769 = vst.msk [vmem:[%s8740 + $0x151] sm:$0xff] %vm7901, %v8595
  %8770 = vst.msk [vmem:[%s8740 + $0x159] sm:$0xff] %vm7901, %v8596
  %8771 = vst.msk [vmem:[%s8740 + $0x169] sm:$0xff] %vm7901, %v8597
  %8772 = vst.msk [vmem:[%s8740 + $0x171] sm:$0xff] %vm7901, %v8598
  %8773 = vst.msk [vmem:[%s8740 + $0x1b1] sm:$0xff] %vm7901, %v8599
  %8774 = vst.msk [vmem:[%s8740 + $0x1b9] sm:$0xff] %vm7901, %v8600
  %8775 = vst.msk [vmem:[%s8740 + $0x1c9] sm:$0xff] %vm7901, %v8601
  %8776 = vst.msk [vmem:[%s8740 + $0x1d1] sm:$0xff] %vm7901, %v8602
  %8777 = vst.msk [vmem:[%s8740 + $0x1e1] sm:$0xff] %vm7901, %v8603
  %8778 = vst.msk [vmem:[%s8740 + $0x1e9] sm:$0xff] %vm7901, %v8604
  %8779 = vst.msk [vmem:[%s8740 + $0x1f9] sm:$0xff] %vm7901, %v8605
  %8780 = vst.msk [vmem:[%s8740 + $0x201] sm:$0xff] %vm7901, %v8606
  %8781 = vst.msk [vmem:[%s8740 + $0x211] sm:$0xff] %vm7901, %v8607
  %8782 = vst.msk [vmem:[%s8740 + $0x219] sm:$0xff] %vm7901, %v8608
  %8783 = vst.msk [vmem:[%s8740 + $0x229] sm:$0xff] %vm7901, %v8609
  %8784 = vst.msk [vmem:[%s8740 + $0x231] sm:$0xff] %vm7901, %v8610
  %8785 = vst.msk [vmem:[%s8740 + $0x241] sm:$0xff] %vm7901, %v8611
  %8786 = vst.msk [vmem:[%s8740 + $0x249] sm:$0xff] %vm7901, %v8612
  %8787 = vst.msk [vmem:[%s8740 + $0x259] sm:$0xff] %vm7901, %v8613
  %8788 = vst.msk [vmem:[%s8740 + $0x261] sm:$0xff] %vm7901, %v8614
  %8789 = vst.msk [vmem:[%s8740 + $0x271] sm:$0xff] %vm7901, %v8615
  %8790 = vst.msk [vmem:[%s8740 + $0x279] sm:$0xff] %vm7901, %v8616
  %8791 = vst.msk [vmem:[%s8740 + $0x289] sm:$0xff] %vm7901, %v8617
  %8792 = vst.msk [vmem:[%s8740 + $0x291] sm:$0xff] %vm7901, %v8618
  %8793 = vst.msk [vmem:[%s8740 + $0x2a1] sm:$0xff] %vm7901, %v8619
  %8794 = vst.msk [vmem:[%s8740 + $0x2a9] sm:$0xff] %vm7901, %v8620
  %8795 = vst.msk [vmem:[%s8740 + $0x2b9] sm:$0xff] %vm7901, %v8621
  %8796 = vst.msk [vmem:[%s8740 + $0x2c1] sm:$0xff] %vm7901, %v8622
  %8797 = vst.msk [vmem:[%s8740 + $0x2d1] sm:$0xff] %vm7901, %v8623
  %8798 = vst.msk [vmem:[%s8740 + $0x2d9] sm:$0xff] %vm7901, %v8624
  %8799 = vst.msk [vmem:[%s8740 + $0x2e9] sm:$0xff] %vm7901, %v8625
  %8800 = vst.msk [vmem:[%s8740 + $0x2f1] sm:$0xff] %vm7901, %v8626
  %8801 = vst.msk [vmem:[%s8740 + $0x301] sm:$0xff] %vm7901, %v8627
  %8802 = vst.msk [vmem:[%s8740 + $0x309] sm:$0xff] %vm7901, %v8628
  %8803 = vst.msk [vmem:[%s8740 + $0x319] sm:$0xff] %vm7901, %v8629
  %8804 = vst.msk [vmem:[%s8740 + $0x321] sm:$0xff] %vm7901, %v8630
  %v8805 = vld [vmem:[#allocation4] sm:$0xff]
  %v8806 = vld [vmem:[#allocation4 + $0x8] sm:$0xff]
  %v8807 = vld [vmem:[#allocation4 + $0x18] sm:$0xff]
  %v8808 = vld [vmem:[#allocation4 + $0x20] sm:$0xff]
  %v8809 = vld [vmem:[#allocation4 + $0x30] sm:$0xff]
  %v8810 = vld [vmem:[#allocation4 + $0x38] sm:$0xff]
  %v8811 = vld [vmem:[#allocation4 + $0x48] sm:$0xff]
  %v8812 = vld [vmem:[#allocation4 + $0x50] sm:$0xff]
  %v8813 = vld [vmem:[#allocation4 + $0x60] sm:$0xff]
  %v8814 = vld [vmem:[#allocation4 + $0x68] sm:$0xff]
  %v8815 = vld [vmem:[#allocation4 + $0x78] sm:$0xff]
  %v8816 = vld [vmem:[#allocation4 + $0x80] sm:$0xff]
  %v8817 = vld [vmem:[#allocation4 + $0x90] sm:$0xff]
  %v8818 = vld [vmem:[#allocation4 + $0x98] sm:$0xff]
  %v8819 = vld [vmem:[#allocation4 + $0xa8] sm:$0xff]
  %v8820 = vld [vmem:[#allocation4 + $0xb0] sm:$0xff]
  %v8821 = vld [vmem:[#allocation4 + $0xc0] sm:$0xff]
  %v8822 = vld [vmem:[#allocation4 + $0xc8] sm:$0xff]
  %v8823 = vld [vmem:[#allocation4 + $0xd8] sm:$0xff]
  %v8824 = vld [vmem:[#allocation4 + $0xe0] sm:$0xff]
  %v8825 = vld [vmem:[#allocation4 + $0xf0] sm:$0xff]
  %v8826 = vld [vmem:[#allocation4 + $0xf8] sm:$0xff]
  %v8827 = vld [vmem:[#allocation4 + $0x108] sm:$0xff]
  %v8828 = vld [vmem:[#allocation4 + $0x110] sm:$0xff]
  %v8829 = vld [vmem:[#allocation4 + $0x120] sm:$0xff]
  %v8830 = vld [vmem:[#allocation4 + $0x128] sm:$0xff]
  %v8831 = vld [vmem:[#allocation4 + $0x138] sm:$0xff]
  %v8832 = vld [vmem:[#allocation4 + $0x140] sm:$0xff]
  %v8833 = vld [vmem:[#allocation4 + $0x150] sm:$0xff]
  %v8834 = vld [vmem:[#allocation4 + $0x158] sm:$0xff]
  %v8835 = vld [vmem:[#allocation4 + $0x168] sm:$0xff]
  %v8836 = vld [vmem:[#allocation4 + $0x170] sm:$0xff]
  %v8837 = vld [vmem:[#allocation4 + $0x1b0] sm:$0xff]
  %v8838 = vld [vmem:[#allocation4 + $0x1b8] sm:$0xff]
  %v8839 = vld [vmem:[#allocation4 + $0x1c8] sm:$0xff]
  %v8840 = vld [vmem:[#allocation4 + $0x1d0] sm:$0xff]
  %v8841 = vld [vmem:[#allocation4 + $0x1e0] sm:$0xff]
  %v8842 = vld [vmem:[#allocation4 + $0x1e8] sm:$0xff]
  %v8843 = vld [vmem:[#allocation4 + $0x1f8] sm:$0xff]
  %v8844 = vld [vmem:[#allocation4 + $0x200] sm:$0xff]
  %v8845 = vld [vmem:[#allocation4 + $0x210] sm:$0xff]
  %v8846 = vld [vmem:[#allocation4 + $0x218] sm:$0xff]
  %v8847 = vld [vmem:[#allocation4 + $0x228] sm:$0xff]
  %v8848 = vld [vmem:[#allocation4 + $0x230] sm:$0xff]
  %v8849 = vld [vmem:[#allocation4 + $0x240] sm:$0xff]
  %v8850 = vld [vmem:[#allocation4 + $0x248] sm:$0xff]
  %v8851 = vld [vmem:[#allocation4 + $0x258] sm:$0xff]
  %v8852 = vld [vmem:[#allocation4 + $0x260] sm:$0xff]
  %v8853 = vld [vmem:[#allocation4 + $0x270] sm:$0xff]
  %v8854 = vld [vmem:[#allocation4 + $0x278] sm:$0xff]
  %v8855 = vld [vmem:[#allocation4 + $0x288] sm:$0xff]
  %v8856 = vld [vmem:[#allocation4 + $0x290] sm:$0xff]
  %v8857 = vld [vmem:[#allocation4 + $0x2a0] sm:$0xff]
  %v8858 = vld [vmem:[#allocation4 + $0x2a8] sm:$0xff]
  %v8859 = vld [vmem:[#allocation4 + $0x2b8] sm:$0xff]
  %v8860 = vld [vmem:[#allocation4 + $0x2c0] sm:$0xff]
  %v8861 = vld [vmem:[#allocation4 + $0x2d0] sm:$0xff]
  %v8862 = vld [vmem:[#allocation4 + $0x2d8] sm:$0xff]
  %v8863 = vld [vmem:[#allocation4 + $0x2e8] sm:$0xff]
  %v8864 = vld [vmem:[#allocation4 + $0x2f0] sm:$0xff]
  %v8865 = vld [vmem:[#allocation4 + $0x300] sm:$0xff]
  %v8866 = vld [vmem:[#allocation4 + $0x308] sm:$0xff]
  %v8867 = vld [vmem:[#allocation4 + $0x318] sm:$0xff]
  %v8868 = vld [vmem:[#allocation4 + $0x320] sm:$0xff]
  %v8869 = vld [vmem:[#allocation4 + $0x1] sm:$0xff]
  %v8870 = vld [vmem:[#allocation4 + $0x9] sm:$0xff]
  %v8871 = vld [vmem:[#allocation4 + $0x19] sm:$0xff]
  %v8872 = vld [vmem:[#allocation4 + $0x21] sm:$0xff]
  %v8873 = vld [vmem:[#allocation4 + $0x31] sm:$0xff]
  %v8874 = vld [vmem:[#allocation4 + $0x39] sm:$0xff]
  %v8875 = vld [vmem:[#allocation4 + $0x49] sm:$0xff]
  %v8876 = vld [vmem:[#allocation4 + $0x51] sm:$0xff]
  %v8877 = vld [vmem:[#allocation4 + $0x61] sm:$0xff]
  %v8878 = vld [vmem:[#allocation4 + $0x69] sm:$0xff]
  %v8879 = vld [vmem:[#allocation4 + $0x79] sm:$0xff]
  %v8880 = vld [vmem:[#allocation4 + $0x81] sm:$0xff]
  %v8881 = vld [vmem:[#allocation4 + $0x91] sm:$0xff]
  %v8882 = vld [vmem:[#allocation4 + $0x99] sm:$0xff]
  %v8883 = vld [vmem:[#allocation4 + $0xa9] sm:$0xff]
  %v8884 = vld [vmem:[#allocation4 + $0xb1] sm:$0xff]
  %v8885 = vld [vmem:[#allocation4 + $0xc1] sm:$0xff]
  %v8886 = vld [vmem:[#allocation4 + $0xc9] sm:$0xff]
  %v8887 = vld [vmem:[#allocation4 + $0xd9] sm:$0xff]
  %v8888 = vld [vmem:[#allocation4 + $0xe1] sm:$0xff]
  %v8889 = vld [vmem:[#allocation4 + $0xf1] sm:$0xff]
  %v8890 = vld [vmem:[#allocation4 + $0xf9] sm:$0xff]
  %v8891 = vld [vmem:[#allocation4 + $0x109] sm:$0xff]
  %v8892 = vld [vmem:[#allocation4 + $0x111] sm:$0xff]
  %v8893 = vld [vmem:[#allocation4 + $0x121] sm:$0xff]
  %v8894 = vld [vmem:[#allocation4 + $0x129] sm:$0xff]
  %v8895 = vld [vmem:[#allocation4 + $0x139] sm:$0xff]
  %v8896 = vld [vmem:[#allocation4 + $0x141] sm:$0xff]
  %v8897 = vld [vmem:[#allocation4 + $0x151] sm:$0xff]
  %v8898 = vld [vmem:[#allocation4 + $0x159] sm:$0xff]
  %v8899 = vld [vmem:[#allocation4 + $0x169] sm:$0xff]
  %v8900 = vld [vmem:[#allocation4 + $0x171] sm:$0xff]
  %v8901 = vld [vmem:[#allocation4 + $0x1b1] sm:$0xff]
  %v8902 = vld [vmem:[#allocation4 + $0x1b9] sm:$0xff]
  %v8903 = vld [vmem:[#allocation4 + $0x1c9] sm:$0xff]
  %v8904 = vld [vmem:[#allocation4 + $0x1d1] sm:$0xff]
  %v8905 = vld [vmem:[#allocation4 + $0x1e1] sm:$0xff]
  %v8906 = vld [vmem:[#allocation4 + $0x1e9] sm:$0xff]
  %v8907 = vld [vmem:[#allocation4 + $0x1f9] sm:$0xff]
  %v8908 = vld [vmem:[#allocation4 + $0x201] sm:$0xff]
  %v8909 = vld [vmem:[#allocation4 + $0x211] sm:$0xff]
  %v8910 = vld [vmem:[#allocation4 + $0x219] sm:$0xff]
  %v8911 = vld [vmem:[#allocation4 + $0x229] sm:$0xff]
  %v8912 = vld [vmem:[#allocation4 + $0x231] sm:$0xff]
  %v8913 = vld [vmem:[#allocation4 + $0x241] sm:$0xff]
  %v8914 = vld [vmem:[#allocation4 + $0x249] sm:$0xff]
  %v8915 = vld [vmem:[#allocation4 + $0x259] sm:$0xff]
  %v8916 = vld [vmem:[#allocation4 + $0x261] sm:$0xff]
  %v8917 = vld [vmem:[#allocation4 + $0x271] sm:$0xff]
  %v8918 = vld [vmem:[#allocation4 + $0x279] sm:$0xff]
  %v8919 = vld [vmem:[#allocation4 + $0x289] sm:$0xff]
  %v8920 = vld [vmem:[#allocation4 + $0x291] sm:$0xff]
  %v8921 = vld [vmem:[#allocation4 + $0x2a1] sm:$0xff]
  %v8922 = vld [vmem:[#allocation4 + $0x2a9] sm:$0xff]
  %v8923 = vld [vmem:[#allocation4 + $0x2b9] sm:$0xff]
  %v8924 = vld [vmem:[#allocation4 + $0x2c1] sm:$0xff]
  %v8925 = vld [vmem:[#allocation4 + $0x2d1] sm:$0xff]
  %v8926 = vld [vmem:[#allocation4 + $0x2d9] sm:$0xff]
  %v8927 = vld [vmem:[#allocation4 + $0x2e9] sm:$0xff]
  %v8928 = vld [vmem:[#allocation4 + $0x2f1] sm:$0xff]
  %v8929 = vld [vmem:[#allocation4 + $0x301] sm:$0xff]
  %v8930 = vld [vmem:[#allocation4 + $0x309] sm:$0xff]
  %v8931 = vld [vmem:[#allocation4 + $0x319] sm:$0xff]
  %v8932 = vld [vmem:[#allocation4 + $0x321] sm:$0xff]
  %v8933 = vld [vmem:[#allocation4 + $0x2] sm:$0xff]
  %v8934 = vld [vmem:[#allocation4 + $0xa] sm:$0xff]
  %v8935 = vld [vmem:[#allocation4 + $0x1a] sm:$0xff]
  %v8936 = vld [vmem:[#allocation4 + $0x22] sm:$0xff]
  %v8937 = vld [vmem:[#allocation4 + $0x32] sm:$0xff]
  %v8938 = vld [vmem:[#allocation4 + $0x3a] sm:$0xff]
  %v8939 = vld [vmem:[#allocation4 + $0x4a] sm:$0xff]
  %v8940 = vld [vmem:[#allocation4 + $0x52] sm:$0xff]
  %v8941 = vld [vmem:[#allocation4 + $0x62] sm:$0xff]
  %v8942 = vld [vmem:[#allocation4 + $0x6a] sm:$0xff]
  %v8943 = vld [vmem:[#allocation4 + $0x7a] sm:$0xff]
  %v8944 = vld [vmem:[#allocation4 + $0x82] sm:$0xff]
  %v8945 = vld [vmem:[#allocation4 + $0x92] sm:$0xff]
  %v8946 = vld [vmem:[#allocation4 + $0x9a] sm:$0xff]
  %v8947 = vld [vmem:[#allocation4 + $0xaa] sm:$0xff]
  %v8948 = vld [vmem:[#allocation4 + $0xb2] sm:$0xff]
  %v8949 = vld [vmem:[#allocation4 + $0xc2] sm:$0xff]
  %v8950 = vld [vmem:[#allocation4 + $0xca] sm:$0xff]
  %v8951 = vld [vmem:[#allocation4 + $0xda] sm:$0xff]
  %v8952 = vld [vmem:[#allocation4 + $0xe2] sm:$0xff]
  %v8953 = vld [vmem:[#allocation4 + $0xf2] sm:$0xff]
  %v8954 = vld [vmem:[#allocation4 + $0xfa] sm:$0xff]
  %v8955 = vld [vmem:[#allocation4 + $0x10a] sm:$0xff]
  %v8956 = vld [vmem:[#allocation4 + $0x112] sm:$0xff]
  %v8957 = vld [vmem:[#allocation4 + $0x122] sm:$0xff]
  %v8958 = vld [vmem:[#allocation4 + $0x12a] sm:$0xff]
  %v8959 = vld [vmem:[#allocation4 + $0x13a] sm:$0xff]
  %v8960 = vld [vmem:[#allocation4 + $0x142] sm:$0xff]
  %v8961 = vld [vmem:[#allocation4 + $0x152] sm:$0xff]
  %v8962 = vld [vmem:[#allocation4 + $0x15a] sm:$0xff]
  %v8963 = vld [vmem:[#allocation4 + $0x16a] sm:$0xff]
  %v8964 = vld [vmem:[#allocation4 + $0x172] sm:$0xff]
  %v8965 = vld [vmem:[#allocation4 + $0x1b2] sm:$0xff]
  %v8966 = vld [vmem:[#allocation4 + $0x1ba] sm:$0xff]
  %v8967 = vld [vmem:[#allocation4 + $0x1ca] sm:$0xff]
  %v8968 = vld [vmem:[#allocation4 + $0x1d2] sm:$0xff]
  %v8969 = vld [vmem:[#allocation4 + $0x1e2] sm:$0xff]
  %v8970 = vld [vmem:[#allocation4 + $0x1ea] sm:$0xff]
  %v8971 = vld [vmem:[#allocation4 + $0x1fa] sm:$0xff]
  %v8972 = vld [vmem:[#allocation4 + $0x202] sm:$0xff]
  %v8973 = vld [vmem:[#allocation4 + $0x212] sm:$0xff]
  %v8974 = vld [vmem:[#allocation4 + $0x21a] sm:$0xff]
  %v8975 = vld [vmem:[#allocation4 + $0x22a] sm:$0xff]
  %v8976 = vld [vmem:[#allocation4 + $0x232] sm:$0xff]
  %v8977 = vld [vmem:[#allocation4 + $0x242] sm:$0xff]
  %v8978 = vld [vmem:[#allocation4 + $0x24a] sm:$0xff]
  %v8979 = vld [vmem:[#allocation4 + $0x25a] sm:$0xff]
  %v8980 = vld [vmem:[#allocation4 + $0x262] sm:$0xff]
  %v8981 = vld [vmem:[#allocation4 + $0x272] sm:$0xff]
  %v8982 = vld [vmem:[#allocation4 + $0x27a] sm:$0xff]
  %v8983 = vld [vmem:[#allocation4 + $0x28a] sm:$0xff]
  %v8984 = vld [vmem:[#allocation4 + $0x292] sm:$0xff]
  %v8985 = vld [vmem:[#allocation4 + $0x2a2] sm:$0xff]
  %v8986 = vld [vmem:[#allocation4 + $0x2aa] sm:$0xff]
  %v8987 = vld [vmem:[#allocation4 + $0x2ba] sm:$0xff]
  %v8988 = vld [vmem:[#allocation4 + $0x2c2] sm:$0xff]
  %v8989 = vld [vmem:[#allocation4 + $0x2d2] sm:$0xff]
  %v8990 = vld [vmem:[#allocation4 + $0x2da] sm:$0xff]
  %v8991 = vld [vmem:[#allocation4 + $0x2ea] sm:$0xff]
  %v8992 = vld [vmem:[#allocation4 + $0x2f2] sm:$0xff]
  %v8993 = vld [vmem:[#allocation4 + $0x302] sm:$0xff]
  %v8994 = vld [vmem:[#allocation4 + $0x30a] sm:$0xff]
  %v8995 = vld [vmem:[#allocation4 + $0x31a] sm:$0xff]
  %v8996 = vld [vmem:[#allocation4 + $0x322] sm:$0xff]
  %9061 = vrot.lane.b32.xlu0 %v8869, 64
  %v9062 = vpop.permute.xlu0 %9061
  %9063 = vrot.lane.b32.xlu0 %v8870, 64
  %v9064 = vpop.permute.xlu0 %9063
  %9065 = vrot.lane.b32.xlu0 %v8871, 64
  %v9066 = vpop.permute.xlu0 %9065
  %9067 = vrot.lane.b32.xlu0 %v8872, 64
  %v9068 = vpop.permute.xlu0 %9067
  %9069 = vrot.lane.b32.xlu0 %v8873, 64
  %v9070 = vpop.permute.xlu0 %9069
  %9071 = vrot.lane.b32.xlu0 %v8874, 64
  %v9072 = vpop.permute.xlu0 %9071
  %9073 = vrot.lane.b32.xlu0 %v8875, 64
  %v9074 = vpop.permute.xlu0 %9073
  %9075 = vrot.lane.b32.xlu0 %v8876, 64
  %v9076 = vpop.permute.xlu0 %9075
  %9077 = vrot.lane.b32.xlu0 %v8877, 64
  %v9078 = vpop.permute.xlu0 %9077
  %9079 = vrot.lane.b32.xlu0 %v8878, 64
  %v9080 = vpop.permute.xlu0 %9079
  %9081 = vrot.lane.b32.xlu0 %v8879, 64
  %v9082 = vpop.permute.xlu0 %9081
  %9083 = vrot.lane.b32.xlu0 %v8880, 64
  %v9084 = vpop.permute.xlu0 %9083
  %9085 = vrot.lane.b32.xlu0 %v8881, 64
  %v9086 = vpop.permute.xlu0 %9085
  %9087 = vrot.lane.b32.xlu0 %v8882, 64
  %v9088 = vpop.permute.xlu0 %9087
  %9089 = vrot.lane.b32.xlu0 %v8883, 64
  %v9090 = vpop.permute.xlu0 %9089
  %9091 = vrot.lane.b32.xlu0 %v8884, 64
  %v9092 = vpop.permute.xlu0 %9091
  %9093 = vrot.lane.b32.xlu0 %v8885, 64
  %v9094 = vpop.permute.xlu0 %9093
  %9095 = vrot.lane.b32.xlu0 %v8886, 64
  %v9096 = vpop.permute.xlu0 %9095
  %9097 = vrot.lane.b32.xlu0 %v8887, 64
  %v9098 = vpop.permute.xlu0 %9097
  %9099 = vrot.lane.b32.xlu0 %v8888, 64
  %v9100 = vpop.permute.xlu0 %9099
  %9101 = vrot.lane.b32.xlu0 %v8889, 64
  %v9102 = vpop.permute.xlu0 %9101
  %9103 = vrot.lane.b32.xlu0 %v8890, 64
  %v9104 = vpop.permute.xlu0 %9103
  %9105 = vrot.lane.b32.xlu0 %v8891, 64
  %v9106 = vpop.permute.xlu0 %9105
  %9107 = vrot.lane.b32.xlu0 %v8892, 64
  %v9108 = vpop.permute.xlu0 %9107
  %9109 = vrot.lane.b32.xlu0 %v8893, 64
  %v9110 = vpop.permute.xlu0 %9109
  %9111 = vrot.lane.b32.xlu0 %v8894, 64
  %v9112 = vpop.permute.xlu0 %9111
  %9113 = vrot.lane.b32.xlu0 %v8895, 64
  %v9114 = vpop.permute.xlu0 %9113
  %9115 = vrot.lane.b32.xlu0 %v8896, 64
  %v9116 = vpop.permute.xlu0 %9115
  %9117 = vrot.lane.b32.xlu0 %v8897, 64
  %v9118 = vpop.permute.xlu0 %9117
  %9119 = vrot.lane.b32.xlu0 %v8898, 64
  %v9120 = vpop.permute.xlu0 %9119
  %9121 = vrot.lane.b32.xlu0 %v8899, 64
  %v9122 = vpop.permute.xlu0 %9121
  %9123 = vrot.lane.b32.xlu0 %v8900, 64
  %v9124 = vpop.permute.xlu0 %9123
  %9125 = vrot.lane.b32.xlu0 %v8901, 64
  %v9126 = vpop.permute.xlu0 %9125
  %9127 = vrot.lane.b32.xlu0 %v8902, 64
  %v9128 = vpop.permute.xlu0 %9127
  %9129 = vrot.lane.b32.xlu0 %v8903, 64
  %v9130 = vpop.permute.xlu0 %9129
  %9131 = vrot.lane.b32.xlu0 %v8904, 64
  %v9132 = vpop.permute.xlu0 %9131
  %9133 = vrot.lane.b32.xlu0 %v8905, 64
  %v9134 = vpop.permute.xlu0 %9133
  %9135 = vrot.lane.b32.xlu0 %v8906, 64
  %v9136 = vpop.permute.xlu0 %9135
  %9137 = vrot.lane.b32.xlu0 %v8907, 64
  %v9138 = vpop.permute.xlu0 %9137
  %9139 = vrot.lane.b32.xlu0 %v8908, 64
  %v9140 = vpop.permute.xlu0 %9139
  %9141 = vrot.lane.b32.xlu0 %v8909, 64
  %v9142 = vpop.permute.xlu0 %9141
  %9143 = vrot.lane.b32.xlu0 %v8910, 64
  %v9144 = vpop.permute.xlu0 %9143
  %9145 = vrot.lane.b32.xlu0 %v8911, 64
  %v9146 = vpop.permute.xlu0 %9145
  %9147 = vrot.lane.b32.xlu0 %v8912, 64
  %v9148 = vpop.permute.xlu0 %9147
  %9149 = vrot.lane.b32.xlu0 %v8913, 64
  %v9150 = vpop.permute.xlu0 %9149
  %9151 = vrot.lane.b32.xlu0 %v8914, 64
  %v9152 = vpop.permute.xlu0 %9151
  %9153 = vrot.lane.b32.xlu0 %v8915, 64
  %v9154 = vpop.permute.xlu0 %9153
  %9155 = vrot.lane.b32.xlu0 %v8916, 64
  %v9156 = vpop.permute.xlu0 %9155
  %9157 = vrot.lane.b32.xlu0 %v8917, 64
  %v9158 = vpop.permute.xlu0 %9157
  %9159 = vrot.lane.b32.xlu0 %v8918, 64
  %v9160 = vpop.permute.xlu0 %9159
  %9161 = vrot.lane.b32.xlu0 %v8919, 64
  %v9162 = vpop.permute.xlu0 %9161
  %9163 = vrot.lane.b32.xlu0 %v8920, 64
  %v9164 = vpop.permute.xlu0 %9163
  %9165 = vrot.lane.b32.xlu0 %v8921, 64
  %v9166 = vpop.permute.xlu0 %9165
  %9167 = vrot.lane.b32.xlu0 %v8922, 64
  %v9168 = vpop.permute.xlu0 %9167
  %9169 = vrot.lane.b32.xlu0 %v8923, 64
  %v9170 = vpop.permute.xlu0 %9169
  %9171 = vrot.lane.b32.xlu0 %v8924, 64
  %v9172 = vpop.permute.xlu0 %9171
  %9173 = vrot.lane.b32.xlu0 %v8925, 64
  %v9174 = vpop.permute.xlu0 %9173
  %9175 = vrot.lane.b32.xlu0 %v8926, 64
  %v9176 = vpop.permute.xlu0 %9175
  %9177 = vrot.lane.b32.xlu0 %v8927, 64
  %v9178 = vpop.permute.xlu0 %9177
  %9179 = vrot.lane.b32.xlu0 %v8928, 64
  %v9180 = vpop.permute.xlu0 %9179
  %9181 = vrot.lane.b32.xlu0 %v8929, 64
  %v9182 = vpop.permute.xlu0 %9181
  %9183 = vrot.lane.b32.xlu0 %v8930, 64
  %v9184 = vpop.permute.xlu0 %9183
  %9185 = vrot.lane.b32.xlu0 %v8931, 64
  %v9186 = vpop.permute.xlu0 %9185
  %9187 = vrot.lane.b32.xlu0 %v8932, 64
  %v9188 = vpop.permute.xlu0 %9187
  %v9253 = vsel %vm7901, %v8805, %v9062
  %v9254 = vsel %vm7901, %v8806, %v9064
  %v9255 = vsel %vm7901, %v8807, %v9066
  %v9256 = vsel %vm7901, %v8808, %v9068
  %v9257 = vsel %vm7901, %v8809, %v9070
  %v9258 = vsel %vm7901, %v8810, %v9072
  %v9259 = vsel %vm7901, %v8811, %v9074
  %v9260 = vsel %vm7901, %v8812, %v9076
  %v9261 = vsel %vm7901, %v8813, %v9078
  %v9262 = vsel %vm7901, %v8814, %v9080
  %v9263 = vsel %vm7901, %v8815, %v9082
  %v9264 = vsel %vm7901, %v8816, %v9084
  %v9265 = vsel %vm7901, %v8817, %v9086
  %v9266 = vsel %vm7901, %v8818, %v9088
  %v9267 = vsel %vm7901, %v8819, %v9090
  %v9268 = vsel %vm7901, %v8820, %v9092
  %v9269 = vsel %vm7901, %v8821, %v9094
  %v9270 = vsel %vm7901, %v8822, %v9096
  %v9271 = vsel %vm7901, %v8823, %v9098
  %v9272 = vsel %vm7901, %v8824, %v9100
  %v9273 = vsel %vm7901, %v8825, %v9102
  %v9274 = vsel %vm7901, %v8826, %v9104
  %v9275 = vsel %vm7901, %v8827, %v9106
  %v9276 = vsel %vm7901, %v8828, %v9108
  %v9277 = vsel %vm7901, %v8829, %v9110
  %v9278 = vsel %vm7901, %v8830, %v9112
  %v9279 = vsel %vm7901, %v8831, %v9114
  %v9280 = vsel %vm7901, %v8832, %v9116
  %v9281 = vsel %vm7901, %v8833, %v9118
  %v9282 = vsel %vm7901, %v8834, %v9120
  %v9283 = vsel %vm7901, %v8835, %v9122
  %v9284 = vsel %vm7901, %v8836, %v9124
  %v9285 = vsel %vm7901, %v8837, %v9126
  %v9286 = vsel %vm7901, %v8838, %v9128
  %v9287 = vsel %vm7901, %v8839, %v9130
  %v9288 = vsel %vm7901, %v8840, %v9132
  %v9289 = vsel %vm7901, %v8841, %v9134
  %v9290 = vsel %vm7901, %v8842, %v9136
  %v9291 = vsel %vm7901, %v8843, %v9138
  %v9292 = vsel %vm7901, %v8844, %v9140
  %v9293 = vsel %vm7901, %v8845, %v9142
  %v9294 = vsel %vm7901, %v8846, %v9144
  %v9295 = vsel %vm7901, %v8847, %v9146
  %v9296 = vsel %vm7901, %v8848, %v9148
  %v9297 = vsel %vm7901, %v8849, %v9150
  %v9298 = vsel %vm7901, %v8850, %v9152
  %v9299 = vsel %vm7901, %v8851, %v9154
  %v9300 = vsel %vm7901, %v8852, %v9156
  %v9301 = vsel %vm7901, %v8853, %v9158
  %v9302 = vsel %vm7901, %v8854, %v9160
  %v9303 = vsel %vm7901, %v8855, %v9162
  %v9304 = vsel %vm7901, %v8856, %v9164
  %v9305 = vsel %vm7901, %v8857, %v9166
  %v9306 = vsel %vm7901, %v8858, %v9168
  %v9307 = vsel %vm7901, %v8859, %v9170
  %v9308 = vsel %vm7901, %v8860, %v9172
  %v9309 = vsel %vm7901, %v8861, %v9174
  %v9310 = vsel %vm7901, %v8862, %v9176
  %v9311 = vsel %vm7901, %v8863, %v9178
  %v9312 = vsel %vm7901, %v8864, %v9180
  %v9313 = vsel %vm7901, %v8865, %v9182
  %v9314 = vsel %vm7901, %v8866, %v9184
  %v9315 = vsel %vm7901, %v8867, %v9186
  %v9316 = vsel %vm7901, %v8868, %v9188
  %v9317 = vpack.c.bf16 %v9254, %v9253
  %v9318 = vpack.c.bf16 %v8934, %v8933
  %v9319 = vpack.c.bf16 %v9256, %v9255
  %v9320 = vpack.c.bf16 %v8936, %v8935
  %v9321 = vpack.c.bf16 %v9258, %v9257
  %v9322 = vpack.c.bf16 %v8938, %v8937
  %v9323 = vpack.c.bf16 %v9260, %v9259
  %v9324 = vpack.c.bf16 %v8940, %v8939
  %v9325 = vpack.c.bf16 %v9262, %v9261
  %v9326 = vpack.c.bf16 %v8942, %v8941
  %v9327 = vpack.c.bf16 %v9264, %v9263
  %v9328 = vpack.c.bf16 %v8944, %v8943
  %v9329 = vpack.c.bf16 %v9266, %v9265
  %v9330 = vpack.c.bf16 %v8946, %v8945
  %v9331 = vpack.c.bf16 %v9268, %v9267
  %v9332 = vpack.c.bf16 %v8948, %v8947
  %v9333 = vpack.c.bf16 %v9270, %v9269
  %v9334 = vpack.c.bf16 %v8950, %v8949
  %v9335 = vpack.c.bf16 %v9272, %v9271
  %v9336 = vpack.c.bf16 %v8952, %v8951
  %v9337 = vpack.c.bf16 %v9274, %v9273
  %v9338 = vpack.c.bf16 %v8954, %v8953
  %v9339 = vpack.c.bf16 %v9276, %v9275
  %v9340 = vpack.c.bf16 %v8956, %v8955
  %v9341 = vpack.c.bf16 %v9278, %v9277
  %v9342 = vpack.c.bf16 %v8958, %v8957
  %v9343 = vpack.c.bf16 %v9280, %v9279
  %v9344 = vpack.c.bf16 %v8960, %v8959
  %v9345 = vpack.c.bf16 %v9282, %v9281
  %v9346 = vpack.c.bf16 %v8962, %v8961
  %v9347 = vpack.c.bf16 %v9284, %v9283
  %v9348 = vpack.c.bf16 %v8964, %v8963
  %v9349 = vpack.c.bf16 %v9286, %v9285
  %v9350 = vpack.c.bf16 %v8966, %v8965
  %v9351 = vpack.c.bf16 %v9288, %v9287
  %v9352 = vpack.c.bf16 %v8968, %v8967
  %v9353 = vpack.c.bf16 %v9290, %v9289
  %v9354 = vpack.c.bf16 %v8970, %v8969
  %v9355 = vpack.c.bf16 %v9292, %v9291
  %v9356 = vpack.c.bf16 %v8972, %v8971
  %v9357 = vpack.c.bf16 %v9294, %v9293
  %v9358 = vpack.c.bf16 %v8974, %v8973
  %v9359 = vpack.c.bf16 %v9296, %v9295
  %v9360 = vpack.c.bf16 %v8976, %v8975
  %v9361 = vpack.c.bf16 %v9298, %v9297
  %v9362 = vpack.c.bf16 %v8978, %v8977
  %v9363 = vpack.c.bf16 %v9300, %v9299
  %v9364 = vpack.c.bf16 %v8980, %v8979
  %v9365 = vpack.c.bf16 %v9302, %v9301
  %v9366 = vpack.c.bf16 %v8982, %v8981
  %v9367 = vpack.c.bf16 %v9304, %v9303
  %v9368 = vpack.c.bf16 %v8984, %v8983
  %v9369 = vpack.c.bf16 %v9306, %v9305
  %v9370 = vpack.c.bf16 %v8986, %v8985
  %v9371 = vpack.c.bf16 %v9308, %v9307
  %v9372 = vpack.c.bf16 %v8988, %v8987
  %v9373 = vpack.c.bf16 %v9310, %v9309
  %v9374 = vpack.c.bf16 %v8990, %v8989
  %v9375 = vpack.c.bf16 %v9312, %v9311
  %v9376 = vpack.c.bf16 %v8992, %v8991
  %v9377 = vpack.c.bf16 %v9314, %v9313
  %v9378 = vpack.c.bf16 %v8994, %v8993
  %v9379 = vpack.c.bf16 %v9316, %v9315
  %v9380 = vpack.c.bf16 %v8996, %v8995
  %v9381 = vld [vmem:[%s11] sm:$0xf]
  %v9382 = vld [vmem:[%s11 + $0x4] sm:$0xf]
  %v9383 = vld [vmem:[%s11 + $0x8] sm:$0xf]
  %v9384 = vld [vmem:[%s11 + $0xc] sm:$0xf]
  %v9385 = vld [vmem:[%s11 + $0x10] sm:$0xf]
  %v9386 = vld [vmem:[%s11 + $0x14] sm:$0xf]
  %v9387 = vld [vmem:[%s11 + $0x18] sm:$0xf]
  %v9388 = vld [vmem:[%s11 + $0x1c] sm:$0xf]
  %v9389 = vld [vmem:[%s11 + $0x20] sm:$0xf]
  %v9390 = vld [vmem:[%s11 + $0x24] sm:$0xf]
  %v9391 = vld [vmem:[%s11 + $0x28] sm:$0xf]
  %v9392 = vld [vmem:[%s11 + $0x2c] sm:$0xf]
  %v9393 = vld [vmem:[%s11 + $0x30] sm:$0xf]
  %v9394 = vld [vmem:[%s11 + $0x34] sm:$0xf]
  %v9395 = vld [vmem:[%s11 + $0x38] sm:$0xf]
  %v9396 = vld [vmem:[%s11 + $0x3c] sm:$0xf]
  %v9397 = vld [vmem:[%s11 + $0x40] sm:$0xf]
  %v9398 = vld [vmem:[%s11 + $0x44] sm:$0xf]
  %v9399 = vld [vmem:[%s11 + $0x48] sm:$0xf]
  %v9400 = vld [vmem:[%s11 + $0x4c] sm:$0xf]
  %v9401 = vld [vmem:[%s11 + $0x50] sm:$0xf]
  %v9402 = vld [vmem:[%s11 + $0x54] sm:$0xf]
  %v9403 = vld [vmem:[%s11 + $0x58] sm:$0xf]
  %v9404 = vld [vmem:[%s11 + $0x5c] sm:$0xf]
  %v9405 = vld [vmem:[%s8740] sm:$0xff]
  %v9406 = vld [vmem:[%s8740 + $0x8] sm:$0xff]
  %v9407 = vld [vmem:[%s8740 + $0x18] sm:$0xff]
  %v9408 = vld [vmem:[%s8740 + $0x20] sm:$0xff]
  %v9409 = vld [vmem:[%s8740 + $0x30] sm:$0xff]
  %v9410 = vld [vmem:[%s8740 + $0x38] sm:$0xff]
  %v9411 = vld [vmem:[%s8740 + $0x48] sm:$0xff]
  %v9412 = vld [vmem:[%s8740 + $0x50] sm:$0xff]
  %v9413 = vld [vmem:[%s8740 + $0x60] sm:$0xff]
  %v9414 = vld [vmem:[%s8740 + $0x68] sm:$0xff]
  %v9415 = vld [vmem:[%s8740 + $0x78] sm:$0xff]
  %v9416 = vld [vmem:[%s8740 + $0x80] sm:$0xff]
  %v9417 = vld [vmem:[%s8740 + $0x90] sm:$0xff]
  %v9418 = vld [vmem:[%s8740 + $0x98] sm:$0xff]
  %v9419 = vld [vmem:[%s8740 + $0xa8] sm:$0xff]
  %v9420 = vld [vmem:[%s8740 + $0xb0] sm:$0xff]
  %v9421 = vld [vmem:[%s8740 + $0xc0] sm:$0xff]
  %v9422 = vld [vmem:[%s8740 + $0xc8] sm:$0xff]
  %v9423 = vld [vmem:[%s8740 + $0xd8] sm:$0xff]
  %v9424 = vld [vmem:[%s8740 + $0xe0] sm:$0xff]
  %v9425 = vld [vmem:[%s8740 + $0xf0] sm:$0xff]
  %v9426 = vld [vmem:[%s8740 + $0xf8] sm:$0xff]
  %v9427 = vld [vmem:[%s8740 + $0x108] sm:$0xff]
  %v9428 = vld [vmem:[%s8740 + $0x110] sm:$0xff]
  %v9429 = vld [vmem:[%s8740 + $0x120] sm:$0xff]
  %v9430 = vld [vmem:[%s8740 + $0x128] sm:$0xff]
  %v9431 = vld [vmem:[%s8740 + $0x138] sm:$0xff]
  %v9432 = vld [vmem:[%s8740 + $0x140] sm:$0xff]
  %v9433 = vld [vmem:[%s8740 + $0x150] sm:$0xff]
  %v9434 = vld [vmem:[%s8740 + $0x158] sm:$0xff]
  %v9435 = vld [vmem:[%s8740 + $0x168] sm:$0xff]
  %v9436 = vld [vmem:[%s8740 + $0x170] sm:$0xff]
  %v9437 = vld [vmem:[%s8740 + $0x1b0] sm:$0xff]
  %v9438 = vld [vmem:[%s8740 + $0x1b8] sm:$0xff]
  %v9439 = vld [vmem:[%s8740 + $0x1c8] sm:$0xff]
  %v9440 = vld [vmem:[%s8740 + $0x1d0] sm:$0xff]
  %v9441 = vld [vmem:[%s8740 + $0x1e0] sm:$0xff]
  %v9442 = vld [vmem:[%s8740 + $0x1e8] sm:$0xff]
  %v9443 = vld [vmem:[%s8740 + $0x1f8] sm:$0xff]
  %v9444 = vld [vmem:[%s8740 + $0x200] sm:$0xff]
  %v9445 = vld [vmem:[%s8740 + $0x210] sm:$0xff]
  %v9446 = vld [vmem:[%s8740 + $0x218] sm:$0xff]
  %v9447 = vld [vmem:[%s8740 + $0x228] sm:$0xff]
  %v9448 = vld [vmem:[%s8740 + $0x230] sm:$0xff]
  %v9449 = vld [vmem:[%s8740 + $0x240] sm:$0xff]
  %v9450 = vld [vmem:[%s8740 + $0x248] sm:$0xff]
  %v9451 = vld [vmem:[%s8740 + $0x258] sm:$0xff]
  %v9452 = vld [vmem:[%s8740 + $0x260] sm:$0xff]
  %v9453 = vld [vmem:[%s8740 + $0x270] sm:$0xff]
  %v9454 = vld [vmem:[%s8740 + $0x278] sm:$0xff]
  %v9455 = vld [vmem:[%s8740 + $0x288] sm:$0xff]
  %v9456 = vld [vmem:[%s8740 + $0x290] sm:$0xff]
  %v9457 = vld [vmem:[%s8740 + $0x2a0] sm:$0xff]
  %v9458 = vld [vmem:[%s8740 + $0x2a8] sm:$0xff]
  %v9459 = vld [vmem:[%s8740 + $0x2b8] sm:$0xff]
  %v9460 = vld [vmem:[%s8740 + $0x2c0] sm:$0xff]
  %v9461 = vld [vmem:[%s8740 + $0x2d0] sm:$0xff]
  %v9462 = vld [vmem:[%s8740 + $0x2d8] sm:$0xff]
  %v9463 = vld [vmem:[%s8740 + $0x2e8] sm:$0xff]
  %v9464 = vld [vmem:[%s8740 + $0x2f0] sm:$0xff]
  %v9465 = vld [vmem:[%s8740 + $0x300] sm:$0xff]
  %v9466 = vld [vmem:[%s8740 + $0x308] sm:$0xff]
  %v9467 = vld [vmem:[%s8740 + $0x318] sm:$0xff]
  %v9468 = vld [vmem:[%s8740 + $0x320] sm:$0xff]
  %v9469 = vld [vmem:[%s8740 + $0x1] sm:$0xff]
  %v9470 = vld [vmem:[%s8740 + $0x9] sm:$0xff]
  %v9471 = vld [vmem:[%s8740 + $0x19] sm:$0xff]
  %v9472 = vld [vmem:[%s8740 + $0x21] sm:$0xff]
  %v9473 = vld [vmem:[%s8740 + $0x31] sm:$0xff]
  %v9474 = vld [vmem:[%s8740 + $0x39] sm:$0xff]
  %v9475 = vld [vmem:[%s8740 + $0x49] sm:$0xff]
  %v9476 = vld [vmem:[%s8740 + $0x51] sm:$0xff]
  %v9477 = vld [vmem:[%s8740 + $0x61] sm:$0xff]
  %v9478 = vld [vmem:[%s8740 + $0x69] sm:$0xff]
  %v9479 = vld [vmem:[%s8740 + $0x79] sm:$0xff]
  %v9480 = vld [vmem:[%s8740 + $0x81] sm:$0xff]
  %v9481 = vld [vmem:[%s8740 + $0x91] sm:$0xff]
  %v9482 = vld [vmem:[%s8740 + $0x99] sm:$0xff]
  %v9483 = vld [vmem:[%s8740 + $0xa9] sm:$0xff]
  %v9484 = vld [vmem:[%s8740 + $0xb1] sm:$0xff]
  %v9485 = vld [vmem:[%s8740 + $0xc1] sm:$0xff]
  %v9486 = vld [vmem:[%s8740 + $0xc9] sm:$0xff]
  %v9487 = vld [vmem:[%s8740 + $0xd9] sm:$0xff]
  %v9488 = vld [vmem:[%s8740 + $0xe1] sm:$0xff]
  %v9489 = vld [vmem:[%s8740 + $0xf1] sm:$0xff]
  %v9490 = vld [vmem:[%s8740 + $0xf9] sm:$0xff]
  %v9491 = vld [vmem:[%s8740 + $0x109] sm:$0xff]
  %v9492 = vld [vmem:[%s8740 + $0x111] sm:$0xff]
  %v9493 = vld [vmem:[%s8740 + $0x121] sm:$0xff]
  %v9494 = vld [vmem:[%s8740 + $0x129] sm:$0xff]
  %v9495 = vld [vmem:[%s8740 + $0x139] sm:$0xff]
  %v9496 = vld [vmem:[%s8740 + $0x141] sm:$0xff]
  %v9497 = vld [vmem:[%s8740 + $0x151] sm:$0xff]
  %v9498 = vld [vmem:[%s8740 + $0x159] sm:$0xff]
  %v9499 = vld [vmem:[%s8740 + $0x169] sm:$0xff]
  %v9500 = vld [vmem:[%s8740 + $0x171] sm:$0xff]
  %v9501 = vld [vmem:[%s8740 + $0x1b1] sm:$0xff]
  %v9502 = vld [vmem:[%s8740 + $0x1b9] sm:$0xff]
  %v9503 = vld [vmem:[%s8740 + $0x1c9] sm:$0xff]
  %v9504 = vld [vmem:[%s8740 + $0x1d1] sm:$0xff]
  %v9505 = vld [vmem:[%s8740 + $0x1e1] sm:$0xff]
  %v9506 = vld [vmem:[%s8740 + $0x1e9] sm:$0xff]
  %v9507 = vld [vmem:[%s8740 + $0x1f9] sm:$0xff]
  %v9508 = vld [vmem:[%s8740 + $0x201] sm:$0xff]
  %v9509 = vld [vmem:[%s8740 + $0x211] sm:$0xff]
  %v9510 = vld [vmem:[%s8740 + $0x219] sm:$0xff]
  %v9511 = vld [vmem:[%s8740 + $0x229] sm:$0xff]
  %v9512 = vld [vmem:[%s8740 + $0x231] sm:$0xff]
  %v9513 = vld [vmem:[%s8740 + $0x241] sm:$0xff]
  %v9514 = vld [vmem:[%s8740 + $0x249] sm:$0xff]
  %v9515 = vld [vmem:[%s8740 + $0x259] sm:$0xff]
  %v9516 = vld [vmem:[%s8740 + $0x261] sm:$0xff]
  %v9517 = vld [vmem:[%s8740 + $0x271] sm:$0xff]
  %v9518 = vld [vmem:[%s8740 + $0x279] sm:$0xff]
  %v9519 = vld [vmem:[%s8740 + $0x289] sm:$0xff]
  %v9520 = vld [vmem:[%s8740 + $0x291] sm:$0xff]
  %v9521 = vld [vmem:[%s8740 + $0x2a1] sm:$0xff]
  %v9522 = vld [vmem:[%s8740 + $0x2a9] sm:$0xff]
  %v9523 = vld [vmem:[%s8740 + $0x2b9] sm:$0xff]
  %v9524 = vld [vmem:[%s8740 + $0x2c1] sm:$0xff]
  %v9525 = vld [vmem:[%s8740 + $0x2d1] sm:$0xff]
  %v9526 = vld [vmem:[%s8740 + $0x2d9] sm:$0xff]
  %v9527 = vld [vmem:[%s8740 + $0x2e9] sm:$0xff]
  %v9528 = vld [vmem:[%s8740 + $0x2f1] sm:$0xff]
  %v9529 = vld [vmem:[%s8740 + $0x301] sm:$0xff]
  %v9530 = vld [vmem:[%s8740 + $0x309] sm:$0xff]
  %v9531 = vld [vmem:[%s8740 + $0x319] sm:$0xff]
  %v9532 = vld [vmem:[%s8740 + $0x321] sm:$0xff]
  %v9533 = vld [vmem:[%s8740 + $0x2] sm:$0xff]
  %v9534 = vld [vmem:[%s8740 + $0xa] sm:$0xff]
  %v9535 = vld [vmem:[%s8740 + $0x1a] sm:$0xff]
  %v9536 = vld [vmem:[%s8740 + $0x22] sm:$0xff]
  %v9537 = vld [vmem:[%s8740 + $0x32] sm:$0xff]
  %v9538 = vld [vmem:[%s8740 + $0x3a] sm:$0xff]
  %v9539 = vld [vmem:[%s8740 + $0x4a] sm:$0xff]
  %v9540 = vld [vmem:[%s8740 + $0x52] sm:$0xff]
  %v9541 = vld [vmem:[%s8740 + $0x62] sm:$0xff]
  %v9542 = vld [vmem:[%s8740 + $0x6a] sm:$0xff]
  %v9543 = vld [vmem:[%s8740 + $0x7a] sm:$0xff]
  %v9544 = vld [vmem:[%s8740 + $0x82] sm:$0xff]
  %v9545 = vld [vmem:[%s8740 + $0x92] sm:$0xff]
  %v9546 = vld [vmem:[%s8740 + $0x9a] sm:$0xff]
  %v9547 = vld [vmem:[%s8740 + $0xaa] sm:$0xff]
  %v9548 = vld [vmem:[%s8740 + $0xb2] sm:$0xff]
  %v9549 = vld [vmem:[%s8740 + $0xc2] sm:$0xff]
  %v9550 = vld [vmem:[%s8740 + $0xca] sm:$0xff]
  %v9551 = vld [vmem:[%s8740 + $0xda] sm:$0xff]
  %v9552 = vld [vmem:[%s8740 + $0xe2] sm:$0xff]
  %v9553 = vld [vmem:[%s8740 + $0xf2] sm:$0xff]
  %v9554 = vld [vmem:[%s8740 + $0xfa] sm:$0xff]
  %v9555 = vld [vmem:[%s8740 + $0x10a] sm:$0xff]
  %v9556 = vld [vmem:[%s8740 + $0x112] sm:$0xff]
  %v9557 = vld [vmem:[%s8740 + $0x122] sm:$0xff]
  %v9558 = vld [vmem:[%s8740 + $0x12a] sm:$0xff]
  %v9559 = vld [vmem:[%s8740 + $0x13a] sm:$0xff]
  %v9560 = vld [vmem:[%s8740 + $0x142] sm:$0xff]
  %v9561 = vld [vmem:[%s8740 + $0x152] sm:$0xff]
  %v9562 = vld [vmem:[%s8740 + $0x15a] sm:$0xff]
  %v9563 = vld [vmem:[%s8740 + $0x16a] sm:$0xff]
  %v9564 = vld [vmem:[%s8740 + $0x172] sm:$0xff]
  %v9565 = vld [vmem:[%s8740 + $0x1b2] sm:$0xff]
  %v9566 = vld [vmem:[%s8740 + $0x1ba] sm:$0xff]
  %v9567 = vld [vmem:[%s8740 + $0x1ca] sm:$0xff]
  %v9568 = vld [vmem:[%s8740 + $0x1d2] sm:$0xff]
  %v9569 = vld [vmem:[%s8740 + $0x1e2] sm:$0xff]
  %v9570 = vld [vmem:[%s8740 + $0x1ea] sm:$0xff]
  %v9571 = vld [vmem:[%s8740 + $0x1fa] sm:$0xff]
  %v9572 = vld [vmem:[%s8740 + $0x202] sm:$0xff]
  %v9573 = vld [vmem:[%s8740 + $0x212] sm:$0xff]
  %v9574 = vld [vmem:[%s8740 + $0x21a] sm:$0xff]
  %v9575 = vld [vmem:[%s8740 + $0x22a] sm:$0xff]
  %v9576 = vld [vmem:[%s8740 + $0x232] sm:$0xff]
  %v9577 = vld [vmem:[%s8740 + $0x242] sm:$0xff]
  %v9578 = vld [vmem:[%s8740 + $0x24a] sm:$0xff]
  %v9579 = vld [vmem:[%s8740 + $0x25a] sm:$0xff]
  %v9580 = vld [vmem:[%s8740 + $0x262] sm:$0xff]
  %v9581 = vld [vmem:[%s8740 + $0x272] sm:$0xff]
  %v9582 = vld [vmem:[%s8740 + $0x27a] sm:$0xff]
  %v9583 = vld [vmem:[%s8740 + $0x28a] sm:$0xff]
  %v9584 = vld [vmem:[%s8740 + $0x292] sm:$0xff]
  %v9585 = vld [vmem:[%s8740 + $0x2a2] sm:$0xff]
  %v9586 = vld [vmem:[%s8740 + $0x2aa] sm:$0xff]
  %v9587 = vld [vmem:[%s8740 + $0x2ba] sm:$0xff]
  %v9588 = vld [vmem:[%s8740 + $0x2c2] sm:$0xff]
  %v9589 = vld [vmem:[%s8740 + $0x2d2] sm:$0xff]
  %v9590 = vld [vmem:[%s8740 + $0x2da] sm:$0xff]
  %v9591 = vld [vmem:[%s8740 + $0x2ea] sm:$0xff]
  %v9592 = vld [vmem:[%s8740 + $0x2f2] sm:$0xff]
  %v9593 = vld [vmem:[%s8740 + $0x302] sm:$0xff]
  %v9594 = vld [vmem:[%s8740 + $0x30a] sm:$0xff]
  %v9595 = vld [vmem:[%s8740 + $0x31a] sm:$0xff]
  %v9596 = vld [vmem:[%s8740 + $0x322] sm:$0xff]
  %9661 = vrot.lane.b32.xlu0 %v9469, 64
  %v9662 = vpop.permute.xlu0 %9661
  %9663 = vrot.lane.b32.xlu0 %v9470, 64
  %v9664 = vpop.permute.xlu0 %9663
  %9665 = vrot.lane.b32.xlu0 %v9471, 64
  %v9666 = vpop.permute.xlu0 %9665
  %9667 = vrot.lane.b32.xlu0 %v9472, 64
  %v9668 = vpop.permute.xlu0 %9667
  %9669 = vrot.lane.b32.xlu0 %v9473, 64
  %v9670 = vpop.permute.xlu0 %9669
  %9671 = vrot.lane.b32.xlu0 %v9474, 64
  %v9672 = vpop.permute.xlu0 %9671
  %9673 = vrot.lane.b32.xlu0 %v9475, 64
  %v9674 = vpop.permute.xlu0 %9673
  %9675 = vrot.lane.b32.xlu0 %v9476, 64
  %v9676 = vpop.permute.xlu0 %9675
  %9677 = vrot.lane.b32.xlu0 %v9477, 64
  %v9678 = vpop.permute.xlu0 %9677
  %9679 = vrot.lane.b32.xlu0 %v9478, 64
  %v9680 = vpop.permute.xlu0 %9679
  %9681 = vrot.lane.b32.xlu0 %v9479, 64
  %v9682 = vpop.permute.xlu0 %9681
  %9683 = vrot.lane.b32.xlu0 %v9480, 64
  %v9684 = vpop.permute.xlu0 %9683
  %9685 = vrot.lane.b32.xlu0 %v9481, 64
  %v9686 = vpop.permute.xlu0 %9685
  %9687 = vrot.lane.b32.xlu0 %v9482, 64
  %v9688 = vpop.permute.xlu0 %9687
  %9689 = vrot.lane.b32.xlu0 %v9483, 64
  %v9690 = vpop.permute.xlu0 %9689
  %9691 = vrot.lane.b32.xlu0 %v9484, 64
  %v9692 = vpop.permute.xlu0 %9691
  %9693 = vrot.lane.b32.xlu0 %v9485, 64
  %v9694 = vpop.permute.xlu0 %9693
  %9695 = vrot.lane.b32.xlu0 %v9486, 64
  %v9696 = vpop.permute.xlu0 %9695
  %9697 = vrot.lane.b32.xlu0 %v9487, 64
  %v9698 = vpop.permute.xlu0 %9697
  %9699 = vrot.lane.b32.xlu0 %v9488, 64
  %v9700 = vpop.permute.xlu0 %9699
  %9701 = vrot.lane.b32.xlu0 %v9489, 64
  %v9702 = vpop.permute.xlu0 %9701
  %9703 = vrot.lane.b32.xlu0 %v9490, 64
  %v9704 = vpop.permute.xlu0 %9703
  %9705 = vrot.lane.b32.xlu0 %v9491, 64
  %v9706 = vpop.permute.xlu0 %9705
  %9707 = vrot.lane.b32.xlu0 %v9492, 64
  %v9708 = vpop.permute.xlu0 %9707
  %9709 = vrot.lane.b32.xlu0 %v9493, 64
  %v9710 = vpop.permute.xlu0 %9709
  %9711 = vrot.lane.b32.xlu0 %v9494, 64
  %v9712 = vpop.permute.xlu0 %9711
  %9713 = vrot.lane.b32.xlu0 %v9495, 64
  %v9714 = vpop.permute.xlu0 %9713
  %9715 = vrot.lane.b32.xlu0 %v9496, 64
  %v9716 = vpop.permute.xlu0 %9715
  %9717 = vrot.lane.b32.xlu0 %v9497, 64
  %v9718 = vpop.permute.xlu0 %9717
  %9719 = vrot.lane.b32.xlu0 %v9498, 64
  %v9720 = vpop.permute.xlu0 %9719
  %9721 = vrot.lane.b32.xlu0 %v9499, 64
  %v9722 = vpop.permute.xlu0 %9721
  %9723 = vrot.lane.b32.xlu0 %v9500, 64
  %v9724 = vpop.permute.xlu0 %9723
  %9725 = vrot.lane.b32.xlu0 %v9501, 64
  %v9726 = vpop.permute.xlu0 %9725
  %9727 = vrot.lane.b32.xlu0 %v9502, 64
  %v9728 = vpop.permute.xlu0 %9727
  %9729 = vrot.lane.b32.xlu0 %v9503, 64
  %v9730 = vpop.permute.xlu0 %9729
  %9731 = vrot.lane.b32.xlu0 %v9504, 64
  %v9732 = vpop.permute.xlu0 %9731
  %9733 = vrot.lane.b32.xlu0 %v9505, 64
  %v9734 = vpop.permute.xlu0 %9733
  %9735 = vrot.lane.b32.xlu0 %v9506, 64
  %v9736 = vpop.permute.xlu0 %9735
  %9737 = vrot.lane.b32.xlu0 %v9507, 64
  %v9738 = vpop.permute.xlu0 %9737
  %9739 = vrot.lane.b32.xlu0 %v9508, 64
  %v9740 = vpop.permute.xlu0 %9739
  %9741 = vrot.lane.b32.xlu0 %v9509, 64
  %v9742 = vpop.permute.xlu0 %9741
  %9743 = vrot.lane.b32.xlu0 %v9510, 64
  %v9744 = vpop.permute.xlu0 %9743
  %9745 = vrot.lane.b32.xlu0 %v9511, 64
  %v9746 = vpop.permute.xlu0 %9745
  %9747 = vrot.lane.b32.xlu0 %v9512, 64
  %v9748 = vpop.permute.xlu0 %9747
  %9749 = vrot.lane.b32.xlu0 %v9513, 64
  %v9750 = vpop.permute.xlu0 %9749
  %9751 = vrot.lane.b32.xlu0 %v9514, 64
  %v9752 = vpop.permute.xlu0 %9751
  %9753 = vrot.lane.b32.xlu0 %v9515, 64
  %v9754 = vpop.permute.xlu0 %9753
  %9755 = vrot.lane.b32.xlu0 %v9516, 64
  %v9756 = vpop.permute.xlu0 %9755
  %9757 = vrot.lane.b32.xlu0 %v9517, 64
  %v9758 = vpop.permute.xlu0 %9757
  %9759 = vrot.lane.b32.xlu0 %v9518, 64
  %v9760 = vpop.permute.xlu0 %9759
  %9761 = vrot.lane.b32.xlu0 %v9519, 64
  %v9762 = vpop.permute.xlu0 %9761
  %9763 = vrot.lane.b32.xlu0 %v9520, 64
  %v9764 = vpop.permute.xlu0 %9763
  %9765 = vrot.lane.b32.xlu0 %v9521, 64
  %v9766 = vpop.permute.xlu0 %9765
  %9767 = vrot.lane.b32.xlu0 %v9522, 64
  %v9768 = vpop.permute.xlu0 %9767
  %9769 = vrot.lane.b32.xlu0 %v9523, 64
  %v9770 = vpop.permute.xlu0 %9769
  %9771 = vrot.lane.b32.xlu0 %v9524, 64
  %v9772 = vpop.permute.xlu0 %9771
  %9773 = vrot.lane.b32.xlu0 %v9525, 64
  %v9774 = vpop.permute.xlu0 %9773
  %9775 = vrot.lane.b32.xlu0 %v9526, 64
  %v9776 = vpop.permute.xlu0 %9775
  %9777 = vrot.lane.b32.xlu0 %v9527, 64
  %v9778 = vpop.permute.xlu0 %9777
  %9779 = vrot.lane.b32.xlu0 %v9528, 64
  %v9780 = vpop.permute.xlu0 %9779
  %9781 = vrot.lane.b32.xlu0 %v9529, 64
  %v9782 = vpop.permute.xlu0 %9781
  %9783 = vrot.lane.b32.xlu0 %v9530, 64
  %v9784 = vpop.permute.xlu0 %9783
  %9785 = vrot.lane.b32.xlu0 %v9531, 64
  %v9786 = vpop.permute.xlu0 %9785
  %9787 = vrot.lane.b32.xlu0 %v9532, 64
  %v9788 = vpop.permute.xlu0 %9787
  %v9853 = vsel %vm7901, %v9405, %v9662
  %v9854 = vsel %vm7901, %v9406, %v9664
  %v9855 = vsel %vm7901, %v9407, %v9666
  %v9856 = vsel %vm7901, %v9408, %v9668
  %v9857 = vsel %vm7901, %v9409, %v9670
  %v9858 = vsel %vm7901, %v9410, %v9672
  %v9859 = vsel %vm7901, %v9411, %v9674
  %v9860 = vsel %vm7901, %v9412, %v9676
  %v9861 = vsel %vm7901, %v9413, %v9678
  %v9862 = vsel %vm7901, %v9414, %v9680
  %v9863 = vsel %vm7901, %v9415, %v9682
  %v9864 = vsel %vm7901, %v9416, %v9684
  %v9865 = vsel %vm7901, %v9417, %v9686
  %v9866 = vsel %vm7901, %v9418, %v9688
  %v9867 = vsel %vm7901, %v9419, %v9690
  %v9868 = vsel %vm7901, %v9420, %v9692
  %v9869 = vsel %vm7901, %v9421, %v9694
  %v9870 = vsel %vm7901, %v9422, %v9696
  %v9871 = vsel %vm7901, %v9423, %v9698
  %v9872 = vsel %vm7901, %v9424, %v9700
  %v9873 = vsel %vm7901, %v9425, %v9702
  %v9874 = vsel %vm7901, %v9426, %v9704
  %v9875 = vsel %vm7901, %v9427, %v9706
  %v9876 = vsel %vm7901, %v9428, %v9708
  %v9877 = vsel %vm7901, %v9429, %v9710
  %v9878 = vsel %vm7901, %v9430, %v9712
  %v9879 = vsel %vm7901, %v9431, %v9714
  %v9880 = vsel %vm7901, %v9432, %v9716
  %v9881 = vsel %vm7901, %v9433, %v9718
  %v9882 = vsel %vm7901, %v9434, %v9720
  %v9883 = vsel %vm7901, %v9435, %v9722
  %v9884 = vsel %vm7901, %v9436, %v9724
  %v9885 = vsel %vm7901, %v9437, %v9726
  %v9886 = vsel %vm7901, %v9438, %v9728
  %v9887 = vsel %vm7901, %v9439, %v9730
  %v9888 = vsel %vm7901, %v9440, %v9732
  %v9889 = vsel %vm7901, %v9441, %v9734
  %v9890 = vsel %vm7901, %v9442, %v9736
  %v9891 = vsel %vm7901, %v9443, %v9738
  %v9892 = vsel %vm7901, %v9444, %v9740
  %v9893 = vsel %vm7901, %v9445, %v9742
  %v9894 = vsel %vm7901, %v9446, %v9744
  %v9895 = vsel %vm7901, %v9447, %v9746
  %v9896 = vsel %vm7901, %v9448, %v9748
  %v9897 = vsel %vm7901, %v9449, %v9750
  %v9898 = vsel %vm7901, %v9450, %v9752
  %v9899 = vsel %vm7901, %v9451, %v9754
  %v9900 = vsel %vm7901, %v9452, %v9756
  %v9901 = vsel %vm7901, %v9453, %v9758
  %v9902 = vsel %vm7901, %v9454, %v9760
  %v9903 = vsel %vm7901, %v9455, %v9762
  %v9904 = vsel %vm7901, %v9456, %v9764
  %v9905 = vsel %vm7901, %v9457, %v9766
  %v9906 = vsel %vm7901, %v9458, %v9768
  %v9907 = vsel %vm7901, %v9459, %v9770
  %v9908 = vsel %vm7901, %v9460, %v9772
  %v9909 = vsel %vm7901, %v9461, %v9774
  %v9910 = vsel %vm7901, %v9462, %v9776
  %v9911 = vsel %vm7901, %v9463, %v9778
  %v9912 = vsel %vm7901, %v9464, %v9780
  %v9913 = vsel %vm7901, %v9465, %v9782
  %v9914 = vsel %vm7901, %v9466, %v9784
  %v9915 = vsel %vm7901, %v9467, %v9786
  %v9916 = vsel %vm7901, %v9468, %v9788
  %v9917 = vpack.c.bf16 %v9854, %v9853
  %v9918 = vpack.c.bf16 %v9534, %v9533
  %v9919 = vpack.c.bf16 %v9856, %v9855
  %v9920 = vpack.c.bf16 %v9536, %v9535
  %v9921 = vpack.c.bf16 %v9858, %v9857
  %v9922 = vpack.c.bf16 %v9538, %v9537
  %v9923 = vpack.c.bf16 %v9860, %v9859
  %v9924 = vpack.c.bf16 %v9540, %v9539
  %v9925 = vpack.c.bf16 %v9862, %v9861
  %v9926 = vpack.c.bf16 %v9542, %v9541
  %v9927 = vpack.c.bf16 %v9864, %v9863
  %v9928 = vpack.c.bf16 %v9544, %v9543
  %v9929 = vpack.c.bf16 %v9866, %v9865
  %v9930 = vpack.c.bf16 %v9546, %v9545
  %v9931 = vpack.c.bf16 %v9868, %v9867
  %v9932 = vpack.c.bf16 %v9548, %v9547
  %v9933 = vpack.c.bf16 %v9870, %v9869
  %v9934 = vpack.c.bf16 %v9550, %v9549
  %v9935 = vpack.c.bf16 %v9872, %v9871
  %v9936 = vpack.c.bf16 %v9552, %v9551
  %v9937 = vpack.c.bf16 %v9874, %v9873
  %v9938 = vpack.c.bf16 %v9554, %v9553
  %v9939 = vpack.c.bf16 %v9876, %v9875
  %v9940 = vpack.c.bf16 %v9556, %v9555
  %v9941 = vpack.c.bf16 %v9878, %v9877
  %v9942 = vpack.c.bf16 %v9558, %v9557
  %v9943 = vpack.c.bf16 %v9880, %v9879
  %v9944 = vpack.c.bf16 %v9560, %v9559
  %v9945 = vpack.c.bf16 %v9882, %v9881
  %v9946 = vpack.c.bf16 %v9562, %v9561
  %v9947 = vpack.c.bf16 %v9884, %v9883
  %v9948 = vpack.c.bf16 %v9564, %v9563
  %v9949 = vpack.c.bf16 %v9886, %v9885
  %v9950 = vpack.c.bf16 %v9566, %v9565
  %v9951 = vpack.c.bf16 %v9888, %v9887
  %v9952 = vpack.c.bf16 %v9568, %v9567
  %v9953 = vpack.c.bf16 %v9890, %v9889
  %v9954 = vpack.c.bf16 %v9570, %v9569
  %v9955 = vpack.c.bf16 %v9892, %v9891
  %v9956 = vpack.c.bf16 %v9572, %v9571
  %v9957 = vpack.c.bf16 %v9894, %v9893
  %v9958 = vpack.c.bf16 %v9574, %v9573
  %v9959 = vpack.c.bf16 %v9896, %v9895
  %v9960 = vpack.c.bf16 %v9576, %v9575
  %v9961 = vpack.c.bf16 %v9898, %v9897
  %v9962 = vpack.c.bf16 %v9578, %v9577
  %v9963 = vpack.c.bf16 %v9900, %v9899
  %v9964 = vpack.c.bf16 %v9580, %v9579
  %v9965 = vpack.c.bf16 %v9902, %v9901
  %v9966 = vpack.c.bf16 %v9582, %v9581
  %v9967 = vpack.c.bf16 %v9904, %v9903
  %v9968 = vpack.c.bf16 %v9584, %v9583
  %v9969 = vpack.c.bf16 %v9906, %v9905
  %v9970 = vpack.c.bf16 %v9586, %v9585
  %v9971 = vpack.c.bf16 %v9908, %v9907
  %v9972 = vpack.c.bf16 %v9588, %v9587
  %v9973 = vpack.c.bf16 %v9910, %v9909
  %v9974 = vpack.c.bf16 %v9590, %v9589
  %v9975 = vpack.c.bf16 %v9912, %v9911
  %v9976 = vpack.c.bf16 %v9592, %v9591
  %v9977 = vpack.c.bf16 %v9914, %v9913
  %v9978 = vpack.c.bf16 %v9594, %v9593
  %v9979 = vpack.c.bf16 %v9916, %v9915
  %v9980 = vpack.c.bf16 %v9596, %v9595
  %s9981 = scalar_lea.vmem %s11, 96
  %v9982 = vld [vmem:[%s9981] sm:$0xf]
  %v9983 = vld [vmem:[%s9981 + $0x4] sm:$0xf]
  %v9984 = vld [vmem:[%s9981 + $0x8] sm:$0xf]
  %v9985 = vld [vmem:[%s9981 + $0xc] sm:$0xf]
  %v9986 = vld [vmem:[%s9981 + $0x10] sm:$0xf]
  %v9987 = vld [vmem:[%s9981 + $0x14] sm:$0xf]
  %v9988 = vld [vmem:[%s9981 + $0x18] sm:$0xf]
  %v9989 = vld [vmem:[%s9981 + $0x1c] sm:$0xf]
  %v9990 = vld [vmem:[%s9981 + $0x20] sm:$0xf]
  %v9991 = vld [vmem:[%s9981 + $0x24] sm:$0xf]
  %v9992 = vld [vmem:[%s9981 + $0x28] sm:$0xf]
  %v9993 = vld [vmem:[%s9981 + $0x2c] sm:$0xf]
  %v9994 = vld [vmem:[%s9981 + $0x30] sm:$0xf]
  %v9995 = vld [vmem:[%s9981 + $0x34] sm:$0xf]
  %v9996 = vld [vmem:[%s9981 + $0x38] sm:$0xf]
  %v9997 = vld [vmem:[%s9981 + $0x3c] sm:$0xf]
  %v9998 = vld [vmem:[%s9981 + $0x40] sm:$0xf]
  %v9999 = vld [vmem:[%s9981 + $0x44] sm:$0xf]
  %v10000 = vld [vmem:[%s9981 + $0x48] sm:$0xf]
  %v10001 = vld [vmem:[%s9981 + $0x4c] sm:$0xf]
  %v10002 = vld [vmem:[%s9981 + $0x50] sm:$0xf]
  %v10003 = vld [vmem:[%s9981 + $0x54] sm:$0xf]
  %v10004 = vld [vmem:[%s9981 + $0x58] sm:$0xf]
  %v10005 = vld [vmem:[%s9981 + $0x5c] sm:$0xf]
  %v10030 = vunpack.c.l.b16 %v9982
  %v10031 = vunpack.c.l.b16 %v9983
  %v10032 = vunpack.c.l.b16 %v9984
  %v10033 = vunpack.c.l.b16 %v9985
  %v10034 = vunpack.c.l.b16 %v9986
  %v10035 = vunpack.c.l.b16 %v9987
  %v10036 = vunpack.c.l.b16 %v9988
  %v10037 = vunpack.c.l.b16 %v9989
  %v10038 = vunpack.c.l.b16 %v9990
  %v10039 = vunpack.c.l.b16 %v9991
  %v10040 = vunpack.c.l.b16 %v9992
  %v10041 = vunpack.c.l.b16 %v9993
  %v10042 = vunpack.c.l.b16 %v9994
  %v10043 = vunpack.c.l.b16 %v9995
  %v10044 = vunpack.c.l.b16 %v9996
  %v10045 = vunpack.c.l.b16 %v9997
  %v10046 = vunpack.c.l.b16 %v9998
  %v10047 = vunpack.c.l.b16 %v9999
  %v10048 = vunpack.c.l.b16 %v10000
  %v10049 = vunpack.c.l.b16 %v10001
  %v10050 = vunpack.c.l.b16 %v10002
  %v10051 = vunpack.c.l.b16 %v10003
  %v10052 = vunpack.c.l.b16 %v10004
  %v10053 = vunpack.c.l.b16 %v10005
  %v10054 = vpack.c.b16 %v10031, %v10030
  %v10055 = vpack.c.b16 %v10033, %v10032
  %v10056 = vpack.c.b16 %v10035, %v10034
  %v10057 = vpack.c.b16 %v10037, %v10036
  %v10058 = vpack.c.b16 %v10039, %v10038
  %v10059 = vpack.c.b16 %v10041, %v10040
  %v10060 = vpack.c.b16 %v10043, %v10042
  %v10061 = vpack.c.b16 %v10045, %v10044
  %v10062 = vpack.c.b16 %v10047, %v10046
  %v10063 = vpack.c.b16 %v10049, %v10048
  %v10064 = vpack.c.b16 %v10051, %v10050
  %v10065 = vpack.c.b16 %v10053, %v10052
  %v10079 = vsel %vm7901, %v9918, 0
  %v10082 = vsel %vm7901, %v9920, 0
  %v10085 = vsel %vm7901, %v9922, 0
  %v10088 = vsel %vm7901, %v9924, 0
  %v10091 = vsel %vm7901, %v9926, 0
  %v10094 = vsel %vm7901, %v9928, 0
  %v10097 = vsel %vm7901, %v9930, 0
  %v10100 = vsel %vm7901, %v9932, 0
  %v10103 = vsel %vm7901, %v9934, 0
  %v10106 = vsel %vm7901, %v9936, 0
  %v10109 = vsel %vm7901, %v9938, 0
  %v10112 = vsel %vm7901, %v9940, 0
  %v10115 = vsel %vm7901, %v9942, 0
  %v10118 = vsel %vm7901, %v9944, 0
  %v10121 = vsel %vm7901, %v9946, 0
  %v10124 = vsel %vm7901, %v9948, 0
  %v10127 = vsel %vm7901, %v9950, 0
  %v10130 = vsel %vm7901, %v9952, 0
  %v10133 = vsel %vm7901, %v9954, 0
  %v10136 = vsel %vm7901, %v9956, 0
  %v10139 = vsel %vm7901, %v9958, 0
  %v10142 = vsel %vm7901, %v9960, 0
  %v10145 = vsel %vm7901, %v9962, 0
  %v10148 = vsel %vm7901, %v9964, 0
  %v10151 = vsel %vm7901, %v9966, 0
  %v10154 = vsel %vm7901, %v9968, 0
  %v10157 = vsel %vm7901, %v9970, 0
  %v10160 = vsel %vm7901, %v9972, 0
  %v10163 = vsel %vm7901, %v9974, 0
  %v10166 = vsel %vm7901, %v9976, 0
  %v10169 = vsel %vm7901, %v9978, 0
  %v10172 = vsel %vm7901, %v9980, 0
  %10174 = vmatprep.subr.bf16.mxu0 0
  %10175 = vmatpush1.bf16.msra.mxu0 %v10054
  %10176 = vmatprep.subr.bf16.mxu0 0
  %10177 = vmatpush1.bf16.msra.mxu0 %v10055
  %10178 = vmatprep.subr.bf16.mxu0 0
  %10179 = vmatpush1.bf16.msra.mxu0 %v10056
  %10180 = vmatprep.subr.bf16.mxu0 0
  %10181 = vmatpush1.bf16.msra.mxu0 %v10057
  %10182 = vmatprep.subr.bf16.mxu0 0
  %10183 = vmatpush1.bf16.msra.mxu0 %v10058
  %10184 = vmatprep.subr.bf16.mxu0 0
  %10185 = vmatpush1.bf16.msra.mxu0 %v10059
  %10186 = vmatprep.subr.bf16.mxu0 0
  %10187 = vmatpush1.bf16.msra.mxu0 %v10060
  %10188 = vmatprep.subr.bf16.mxu0 0
  %10189 = vmatpush1.bf16.msra.mxu0 %v10061
  %10190 = vmatprep.subr.bf16.mxu0 0
  %10191 = vmatpush1.bf16.msra.mxu0 %v10062
  %10192 = vmatprep.subr.bf16.mxu0 0
  %10193 = vmatpush1.bf16.msra.mxu0 %v10063
  %10194 = vmatprep.subr.bf16.mxu0 0
  %10195 = vmatpush1.bf16.msra.mxu0 %v10064
  %10196 = vmatprep.subr.bf16.mxu0 0
  %10197 = vmatpush1.bf16.msra.mxu0 %v10065
  %10198 = vmatprep.subr.bf16.mxu0 0
  %10199 = vmatpush1.bf16.msra.mxu0 0
  %10200 = vmatprep.subr.bf16.mxu0 0
  %10201 = vmatpush1.bf16.msra.mxu0 0
  %10202 = vmatprep.subr.bf16.mxu0 0
  %10203 = vmatpush1.bf16.msra.mxu0 0
  %10204 = vmatprep.subr.bf16.mxu0 0
  %10205 = vmatpush1.bf16.msra.mxu0 0
  %10206 = vmatprep.mubr.bf16.mxu0 %v10079
  %10207 = vmatmul.mubr.bf16.gmra.mrb[0].mxu0 %v9917
  %v10208 = vpop.f32.mrb[0].mxu0
  %v10209 = vadd.f32 0.0, %v10208
  %v10210 = vpop.f32.mrb[0].mxu0
  %v10211 = vpop.f32.mrb[0].mxu0
  %v10212 = vadd.f32 0.0, %v10211
  %v10213 = vpop.f32.mrb[0].mxu0
  %10214 = vmatprep.mubr.bf16.mxu0 %v10082
  %10215 = vmatmul.mubr.bf16.gmra.mrb[0].mxu0 %v9919
  %v10216 = vpop.f32.mrb[0].mxu0
  %v10217 = vadd.f32 0.0, %v10216
  %v10218 = vpop.f32.mrb[0].mxu0
  %v10219 = vpop.f32.mrb[0].mxu0
  %v10220 = vadd.f32 0.0, %v10219
  %v10221 = vpop.f32.mrb[0].mxu0
  %10222 = vmatprep.mubr.bf16.mxu0 %v10085
  %10223 = vmatmul.mubr.bf16.gmra.mrb[0].mxu0 %v9921
  %v10224 = vpop.f32.mrb[0].mxu0
  %v10225 = vadd.f32 0.0, %v10224
  %v10226 = vpop.f32.mrb[0].mxu0
  %v10227 = vpop.f32.mrb[0].mxu0
  %v10228 = vadd.f32 0.0, %v10227
  %v10229 = vpop.f32.mrb[0].mxu0
  %10230 = vmatprep.mubr.bf16.mxu0 %v10088
  %10231 = vmatmul.mubr.bf16.gmra.mrb[0].mxu0 %v9923
  %v10232 = vpop.f32.mrb[0].mxu0
  %v10233 = vadd.f32 0.0, %v10232
  %v10234 = vpop.f32.mrb[0].mxu0
  %v10235 = vpop.f32.mrb[0].mxu0
  %v10236 = vadd.f32 0.0, %v10235
  %v10237 = vpop.f32.mrb[0].mxu0
  %10238 = vmatprep.mubr.bf16.mxu0 %v10091
  %10239 = vmatmul.mubr.bf16.gmra.mrb[0].mxu0 %v9925
  %v10240 = vpop.f32.mrb[0].mxu0
  %v10241 = vadd.f32 0.0, %v10240
  %v10242 = vpop.f32.mrb[0].mxu0
  %v10243 = vpop.f32.mrb[0].mxu0
  %v10244 = vadd.f32 0.0, %v10243
  %v10245 = vpop.f32.mrb[0].mxu0
  %10246 = vmatprep.mubr.bf16.mxu0 %v10094
  %10247 = vmatmul.mubr.bf16.gmra.mrb[0].mxu0 %v9927
  %v10248 = vpop.f32.mrb[0].mxu0
  %v10249 = vadd.f32 0.0, %v10248
  %v10250 = vpop.f32.mrb[0].mxu0
  %v10251 = vpop.f32.mrb[0].mxu0
  %v10252 = vadd.f32 0.0, %v10251
  %v10253 = vpop.f32.mrb[0].mxu0
  %10254 = vmatprep.mubr.bf16.mxu0 %v10097
  %10255 = vmatmul.mubr.bf16.gmra.mrb[0].mxu0 %v9929
  %v10256 = vpop.f32.mrb[0].mxu0
  %v10257 = vadd.f32 0.0, %v10256
  %v10258 = vpop.f32.mrb[0].mxu0
  %v10259 = vpop.f32.mrb[0].mxu0
  %v10260 = vadd.f32 0.0, %v10259
  %v10261 = vpop.f32.mrb[0].mxu0
  %10262 = vmatprep.mubr.bf16.mxu0 %v10100
  %10263 = vmatmul.mubr.bf16.gmra.mrb[0].mxu0 %v9931
  %v10264 = vpop.f32.mrb[0].mxu0
  %v10265 = vadd.f32 0.0, %v10264
  %v10266 = vpop.f32.mrb[0].mxu0
  %v10267 = vpop.f32.mrb[0].mxu0
  %v10268 = vadd.f32 0.0, %v10267
  %v10269 = vpop.f32.mrb[0].mxu0
  %10270 = vmatprep.mubr.bf16.mxu0 %v10103
  %10271 = vmatmul.mubr.bf16.gmra.mrb[0].mxu0 %v9933
  %v10272 = vpop.f32.mrb[0].mxu0
  %v10273 = vadd.f32 0.0, %v10272
  %v10274 = vpop.f32.mrb[0].mxu0
  %v10275 = vpop.f32.mrb[0].mxu0
  %v10276 = vadd.f32 0.0, %v10275
  %v10277 = vpop.f32.mrb[0].mxu0
  %10278 = vmatprep.mubr.bf16.mxu0 %v10106
  %10279 = vmatmul.mubr.bf16.gmra.mrb[0].mxu0 %v9935
  %v10280 = vpop.f32.mrb[0].mxu0
  %v10281 = vadd.f32 0.0, %v10280
  %v10282 = vpop.f32.mrb[0].mxu0
  %v10283 = vpop.f32.mrb[0].mxu0
  %v10284 = vadd.f32 0.0, %v10283
  %v10285 = vpop.f32.mrb[0].mxu0
  %10286 = vmatprep.mubr.bf16.mxu0 %v10109
  %10287 = vmatmul.mubr.bf16.gmra.mrb[0].mxu0 %v9937
  %v10288 = vpop.f32.mrb[0].mxu0
  %v10289 = vadd.f32 0.0, %v10288
  %v10290 = vpop.f32.mrb[0].mxu0
  %v10291 = vpop.f32.mrb[0].mxu0
  %v10292 = vadd.f32 0.0, %v10291
  %v10293 = vpop.f32.mrb[0].mxu0
  %10294 = vmatprep.mubr.bf16.mxu0 %v10112
  %10295 = vmatmul.mubr.bf16.gmra.mrb[0].mxu0 %v9939
  %v10296 = vpop.f32.mrb[0].mxu0
  %v10297 = vadd.f32 0.0, %v10296
  %v10298 = vpop.f32.mrb[0].mxu0
  %v10299 = vpop.f32.mrb[0].mxu0
  %v10300 = vadd.f32 0.0, %v10299
  %v10301 = vpop.f32.mrb[0].mxu0
  %10302 = vmatprep.mubr.bf16.mxu0 %v10115
  %10303 = vmatmul.mubr.bf16.gmra.mrb[0].mxu0 %v9941
  %v10304 = vpop.f32.mrb[0].mxu0
  %v10305 = vadd.f32 0.0, %v10304
  %v10306 = vpop.f32.mrb[0].mxu0
  %v10307 = vpop.f32.mrb[0].mxu0
  %v10308 = vadd.f32 0.0, %v10307
  %v10309 = vpop.f32.mrb[0].mxu0
  %10310 = vmatprep.mubr.bf16.mxu0 %v10118
  %10311 = vmatmul.mubr.bf16.gmra.mrb[0].mxu0 %v9943
  %v10312 = vpop.f32.mrb[0].mxu0
  %v10313 = vadd.f32 0.0, %v10312
  %v10314 = vpop.f32.mrb[0].mxu0
  %v10315 = vpop.f32.mrb[0].mxu0
  %v10316 = vadd.f32 0.0, %v10315
  %v10317 = vpop.f32.mrb[0].mxu0
  %10318 = vmatprep.mubr.bf16.mxu0 %v10121
  %10319 = vmatmul.mubr.bf16.gmra.mrb[0].mxu0 %v9945
  %v10320 = vpop.f32.mrb[0].mxu0
  %v10321 = vadd.f32 0.0, %v10320
  %v10322 = vpop.f32.mrb[0].mxu0
  %v10323 = vpop.f32.mrb[0].mxu0
  %v10324 = vadd.f32 0.0, %v10323
  %v10325 = vpop.f32.mrb[0].mxu0
  %10326 = vmatprep.mubr.bf16.mxu0 %v10124
  %10327 = vmatmul.mubr.bf16.gmra.mrb[0].mxu0 %v9947
  %v10328 = vpop.f32.mrb[0].mxu0
  %v10329 = vadd.f32 0.0, %v10328
  %v10330 = vpop.f32.mrb[0].mxu0
  %v10331 = vpop.f32.mrb[0].mxu0
  %v10332 = vadd.f32 0.0, %v10331
  %v10333 = vpop.f32.mrb[0].mxu0
  %10334 = vmatprep.mubr.bf16.mxu0 %v10127
  %10335 = vmatmul.mubr.bf16.gmra.mrb[0].mxu0 %v9949
  %v10336 = vpop.f32.mrb[0].mxu0
  %v10337 = vadd.f32 0.0, %v10336
  %v10338 = vpop.f32.mrb[0].mxu0
  %v10339 = vpop.f32.mrb[0].mxu0
  %v10340 = vadd.f32 0.0, %v10339
  %v10341 = vpop.f32.mrb[0].mxu0
  %10342 = vmatprep.mubr.bf16.mxu0 %v10130
  %10343 = vmatmul.mubr.bf16.gmra.mrb[0].mxu0 %v9951
  %v10344 = vpop.f32.mrb[0].mxu0
  %v10345 = vadd.f32 0.0, %v10344
  %v10346 = vpop.f32.mrb[0].mxu0
  %v10347 = vpop.f32.mrb[0].mxu0
  %v10348 = vadd.f32 0.0, %v10347
  %v10349 = vpop.f32.mrb[0].mxu0
  %10350 = vmatprep.mubr.bf16.mxu0 %v10133
  %10351 = vmatmul.mubr.bf16.gmra.mrb[0].mxu0 %v9953
  %v10352 = vpop.f32.mrb[0].mxu0
  %v10353 = vadd.f32 0.0, %v10352
  %v10354 = vpop.f32.mrb[0].mxu0
  %v10355 = vpop.f32.mrb[0].mxu0
  %v10356 = vadd.f32 0.0, %v10355
  %v10357 = vpop.f32.mrb[0].mxu0
  %10358 = vmatprep.mubr.bf16.mxu0 %v10136
  %10359 = vmatmul.mubr.bf16.gmra.mrb[0].mxu0 %v9955
  %v10360 = vpop.f32.mrb[0].mxu0
  %v10361 = vadd.f32 0.0, %v10360
  %v10362 = vpop.f32.mrb[0].mxu0
  %v10363 = vpop.f32.mrb[0].mxu0
  %v10364 = vadd.f32 0.0, %v10363
  %v10365 = vpop.f32.mrb[0].mxu0
  %10366 = vmatprep.mubr.bf16.mxu0 %v10139
  %10367 = vmatmul.mubr.bf16.gmra.mrb[0].mxu0 %v9957
  %v10368 = vpop.f32.mrb[0].mxu0
  %v10369 = vadd.f32 0.0, %v10368
  %v10370 = vpop.f32.mrb[0].mxu0
  %v10371 = vpop.f32.mrb[0].mxu0
  %v10372 = vadd.f32 0.0, %v10371
  %v10373 = vpop.f32.mrb[0].mxu0
  %10374 = vmatprep.mubr.bf16.mxu0 %v10142
  %10375 = vmatmul.mubr.bf16.gmra.mrb[0].mxu0 %v9959
  %v10376 = vpop.f32.mrb[0].mxu0
  %v10377 = vadd.f32 0.0, %v10376
  %v10378 = vpop.f32.mrb[0].mxu0
  %v10379 = vpop.f32.mrb[0].mxu0
  %v10380 = vadd.f32 0.0, %v10379
  %v10381 = vpop.f32.mrb[0].mxu0
  %10382 = vmatprep.mubr.bf16.mxu0 %v10145
  %10383 = vmatmul.mubr.bf16.gmra.mrb[0].mxu0 %v9961
  %v10384 = vpop.f32.mrb[0].mxu0
  %v10385 = vadd.f32 0.0, %v10384
  %v10386 = vpop.f32.mrb[0].mxu0
  %v10387 = vpop.f32.mrb[0].mxu0
  %v10388 = vadd.f32 0.0, %v10387
  %v10389 = vpop.f32.mrb[0].mxu0
  %10390 = vmatprep.mubr.bf16.mxu0 %v10148
  %10391 = vmatmul.mubr.bf16.gmra.mrb[0].mxu0 %v9963
  %v10392 = vpop.f32.mrb[0].mxu0
  %v10393 = vadd.f32 0.0, %v10392
  %v10394 = vpop.f32.mrb[0].mxu0
  %v10395 = vpop.f32.mrb[0].mxu0
  %v10396 = vadd.f32 0.0, %v10395
  %v10397 = vpop.f32.mrb[0].mxu0
  %10398 = vmatprep.mubr.bf16.mxu0 %v10151
  %10399 = vmatmul.mubr.bf16.gmra.mrb[0].mxu0 %v9965
  %v10400 = vpop.f32.mrb[0].mxu0
  %v10401 = vadd.f32 0.0, %v10400
  %v10402 = vpop.f32.mrb[0].mxu0
  %v10403 = vpop.f32.mrb[0].mxu0
  %v10404 = vadd.f32 0.0, %v10403
  %v10405 = vpop.f32.mrb[0].mxu0
  %10406 = vmatprep.mubr.bf16.mxu0 %v10154
  %10407 = vmatmul.mubr.bf16.gmra.mrb[0].mxu0 %v9967
  %v10408 = vpop.f32.mrb[0].mxu0
  %v10409 = vadd.f32 0.0, %v10408
  %v10410 = vpop.f32.mrb[0].mxu0
  %v10411 = vpop.f32.mrb[0].mxu0
  %v10412 = vadd.f32 0.0, %v10411
  %v10413 = vpop.f32.mrb[0].mxu0
  %10414 = vmatprep.mubr.bf16.mxu0 %v10157
  %10415 = vmatmul.mubr.bf16.gmra.mrb[0].mxu0 %v9969
  %v10416 = vpop.f32.mrb[0].mxu0
  %v10417 = vadd.f32 0.0, %v10416
  %v10418 = vpop.f32.mrb[0].mxu0
  %v10419 = vpop.f32.mrb[0].mxu0
  %v10420 = vadd.f32 0.0, %v10419
  %v10421 = vpop.f32.mrb[0].mxu0
  %10422 = vmatprep.mubr.bf16.mxu0 %v10160
  %10423 = vmatmul.mubr.bf16.gmra.mrb[0].mxu0 %v9971
  %v10424 = vpop.f32.mrb[0].mxu0
  %v10425 = vadd.f32 0.0, %v10424
  %v10426 = vpop.f32.mrb[0].mxu0
  %v10427 = vpop.f32.mrb[0].mxu0
  %v10428 = vadd.f32 0.0, %v10427
  %v10429 = vpop.f32.mrb[0].mxu0
  %10430 = vmatprep.mubr.bf16.mxu0 %v10163
  %10431 = vmatmul.mubr.bf16.gmra.mrb[0].mxu0 %v9973
  %v10432 = vpop.f32.mrb[0].mxu0
  %v10433 = vadd.f32 0.0, %v10432
  %v10434 = vpop.f32.mrb[0].mxu0
  %v10435 = vpop.f32.mrb[0].mxu0
  %v10436 = vadd.f32 0.0, %v10435
  %v10437 = vpop.f32.mrb[0].mxu0
  %10438 = vmatprep.mubr.bf16.mxu0 %v10166
  %10439 = vmatmul.mubr.bf16.gmra.mrb[0].mxu0 %v9975
  %v10440 = vpop.f32.mrb[0].mxu0
  %v10441 = vadd.f32 0.0, %v10440
  %v10442 = vpop.f32.mrb[0].mxu0
  %v10443 = vpop.f32.mrb[0].mxu0
  %v10444 = vadd.f32 0.0, %v10443
  %v10445 = vpop.f32.mrb[0].mxu0
  %10446 = vmatprep.mubr.bf16.mxu0 %v10169
  %10447 = vmatmul.mubr.bf16.gmra.mrb[0].mxu0 %v9977
  %v10448 = vpop.f32.mrb[0].mxu0
  %v10449 = vadd.f32 0.0, %v10448
  %v10450 = vpop.f32.mrb[0].mxu0
  %v10451 = vpop.f32.mrb[0].mxu0
  %v10452 = vadd.f32 0.0, %v10451
  %v10453 = vpop.f32.mrb[0].mxu0
  %10454 = vmatprep.mubr.bf16.mxu0 %v10172
  %10455 = vmatmul.mubr.bf16.gmra.mrb[0].mxu0 %v9979
  %v10456 = vpop.f32.mrb[0].mxu0
  %v10457 = vadd.f32 0.0, %v10456
  %v10458 = vpop.f32.mrb[0].mxu0
  %v10459 = vpop.f32.mrb[0].mxu0
  %v10460 = vadd.f32 0.0, %v10459
  %v10461 = vpop.f32.mrb[0].mxu0
  %10462 = vdwg.mxu0
  %v10487 = vunpack.c.l.b16 %v9381
  %v10488 = vunpack.c.l.b16 %v9382
  %v10489 = vunpack.c.l.b16 %v9383
  %v10490 = vunpack.c.l.b16 %v9384
  %v10491 = vunpack.c.l.b16 %v9385
  %v10492 = vunpack.c.l.b16 %v9386
  %v10493 = vunpack.c.l.b16 %v9387
  %v10494 = vunpack.c.l.b16 %v9388
  %v10495 = vunpack.c.l.b16 %v9389
  %v10496 = vunpack.c.l.b16 %v9390
  %v10497 = vunpack.c.l.b16 %v9391
  %v10498 = vunpack.c.l.b16 %v9392
  %v10499 = vunpack.c.l.b16 %v9393
  %v10500 = vunpack.c.l.b16 %v9394
  %v10501 = vunpack.c.l.b16 %v9395
  %v10502 = vunpack.c.l.b16 %v9396
  %v10503 = vunpack.c.l.b16 %v9397
  %v10504 = vunpack.c.l.b16 %v9398
  %v10505 = vunpack.c.l.b16 %v9399
  %v10506 = vunpack.c.l.b16 %v9400
  %v10507 = vunpack.c.l.b16 %v9401
  %v10508 = vunpack.c.l.b16 %v9402
  %v10509 = vunpack.c.l.b16 %v9403
  %v10510 = vunpack.c.l.b16 %v9404
  %v10511 = vpack.c.b16 %v10488, %v10487
  %v10512 = vpack.c.b16 %v10490, %v10489
  %v10513 = vpack.c.b16 %v10492, %v10491
  %v10514 = vpack.c.b16 %v10494, %v10493
  %v10515 = vpack.c.b16 %v10496, %v10495
  %v10516 = vpack.c.b16 %v10498, %v10497
  %v10517 = vpack.c.b16 %v10500, %v10499
  %v10518 = vpack.c.b16 %v10502, %v10501
  %v10519 = vpack.c.b16 %v10504, %v10503
  %v10520 = vpack.c.b16 %v10506, %v10505
  %v10521 = vpack.c.b16 %v10508, %v10507
  %v10522 = vpack.c.b16 %v10510, %v10509
  %v10536 = vsel %vm7901, %v9318, 0
  %v10539 = vsel %vm7901, %v9320, 0
  %v10542 = vsel %vm7901, %v9322, 0
  %v10545 = vsel %vm7901, %v9324, 0
  %v10548 = vsel %vm7901, %v9326, 0
  %v10551 = vsel %vm7901, %v9328, 0
  %v10554 = vsel %vm7901, %v9330, 0
  %v10557 = vsel %vm7901, %v9332, 0
  %v10560 = vsel %vm7901, %v9334, 0
  %v10563 = vsel %vm7901, %v9336, 0
  %v10566 = vsel %vm7901, %v9338, 0
  %v10569 = vsel %vm7901, %v9340, 0
  %v10572 = vsel %vm7901, %v9342, 0
  %v10575 = vsel %vm7901, %v9344, 0
  %v10578 = vsel %vm7901, %v9346, 0
  %v10581 = vsel %vm7901, %v9348, 0
  %v10584 = vsel %vm7901, %v9350, 0
  %v10587 = vsel %vm7901, %v9352, 0
  %v10590 = vsel %vm7901, %v9354, 0
  %v10593 = vsel %vm7901, %v9356, 0
  %v10596 = vsel %vm7901, %v9358, 0
  %v10599 = vsel %vm7901, %v9360, 0
  %v10602 = vsel %vm7901, %v9362, 0
  %v10605 = vsel %vm7901, %v9364, 0
  %v10608 = vsel %vm7901, %v9366, 0
  %v10611 = vsel %vm7901, %v9368, 0
  %v10614 = vsel %vm7901, %v9370, 0
  %v10617 = vsel %vm7901, %v9372, 0
  %v10620 = vsel %vm7901, %v9374, 0
  %v10623 = vsel %vm7901, %v9376, 0
  %v10626 = vsel %vm7901, %v9378, 0
  %v10629 = vsel %vm7901, %v9380, 0
  %10631 = vmatprep.subr.bf16.mxu0 0
  %10632 = vmatpush1.bf16.msra.mxu0 %v10511
  %10633 = vmatprep.subr.bf16.mxu0 0
  %10634 = vmatpush1.bf16.msra.mxu0 %v10512
  %10635 = vmatprep.subr.bf16.mxu0 0
  %10636 = vmatpush1.bf16.msra.mxu0 %v10513
  %10637 = vmatprep.subr.bf16.mxu0 0
  %10638 = vmatpush1.bf16.msra.mxu0 %v10514
  %10639 = vmatprep.subr.bf16.mxu0 0
  %10640 = vmatpush1.bf16.msra.mxu0 %v10515
  %10641 = vmatprep.subr.bf16.mxu0 0
  %10642 = vmatpush1.bf16.msra.mxu0 %v10516
  %10643 = vmatprep.subr.bf16.mxu0 0
  %10644 = vmatpush1.bf16.msra.mxu0 %v10517
  %10645 = vmatprep.subr.bf16.mxu0 0
  %10646 = vmatpush1.bf16.msra.mxu0 %v10518
  %10647 = vmatprep.subr.bf16.mxu0 0
  %10648 = vmatpush1.bf16.msra.mxu0 %v10519
  %10649 = vmatprep.subr.bf16.mxu0 0
  %10650 = vmatpush1.bf16.msra.mxu0 %v10520
  %10651 = vmatprep.subr.bf16.mxu0 0
  %10652 = vmatpush1.bf16.msra.mxu0 %v10521
  %10653 = vmatprep.subr.bf16.mxu0 0
  %10654 = vmatpush1.bf16.msra.mxu0 %v10522
  %10655 = vmatprep.subr.bf16.mxu0 0
  %10656 = vmatpush1.bf16.msra.mxu0 0
  %10657 = vmatprep.subr.bf16.mxu0 0
  %10658 = vmatpush1.bf16.msra.mxu0 0
  %10659 = vmatprep.subr.bf16.mxu0 0
  %10660 = vmatpush1.bf16.msra.mxu0 0
  %10661 = vmatprep.subr.bf16.mxu0 0
  %10662 = vmatpush1.bf16.msra.mxu0 0
  %10663 = vmatprep.mubr.bf16.mxu0 %v10536
  %10664 = vmatmul.mubr.bf16.gmra.mrb[0].mxu0 %v9317
  %v10665 = vpop.f32.mrb[0].mxu0
  %v10666 = vadd.f32 %v10209, %v10665
  %v10667 = vpop.f32.mrb[0].mxu0
  %v10668 = vpop.f32.mrb[0].mxu0
  %v10669 = vadd.f32 %v10212, %v10668
  %v10670 = vpop.f32.mrb[0].mxu0
  %10671 = vmatprep.mubr.bf16.mxu0 %v10539
  %10672 = vmatmul.mubr.bf16.gmra.mrb[0].mxu0 %v9319
  %v10673 = vpop.f32.mrb[0].mxu0
  %v10674 = vadd.f32 %v10217, %v10673
  %v10675 = vpop.f32.mrb[0].mxu0
  %v10676 = vpop.f32.mrb[0].mxu0
  %v10677 = vadd.f32 %v10220, %v10676
  %v10678 = vpop.f32.mrb[0].mxu0
  %10679 = vmatprep.mubr.bf16.mxu0 %v10542
  %10680 = vmatmul.mubr.bf16.gmra.mrb[0].mxu0 %v9321
  %v10681 = vpop.f32.mrb[0].mxu0
  %v10682 = vadd.f32 %v10225, %v10681
  %v10683 = vpop.f32.mrb[0].mxu0
  %v10684 = vpop.f32.mrb[0].mxu0
  %v10685 = vadd.f32 %v10228, %v10684
  %v10686 = vpop.f32.mrb[0].mxu0
  %10687 = vmatprep.mubr.bf16.mxu0 %v10545
  %10688 = vmatmul.mubr.bf16.gmra.mrb[0].mxu0 %v9323
  %v10689 = vpop.f32.mrb[0].mxu0
  %v10690 = vadd.f32 %v10233, %v10689
  %v10691 = vpop.f32.mrb[0].mxu0
  %v10692 = vpop.f32.mrb[0].mxu0
  %v10693 = vadd.f32 %v10236, %v10692
  %v10694 = vpop.f32.mrb[0].mxu0
  %10695 = vmatprep.mubr.bf16.mxu0 %v10548
  %10696 = vmatmul.mubr.bf16.gmra.mrb[0].mxu0 %v9325
  %v10697 = vpop.f32.mrb[0].mxu0
  %v10698 = vadd.f32 %v10241, %v10697
  %v10699 = vpop.f32.mrb[0].mxu0
  %v10700 = vpop.f32.mrb[0].mxu0
  %v10701 = vadd.f32 %v10244, %v10700
  %v10702 = vpop.f32.mrb[0].mxu0
  %10703 = vmatprep.mubr.bf16.mxu0 %v10551
  %10704 = vmatmul.mubr.bf16.gmra.mrb[0].mxu0 %v9327
  %v10705 = vpop.f32.mrb[0].mxu0
  %v10706 = vadd.f32 %v10249, %v10705
  %v10707 = vpop.f32.mrb[0].mxu0
  %v10708 = vpop.f32.mrb[0].mxu0
  %v10709 = vadd.f32 %v10252, %v10708
  %v10710 = vpop.f32.mrb[0].mxu0
  %10711 = vmatprep.mubr.bf16.mxu0 %v10554
  %10712 = vmatmul.mubr.bf16.gmra.mrb[0].mxu0 %v9329
  %v10713 = vpop.f32.mrb[0].mxu0
  %v10714 = vadd.f32 %v10257, %v10713
  %v10715 = vpop.f32.mrb[0].mxu0
  %v10716 = vpop.f32.mrb[0].mxu0
  %v10717 = vadd.f32 %v10260, %v10716
  %v10718 = vpop.f32.mrb[0].mxu0
  %10719 = vmatprep.mubr.bf16.mxu0 %v10557
  %10720 = vmatmul.mubr.bf16.gmra.mrb[0].mxu0 %v9331
  %v10721 = vpop.f32.mrb[0].mxu0
  %v10722 = vadd.f32 %v10265, %v10721
  %v10723 = vpop.f32.mrb[0].mxu0
  %v10724 = vpop.f32.mrb[0].mxu0
  %v10725 = vadd.f32 %v10268, %v10724
  %v10726 = vpop.f32.mrb[0].mxu0
  %10727 = vmatprep.mubr.bf16.mxu0 %v10560
  %10728 = vmatmul.mubr.bf16.gmra.mrb[0].mxu0 %v9333
  %v10729 = vpop.f32.mrb[0].mxu0
  %v10730 = vadd.f32 %v10273, %v10729
  %v10731 = vpop.f32.mrb[0].mxu0
  %v10732 = vpop.f32.mrb[0].mxu0
  %v10733 = vadd.f32 %v10276, %v10732
  %v10734 = vpop.f32.mrb[0].mxu0
  %10735 = vmatprep.mubr.bf16.mxu0 %v10563
  %10736 = vmatmul.mubr.bf16.gmra.mrb[0].mxu0 %v9335
  %v10737 = vpop.f32.mrb[0].mxu0
  %v10738 = vadd.f32 %v10281, %v10737
  %v10739 = vpop.f32.mrb[0].mxu0
  %v10740 = vpop.f32.mrb[0].mxu0
  %v10741 = vadd.f32 %v10284, %v10740
  %v10742 = vpop.f32.mrb[0].mxu0
  %10743 = vmatprep.mubr.bf16.mxu0 %v10566
  %10744 = vmatmul.mubr.bf16.gmra.mrb[0].mxu0 %v9337
  %v10745 = vpop.f32.mrb[0].mxu0
  %v10746 = vadd.f32 %v10289, %v10745
  %v10747 = vpop.f32.mrb[0].mxu0
  %v10748 = vpop.f32.mrb[0].mxu0
  %v10749 = vadd.f32 %v10292, %v10748
  %v10750 = vpop.f32.mrb[0].mxu0
  %10751 = vmatprep.mubr.bf16.mxu0 %v10569
  %10752 = vmatmul.mubr.bf16.gmra.mrb[0].mxu0 %v9339
  %v10753 = vpop.f32.mrb[0].mxu0
  %v10754 = vadd.f32 %v10297, %v10753
  %v10755 = vpop.f32.mrb[0].mxu0
  %v10756 = vpop.f32.mrb[0].mxu0
  %v10757 = vadd.f32 %v10300, %v10756
  %v10758 = vpop.f32.mrb[0].mxu0
  %10759 = vmatprep.mubr.bf16.mxu0 %v10572
  %10760 = vmatmul.mubr.bf16.gmra.mrb[0].mxu0 %v9341
  %v10761 = vpop.f32.mrb[0].mxu0
  %v10762 = vadd.f32 %v10305, %v10761
  %v10763 = vpop.f32.mrb[0].mxu0
  %v10764 = vpop.f32.mrb[0].mxu0
  %v10765 = vadd.f32 %v10308, %v10764
  %v10766 = vpop.f32.mrb[0].mxu0
  %10767 = vmatprep.mubr.bf16.mxu0 %v10575
  %10768 = vmatmul.mubr.bf16.gmra.mrb[0].mxu0 %v9343
  %v10769 = vpop.f32.mrb[0].mxu0
  %v10770 = vadd.f32 %v10313, %v10769
  %v10771 = vpop.f32.mrb[0].mxu0
  %v10772 = vpop.f32.mrb[0].mxu0
  %v10773 = vadd.f32 %v10316, %v10772
  %v10774 = vpop.f32.mrb[0].mxu0
  %10775 = vmatprep.mubr.bf16.mxu0 %v10578
  %10776 = vmatmul.mubr.bf16.gmra.mrb[0].mxu0 %v9345
  %v10777 = vpop.f32.mrb[0].mxu0
  %v10778 = vadd.f32 %v10321, %v10777
  %v10779 = vpop.f32.mrb[0].mxu0
  %v10780 = vpop.f32.mrb[0].mxu0
  %v10781 = vadd.f32 %v10324, %v10780
  %v10782 = vpop.f32.mrb[0].mxu0
  %10783 = vmatprep.mubr.bf16.mxu0 %v10581
  %10784 = vmatmul.mubr.bf16.gmra.mrb[0].mxu0 %v9347
  %v10785 = vpop.f32.mrb[0].mxu0
  %v10786 = vadd.f32 %v10329, %v10785
  %v10787 = vpop.f32.mrb[0].mxu0
  %v10788 = vpop.f32.mrb[0].mxu0
  %v10789 = vadd.f32 %v10332, %v10788
  %v10790 = vpop.f32.mrb[0].mxu0
  %10791 = vmatprep.mubr.bf16.mxu0 %v10584
  %10792 = vmatmul.mubr.bf16.gmra.mrb[0].mxu0 %v9349
  %v10793 = vpop.f32.mrb[0].mxu0
  %v10794 = vadd.f32 %v10337, %v10793
  %v10795 = vpop.f32.mrb[0].mxu0
  %v10796 = vpop.f32.mrb[0].mxu0
  %v10797 = vadd.f32 %v10340, %v10796
  %v10798 = vpop.f32.mrb[0].mxu0
  %10799 = vmatprep.mubr.bf16.mxu0 %v10587
  %10800 = vmatmul.mubr.bf16.gmra.mrb[0].mxu0 %v9351
  %v10801 = vpop.f32.mrb[0].mxu0
  %v10802 = vadd.f32 %v10345, %v10801
  %v10803 = vpop.f32.mrb[0].mxu0
  %v10804 = vpop.f32.mrb[0].mxu0
  %v10805 = vadd.f32 %v10348, %v10804
  %v10806 = vpop.f32.mrb[0].mxu0
  %10807 = vmatprep.mubr.bf16.mxu0 %v10590
  %10808 = vmatmul.mubr.bf16.gmra.mrb[0].mxu0 %v9353
  %v10809 = vpop.f32.mrb[0].mxu0
  %v10810 = vadd.f32 %v10353, %v10809
  %v10811 = vpop.f32.mrb[0].mxu0
  %v10812 = vpop.f32.mrb[0].mxu0
  %v10813 = vadd.f32 %v10356, %v10812
  %v10814 = vpop.f32.mrb[0].mxu0
  %10815 = vmatprep.mubr.bf16.mxu0 %v10593
  %10816 = vmatmul.mubr.bf16.gmra.mrb[0].mxu0 %v9355
  %v10817 = vpop.f32.mrb[0].mxu0
  %v10818 = vadd.f32 %v10361, %v10817
  %v10819 = vpop.f32.mrb[0].mxu0
  %v10820 = vpop.f32.mrb[0].mxu0
  %v10821 = vadd.f32 %v10364, %v10820
  %v10822 = vpop.f32.mrb[0].mxu0
  %10823 = vmatprep.mubr.bf16.mxu0 %v10596
  %10824 = vmatmul.mubr.bf16.gmra.mrb[0].mxu0 %v9357
  %v10825 = vpop.f32.mrb[0].mxu0
  %v10826 = vadd.f32 %v10369, %v10825
  %v10827 = vpop.f32.mrb[0].mxu0
  %v10828 = vpop.f32.mrb[0].mxu0
  %v10829 = vadd.f32 %v10372, %v10828
  %v10830 = vpop.f32.mrb[0].mxu0
  %10831 = vmatprep.mubr.bf16.mxu0 %v10599
  %10832 = vmatmul.mubr.bf16.gmra.mrb[0].mxu0 %v9359
  %v10833 = vpop.f32.mrb[0].mxu0
  %v10834 = vadd.f32 %v10377, %v10833
  %v10835 = vpop.f32.mrb[0].mxu0
  %v10836 = vpop.f32.mrb[0].mxu0
  %v10837 = vadd.f32 %v10380, %v10836
  %v10838 = vpop.f32.mrb[0].mxu0
  %10839 = vmatprep.mubr.bf16.mxu0 %v10602
  %10840 = vmatmul.mubr.bf16.gmra.mrb[0].mxu0 %v9361
  %v10841 = vpop.f32.mrb[0].mxu0
  %v10842 = vadd.f32 %v10385, %v10841
  %v10843 = vpop.f32.mrb[0].mxu0
  %v10844 = vpop.f32.mrb[0].mxu0
  %v10845 = vadd.f32 %v10388, %v10844
  %v10846 = vpop.f32.mrb[0].mxu0
  %10847 = vmatprep.mubr.bf16.mxu0 %v10605
  %10848 = vmatmul.mubr.bf16.gmra.mrb[0].mxu0 %v9363
  %v10849 = vpop.f32.mrb[0].mxu0
  %v10850 = vadd.f32 %v10393, %v10849
  %v10851 = vpop.f32.mrb[0].mxu0
  %v10852 = vpop.f32.mrb[0].mxu0
  %v10853 = vadd.f32 %v10396, %v10852
  %v10854 = vpop.f32.mrb[0].mxu0
  %10855 = vmatprep.mubr.bf16.mxu0 %v10608
  %10856 = vmatmul.mubr.bf16.gmra.mrb[0].mxu0 %v9365
  %v10857 = vpop.f32.mrb[0].mxu0
  %v10858 = vadd.f32 %v10401, %v10857
  %v10859 = vpop.f32.mrb[0].mxu0
  %v10860 = vpop.f32.mrb[0].mxu0
  %v10861 = vadd.f32 %v10404, %v10860
  %v10862 = vpop.f32.mrb[0].mxu0
  %10863 = vmatprep.mubr.bf16.mxu0 %v10611
  %10864 = vmatmul.mubr.bf16.gmra.mrb[0].mxu0 %v9367
  %v10865 = vpop.f32.mrb[0].mxu0
  %v10866 = vadd.f32 %v10409, %v10865
  %v10867 = vpop.f32.mrb[0].mxu0
  %v10868 = vpop.f32.mrb[0].mxu0
  %v10869 = vadd.f32 %v10412, %v10868
  %v10870 = vpop.f32.mrb[0].mxu0
  %10871 = vmatprep.mubr.bf16.mxu0 %v10614
  %10872 = vmatmul.mubr.bf16.gmra.mrb[0].mxu0 %v9369
  %v10873 = vpop.f32.mrb[0].mxu0
  %v10874 = vadd.f32 %v10417, %v10873
  %v10875 = vpop.f32.mrb[0].mxu0
  %v10876 = vpop.f32.mrb[0].mxu0
  %v10877 = vadd.f32 %v10420, %v10876
  %v10878 = vpop.f32.mrb[0].mxu0
  %10879 = vmatprep.mubr.bf16.mxu0 %v10617
  %10880 = vmatmul.mubr.bf16.gmra.mrb[0].mxu0 %v9371
  %v10881 = vpop.f32.mrb[0].mxu0
  %v10882 = vadd.f32 %v10425, %v10881
  %v10883 = vpop.f32.mrb[0].mxu0
  %v10884 = vpop.f32.mrb[0].mxu0
  %v10885 = vadd.f32 %v10428, %v10884
  %v10886 = vpop.f32.mrb[0].mxu0
  %10887 = vmatprep.mubr.bf16.mxu0 %v10620
  %10888 = vmatmul.mubr.bf16.gmra.mrb[0].mxu0 %v9373
  %v10889 = vpop.f32.mrb[0].mxu0
  %v10890 = vadd.f32 %v10433, %v10889
  %v10891 = vpop.f32.mrb[0].mxu0
  %v10892 = vpop.f32.mrb[0].mxu0
  %v10893 = vadd.f32 %v10436, %v10892
  %v10894 = vpop.f32.mrb[0].mxu0
  %10895 = vmatprep.mubr.bf16.mxu0 %v10623
  %10896 = vmatmul.mubr.bf16.gmra.mrb[0].mxu0 %v9375
  %v10897 = vpop.f32.mrb[0].mxu0
  %v10898 = vadd.f32 %v10441, %v10897
  %v10899 = vpop.f32.mrb[0].mxu0
  %v10900 = vpop.f32.mrb[0].mxu0
  %v10901 = vadd.f32 %v10444, %v10900
  %v10902 = vpop.f32.mrb[0].mxu0
  %10903 = vmatprep.mubr.bf16.mxu0 %v10626
  %10904 = vmatmul.mubr.bf16.gmra.mrb[0].mxu0 %v9377
  %v10905 = vpop.f32.mrb[0].mxu0
  %v10906 = vadd.f32 %v10449, %v10905
  %v10907 = vpop.f32.mrb[0].mxu0
  %v10908 = vpop.f32.mrb[0].mxu0
  %v10909 = vadd.f32 %v10452, %v10908
  %v10910 = vpop.f32.mrb[0].mxu0
  %10911 = vmatprep.mubr.bf16.mxu0 %v10629
  %10912 = vmatmul.mubr.bf16.gmra.mrb[0].mxu0 %v9379
  %v10913 = vpop.f32.mrb[0].mxu0
  %v10914 = vadd.f32 %v10457, %v10913
  %v10915 = vpop.f32.mrb[0].mxu0
  %v10916 = vpop.f32.mrb[0].mxu0
  %v10917 = vadd.f32 %v10460, %v10916
  %v10918 = vpop.f32.mrb[0].mxu0
  %10919 = vdwg.mxu0
  %s10920 = scalar_lea.vmem [#allocation4], 48
  %v10921 = vld [vmem:[%s10920] sm:$0xff]
  %v10922 = vld [vmem:[%s10920 + $0x8] sm:$0xff]
  %v10923 = vld [vmem:[%s10920 + $0x18] sm:$0xff]
  %v10924 = vld [vmem:[%s10920 + $0x20] sm:$0xff]
  %v10925 = vld [vmem:[%s10920 + $0x30] sm:$0xff]
  %v10926 = vld [vmem:[%s10920 + $0x38] sm:$0xff]
  %v10927 = vld [vmem:[%s10920 + $0x48] sm:$0xff]
  %v10928 = vld [vmem:[%s10920 + $0x50] sm:$0xff]
  %v10929 = vld [vmem:[%s10920 + $0x60] sm:$0xff]
  %v10930 = vld [vmem:[%s10920 + $0x68] sm:$0xff]
  %v10931 = vld [vmem:[%s10920 + $0x78] sm:$0xff]
  %v10932 = vld [vmem:[%s10920 + $0x80] sm:$0xff]
  %v10933 = vld [vmem:[%s10920 + $0x90] sm:$0xff]
  %v10934 = vld [vmem:[%s10920 + $0x98] sm:$0xff]
  %v10935 = vld [vmem:[%s10920 + $0xa8] sm:$0xff]
  %v10936 = vld [vmem:[%s10920 + $0xb0] sm:$0xff]
  %v10937 = vld [vmem:[%s10920 + $0xc0] sm:$0xff]
  %v10938 = vld [vmem:[%s10920 + $0xc8] sm:$0xff]
  %v10939 = vld [vmem:[%s10920 + $0xd8] sm:$0xff]
  %v10940 = vld [vmem:[%s10920 + $0xe0] sm:$0xff]
  %v10941 = vld [vmem:[%s10920 + $0xf0] sm:$0xff]
  %v10942 = vld [vmem:[%s10920 + $0xf8] sm:$0xff]
  %v10943 = vld [vmem:[%s10920 + $0x108] sm:$0xff]
  %v10944 = vld [vmem:[%s10920 + $0x110] sm:$0xff]
  %v10945 = vld [vmem:[%s10920 + $0x120] sm:$0xff]
  %v10946 = vld [vmem:[%s10920 + $0x128] sm:$0xff]
  %v10947 = vld [vmem:[%s10920 + $0x138] sm:$0xff]
  %v10948 = vld [vmem:[%s10920 + $0x140] sm:$0xff]
  %v10949 = vld [vmem:[%s10920 + $0x150] sm:$0xff]
  %v10950 = vld [vmem:[%s10920 + $0x158] sm:$0xff]
  %v10951 = vld [vmem:[%s10920 + $0x168] sm:$0xff]
  %v10952 = vld [vmem:[%s10920 + $0x170] sm:$0xff]
  %v10953 = vld [vmem:[%s10920 + $0x1b0] sm:$0xff]
  %v10954 = vld [vmem:[%s10920 + $0x1b8] sm:$0xff]
  %v10955 = vld [vmem:[%s10920 + $0x1c8] sm:$0xff]
  %v10956 = vld [vmem:[%s10920 + $0x1d0] sm:$0xff]
  %v10957 = vld [vmem:[%s10920 + $0x1e0] sm:$0xff]
  %v10958 = vld [vmem:[%s10920 + $0x1e8] sm:$0xff]
  %v10959 = vld [vmem:[%s10920 + $0x1f8] sm:$0xff]
  %v10960 = vld [vmem:[%s10920 + $0x200] sm:$0xff]
  %v10961 = vld [vmem:[%s10920 + $0x210] sm:$0xff]
  %v10962 = vld [vmem:[%s10920 + $0x218] sm:$0xff]
  %v10963 = vld [vmem:[%s10920 + $0x228] sm:$0xff]
  %v10964 = vld [vmem:[%s10920 + $0x230] sm:$0xff]
  %v10965 = vld [vmem:[%s10920 + $0x240] sm:$0xff]
  %v10966 = vld [vmem:[%s10920 + $0x248] sm:$0xff]
  %v10967 = vld [vmem:[%s10920 + $0x258] sm:$0xff]
  %v10968 = vld [vmem:[%s10920 + $0x260] sm:$0xff]
  %v10969 = vld [vmem:[%s10920 + $0x270] sm:$0xff]
  %v10970 = vld [vmem:[%s10920 + $0x278] sm:$0xff]
  %v10971 = vld [vmem:[%s10920 + $0x288] sm:$0xff]
  %v10972 = vld [vmem:[%s10920 + $0x290] sm:$0xff]
  %v10973 = vld [vmem:[%s10920 + $0x2a0] sm:$0xff]
  %v10974 = vld [vmem:[%s10920 + $0x2a8] sm:$0xff]
  %v10975 = vld [vmem:[%s10920 + $0x2b8] sm:$0xff]
  %v10976 = vld [vmem:[%s10920 + $0x2c0] sm:$0xff]
  %v10977 = vld [vmem:[%s10920 + $0x2d0] sm:$0xff]
  %v10978 = vld [vmem:[%s10920 + $0x2d8] sm:$0xff]
  %v10979 = vld [vmem:[%s10920 + $0x2e8] sm:$0xff]
  %v10980 = vld [vmem:[%s10920 + $0x2f0] sm:$0xff]
  %v10981 = vld [vmem:[%s10920 + $0x300] sm:$0xff]
  %v10982 = vld [vmem:[%s10920 + $0x308] sm:$0xff]
  %v10983 = vld [vmem:[%s10920 + $0x318] sm:$0xff]
  %v10984 = vld [vmem:[%s10920 + $0x320] sm:$0xff]
  %v10985 = vld [vmem:[%s10920 + $0x1] sm:$0xff]
  %v10986 = vld [vmem:[%s10920 + $0x9] sm:$0xff]
  %v10987 = vld [vmem:[%s10920 + $0x19] sm:$0xff]
  %v10988 = vld [vmem:[%s10920 + $0x21] sm:$0xff]
  %v10989 = vld [vmem:[%s10920 + $0x31] sm:$0xff]
  %v10990 = vld [vmem:[%s10920 + $0x39] sm:$0xff]
  %v10991 = vld [vmem:[%s10920 + $0x49] sm:$0xff]
  %v10992 = vld [vmem:[%s10920 + $0x51] sm:$0xff]
  %v10993 = vld [vmem:[%s10920 + $0x61] sm:$0xff]
  %v10994 = vld [vmem:[%s10920 + $0x69] sm:$0xff]
  %v10995 = vld [vmem:[%s10920 + $0x79] sm:$0xff]
  %v10996 = vld [vmem:[%s10920 + $0x81] sm:$0xff]
  %v10997 = vld [vmem:[%s10920 + $0x91] sm:$0xff]
  %v10998 = vld [vmem:[%s10920 + $0x99] sm:$0xff]
  %v10999 = vld [vmem:[%s10920 + $0xa9] sm:$0xff]
  %v11000 = vld [vmem:[%s10920 + $0xb1] sm:$0xff]
  %v11001 = vld [vmem:[%s10920 + $0xc1] sm:$0xff]
  %v11002 = vld [vmem:[%s10920 + $0xc9] sm:$0xff]
  %v11003 = vld [vmem:[%s10920 + $0xd9] sm:$0xff]
  %v11004 = vld [vmem:[%s10920 + $0xe1] sm:$0xff]
  %v11005 = vld [vmem:[%s10920 + $0xf1] sm:$0xff]
  %v11006 = vld [vmem:[%s10920 + $0xf9] sm:$0xff]
  %v11007 = vld [vmem:[%s10920 + $0x109] sm:$0xff]
  %v11008 = vld [vmem:[%s10920 + $0x111] sm:$0xff]
  %v11009 = vld [vmem:[%s10920 + $0x121] sm:$0xff]
  %v11010 = vld [vmem:[%s10920 + $0x129] sm:$0xff]
  %v11011 = vld [vmem:[%s10920 + $0x139] sm:$0xff]
  %v11012 = vld [vmem:[%s10920 + $0x141] sm:$0xff]
  %v11013 = vld [vmem:[%s10920 + $0x151] sm:$0xff]
  %v11014 = vld [vmem:[%s10920 + $0x159] sm:$0xff]
  %v11015 = vld [vmem:[%s10920 + $0x169] sm:$0xff]
  %v11016 = vld [vmem:[%s10920 + $0x171] sm:$0xff]
  %v11017 = vld [vmem:[%s10920 + $0x1b1] sm:$0xff]
  %v11018 = vld [vmem:[%s10920 + $0x1b9] sm:$0xff]
  %v11019 = vld [vmem:[%s10920 + $0x1c9] sm:$0xff]
  %v11020 = vld [vmem:[%s10920 + $0x1d1] sm:$0xff]
  %v11021 = vld [vmem:[%s10920 + $0x1e1] sm:$0xff]
  %v11022 = vld [vmem:[%s10920 + $0x1e9] sm:$0xff]
  %v11023 = vld [vmem:[%s10920 + $0x1f9] sm:$0xff]
  %v11024 = vld [vmem:[%s10920 + $0x201] sm:$0xff]
  %v11025 = vld [vmem:[%s10920 + $0x211] sm:$0xff]
  %v11026 = vld [vmem:[%s10920 + $0x219] sm:$0xff]
  %v11027 = vld [vmem:[%s10920 + $0x229] sm:$0xff]
  %v11028 = vld [vmem:[%s10920 + $0x231] sm:$0xff]
  %v11029 = vld [vmem:[%s10920 + $0x241] sm:$0xff]
  %v11030 = vld [vmem:[%s10920 + $0x249] sm:$0xff]
  %v11031 = vld [vmem:[%s10920 + $0x259] sm:$0xff]
  %v11032 = vld [vmem:[%s10920 + $0x261] sm:$0xff]
  %v11033 = vld [vmem:[%s10920 + $0x271] sm:$0xff]
  %v11034 = vld [vmem:[%s10920 + $0x279] sm:$0xff]
  %v11035 = vld [vmem:[%s10920 + $0x289] sm:$0xff]
  %v11036 = vld [vmem:[%s10920 + $0x291] sm:$0xff]
  %v11037 = vld [vmem:[%s10920 + $0x2a1] sm:$0xff]
  %v11038 = vld [vmem:[%s10920 + $0x2a9] sm:$0xff]
  %v11039 = vld [vmem:[%s10920 + $0x2b9] sm:$0xff]
  %v11040 = vld [vmem:[%s10920 + $0x2c1] sm:$0xff]
  %v11041 = vld [vmem:[%s10920 + $0x2d1] sm:$0xff]
  %v11042 = vld [vmem:[%s10920 + $0x2d9] sm:$0xff]
  %v11043 = vld [vmem:[%s10920 + $0x2e9] sm:$0xff]
  %v11044 = vld [vmem:[%s10920 + $0x2f1] sm:$0xff]
  %v11045 = vld [vmem:[%s10920 + $0x301] sm:$0xff]
  %v11046 = vld [vmem:[%s10920 + $0x309] sm:$0xff]
  %v11047 = vld [vmem:[%s10920 + $0x319] sm:$0xff]
  %v11048 = vld [vmem:[%s10920 + $0x321] sm:$0xff]
  %v11049 = vld [vmem:[%s10920 + $0x2] sm:$0xff]
  %v11050 = vld [vmem:[%s10920 + $0xa] sm:$0xff]
  %v11051 = vld [vmem:[%s10920 + $0x1a] sm:$0xff]
  %v11052 = vld [vmem:[%s10920 + $0x22] sm:$0xff]
  %v11053 = vld [vmem:[%s10920 + $0x32] sm:$0xff]
  %v11054 = vld [vmem:[%s10920 + $0x3a] sm:$0xff]
  %v11055 = vld [vmem:[%s10920 + $0x4a] sm:$0xff]
  %v11056 = vld [vmem:[%s10920 + $0x52] sm:$0xff]
  %v11057 = vld [vmem:[%s10920 + $0x62] sm:$0xff]
  %v11058 = vld [vmem:[%s10920 + $0x6a] sm:$0xff]
  %v11059 = vld [vmem:[%s10920 + $0x7a] sm:$0xff]
  %v11060 = vld [vmem:[%s10920 + $0x82] sm:$0xff]
  %v11061 = vld [vmem:[%s10920 + $0x92] sm:$0xff]
  %v11062 = vld [vmem:[%s10920 + $0x9a] sm:$0xff]
  %v11063 = vld [vmem:[%s10920 + $0xaa] sm:$0xff]
  %v11064 = vld [vmem:[%s10920 + $0xb2] sm:$0xff]
  %v11065 = vld [vmem:[%s10920 + $0xc2] sm:$0xff]
  %v11066 = vld [vmem:[%s10920 + $0xca] sm:$0xff]
  %v11067 = vld [vmem:[%s10920 + $0xda] sm:$0xff]
  %v11068 = vld [vmem:[%s10920 + $0xe2] sm:$0xff]
  %v11069 = vld [vmem:[%s10920 + $0xf2] sm:$0xff]
  %v11070 = vld [vmem:[%s10920 + $0xfa] sm:$0xff]
  %v11071 = vld [vmem:[%s10920 + $0x10a] sm:$0xff]
  %v11072 = vld [vmem:[%s10920 + $0x112] sm:$0xff]
  %v11073 = vld [vmem:[%s10920 + $0x122] sm:$0xff]
  %v11074 = vld [vmem:[%s10920 + $0x12a] sm:$0xff]
  %v11075 = vld [vmem:[%s10920 + $0x13a] sm:$0xff]
  %v11076 = vld [vmem:[%s10920 + $0x142] sm:$0xff]
  %v11077 = vld [vmem:[%s10920 + $0x152] sm:$0xff]
  %v11078 = vld [vmem:[%s10920 + $0x15a] sm:$0xff]
  %v11079 = vld [vmem:[%s10920 + $0x16a] sm:$0xff]
  %v11080 = vld [vmem:[%s10920 + $0x172] sm:$0xff]
  %v11081 = vld [vmem:[%s10920 + $0x1b2] sm:$0xff]
  %v11082 = vld [vmem:[%s10920 + $0x1ba] sm:$0xff]
  %v11083 = vld [vmem:[%s10920 + $0x1ca] sm:$0xff]
  %v11084 = vld [vmem:[%s10920 + $0x1d2] sm:$0xff]
  %v11085 = vld [vmem:[%s10920 + $0x1e2] sm:$0xff]
  %v11086 = vld [vmem:[%s10920 + $0x1ea] sm:$0xff]
  %v11087 = vld [vmem:[%s10920 + $0x1fa] sm:$0xff]
  %v11088 = vld [vmem:[%s10920 + $0x202] sm:$0xff]
  %v11089 = vld [vmem:[%s10920 + $0x212] sm:$0xff]
  %v11090 = vld [vmem:[%s10920 + $0x21a] sm:$0xff]
  %v11091 = vld [vmem:[%s10920 + $0x22a] sm:$0xff]
  %v11092 = vld [vmem:[%s10920 + $0x232] sm:$0xff]
  %v11093 = vld [vmem:[%s10920 + $0x242] sm:$0xff]
  %v11094 = vld [vmem:[%s10920 + $0x24a] sm:$0xff]
  %v11095 = vld [vmem:[%s10920 + $0x25a] sm:$0xff]
  %v11096 = vld [vmem:[%s10920 + $0x262] sm:$0xff]
  %v11097 = vld [vmem:[%s10920 + $0x272] sm:$0xff]
  %v11098 = vld [vmem:[%s10920 + $0x27a] sm:$0xff]
  %v11099 = vld [vmem:[%s10920 + $0x28a] sm:$0xff]
  %v11100 = vld [vmem:[%s10920 + $0x292] sm:$0xff]
  %v11101 = vld [vmem:[%s10920 + $0x2a2] sm:$0xff]
  %v11102 = vld [vmem:[%s10920 + $0x2aa] sm:$0xff]
  %v11103 = vld [vmem:[%s10920 + $0x2ba] sm:$0xff]
  %v11104 = vld [vmem:[%s10920 + $0x2c2] sm:$0xff]
  %v11105 = vld [vmem:[%s10920 + $0x2d2] sm:$0xff]
  %v11106 = vld [vmem:[%s10920 + $0x2da] sm:$0xff]
  %v11107 = vld [vmem:[%s10920 + $0x2ea] sm:$0xff]
  %v11108 = vld [vmem:[%s10920 + $0x2f2] sm:$0xff]
  %v11109 = vld [vmem:[%s10920 + $0x302] sm:$0xff]
  %v11110 = vld [vmem:[%s10920 + $0x30a] sm:$0xff]
  %v11111 = vld [vmem:[%s10920 + $0x31a] sm:$0xff]
  %v11112 = vld [vmem:[%s10920 + $0x322] sm:$0xff]
  %11177 = vrot.lane.b32.xlu0 %v10985, 64
  %v11178 = vpop.permute.xlu0 %11177
  %11179 = vrot.lane.b32.xlu0 %v10986, 64
  %v11180 = vpop.permute.xlu0 %11179
  %11181 = vrot.lane.b32.xlu0 %v10987, 64
  %v11182 = vpop.permute.xlu0 %11181
  %11183 = vrot.lane.b32.xlu0 %v10988, 64
  %v11184 = vpop.permute.xlu0 %11183
  %11185 = vrot.lane.b32.xlu0 %v10989, 64
  %v11186 = vpop.permute.xlu0 %11185
  %11187 = vrot.lane.b32.xlu0 %v10990, 64
  %v11188 = vpop.permute.xlu0 %11187
  %11189 = vrot.lane.b32.xlu0 %v10991, 64
  %v11190 = vpop.permute.xlu0 %11189
  %11191 = vrot.lane.b32.xlu0 %v10992, 64
  %v11192 = vpop.permute.xlu0 %11191
  %11193 = vrot.lane.b32.xlu0 %v10993, 64
  %v11194 = vpop.permute.xlu0 %11193
  %11195 = vrot.lane.b32.xlu0 %v10994, 64
  %v11196 = vpop.permute.xlu0 %11195
  %11197 = vrot.lane.b32.xlu0 %v10995, 64
  %v11198 = vpop.permute.xlu0 %11197
  %11199 = vrot.lane.b32.xlu0 %v10996, 64
  %v11200 = vpop.permute.xlu0 %11199
  %11201 = vrot.lane.b32.xlu0 %v10997, 64
  %v11202 = vpop.permute.xlu0 %11201
  %11203 = vrot.lane.b32.xlu0 %v10998, 64
  %v11204 = vpop.permute.xlu0 %11203
  %11205 = vrot.lane.b32.xlu0 %v10999, 64
  %v11206 = vpop.permute.xlu0 %11205
  %11207 = vrot.lane.b32.xlu0 %v11000, 64
  %v11208 = vpop.permute.xlu0 %11207
  %11209 = vrot.lane.b32.xlu0 %v11001, 64
  %v11210 = vpop.permute.xlu0 %11209
  %11211 = vrot.lane.b32.xlu0 %v11002, 64
  %v11212 = vpop.permute.xlu0 %11211
  %11213 = vrot.lane.b32.xlu0 %v11003, 64
  %v11214 = vpop.permute.xlu0 %11213
  %11215 = vrot.lane.b32.xlu0 %v11004, 64
  %v11216 = vpop.permute.xlu0 %11215
  %11217 = vrot.lane.b32.xlu0 %v11005, 64
  %v11218 = vpop.permute.xlu0 %11217
  %11219 = vrot.lane.b32.xlu0 %v11006, 64
  %v11220 = vpop.permute.xlu0 %11219
  %11221 = vrot.lane.b32.xlu0 %v11007, 64
  %v11222 = vpop.permute.xlu0 %11221
  %11223 = vrot.lane.b32.xlu0 %v11008, 64
  %v11224 = vpop.permute.xlu0 %11223
  %11225 = vrot.lane.b32.xlu0 %v11009, 64
  %v11226 = vpop.permute.xlu0 %11225
  %11227 = vrot.lane.b32.xlu0 %v11010, 64
  %v11228 = vpop.permute.xlu0 %11227
  %11229 = vrot.lane.b32.xlu0 %v11011, 64
  %v11230 = vpop.permute.xlu0 %11229
  %11231 = vrot.lane.b32.xlu0 %v11012, 64
  %v11232 = vpop.permute.xlu0 %11231
  %11233 = vrot.lane.b32.xlu0 %v11013, 64
  %v11234 = vpop.permute.xlu0 %11233
  %11235 = vrot.lane.b32.xlu0 %v11014, 64
  %v11236 = vpop.permute.xlu0 %11235
  %11237 = vrot.lane.b32.xlu0 %v11015, 64
  %v11238 = vpop.permute.xlu0 %11237
  %11239 = vrot.lane.b32.xlu0 %v11016, 64
  %v11240 = vpop.permute.xlu0 %11239
  %11241 = vrot.lane.b32.xlu0 %v11017, 64
  %v11242 = vpop.permute.xlu0 %11241
  %11243 = vrot.lane.b32.xlu0 %v11018, 64
  %v11244 = vpop.permute.xlu0 %11243
  %11245 = vrot.lane.b32.xlu0 %v11019, 64
  %v11246 = vpop.permute.xlu0 %11245
  %11247 = vrot.lane.b32.xlu0 %v11020, 64
  %v11248 = vpop.permute.xlu0 %11247
  %11249 = vrot.lane.b32.xlu0 %v11021, 64
  %v11250 = vpop.permute.xlu0 %11249
  %11251 = vrot.lane.b32.xlu0 %v11022, 64
  %v11252 = vpop.permute.xlu0 %11251
  %11253 = vrot.lane.b32.xlu0 %v11023, 64
  %v11254 = vpop.permute.xlu0 %11253
  %11255 = vrot.lane.b32.xlu0 %v11024, 64
  %v11256 = vpop.permute.xlu0 %11255
  %11257 = vrot.lane.b32.xlu0 %v11025, 64
  %v11258 = vpop.permute.xlu0 %11257
  %11259 = vrot.lane.b32.xlu0 %v11026, 64
  %v11260 = vpop.permute.xlu0 %11259
  %11261 = vrot.lane.b32.xlu0 %v11027, 64
  %v11262 = vpop.permute.xlu0 %11261
  %11263 = vrot.lane.b32.xlu0 %v11028, 64
  %v11264 = vpop.permute.xlu0 %11263
  %11265 = vrot.lane.b32.xlu0 %v11029, 64
  %v11266 = vpop.permute.xlu0 %11265
  %11267 = vrot.lane.b32.xlu0 %v11030, 64
  %v11268 = vpop.permute.xlu0 %11267
  %11269 = vrot.lane.b32.xlu0 %v11031, 64
  %v11270 = vpop.permute.xlu0 %11269
  %11271 = vrot.lane.b32.xlu0 %v11032, 64
  %v11272 = vpop.permute.xlu0 %11271
  %11273 = vrot.lane.b32.xlu0 %v11033, 64
  %v11274 = vpop.permute.xlu0 %11273
  %11275 = vrot.lane.b32.xlu0 %v11034, 64
  %v11276 = vpop.permute.xlu0 %11275
  %11277 = vrot.lane.b32.xlu0 %v11035, 64
  %v11278 = vpop.permute.xlu0 %11277
  %11279 = vrot.lane.b32.xlu0 %v11036, 64
  %v11280 = vpop.permute.xlu0 %11279
  %11281 = vrot.lane.b32.xlu0 %v11037, 64
  %v11282 = vpop.permute.xlu0 %11281
  %11283 = vrot.lane.b32.xlu0 %v11038, 64
  %v11284 = vpop.permute.xlu0 %11283
  %11285 = vrot.lane.b32.xlu0 %v11039, 64
  %v11286 = vpop.permute.xlu0 %11285
  %11287 = vrot.lane.b32.xlu0 %v11040, 64
  %v11288 = vpop.permute.xlu0 %11287
  %11289 = vrot.lane.b32.xlu0 %v11041, 64
  %v11290 = vpop.permute.xlu0 %11289
  %11291 = vrot.lane.b32.xlu0 %v11042, 64
  %v11292 = vpop.permute.xlu0 %11291
  %11293 = vrot.lane.b32.xlu0 %v11043, 64
  %v11294 = vpop.permute.xlu0 %11293
  %11295 = vrot.lane.b32.xlu0 %v11044, 64
  %v11296 = vpop.permute.xlu0 %11295
  %11297 = vrot.lane.b32.xlu0 %v11045, 64
  %v11298 = vpop.permute.xlu0 %11297
  %11299 = vrot.lane.b32.xlu0 %v11046, 64
  %v11300 = vpop.permute.xlu0 %11299
  %11301 = vrot.lane.b32.xlu0 %v11047, 64
  %v11302 = vpop.permute.xlu0 %11301
  %11303 = vrot.lane.b32.xlu0 %v11048, 64
  %v11304 = vpop.permute.xlu0 %11303
  %v11369 = vsel %vm7901, %v10921, %v11178
  %v11370 = vsel %vm7901, %v10922, %v11180
  %v11371 = vsel %vm7901, %v10923, %v11182
  %v11372 = vsel %vm7901, %v10924, %v11184
  %v11373 = vsel %vm7901, %v10925, %v11186
  %v11374 = vsel %vm7901, %v10926, %v11188
  %v11375 = vsel %vm7901, %v10927, %v11190
  %v11376 = vsel %vm7901, %v10928, %v11192
  %v11377 = vsel %vm7901, %v10929, %v11194
  %v11378 = vsel %vm7901, %v10930, %v11196
  %v11379 = vsel %vm7901, %v10931, %v11198
  %v11380 = vsel %vm7901, %v10932, %v11200
  %v11381 = vsel %vm7901, %v10933, %v11202
  %v11382 = vsel %vm7901, %v10934, %v11204
  %v11383 = vsel %vm7901, %v10935, %v11206
  %v11384 = vsel %vm7901, %v10936, %v11208
  %v11385 = vsel %vm7901, %v10937, %v11210
  %v11386 = vsel %vm7901, %v10938, %v11212
  %v11387 = vsel %vm7901, %v10939, %v11214
  %v11388 = vsel %vm7901, %v10940, %v11216
  %v11389 = vsel %vm7901, %v10941, %v11218
  %v11390 = vsel %vm7901, %v10942, %v11220
  %v11391 = vsel %vm7901, %v10943, %v11222
  %v11392 = vsel %vm7901, %v10944, %v11224
  %v11393 = vsel %vm7901, %v10945, %v11226
  %v11394 = vsel %vm7901, %v10946, %v11228
  %v11395 = vsel %vm7901, %v10947, %v11230
  %v11396 = vsel %vm7901, %v10948, %v11232
  %v11397 = vsel %vm7901, %v10949, %v11234
  %v11398 = vsel %vm7901, %v10950, %v11236
  %v11399 = vsel %vm7901, %v10951, %v11238
  %v11400 = vsel %vm7901, %v10952, %v11240
  %v11401 = vsel %vm7901, %v10953, %v11242
  %v11402 = vsel %vm7901, %v10954, %v11244
  %v11403 = vsel %vm7901, %v10955, %v11246
  %v11404 = vsel %vm7901, %v10956, %v11248
  %v11405 = vsel %vm7901, %v10957, %v11250
  %v11406 = vsel %vm7901, %v10958, %v11252
  %v11407 = vsel %vm7901, %v10959, %v11254
  %v11408 = vsel %vm7901, %v10960, %v11256
  %v11409 = vsel %vm7901, %v10961, %v11258
  %v11410 = vsel %vm7901, %v10962, %v11260
  %v11411 = vsel %vm7901, %v10963, %v11262
  %v11412 = vsel %vm7901, %v10964, %v11264
  %v11413 = vsel %vm7901, %v10965, %v11266
  %v11414 = vsel %vm7901, %v10966, %v11268
  %v11415 = vsel %vm7901, %v10967, %v11270
  %v11416 = vsel %vm7901, %v10968, %v11272
  %v11417 = vsel %vm7901, %v10969, %v11274
  %v11418 = vsel %vm7901, %v10970, %v11276
  %v11419 = vsel %vm7901, %v10971, %v11278
  %v11420 = vsel %vm7901, %v10972, %v11280
  %v11421 = vsel %vm7901, %v10973, %v11282
  %v11422 = vsel %vm7901, %v10974, %v11284
  %v11423 = vsel %vm7901, %v10975, %v11286
  %v11424 = vsel %vm7901, %v10976, %v11288
  %v11425 = vsel %vm7901, %v10977, %v11290
  %v11426 = vsel %vm7901, %v10978, %v11292
  %v11427 = vsel %vm7901, %v10979, %v11294
  %v11428 = vsel %vm7901, %v10980, %v11296
  %v11429 = vsel %vm7901, %v10981, %v11298
  %v11430 = vsel %vm7901, %v10982, %v11300
  %v11431 = vsel %vm7901, %v10983, %v11302
  %v11432 = vsel %vm7901, %v10984, %v11304
  %v11433 = vpack.c.bf16 %v11370, %v11369
  %v11434 = vpack.c.bf16 %v11050, %v11049
  %v11435 = vpack.c.bf16 %v11372, %v11371
  %v11436 = vpack.c.bf16 %v11052, %v11051
  %v11437 = vpack.c.bf16 %v11374, %v11373
  %v11438 = vpack.c.bf16 %v11054, %v11053
  %v11439 = vpack.c.bf16 %v11376, %v11375
  %v11440 = vpack.c.bf16 %v11056, %v11055
  %v11441 = vpack.c.bf16 %v11378, %v11377
  %v11442 = vpack.c.bf16 %v11058, %v11057
  %v11443 = vpack.c.bf16 %v11380, %v11379
  %v11444 = vpack.c.bf16 %v11060, %v11059
  %v11445 = vpack.c.bf16 %v11382, %v11381
  %v11446 = vpack.c.bf16 %v11062, %v11061
  %v11447 = vpack.c.bf16 %v11384, %v11383
  %v11448 = vpack.c.bf16 %v11064, %v11063
  %v11449 = vpack.c.bf16 %v11386, %v11385
  %v11450 = vpack.c.bf16 %v11066, %v11065
  %v11451 = vpack.c.bf16 %v11388, %v11387
  %v11452 = vpack.c.bf16 %v11068, %v11067
  %v11453 = vpack.c.bf16 %v11390, %v11389
  %v11454 = vpack.c.bf16 %v11070, %v11069
  %v11455 = vpack.c.bf16 %v11392, %v11391
  %v11456 = vpack.c.bf16 %v11072, %v11071
  %v11457 = vpack.c.bf16 %v11394, %v11393
  %v11458 = vpack.c.bf16 %v11074, %v11073
  %v11459 = vpack.c.bf16 %v11396, %v11395
  %v11460 = vpack.c.bf16 %v11076, %v11075
  %v11461 = vpack.c.bf16 %v11398, %v11397
  %v11462 = vpack.c.bf16 %v11078, %v11077
  %v11463 = vpack.c.bf16 %v11400, %v11399
  %v11464 = vpack.c.bf16 %v11080, %v11079
  %v11465 = vpack.c.bf16 %v11402, %v11401
  %v11466 = vpack.c.bf16 %v11082, %v11081
  %v11467 = vpack.c.bf16 %v11404, %v11403
  %v11468 = vpack.c.bf16 %v11084, %v11083
  %v11469 = vpack.c.bf16 %v11406, %v11405
  %v11470 = vpack.c.bf16 %v11086, %v11085
  %v11471 = vpack.c.bf16 %v11408, %v11407
  %v11472 = vpack.c.bf16 %v11088, %v11087
  %v11473 = vpack.c.bf16 %v11410, %v11409
  %v11474 = vpack.c.bf16 %v11090, %v11089
  %v11475 = vpack.c.bf16 %v11412, %v11411
  %v11476 = vpack.c.bf16 %v11092, %v11091
  %v11477 = vpack.c.bf16 %v11414, %v11413
  %v11478 = vpack.c.bf16 %v11094, %v11093
  %v11479 = vpack.c.bf16 %v11416, %v11415
  %v11480 = vpack.c.bf16 %v11096, %v11095
  %v11481 = vpack.c.bf16 %v11418, %v11417
  %v11482 = vpack.c.bf16 %v11098, %v11097
  %v11483 = vpack.c.bf16 %v11420, %v11419
  %v11484 = vpack.c.bf16 %v11100, %v11099
  %v11485 = vpack.c.bf16 %v11422, %v11421
  %v11486 = vpack.c.bf16 %v11102, %v11101
  %v11487 = vpack.c.bf16 %v11424, %v11423
  %v11488 = vpack.c.bf16 %v11104, %v11103
  %v11489 = vpack.c.bf16 %v11426, %v11425
  %v11490 = vpack.c.bf16 %v11106, %v11105
  %v11491 = vpack.c.bf16 %v11428, %v11427
  %v11492 = vpack.c.bf16 %v11108, %v11107
  %v11493 = vpack.c.bf16 %v11430, %v11429
  %v11494 = vpack.c.bf16 %v11110, %v11109
  %v11495 = vpack.c.bf16 %v11432, %v11431
  %v11496 = vpack.c.bf16 %v11112, %v11111
  %s11497 = scalar_lea.vmem %s11, 192
  %v11498 = vld [vmem:[%s11497] sm:$0xf]
  %v11499 = vld [vmem:[%s11497 + $0x4] sm:$0xf]
  %v11500 = vld [vmem:[%s11497 + $0x8] sm:$0xf]
  %v11501 = vld [vmem:[%s11497 + $0xc] sm:$0xf]
  %v11502 = vld [vmem:[%s11497 + $0x10] sm:$0xf]
  %v11503 = vld [vmem:[%s11497 + $0x14] sm:$0xf]
  %v11504 = vld [vmem:[%s11497 + $0x18] sm:$0xf]
  %v11505 = vld [vmem:[%s11497 + $0x1c] sm:$0xf]
  %v11506 = vld [vmem:[%s11497 + $0x20] sm:$0xf]
  %v11507 = vld [vmem:[%s11497 + $0x24] sm:$0xf]
  %v11508 = vld [vmem:[%s11497 + $0x28] sm:$0xf]
  %v11509 = vld [vmem:[%s11497 + $0x2c] sm:$0xf]
  %v11510 = vld [vmem:[%s11497 + $0x30] sm:$0xf]
  %v11511 = vld [vmem:[%s11497 + $0x34] sm:$0xf]
  %v11512 = vld [vmem:[%s11497 + $0x38] sm:$0xf]
  %v11513 = vld [vmem:[%s11497 + $0x3c] sm:$0xf]
  %v11514 = vld [vmem:[%s11497 + $0x40] sm:$0xf]
  %v11515 = vld [vmem:[%s11497 + $0x44] sm:$0xf]
  %v11516 = vld [vmem:[%s11497 + $0x48] sm:$0xf]
  %v11517 = vld [vmem:[%s11497 + $0x4c] sm:$0xf]
  %v11518 = vld [vmem:[%s11497 + $0x50] sm:$0xf]
  %v11519 = vld [vmem:[%s11497 + $0x54] sm:$0xf]
  %v11520 = vld [vmem:[%s11497 + $0x58] sm:$0xf]
  %v11521 = vld [vmem:[%s11497 + $0x5c] sm:$0xf]
  %v11546 = vunpack.c.l.b16 %v11498
  %v11547 = vunpack.c.l.b16 %v11499
  %v11548 = vunpack.c.l.b16 %v11500
  %v11549 = vunpack.c.l.b16 %v11501
  %v11550 = vunpack.c.l.b16 %v11502
  %v11551 = vunpack.c.l.b16 %v11503
  %v11552 = vunpack.c.l.b16 %v11504
  %v11553 = vunpack.c.l.b16 %v11505
  %v11554 = vunpack.c.l.b16 %v11506
  %v11555 = vunpack.c.l.b16 %v11507
  %v11556 = vunpack.c.l.b16 %v11508
  %v11557 = vunpack.c.l.b16 %v11509
  %v11558 = vunpack.c.l.b16 %v11510
  %v11559 = vunpack.c.l.b16 %v11511
  %v11560 = vunpack.c.l.b16 %v11512
  %v11561 = vunpack.c.l.b16 %v11513
  %v11562 = vunpack.c.l.b16 %v11514
  %v11563 = vunpack.c.l.b16 %v11515
  %v11564 = vunpack.c.l.b16 %v11516
  %v11565 = vunpack.c.l.b16 %v11517
  %v11566 = vunpack.c.l.b16 %v11518
  %v11567 = vunpack.c.l.b16 %v11519
  %v11568 = vunpack.c.l.b16 %v11520
  %v11569 = vunpack.c.l.b16 %v11521
  %v11570 = vpack.c.b16 %v11547, %v11546
  %v11571 = vpack.c.b16 %v11549, %v11548
  %v11572 = vpack.c.b16 %v11551, %v11550
  %v11573 = vpack.c.b16 %v11553, %v11552
  %v11574 = vpack.c.b16 %v11555, %v11554
  %v11575 = vpack.c.b16 %v11557, %v11556
  %v11576 = vpack.c.b16 %v11559, %v11558
  %v11577 = vpack.c.b16 %v11561, %v11560
  %v11578 = vpack.c.b16 %v11563, %v11562
  %v11579 = vpack.c.b16 %v11565, %v11564
  %v11580 = vpack.c.b16 %v11567, %v11566
  %v11581 = vpack.c.b16 %v11569, %v11568
  %v11595 = vsel %vm7901, %v11434, 0
  %v11598 = vsel %vm7901, %v11436, 0
  %v11601 = vsel %vm7901, %v11438, 0
  %v11604 = vsel %vm7901, %v11440, 0
  %v11607 = vsel %vm7901, %v11442, 0
  %v11610 = vsel %vm7901, %v11444, 0
  %v11613 = vsel %vm7901, %v11446, 0
  %v11616 = vsel %vm7901, %v11448, 0
  %v11619 = vsel %vm7901, %v11450, 0
  %v11622 = vsel %vm7901, %v11452, 0
  %v11625 = vsel %vm7901, %v11454, 0
  %v11628 = vsel %vm7901, %v11456, 0
  %v11631 = vsel %vm7901, %v11458, 0
  %v11634 = vsel %vm7901, %v11460, 0
  %v11637 = vsel %vm7901, %v11462, 0
  %v11640 = vsel %vm7901, %v11464, 0
  %v11643 = vsel %vm7901, %v11466, 0
  %v11646 = vsel %vm7901, %v11468, 0
  %v11649 = vsel %vm7901, %v11470, 0
  %v11652 = vsel %vm7901, %v11472, 0
  %v11655 = vsel %vm7901, %v11474, 0
  %v11658 = vsel %vm7901, %v11476, 0
  %v11661 = vsel %vm7901, %v11478, 0
  %v11664 = vsel %vm7901, %v11480, 0
  %v11667 = vsel %vm7901, %v11482, 0
  %v11670 = vsel %vm7901, %v11484, 0
  %v11673 = vsel %vm7901, %v11486, 0
  %v11676 = vsel %vm7901, %v11488, 0
  %v11679 = vsel %vm7901, %v11490, 0
  %v11682 = vsel %vm7901, %v11492, 0
  %v11685 = vsel %vm7901, %v11494, 0
  %v11688 = vsel %vm7901, %v11496, 0
  %11690 = vmatprep.subr.bf16.mxu0 0
  %11691 = vmatpush1.bf16.msra.mxu0 %v11570
  %11692 = vmatprep.subr.bf16.mxu0 0
  %11693 = vmatpush1.bf16.msra.mxu0 %v11571
  %11694 = vmatprep.subr.bf16.mxu0 0
  %11695 = vmatpush1.bf16.msra.mxu0 %v11572
  %11696 = vmatprep.subr.bf16.mxu0 0
  %11697 = vmatpush1.bf16.msra.mxu0 %v11573
  %11698 = vmatprep.subr.bf16.mxu0 0
  %11699 = vmatpush1.bf16.msra.mxu0 %v11574
  %11700 = vmatprep.subr.bf16.mxu0 0
  %11701 = vmatpush1.bf16.msra.mxu0 %v11575
  %11702 = vmatprep.subr.bf16.mxu0 0
  %11703 = vmatpush1.bf16.msra.mxu0 %v11576
  %11704 = vmatprep.subr.bf16.mxu0 0
  %11705 = vmatpush1.bf16.msra.mxu0 %v11577
  %11706 = vmatprep.subr.bf16.mxu0 0
  %11707 = vmatpush1.bf16.msra.mxu0 %v11578
  %11708 = vmatprep.subr.bf16.mxu0 0
  %11709 = vmatpush1.bf16.msra.mxu0 %v11579
  %11710 = vmatprep.subr.bf16.mxu0 0
  %11711 = vmatpush1.bf16.msra.mxu0 %v11580
  %11712 = vmatprep.subr.bf16.mxu0 0
  %11713 = vmatpush1.bf16.msra.mxu0 %v11581
  %11714 = vmatprep.subr.bf16.mxu0 0
  %11715 = vmatpush1.bf16.msra.mxu0 0
  %11716 = vmatprep.subr.bf16.mxu0 0
  %11717 = vmatpush1.bf16.msra.mxu0 0
  %11718 = vmatprep.subr.bf16.mxu0 0
  %11719 = vmatpush1.bf16.msra.mxu0 0
  %11720 = vmatprep.subr.bf16.mxu0 0
  %11721 = vmatpush1.bf16.msra.mxu0 0
  %11722 = vmatprep.mubr.bf16.mxu0 %v11595
  %11723 = vmatmul.mubr.bf16.gmra.mrb[0].mxu0 %v11433
  %v11724 = vpop.f32.mrb[0].mxu0
  %v11725 = vadd.f32 0.0, %v11724
  %v11726 = vpop.f32.mrb[0].mxu0
  %v11727 = vpop.f32.mrb[0].mxu0
  %v11728 = vadd.f32 0.0, %v11727
  %v11729 = vpop.f32.mrb[0].mxu0
  %11730 = vmatprep.mubr.bf16.mxu0 %v11598
  %11731 = vmatmul.mubr.bf16.gmra.mrb[0].mxu0 %v11435
  %v11732 = vpop.f32.mrb[0].mxu0
  %v11733 = vadd.f32 0.0, %v11732
  %v11734 = vpop.f32.mrb[0].mxu0
  %v11735 = vpop.f32.mrb[0].mxu0
  %v11736 = vadd.f32 0.0, %v11735
  %v11737 = vpop.f32.mrb[0].mxu0
  %11738 = vmatprep.mubr.bf16.mxu0 %v11601
  %11739 = vmatmul.mubr.bf16.gmra.mrb[0].mxu0 %v11437
  %v11740 = vpop.f32.mrb[0].mxu0
  %v11741 = vadd.f32 0.0, %v11740
  %v11742 = vpop.f32.mrb[0].mxu0
  %v11743 = vpop.f32.mrb[0].mxu0
  %v11744 = vadd.f32 0.0, %v11743
  %v11745 = vpop.f32.mrb[0].mxu0
  %11746 = vmatprep.mubr.bf16.mxu0 %v11604
  %11747 = vmatmul.mubr.bf16.gmra.mrb[0].mxu0 %v11439
  %v11748 = vpop.f32.mrb[0].mxu0
  %v11749 = vadd.f32 0.0, %v11748
  %v11750 = vpop.f32.mrb[0].mxu0
  %v11751 = vpop.f32.mrb[0].mxu0
  %v11752 = vadd.f32 0.0, %v11751
  %v11753 = vpop.f32.mrb[0].mxu0
  %11754 = vmatprep.mubr.bf16.mxu0 %v11607
  %11755 = vmatmul.mubr.bf16.gmra.mrb[0].mxu0 %v11441
  %v11756 = vpop.f32.mrb[0].mxu0
  %v11757 = vadd.f32 0.0, %v11756
  %v11758 = vpop.f32.mrb[0].mxu0
  %v11759 = vpop.f32.mrb[0].mxu0
  %v11760 = vadd.f32 0.0, %v11759
  %v11761 = vpop.f32.mrb[0].mxu0
  %11762 = vmatprep.mubr.bf16.mxu0 %v11610
  %11763 = vmatmul.mubr.bf16.gmra.mrb[0].mxu0 %v11443
  %v11764 = vpop.f32.mrb[0].mxu0
  %v11765 = vadd.f32 0.0, %v11764
  %v11766 = vpop.f32.mrb[0].mxu0
  %v11767 = vpop.f32.mrb[0].mxu0
  %v11768 = vadd.f32 0.0, %v11767
  %v11769 = vpop.f32.mrb[0].mxu0
  %11770 = vmatprep.mubr.bf16.mxu0 %v11613
  %11771 = vmatmul.mubr.bf16.gmra.mrb[0].mxu0 %v11445
  %v11772 = vpop.f32.mrb[0].mxu0
  %v11773 = vadd.f32 0.0, %v11772
  %v11774 = vpop.f32.mrb[0].mxu0
  %v11775 = vpop.f32.mrb[0].mxu0
  %v11776 = vadd.f32 0.0, %v11775
  %v11777 = vpop.f32.mrb[0].mxu0
  %11778 = vmatprep.mubr.bf16.mxu0 %v11616
  %11779 = vmatmul.mubr.bf16.gmra.mrb[0].mxu0 %v11447
  %v11780 = vpop.f32.mrb[0].mxu0
  %v11781 = vadd.f32 0.0, %v11780
  %v11782 = vpop.f32.mrb[0].mxu0
  %v11783 = vpop.f32.mrb[0].mxu0
  %v11784 = vadd.f32 0.0, %v11783
  %v11785 = vpop.f32.mrb[0].mxu0
  %11786 = vmatprep.mubr.bf16.mxu0 %v11619
  %11787 = vmatmul.mubr.bf16.gmra.mrb[0].mxu0 %v11449
  %v11788 = vpop.f32.mrb[0].mxu0
  %v11789 = vadd.f32 0.0, %v11788
  %v11790 = vpop.f32.mrb[0].mxu0
  %v11791 = vpop.f32.mrb[0].mxu0
  %v11792 = vadd.f32 0.0, %v11791
  %v11793 = vpop.f32.mrb[0].mxu0
  %11794 = vmatprep.mubr.bf16.mxu0 %v11622
  %11795 = vmatmul.mubr.bf16.gmra.mrb[0].mxu0 %v11451
  %v11796 = vpop.f32.mrb[0].mxu0
  %v11797 = vadd.f32 0.0, %v11796
  %v11798 = vpop.f32.mrb[0].mxu0
  %v11799 = vpop.f32.mrb[0].mxu0
  %v11800 = vadd.f32 0.0, %v11799
  %v11801 = vpop.f32.mrb[0].mxu0
  %11802 = vmatprep.mubr.bf16.mxu0 %v11625
  %11803 = vmatmul.mubr.bf16.gmra.mrb[0].mxu0 %v11453
  %v11804 = vpop.f32.mrb[0].mxu0
  %v11805 = vadd.f32 0.0, %v11804
  %v11806 = vpop.f32.mrb[0].mxu0
  %v11807 = vpop.f32.mrb[0].mxu0
  %v11808 = vadd.f32 0.0, %v11807
  %v11809 = vpop.f32.mrb[0].mxu0
  %11810 = vmatprep.mubr.bf16.mxu0 %v11628
  %11811 = vmatmul.mubr.bf16.gmra.mrb[0].mxu0 %v11455
  %v11812 = vpop.f32.mrb[0].mxu0
  %v11813 = vadd.f32 0.0, %v11812
  %v11814 = vpop.f32.mrb[0].mxu0
  %v11815 = vpop.f32.mrb[0].mxu0
  %v11816 = vadd.f32 0.0, %v11815
  %v11817 = vpop.f32.mrb[0].mxu0
  %11818 = vmatprep.mubr.bf16.mxu0 %v11631
  %11819 = vmatmul.mubr.bf16.gmra.mrb[0].mxu0 %v11457
  %v11820 = vpop.f32.mrb[0].mxu0
  %v11821 = vadd.f32 0.0, %v11820
  %v11822 = vpop.f32.mrb[0].mxu0
  %v11823 = vpop.f32.mrb[0].mxu0
  %v11824 = vadd.f32 0.0, %v11823
  %v11825 = vpop.f32.mrb[0].mxu0
  %11826 = vmatprep.mubr.bf16.mxu0 %v11634
  %11827 = vmatmul.mubr.bf16.gmra.mrb[0].mxu0 %v11459
  %v11828 = vpop.f32.mrb[0].mxu0
  %v11829 = vadd.f32 0.0, %v11828
  %v11830 = vpop.f32.mrb[0].mxu0
  %v11831 = vpop.f32.mrb[0].mxu0
  %v11832 = vadd.f32 0.0, %v11831
  %v11833 = vpop.f32.mrb[0].mxu0
  %11834 = vmatprep.mubr.bf16.mxu0 %v11637
  %11835 = vmatmul.mubr.bf16.gmra.mrb[0].mxu0 %v11461
  %v11836 = vpop.f32.mrb[0].mxu0
  %v11837 = vadd.f32 0.0, %v11836
  %v11838 = vpop.f32.mrb[0].mxu0
  %v11839 = vpop.f32.mrb[0].mxu0
  %v11840 = vadd.f32 0.0, %v11839
  %v11841 = vpop.f32.mrb[0].mxu0
  %11842 = vmatprep.mubr.bf16.mxu0 %v11640
  %11843 = vmatmul.mubr.bf16.gmra.mrb[0].mxu0 %v11463
  %v11844 = vpop.f32.mrb[0].mxu0
  %v11845 = vadd.f32 0.0, %v11844
  %v11846 = vpop.f32.mrb[0].mxu0
  %v11847 = vpop.f32.mrb[0].mxu0
  %v11848 = vadd.f32 0.0, %v11847
  %v11849 = vpop.f32.mrb[0].mxu0
  %11850 = vmatprep.mubr.bf16.mxu0 %v11643
  %11851 = vmatmul.mubr.bf16.gmra.mrb[0].mxu0 %v11465
  %v11852 = vpop.f32.mrb[0].mxu0
  %v11853 = vadd.f32 0.0, %v11852
  %v11854 = vpop.f32.mrb[0].mxu0
  %v11855 = vpop.f32.mrb[0].mxu0
  %v11856 = vadd.f32 0.0, %v11855
  %v11857 = vpop.f32.mrb[0].mxu0
  %11858 = vmatprep.mubr.bf16.mxu0 %v11646
  %11859 = vmatmul.mubr.bf16.gmra.mrb[0].mxu0 %v11467
  %v11860 = vpop.f32.mrb[0].mxu0
  %v11861 = vadd.f32 0.0, %v11860
  %v11862 = vpop.f32.mrb[0].mxu0
  %v11863 = vpop.f32.mrb[0].mxu0
  %v11864 = vadd.f32 0.0, %v11863
  %v11865 = vpop.f32.mrb[0].mxu0
  %11866 = vmatprep.mubr.bf16.mxu0 %v11649
  %11867 = vmatmul.mubr.bf16.gmra.mrb[0].mxu0 %v11469
  %v11868 = vpop.f32.mrb[0].mxu0
  %v11869 = vadd.f32 0.0, %v11868
  %v11870 = vpop.f32.mrb[0].mxu0
  %v11871 = vpop.f32.mrb[0].mxu0
  %v11872 = vadd.f32 0.0, %v11871
  %v11873 = vpop.f32.mrb[0].mxu0
  %11874 = vmatprep.mubr.bf16.mxu0 %v11652
  %11875 = vmatmul.mubr.bf16.gmra.mrb[0].mxu0 %v11471
  %v11876 = vpop.f32.mrb[0].mxu0
  %v11877 = vadd.f32 0.0, %v11876
  %v11878 = vpop.f32.mrb[0].mxu0
  %v11879 = vpop.f32.mrb[0].mxu0
  %v11880 = vadd.f32 0.0, %v11879
  %v11881 = vpop.f32.mrb[0].mxu0
  %11882 = vmatprep.mubr.bf16.mxu0 %v11655
  %11883 = vmatmul.mubr.bf16.gmra.mrb[0].mxu0 %v11473
  %v11884 = vpop.f32.mrb[0].mxu0
  %v11885 = vadd.f32 0.0, %v11884
  %v11886 = vpop.f32.mrb[0].mxu0
  %v11887 = vpop.f32.mrb[0].mxu0
  %v11888 = vadd.f32 0.0, %v11887
  %v11889 = vpop.f32.mrb[0].mxu0
  %11890 = vmatprep.mubr.bf16.mxu0 %v11658
  %11891 = vmatmul.mubr.bf16.gmra.mrb[0].mxu0 %v11475
  %v11892 = vpop.f32.mrb[0].mxu0
  %v11893 = vadd.f32 0.0, %v11892
  %v11894 = vpop.f32.mrb[0].mxu0
  %v11895 = vpop.f32.mrb[0].mxu0
  %v11896 = vadd.f32 0.0, %v11895
  %v11897 = vpop.f32.mrb[0].mxu0
  %11898 = vmatprep.mubr.bf16.mxu0 %v11661
  %11899 = vmatmul.mubr.bf16.gmra.mrb[0].mxu0 %v11477
  %v11900 = vpop.f32.mrb[0].mxu0
  %v11901 = vadd.f32 0.0, %v11900
  %v11902 = vpop.f32.mrb[0].mxu0
  %v11903 = vpop.f32.mrb[0].mxu0
  %v11904 = vadd.f32 0.0, %v11903
  %v11905 = vpop.f32.mrb[0].mxu0
  %11906 = vmatprep.mubr.bf16.mxu0 %v11664
  %11907 = vmatmul.mubr.bf16.gmra.mrb[0].mxu0 %v11479
  %v11908 = vpop.f32.mrb[0].mxu0
  %v11909 = vadd.f32 0.0, %v11908
  %v11910 = vpop.f32.mrb[0].mxu0
  %v11911 = vpop.f32.mrb[0].mxu0
  %v11912 = vadd.f32 0.0, %v11911
  %v11913 = vpop.f32.mrb[0].mxu0
  %11914 = vmatprep.mubr.bf16.mxu0 %v11667
  %11915 = vmatmul.mubr.bf16.gmra.mrb[0].mxu0 %v11481
  %v11916 = vpop.f32.mrb[0].mxu0
  %v11917 = vadd.f32 0.0, %v11916
  %v11918 = vpop.f32.mrb[0].mxu0
  %v11919 = vpop.f32.mrb[0].mxu0
  %v11920 = vadd.f32 0.0, %v11919
  %v11921 = vpop.f32.mrb[0].mxu0
  %11922 = vmatprep.mubr.bf16.mxu0 %v11670
  %11923 = vmatmul.mubr.bf16.gmra.mrb[0].mxu0 %v11483
  %v11924 = vpop.f32.mrb[0].mxu0
  %v11925 = vadd.f32 0.0, %v11924
  %v11926 = vpop.f32.mrb[0].mxu0
  %v11927 = vpop.f32.mrb[0].mxu0
  %v11928 = vadd.f32 0.0, %v11927
  %v11929 = vpop.f32.mrb[0].mxu0
  %11930 = vmatprep.mubr.bf16.mxu0 %v11673
  %11931 = vmatmul.mubr.bf16.gmra.mrb[0].mxu0 %v11485
  %v11932 = vpop.f32.mrb[0].mxu0
  %v11933 = vadd.f32 0.0, %v11932
  %v11934 = vpop.f32.mrb[0].mxu0
  %v11935 = vpop.f32.mrb[0].mxu0
  %v11936 = vadd.f32 0.0, %v11935
  %v11937 = vpop.f32.mrb[0].mxu0
  %11938 = vmatprep.mubr.bf16.mxu0 %v11676
  %11939 = vmatmul.mubr.bf16.gmra.mrb[0].mxu0 %v11487
  %v11940 = vpop.f32.mrb[0].mxu0
  %v11941 = vadd.f32 0.0, %v11940
  %v11942 = vpop.f32.mrb[0].mxu0
  %v11943 = vpop.f32.mrb[0].mxu0
  %v11944 = vadd.f32 0.0, %v11943
  %v11945 = vpop.f32.mrb[0].mxu0
  %11946 = vmatprep.mubr.bf16.mxu0 %v11679
  %11947 = vmatmul.mubr.bf16.gmra.mrb[0].mxu0 %v11489
  %v11948 = vpop.f32.mrb[0].mxu0
  %v11949 = vadd.f32 0.0, %v11948
  %v11950 = vpop.f32.mrb[0].mxu0
  %v11951 = vpop.f32.mrb[0].mxu0
  %v11952 = vadd.f32 0.0, %v11951
  %v11953 = vpop.f32.mrb[0].mxu0
  %11954 = vmatprep.mubr.bf16.mxu0 %v11682
  %11955 = vmatmul.mubr.bf16.gmra.mrb[0].mxu0 %v11491
  %v11956 = vpop.f32.mrb[0].mxu0
  %v11957 = vadd.f32 0.0, %v11956
  %v11958 = vpop.f32.mrb[0].mxu0
  %v11959 = vpop.f32.mrb[0].mxu0
  %v11960 = vadd.f32 0.0, %v11959
  %v11961 = vpop.f32.mrb[0].mxu0
  %11962 = vmatprep.mubr.bf16.mxu0 %v11685
  %11963 = vmatmul.mubr.bf16.gmra.mrb[0].mxu0 %v11493
  %v11964 = vpop.f32.mrb[0].mxu0
  %v11965 = vadd.f32 0.0, %v11964
  %v11966 = vpop.f32.mrb[0].mxu0
  %v11967 = vpop.f32.mrb[0].mxu0
  %v11968 = vadd.f32 0.0, %v11967
  %v11969 = vpop.f32.mrb[0].mxu0
  %11970 = vmatprep.mubr.bf16.mxu0 %v11688
  %11971 = vmatmul.mubr.bf16.gmra.mrb[0].mxu0 %v11495
  %v11972 = vpop.f32.mrb[0].mxu0
  %v11973 = vadd.f32 0.0, %v11972
  %v11974 = vpop.f32.mrb[0].mxu0
  %v11975 = vpop.f32.mrb[0].mxu0
  %v11976 = vadd.f32 0.0, %v11975
  %v11977 = vpop.f32.mrb[0].mxu0
  %11978 = vdwg.mxu0
  %v11979 = vadd.f32 %v10666, %v11725
  %v11980 = vadd.f32 %v10669, %v11728
  %v11981 = vadd.f32 %v10674, %v11733
  %v11982 = vadd.f32 %v10677, %v11736
  %v11983 = vadd.f32 %v10682, %v11741
  %v11984 = vadd.f32 %v10685, %v11744
  %v11985 = vadd.f32 %v10690, %v11749
  %v11986 = vadd.f32 %v10693, %v11752
  %v11987 = vadd.f32 %v10698, %v11757
  %v11988 = vadd.f32 %v10701, %v11760
  %v11989 = vadd.f32 %v10706, %v11765
  %v11990 = vadd.f32 %v10709, %v11768
  %v11991 = vadd.f32 %v10714, %v11773
  %v11992 = vadd.f32 %v10717, %v11776
  %v11993 = vadd.f32 %v10722, %v11781
  %v11994 = vadd.f32 %v10725, %v11784
  %v11995 = vadd.f32 %v10730, %v11789
  %v11996 = vadd.f32 %v10733, %v11792
  %v11997 = vadd.f32 %v10738, %v11797
  %v11998 = vadd.f32 %v10741, %v11800
  %v11999 = vadd.f32 %v10746, %v11805
  %v12000 = vadd.f32 %v10749, %v11808
  %v12001 = vadd.f32 %v10754, %v11813
  %v12002 = vadd.f32 %v10757, %v11816
  %v12003 = vadd.f32 %v10762, %v11821
  %v12004 = vadd.f32 %v10765, %v11824
  %v12005 = vadd.f32 %v10770, %v11829
  %v12006 = vadd.f32 %v10773, %v11832
  %v12007 = vadd.f32 %v10778, %v11837
  %v12008 = vadd.f32 %v10781, %v11840
  %v12009 = vadd.f32 %v10786, %v11845
  %v12010 = vadd.f32 %v10789, %v11848
  %v12011 = vadd.f32 %v10794, %v11853
  %v12012 = vadd.f32 %v10797, %v11856
  %v12013 = vadd.f32 %v10802, %v11861
  %v12014 = vadd.f32 %v10805, %v11864
  %v12015 = vadd.f32 %v10810, %v11869
  %v12016 = vadd.f32 %v10813, %v11872
  %v12017 = vadd.f32 %v10818, %v11877
  %v12018 = vadd.f32 %v10821, %v11880
  %v12019 = vadd.f32 %v10826, %v11885
  %v12020 = vadd.f32 %v10829, %v11888
  %v12021 = vadd.f32 %v10834, %v11893
  %v12022 = vadd.f32 %v10837, %v11896
  %v12023 = vadd.f32 %v10842, %v11901
  %v12024 = vadd.f32 %v10845, %v11904
  %v12025 = vadd.f32 %v10850, %v11909
  %v12026 = vadd.f32 %v10853, %v11912
  %v12027 = vadd.f32 %v10858, %v11917
  %v12028 = vadd.f32 %v10861, %v11920
  %v12029 = vadd.f32 %v10866, %v11925
  %v12030 = vadd.f32 %v10869, %v11928
  %v12031 = vadd.f32 %v10874, %v11933
  %v12032 = vadd.f32 %v10877, %v11936
  %v12033 = vadd.f32 %v10882, %v11941
  %v12034 = vadd.f32 %v10885, %v11944
  %v12035 = vadd.f32 %v10890, %v11949
  %v12036 = vadd.f32 %v10893, %v11952
  %v12037 = vadd.f32 %v10898, %v11957
  %v12038 = vadd.f32 %v10901, %v11960
  %v12039 = vadd.f32 %v10906, %v11965
  %v12040 = vadd.f32 %v10909, %v11968
  %v12041 = vadd.f32 %v10914, %v11973
  %v12042 = vadd.f32 %v10917, %v11976
  %v12043 = vld [vmem:[%s12] sm:$0x1]
  %v12045 = vlaneseq
  %v12046 = vshrl.u32 %v12045, 7
  %v12047 = vsub.s32 0, %v12046
  %v12048 = vrot.slane %v12043, %v12047
  %v12050 = vadd.f32 %v11979, %v12048
  %v12051 = vadd.f32 %v11980, %v12048
  %v12052 = vadd.f32 %v11981, %v12048
  %v12053 = vadd.f32 %v11982, %v12048
  %v12054 = vadd.f32 %v11983, %v12048
  %v12055 = vadd.f32 %v11984, %v12048
  %v12056 = vadd.f32 %v11985, %v12048
  %v12057 = vadd.f32 %v11986, %v12048
  %v12058 = vadd.f32 %v11987, %v12048
  %v12059 = vadd.f32 %v11988, %v12048
  %v12060 = vadd.f32 %v11989, %v12048
  %v12061 = vadd.f32 %v11990, %v12048
  %v12062 = vadd.f32 %v11991, %v12048
  %v12063 = vadd.f32 %v11992, %v12048
  %v12064 = vadd.f32 %v11993, %v12048
  %v12065 = vadd.f32 %v11994, %v12048
  %v12066 = vadd.f32 %v11995, %v12048
  %v12067 = vadd.f32 %v11996, %v12048
  %v12068 = vadd.f32 %v11997, %v12048
  %v12069 = vadd.f32 %v11998, %v12048
  %v12070 = vadd.f32 %v11999, %v12048
  %v12071 = vadd.f32 %v12000, %v12048
  %v12072 = vadd.f32 %v12001, %v12048
  %v12073 = vadd.f32 %v12002, %v12048
  %v12074 = vadd.f32 %v12003, %v12048
  %v12075 = vadd.f32 %v12004, %v12048
  %v12076 = vadd.f32 %v12005, %v12048
  %v12077 = vadd.f32 %v12006, %v12048
  %v12078 = vadd.f32 %v12007, %v12048
  %v12079 = vadd.f32 %v12008, %v12048
  %v12080 = vadd.f32 %v12009, %v12048
  %v12081 = vadd.f32 %v12010, %v12048
  %v12082 = vadd.f32 %v12011, %v12048
  %v12083 = vadd.f32 %v12012, %v12048
  %v12084 = vadd.f32 %v12013, %v12048
  %v12085 = vadd.f32 %v12014, %v12048
  %v12086 = vadd.f32 %v12015, %v12048
  %v12087 = vadd.f32 %v12016, %v12048
  %v12088 = vadd.f32 %v12017, %v12048
  %v12089 = vadd.f32 %v12018, %v12048
  %v12090 = vadd.f32 %v12019, %v12048
  %v12091 = vadd.f32 %v12020, %v12048
  %v12092 = vadd.f32 %v12021, %v12048
  %v12093 = vadd.f32 %v12022, %v12048
  %v12094 = vadd.f32 %v12023, %v12048
  %v12095 = vadd.f32 %v12024, %v12048
  %v12096 = vadd.f32 %v12025, %v12048
  %v12097 = vadd.f32 %v12026, %v12048
  %v12098 = vadd.f32 %v12027, %v12048
  %v12099 = vadd.f32 %v12028, %v12048
  %v12100 = vadd.f32 %v12029, %v12048
  %v12101 = vadd.f32 %v12030, %v12048
  %v12102 = vadd.f32 %v12031, %v12048
  %v12103 = vadd.f32 %v12032, %v12048
  %v12104 = vadd.f32 %v12033, %v12048
  %v12105 = vadd.f32 %v12034, %v12048
  %v12106 = vadd.f32 %v12035, %v12048
  %v12107 = vadd.f32 %v12036, %v12048
  %v12108 = vadd.f32 %v12037, %v12048
  %v12109 = vadd.f32 %v12038, %v12048
  %v12110 = vadd.f32 %v12039, %v12048
  %v12111 = vadd.f32 %v12040, %v12048
  %v12112 = vadd.f32 %v12041, %v12048
  %v12113 = vadd.f32 %v12042, %v12048
  %v12114 = vtanh.pop %v12050
  %v12115 = vtanh.pop %v12051
  %v12116 = vtanh.pop %v12052
  %v12117 = vtanh.pop %v12053
  %v12118 = vtanh.pop %v12054
  %v12119 = vtanh.pop %v12055
  %v12120 = vtanh.pop %v12056
  %v12121 = vtanh.pop %v12057
  %v12122 = vtanh.pop %v12058
  %v12123 = vtanh.pop %v12059
  %v12124 = vtanh.pop %v12060
  %v12125 = vtanh.pop %v12061
  %v12126 = vtanh.pop %v12062
  %v12127 = vtanh.pop %v12063
  %v12128 = vtanh.pop %v12064
  %v12129 = vtanh.pop %v12065
  %v12130 = vtanh.pop %v12066
  %v12131 = vtanh.pop %v12067
  %v12132 = vtanh.pop %v12068
  %v12133 = vtanh.pop %v12069
  %v12134 = vtanh.pop %v12070
  %v12135 = vtanh.pop %v12071
  %v12136 = vtanh.pop %v12072
  %v12137 = vtanh.pop %v12073
  %v12138 = vtanh.pop %v12074
  %v12139 = vtanh.pop %v12075
  %v12140 = vtanh.pop %v12076
  %v12141 = vtanh.pop %v12077
  %v12142 = vtanh.pop %v12078
  %v12143 = vtanh.pop %v12079
  %v12144 = vtanh.pop %v12080
  %v12145 = vtanh.pop %v12081
  %v12146 = vtanh.pop %v12082
  %v12147 = vtanh.pop %v12083
  %v12148 = vtanh.pop %v12084
  %v12149 = vtanh.pop %v12085
  %v12150 = vtanh.pop %v12086
  %v12151 = vtanh.pop %v12087
  %v12152 = vtanh.pop %v12088
  %v12153 = vtanh.pop %v12089
  %v12154 = vtanh.pop %v12090
  %v12155 = vtanh.pop %v12091
  %v12156 = vtanh.pop %v12092
  %v12157 = vtanh.pop %v12093
  %v12158 = vtanh.pop %v12094
  %v12159 = vtanh.pop %v12095
  %v12160 = vtanh.pop %v12096
  %v12161 = vtanh.pop %v12097
  %v12162 = vtanh.pop %v12098
  %v12163 = vtanh.pop %v12099
  %v12164 = vtanh.pop %v12100
  %v12165 = vtanh.pop %v12101
  %v12166 = vtanh.pop %v12102
  %v12167 = vtanh.pop %v12103
  %v12168 = vtanh.pop %v12104
  %v12169 = vtanh.pop %v12105
  %v12170 = vtanh.pop %v12106
  %v12171 = vtanh.pop %v12107
  %v12172 = vtanh.pop %v12108
  %v12173 = vtanh.pop %v12109
  %v12174 = vtanh.pop %v12110
  %v12175 = vtanh.pop %v12111
  %v12176 = vtanh.pop %v12112
  %v12177 = vtanh.pop %v12113
  %v12178 = vadd.f32 %v12114, %v12115
  %v12179 = vadd.f32 %v12178, %v12116
  %v12180 = vadd.f32 %v12179, %v12117
  %v12181 = vadd.f32 %v12180, %v12118
  %v12182 = vadd.f32 %v12181, %v12119
  %v12183 = vadd.f32 %v12182, %v12120
  %v12184 = vadd.f32 %v12183, %v12121
  %v12185 = vadd.f32 %v12184, %v12122
  %v12186 = vadd.f32 %v12185, %v12123
  %v12187 = vadd.f32 %v12186, %v12124
  %v12188 = vadd.f32 %v12187, %v12125
  %v12189 = vadd.f32 %v12188, %v12126
  %v12190 = vadd.f32 %v12189, %v12127
  %v12191 = vadd.f32 %v12190, %v12128
  %v12192 = vadd.f32 %v12191, %v12129
  %v12193 = vadd.f32 %v12192, %v12130
  %v12194 = vadd.f32 %v12193, %v12131
  %v12195 = vadd.f32 %v12194, %v12132
  %v12196 = vadd.f32 %v12195, %v12133
  %v12197 = vadd.f32 %v12196, %v12134
  %v12198 = vadd.f32 %v12197, %v12135
  %v12199 = vadd.f32 %v12198, %v12136
  %v12200 = vadd.f32 %v12199, %v12137
  %v12201 = vadd.f32 %v12200, %v12138
  %v12202 = vadd.f32 %v12201, %v12139
  %v12203 = vadd.f32 %v12202, %v12140
  %v12204 = vadd.f32 %v12203, %v12141
  %v12205 = vadd.f32 %v12204, %v12142
  %v12206 = vadd.f32 %v12205, %v12143
  %v12207 = vadd.f32 %v12206, %v12144
  %v12208 = vadd.f32 %v12207, %v12145
  %v12209 = vadd.f32 %v12208, %v12146
  %v12210 = vadd.f32 %v12209, %v12147
  %v12211 = vadd.f32 %v12210, %v12148
  %v12212 = vadd.f32 %v12211, %v12149
  %v12213 = vadd.f32 %v12212, %v12150
  %v12214 = vadd.f32 %v12213, %v12151
  %v12215 = vadd.f32 %v12214, %v12152
  %v12216 = vadd.f32 %v12215, %v12153
  %v12217 = vadd.f32 %v12216, %v12154
  %v12218 = vadd.f32 %v12217, %v12155
  %v12219 = vadd.f32 %v12218, %v12156
  %v12220 = vadd.f32 %v12219, %v12157
  %v12221 = vadd.f32 %v12220, %v12158
  %v12222 = vadd.f32 %v12221, %v12159
  %v12223 = vadd.f32 %v12222, %v12160
  %v12224 = vadd.f32 %v12223, %v12161
  %v12225 = vadd.f32 %v12224, %v12162
  %v12226 = vadd.f32 %v12225, %v12163
  %v12227 = vadd.f32 %v12226, %v12164
  %v12228 = vadd.f32 %v12227, %v12165
  %v12229 = vadd.f32 %v12228, %v12166
  %v12230 = vadd.f32 %v12229, %v12167
  %v12231 = vadd.f32 %v12230, %v12168
  %v12232 = vadd.f32 %v12231, %v12169
  %v12233 = vadd.f32 %v12232, %v12170
  %v12234 = vadd.f32 %v12233, %v12171
  %v12235 = vadd.f32 %v12234, %v12172
  %v12236 = vadd.f32 %v12235, %v12173
  %v12237 = vadd.f32 %v12236, %v12174
  %v12238 = vadd.f32 %v12237, %v12175
  %v12239 = vadd.f32 %v12238, %v12176
  %v12240 = vadd.f32 %v12239, %v12177
  %v12241 = vrot.slane %v12240, 4
  %v12242 = vadd.f32 %v12240, %v12241
  %v12243 = vrot.slane %v12242, 2
  %v12244 = vadd.f32 %v12242, %v12243
  %v12245 = vrot.slane %v12244, 1
  %v12246 = vadd.f32 %v12244, %v12245
  %v12247 = vmul.f32 %v12246, 0.001953125
  %v12248 = vsub.f32 %v12114, %v12247
  %v12249 = vsub.f32 %v12115, %v12247
  %v12250 = vsub.f32 %v12116, %v12247
  %v12251 = vsub.f32 %v12117, %v12247
  %v12252 = vsub.f32 %v12118, %v12247
  %v12253 = vsub.f32 %v12119, %v12247
  %v12254 = vsub.f32 %v12120, %v12247
  %v12255 = vsub.f32 %v12121, %v12247
  %v12256 = vsub.f32 %v12122, %v12247
  %v12257 = vsub.f32 %v12123, %v12247
  %v12258 = vsub.f32 %v12124, %v12247
  %v12259 = vsub.f32 %v12125, %v12247
  %v12260 = vsub.f32 %v12126, %v12247
  %v12261 = vsub.f32 %v12127, %v12247
  %v12262 = vsub.f32 %v12128, %v12247
  %v12263 = vsub.f32 %v12129, %v12247
  %v12264 = vsub.f32 %v12130, %v12247
  %v12265 = vsub.f32 %v12131, %v12247
  %v12266 = vsub.f32 %v12132, %v12247
  %v12267 = vsub.f32 %v12133, %v12247
  %v12268 = vsub.f32 %v12134, %v12247
  %v12269 = vsub.f32 %v12135, %v12247
  %v12270 = vsub.f32 %v12136, %v12247
  %v12271 = vsub.f32 %v12137, %v12247
  %v12272 = vsub.f32 %v12138, %v12247
  %v12273 = vsub.f32 %v12139, %v12247
  %v12274 = vsub.f32 %v12140, %v12247
  %v12275 = vsub.f32 %v12141, %v12247
  %v12276 = vsub.f32 %v12142, %v12247
  %v12277 = vsub.f32 %v12143, %v12247
  %v12278 = vsub.f32 %v12144, %v12247
  %v12279 = vsub.f32 %v12145, %v12247
  %v12280 = vsub.f32 %v12146, %v12247
  %v12281 = vsub.f32 %v12147, %v12247
  %v12282 = vsub.f32 %v12148, %v12247
  %v12283 = vsub.f32 %v12149, %v12247
  %v12284 = vsub.f32 %v12150, %v12247
  %v12285 = vsub.f32 %v12151, %v12247
  %v12286 = vsub.f32 %v12152, %v12247
  %v12287 = vsub.f32 %v12153, %v12247
  %v12288 = vsub.f32 %v12154, %v12247
  %v12289 = vsub.f32 %v12155, %v12247
  %v12290 = vsub.f32 %v12156, %v12247
  %v12291 = vsub.f32 %v12157, %v12247
  %v12292 = vsub.f32 %v12158, %v12247
  %v12293 = vsub.f32 %v12159, %v12247
  %v12294 = vsub.f32 %v12160, %v12247
  %v12295 = vsub.f32 %v12161, %v12247
  %v12296 = vsub.f32 %v12162, %v12247
  %v12297 = vsub.f32 %v12163, %v12247
  %v12298 = vsub.f32 %v12164, %v12247
  %v12299 = vsub.f32 %v12165, %v12247
  %v12300 = vsub.f32 %v12166, %v12247
  %v12301 = vsub.f32 %v12167, %v12247
  %v12302 = vsub.f32 %v12168, %v12247
  %v12303 = vsub.f32 %v12169, %v12247
  %v12304 = vsub.f32 %v12170, %v12247
  %v12305 = vsub.f32 %v12171, %v12247
  %v12306 = vsub.f32 %v12172, %v12247
  %v12307 = vsub.f32 %v12173, %v12247
  %v12308 = vsub.f32 %v12174, %v12247
  %v12309 = vsub.f32 %v12175, %v12247
  %v12310 = vsub.f32 %v12176, %v12247
  %v12311 = vsub.f32 %v12177, %v12247
  %v12312 = vmul.f32 %v12248, %v12248
  %v12313 = vmul.f32 %v12249, %v12249
  %v12314 = vmul.f32 %v12250, %v12250
  %v12315 = vmul.f32 %v12251, %v12251
  %v12316 = vmul.f32 %v12252, %v12252
  %v12317 = vmul.f32 %v12253, %v12253
  %v12318 = vmul.f32 %v12254, %v12254
  %v12319 = vmul.f32 %v12255, %v12255
  %v12320 = vmul.f32 %v12256, %v12256
  %v12321 = vmul.f32 %v12257, %v12257
  %v12322 = vmul.f32 %v12258, %v12258
  %v12323 = vmul.f32 %v12259, %v12259
  %v12324 = vmul.f32 %v12260, %v12260
  %v12325 = vmul.f32 %v12261, %v12261
  %v12326 = vmul.f32 %v12262, %v12262
  %v12327 = vmul.f32 %v12263, %v12263
  %v12328 = vmul.f32 %v12264, %v12264
  %v12329 = vmul.f32 %v12265, %v12265
  %v12330 = vmul.f32 %v12266, %v12266
  %v12331 = vmul.f32 %v12267, %v12267
  %v12332 = vmul.f32 %v12268, %v12268
  %v12333 = vmul.f32 %v12269, %v12269
  %v12334 = vmul.f32 %v12270, %v12270
  %v12335 = vmul.f32 %v12271, %v12271
  %v12336 = vmul.f32 %v12272, %v12272
  %v12337 = vmul.f32 %v12273, %v12273
  %v12338 = vmul.f32 %v12274, %v12274
  %v12339 = vmul.f32 %v12275, %v12275
  %v12340 = vmul.f32 %v12276, %v12276
  %v12341 = vmul.f32 %v12277, %v12277
  %v12342 = vmul.f32 %v12278, %v12278
  %v12343 = vmul.f32 %v12279, %v12279
  %v12344 = vmul.f32 %v12280, %v12280
  %v12345 = vmul.f32 %v12281, %v12281
  %v12346 = vmul.f32 %v12282, %v12282
  %v12347 = vmul.f32 %v12283, %v12283
  %v12348 = vmul.f32 %v12284, %v12284
  %v12349 = vmul.f32 %v12285, %v12285
  %v12350 = vmul.f32 %v12286, %v12286
  %v12351 = vmul.f32 %v12287, %v12287
  %v12352 = vmul.f32 %v12288, %v12288
  %v12353 = vmul.f32 %v12289, %v12289
  %v12354 = vmul.f32 %v12290, %v12290
  %v12355 = vmul.f32 %v12291, %v12291
  %v12356 = vmul.f32 %v12292, %v12292
  %v12357 = vmul.f32 %v12293, %v12293
  %v12358 = vmul.f32 %v12294, %v12294
  %v12359 = vmul.f32 %v12295, %v12295
  %v12360 = vmul.f32 %v12296, %v12296
  %v12361 = vmul.f32 %v12297, %v12297
  %v12362 = vmul.f32 %v12298, %v12298
  %v12363 = vmul.f32 %v12299, %v12299
  %v12364 = vmul.f32 %v12300, %v12300
  %v12365 = vmul.f32 %v12301, %v12301
  %v12366 = vmul.f32 %v12302, %v12302
  %v12367 = vmul.f32 %v12303, %v12303
  %v12368 = vmul.f32 %v12304, %v12304
  %v12369 = vmul.f32 %v12305, %v12305
  %v12370 = vmul.f32 %v12306, %v12306
  %v12371 = vmul.f32 %v12307, %v12307
  %v12372 = vmul.f32 %v12308, %v12308
  %v12373 = vmul.f32 %v12309, %v12309
  %v12374 = vmul.f32 %v12310, %v12310
  %v12375 = vmul.f32 %v12311, %v12311
  %v12376 = vadd.f32 %v12312, %v12313
  %v12377 = vadd.f32 %v12376, %v12314
  %v12378 = vadd.f32 %v12377, %v12315
  %v12379 = vadd.f32 %v12378, %v12316
  %v12380 = vadd.f32 %v12379, %v12317
  %v12381 = vadd.f32 %v12380, %v12318
  %v12382 = vadd.f32 %v12381, %v12319
  %v12383 = vadd.f32 %v12382, %v12320
  %v12384 = vadd.f32 %v12383, %v12321
  %v12385 = vadd.f32 %v12384, %v12322
  %v12386 = vadd.f32 %v12385, %v12323
  %v12387 = vadd.f32 %v12386, %v12324
  %v12388 = vadd.f32 %v12387, %v12325
  %v12389 = vadd.f32 %v12388, %v12326
  %v12390 = vadd.f32 %v12389, %v12327
  %v12391 = vadd.f32 %v12390, %v12328
  %v12392 = vadd.f32 %v12391, %v12329
  %v12393 = vadd.f32 %v12392, %v12330
  %v12394 = vadd.f32 %v12393, %v12331
  %v12395 = vadd.f32 %v12394, %v12332
  %v12396 = vadd.f32 %v12395, %v12333
  %v12397 = vadd.f32 %v12396, %v12334
  %v12398 = vadd.f32 %v12397, %v12335
  %v12399 = vadd.f32 %v12398, %v12336
  %v12400 = vadd.f32 %v12399, %v12337
  %v12401 = vadd.f32 %v12400, %v12338
  %v12402 = vadd.f32 %v12401, %v12339
  %v12403 = vadd.f32 %v12402, %v12340
  %v12404 = vadd.f32 %v12403, %v12341
  %v12405 = vadd.f32 %v12404, %v12342
  %v12406 = vadd.f32 %v12405, %v12343
  %v12407 = vadd.f32 %v12406, %v12344
  %v12408 = vadd.f32 %v12407, %v12345
  %v12409 = vadd.f32 %v12408, %v12346
  %v12410 = vadd.f32 %v12409, %v12347
  %v12411 = vadd.f32 %v12410, %v12348
  %v12412 = vadd.f32 %v12411, %v12349
  %v12413 = vadd.f32 %v12412, %v12350
  %v12414 = vadd.f32 %v12413, %v12351
  %v12415 = vadd.f32 %v12414, %v12352
  %v12416 = vadd.f32 %v12415, %v12353
  %v12417 = vadd.f32 %v12416, %v12354
  %v12418 = vadd.f32 %v12417, %v12355
  %v12419 = vadd.f32 %v12418, %v12356
  %v12420 = vadd.f32 %v12419, %v12357
  %v12421 = vadd.f32 %v12420, %v12358
  %v12422 = vadd.f32 %v12421, %v12359
  %v12423 = vadd.f32 %v12422, %v12360
  %v12424 = vadd.f32 %v12423, %v12361
  %v12425 = vadd.f32 %v12424, %v12362
  %v12426 = vadd.f32 %v12425, %v12363
  %v12427 = vadd.f32 %v12426, %v12364
  %v12428 = vadd.f32 %v12427, %v12365
  %v12429 = vadd.f32 %v12428, %v12366
  %v12430 = vadd.f32 %v12429, %v12367
  %v12431 = vadd.f32 %v12430, %v12368
  %v12432 = vadd.f32 %v12431, %v12369
  %v12433 = vadd.f32 %v12432, %v12370
  %v12434 = vadd.f32 %v12433, %v12371
  %v12435 = vadd.f32 %v12434, %v12372
  %v12436 = vadd.f32 %v12435, %v12373
  %v12437 = vadd.f32 %v12436, %v12374
  %v12438 = vadd.f32 %v12437, %v12375
  %v12439 = vrot.slane %v12438, 4
  %v12440 = vadd.f32 %v12438, %v12439
  %v12441 = vrot.slane %v12440, 2
  %v12442 = vadd.f32 %v12440, %v12441
  %v12443 = vrot.slane %v12442, 1
  %v12444 = vadd.f32 %v12442, %v12443
  %v12445 = vmul.f32 %v12444, 0.001953125
  %v12446 = vadd.f32 %v12445, 1e-05
  %v12447 = vrsqrt.pop %v12446
  %v12448 = vmul.f32 %v12248, %v12447
  %v12449 = vmul.f32 %v12249, %v12447
  %v12450 = vmul.f32 %v12250, %v12447
  %v12451 = vmul.f32 %v12251, %v12447
  %v12452 = vmul.f32 %v12252, %v12447
  %v12453 = vmul.f32 %v12253, %v12447
  %v12454 = vmul.f32 %v12254, %v12447
  %v12455 = vmul.f32 %v12255, %v12447
  %v12456 = vmul.f32 %v12256, %v12447
  %v12457 = vmul.f32 %v12257, %v12447
  %v12458 = vmul.f32 %v12258, %v12447
  %v12459 = vmul.f32 %v12259, %v12447
  %v12460 = vmul.f32 %v12260, %v12447
  %v12461 = vmul.f32 %v12261, %v12447
  %v12462 = vmul.f32 %v12262, %v12447
  %v12463 = vmul.f32 %v12263, %v12447
  %v12464 = vmul.f32 %v12264, %v12447
  %v12465 = vmul.f32 %v12265, %v12447
  %v12466 = vmul.f32 %v12266, %v12447
  %v12467 = vmul.f32 %v12267, %v12447
  %v12468 = vmul.f32 %v12268, %v12447
  %v12469 = vmul.f32 %v12269, %v12447
  %v12470 = vmul.f32 %v12270, %v12447
  %v12471 = vmul.f32 %v12271, %v12447
  %v12472 = vmul.f32 %v12272, %v12447
  %v12473 = vmul.f32 %v12273, %v12447
  %v12474 = vmul.f32 %v12274, %v12447
  %v12475 = vmul.f32 %v12275, %v12447
  %v12476 = vmul.f32 %v12276, %v12447
  %v12477 = vmul.f32 %v12277, %v12447
  %v12478 = vmul.f32 %v12278, %v12447
  %v12479 = vmul.f32 %v12279, %v12447
  %v12480 = vmul.f32 %v12280, %v12447
  %v12481 = vmul.f32 %v12281, %v12447
  %v12482 = vmul.f32 %v12282, %v12447
  %v12483 = vmul.f32 %v12283, %v12447
  %v12484 = vmul.f32 %v12284, %v12447
  %v12485 = vmul.f32 %v12285, %v12447
  %v12486 = vmul.f32 %v12286, %v12447
  %v12487 = vmul.f32 %v12287, %v12447
  %v12488 = vmul.f32 %v12288, %v12447
  %v12489 = vmul.f32 %v12289, %v12447
  %v12490 = vmul.f32 %v12290, %v12447
  %v12491 = vmul.f32 %v12291, %v12447
  %v12492 = vmul.f32 %v12292, %v12447
  %v12493 = vmul.f32 %v12293, %v12447
  %v12494 = vmul.f32 %v12294, %v12447
  %v12495 = vmul.f32 %v12295, %v12447
  %v12496 = vmul.f32 %v12296, %v12447
  %v12497 = vmul.f32 %v12297, %v12447
  %v12498 = vmul.f32 %v12298, %v12447
  %v12499 = vmul.f32 %v12299, %v12447
  %v12500 = vmul.f32 %v12300, %v12447
  %v12501 = vmul.f32 %v12301, %v12447
  %v12502 = vmul.f32 %v12302, %v12447
  %v12503 = vmul.f32 %v12303, %v12447
  %v12504 = vmul.f32 %v12304, %v12447
  %v12505 = vmul.f32 %v12305, %v12447
  %v12506 = vmul.f32 %v12306, %v12447
  %v12507 = vmul.f32 %v12307, %v12447
  %v12508 = vmul.f32 %v12308, %v12447
  %v12509 = vmul.f32 %v12309, %v12447
  %v12510 = vmul.f32 %v12310, %v12447
  %v12511 = vmul.f32 %v12311, %v12447
  %12512 = vst [vmem:[%s13] sm:$0xff] %v12448
  %12513 = vst [vmem:[%s13 + $0x8] sm:$0xff] %v12449
  %12514 = vst [vmem:[%s13 + $0x10] sm:$0xff] %v12450
  %12515 = vst [vmem:[%s13 + $0x18] sm:$0xff] %v12451
  %12516 = vst [vmem:[%s13 + $0x20] sm:$0xff] %v12452
  %12517 = vst [vmem:[%s13 + $0x28] sm:$0xff] %v12453
  %12518 = vst [vmem:[%s13 + $0x30] sm:$0xff] %v12454
  %12519 = vst [vmem:[%s13 + $0x38] sm:$0xff] %v12455
  %12520 = vst [vmem:[%s13 + $0x40] sm:$0xff] %v12456
  %12521 = vst [vmem:[%s13 + $0x48] sm:$0xff] %v12457
  %12522 = vst [vmem:[%s13 + $0x50] sm:$0xff] %v12458
  %12523 = vst [vmem:[%s13 + $0x58] sm:$0xff] %v12459
  %12524 = vst [vmem:[%s13 + $0x60] sm:$0xff] %v12460
  %12525 = vst [vmem:[%s13 + $0x68] sm:$0xff] %v12461
  %12526 = vst [vmem:[%s13 + $0x70] sm:$0xff] %v12462
  %12527 = vst [vmem:[%s13 + $0x78] sm:$0xff] %v12463
  %12528 = vst [vmem:[%s13 + $0x80] sm:$0xff] %v12464
  %12529 = vst [vmem:[%s13 + $0x88] sm:$0xff] %v12465
  %12530 = vst [vmem:[%s13 + $0x90] sm:$0xff] %v12466
  %12531 = vst [vmem:[%s13 + $0x98] sm:$0xff] %v12467
  %12532 = vst [vmem:[%s13 + $0xa0] sm:$0xff] %v12468
  %12533 = vst [vmem:[%s13 + $0xa8] sm:$0xff] %v12469
  %12534 = vst [vmem:[%s13 + $0xb0] sm:$0xff] %v12470
  %12535 = vst [vmem:[%s13 + $0xb8] sm:$0xff] %v12471
  %12536 = vst [vmem:[%s13 + $0xc0] sm:$0xff] %v12472
  %12537 = vst [vmem:[%s13 + $0xc8] sm:$0xff] %v12473
  %12538 = vst [vmem:[%s13 + $0xd0] sm:$0xff] %v12474
  %12539 = vst [vmem:[%s13 + $0xd8] sm:$0xff] %v12475
  %12540 = vst [vmem:[%s13 + $0xe0] sm:$0xff] %v12476
  %12541 = vst [vmem:[%s13 + $0xe8] sm:$0xff] %v12477
  %12542 = vst [vmem:[%s13 + $0xf0] sm:$0xff] %v12478
  %12543 = vst [vmem:[%s13 + $0xf8] sm:$0xff] %v12479
  %12544 = vst [vmem:[%s13 + $0x100] sm:$0xff] %v12480
  %12545 = vst [vmem:[%s13 + $0x108] sm:$0xff] %v12481
  %12546 = vst [vmem:[%s13 + $0x110] sm:$0xff] %v12482
  %12547 = vst [vmem:[%s13 + $0x118] sm:$0xff] %v12483
  %12548 = vst [vmem:[%s13 + $0x120] sm:$0xff] %v12484
  %12549 = vst [vmem:[%s13 + $0x128] sm:$0xff] %v12485
  %12550 = vst [vmem:[%s13 + $0x130] sm:$0xff] %v12486
  %12551 = vst [vmem:[%s13 + $0x138] sm:$0xff] %v12487
  %12552 = vst [vmem:[%s13 + $0x140] sm:$0xff] %v12488
  %12553 = vst [vmem:[%s13 + $0x148] sm:$0xff] %v12489
  %12554 = vst [vmem:[%s13 + $0x150] sm:$0xff] %v12490
  %12555 = vst [vmem:[%s13 + $0x158] sm:$0xff] %v12491
  %12556 = vst [vmem:[%s13 + $0x160] sm:$0xff] %v12492
  %12557 = vst [vmem:[%s13 + $0x168] sm:$0xff] %v12493
  %12558 = vst [vmem:[%s13 + $0x170] sm:$0xff] %v12494
  %12559 = vst [vmem:[%s13 + $0x178] sm:$0xff] %v12495
  %12560 = vst [vmem:[%s13 + $0x180] sm:$0xff] %v12496
  %12561 = vst [vmem:[%s13 + $0x188] sm:$0xff] %v12497
  %12562 = vst [vmem:[%s13 + $0x190] sm:$0xff] %v12498
  %12563 = vst [vmem:[%s13 + $0x198] sm:$0xff] %v12499
  %12564 = vst [vmem:[%s13 + $0x1a0] sm:$0xff] %v12500
  %12565 = vst [vmem:[%s13 + $0x1a8] sm:$0xff] %v12501
  %12566 = vst [vmem:[%s13 + $0x1b0] sm:$0xff] %v12502
  %12567 = vst [vmem:[%s13 + $0x1b8] sm:$0xff] %v12503
  %12568 = vst [vmem:[%s13 + $0x1c0] sm:$0xff] %v12504
  %12569 = vst [vmem:[%s13 + $0x1c8] sm:$0xff] %v12505
  %12570 = vst [vmem:[%s13 + $0x1d0] sm:$0xff] %v12506
  %12571 = vst [vmem:[%s13 + $0x1d8] sm:$0xff] %v12507
  %12572 = vst [vmem:[%s13 + $0x1e0] sm:$0xff] %v12508
  %12573 = vst [vmem:[%s13 + $0x1e8] sm:$0xff] %v12509
  %12574 = vst [vmem:[%s13 + $0x1f0] sm:$0xff] %v12510
  %12575 = vst [vmem:[%s13 + $0x1f8] sm:$0xff] %v12511
  // Predicated region
  $region54: #{generator_forward.1} parent=0 // pred_check
    _
  $region55: #{generator_forward.1} parent=0 // pred_check_branch
    %12577 = sbr.rel (0) target = $region57
  $region56: #{generator_forward.1} parent=0 // pred_region
    _
  $region57: #{generator_forward.1} parent=0 // pred_fallthru
    _
  // Predicated region
  $region58: #{generator_forward.1} parent=0 // pred_check
    _
  $region59: #{generator_forward.1} parent=0 // pred_check_branch
    %12579 = sbr.rel (0) target = $region61
  $region60: #{generator_forward.1} parent=0 // pred_region
    _
  $region61: #{generator_forward.1} parent=0 // pred_fallthru
    _

</llo_original>
